<compile_context>
chip_gen: v6e
topology: v6e:2x2x1
jax: 0.10.0
libtpu: 0.0.40
codegen_flags: <defaults>
</compile_context>

<pallas_src>
from functools import partial

import numpy as np

import jax
import jax.numpy as jnp
from jax import lax
from jax.experimental import pallas as pl
from jax.experimental.pallas import tpu as pltpu


def _elu(v):
    # ELU(alpha=1); exp argument clamped so the discarded branch never overflows.
    return jnp.where(v > 0, v, jnp.exp(jnp.minimum(v, 0.0)) - 1.0)


# --------------------------------------------------------------------------
# Host-side structural constants (pure numpy)
# --------------------------------------------------------------------------
def _band_expand(W):
    """E[wp, w, kw] = 1 if wp == w + 2*kw  (wp over the padded width W+4)."""
    wp = np.arange(W + 4)[:, None, None]
    w = np.arange(W)[None, :, None]
    kw = np.arange(3)[None, None, :]
    return (wp == w + 2 * kw).astype(np.float32)


def _avgpool_mat_stacked():
    """(128, 36): folds the input row-pair sum, pairs columns, scales by 0.25
    and emits at a +2 column offset (zero column halo for conv1)."""
    w2 = np.arange(32)
    wpre = np.arange(64)
    sel = ((wpre[:, None] == 2 * w2[None, :]) |
           (wpre[:, None] == 2 * w2[None, :] + 1)).astype(np.float32)
    sel = np.pad(sel, ((0, 0), (2, 2))) * 0.25            # (64, 36)
    return np.concatenate([sel, sel], axis=0)             # (128, 36)


def _col_pool_merged(W, C):
    """(W*C, 2*(W//2+4)*C): [even | odd] column-pair selection, with the +2
    column halo for the next conv already applied."""
    w2 = np.arange(W // 2)
    wpre = np.arange(W)
    mats = []
    for dw in (0, 1):
        base = (wpre[:, None] == 2 * w2[None, :] + dw).astype(np.float32)
        base = np.pad(base, ((0, 0), (2, 2)))
        mats.append(np.kron(base, np.eye(C, dtype=np.float32)))
    return np.concatenate(mats, axis=1)


def _row_pool_place(bb, s_in, s_out):
    """Merged even/odd row selection + placement for the stacked layout.

    Shape (2*bb*s_out, bb*s_in - 4).  Row b*s_out+2+j of the even half (and
    the same row of the odd half, offset by bb*s_out) picks conv-output row
    b*s_in + 2j (resp. +2j+1) of image b; halo rows are all-zero, so
    max(even_half, odd_half) is already the fully padded destination slab.
    """
    h_out = s_out - 4
    half = bb * s_out
    m = np.zeros((2 * half, bb * s_in - 4), np.float32)
    for b in range(bb):
        for j in range(h_out):
            m[b * s_out + 2 + j, b * s_in + 2 * j] = 1.0
            m[half + b * s_out + 2 + j, b * s_in + 2 * j + 1] = 1.0
    return m


def _row_sum_select(bb, s_in, h):
    """(bb, bb*s_in - 4): sums the h valid conv5 output rows of each image."""
    m = np.zeros((bb, bb * s_in - 4), np.float32)
    for b in range(bb):
        m[b, b * s_in: b * s_in + h] = 1.0
    return m


# --------------------------------------------------------------------------
# Host-side weight packing (depends on params and the batch-block size)
# --------------------------------------------------------------------------
def _conv_tables(w_hwio, W, out_col_pad):
    """Banded per-kh matrices B[kh]: ((W+4)*Cin, Wout*Cout), bf16."""
    E = jnp.asarray(_band_expand(W))                        # (W+4, W, 3)
    core = jnp.einsum('pwk,hkio->hpiwo', E, w_hwio)         # (3, W+4, Cin, W, Cout)
    if out_col_pad:
        core = jnp.pad(core, ((0, 0), (0, 0), (0, 0), (2, 2), (0, 0)))
    _, wp, cin, wout, cout = core.shape
    return core.reshape(3, wp * cin, wout * cout).astype(jnp.bfloat16)


def _bias_row(b, W, out_col_pad):
    """Bias tiled to the lane-packed (1, W*Cout) f32 layout (zero halo lanes)."""
    cout = b.shape[-1]
    row = jnp.tile(b.reshape(1, cout), (1, W))
    if out_col_pad:
        row = jnp.pad(row, ((0, 0), (2 * cout, 2 * cout)))
    return row


def prepare_tables(params, bb):
    """Pack weights + structural matrices for a bb-image stacked grid step."""
    bf16 = jnp.bfloat16
    gap = np.kron(np.ones((4, 1), np.float32),
                  np.eye(32, dtype=np.float32)) / 16.0      # (128, 32)
    return (
        jnp.asarray(_avgpool_mat_stacked(), bf16),          # s0  (128, 36)
        _conv_tables(params['w1'], 32, True),                # B1  (3, 36, 288)
        _bias_row(params['b1'], 32, True),                   # bb1 (1, 288) f32
        _conv_tables(params['w2'], 32, False),               # B2  (3, 288, 256)
        _bias_row(params['b2'], 32, False),                  # bb2 (1, 256)
        jnp.asarray(_row_pool_place(bb, 36, 20), bf16),      # P2  (40bb, 36bb-4)
        jnp.asarray(_col_pool_merged(32, 8), bf16),          # C2  (256, 320)
        _conv_tables(params['w3'], 16, False),               # B3  (3, 160, 256)
        _bias_row(params['b3'], 16, False),                  # bb3 (1, 256)
        jnp.asarray(_row_pool_place(bb, 20, 12), bf16),      # P3  (24bb, 20bb-4)
        jnp.asarray(_col_pool_merged(16, 16), bf16),         # C3  (256, 384)
        _conv_tables(params['w4'], 8, False),                # B4  (3, 192, 128)
        _bias_row(params['b4'], 8, False),                   # bb4 (1, 128)
        jnp.asarray(_row_pool_place(bb, 12, 8), bf16),       # P4  (16bb, 12bb-4)
        jnp.asarray(_col_pool_merged(8, 16), bf16),          # C4  (128, 256)
        _conv_tables(params['w5'], 4, False),                # B5  (3, 128, 128)
        _bias_row(params['b5'], 4, False),                   # bb5 (1, 128)
        jnp.asarray(_row_sum_select(bb, 8, 4), bf16),        # RS  (bb, 8bb-4)
        jnp.asarray(gap, bf16),                              # gap (128, 32)
        params['fw1'].astype(bf16), params['fb1'],           # fc1: (32,10), (1,10) f32
        params['fw2'].astype(bf16), params['fb2'],           # fc2: (10,2),  (1,2)  f32
    )


# --------------------------------------------------------------------------
# Fused kernel: one grid step == bb images, everything resident in VMEM
# --------------------------------------------------------------------------
def _build_net_kernel(bb):
    f32, bf16 = jnp.float32, jnp.bfloat16
    S0, S1, S2, S3, S4 = 36, 36, 20, 12, 8   # per-image row strides (H + 4)

    def kernel(x_ref, s0_ref,
               b1_ref, bb1_ref,
               b2_ref, bb2_ref, p2_ref, c2_ref,
               b3_ref, bb3_ref, p3_ref, c3_ref,
               b4_ref, bb4_ref, p4_ref, c4_ref,
               b5_ref, bb5_ref,
               rs_ref, gap_ref,
               fw1_ref, fb1_ref, fw2_ref, fb2_ref,
               o_ref,
               a0, a1, a2, a3, a4):

        def conv(act_ref, bt_ref, bias_ref, rows_out):
            # 3 whole-slab shifted MXU matmuls (bf16 x bf16 -> f32 acc),
            # bias add + ELU fused on the VPU in f32.
            acc = jnp.dot(act_ref[pl.ds(0, rows_out), :], bt_ref[0],
                          preferred_element_type=f32)
            for kh in (1, 2):
                acc = acc + jnp.dot(act_ref[pl.ds(2 * kh, rows_out), :],
                                    bt_ref[kh], preferred_element_type=f32)
            return _elu(acc + bias_ref[...])

        def pool_into(dst_ref, conv_out, p_ref, c_ref, half_rows, half_lanes):
            # 2x2 max pool + placement into the next zero-haloed slab with
            # exactly two matmuls (merged even/odd rows, merged even/odd cols).
            v = conv_out.astype(bf16)
            r = jnp.dot(p_ref[...], v, preferred_element_type=f32)
            rm = jnp.maximum(r[0:half_rows], r[half_rows:2 * half_rows])
            rc = jnp.dot(rm.astype(bf16), c_ref[...], preferred_element_type=f32)
            dst_ref[...] = jnp.maximum(rc[:, 0:half_lanes],
                                       rc[:, half_lanes:2 * half_lanes]).astype(bf16)

        def zero_halo_rows(ref, stride):
            lanes = ref.shape[1]
            z2 = jnp.zeros((2, lanes), bf16)
            ref[pl.ds(0, 2), :] = z2
            ref[pl.ds(bb * stride - 2, 2), :] = z2
            for b in range(bb - 1):
                ref[pl.ds((b + 1) * stride - 2, 4), :] = jnp.zeros((4, lanes), bf16)

        # avg_pool2d 2x2 on the raw 64x64 input: the (128, 36) matmul folds the
        # row-pair sum, column pairing, 0.25 scale and the +2 column halo;
        # per-image chunks are placed into the padded a0 slab.
        zero_halo_rows(a0, S0)
        pooled = jnp.dot(x_ref[0].astype(bf16), s0_ref[...],
                         preferred_element_type=f32)                 # (bb*32, 36)
        for b in range(bb):
            a0[pl.ds(b * S0 + 2, 32), :] = pooled[b * 32:(b + 1) * 32, :].astype(bf16)

        # conv1 (1 -> 8): one shifted-slab pass; re-zero the halo rows the
        # full-slab store filled with (discarded) boundary rows.
        out1 = conv(a0, b1_ref, bb1_ref, bb * S0 - 4)                # (36bb-4, 288)
        a1[pl.ds(2, bb * S1 - 4), :] = out1.astype(bf16)
        zero_halo_rows(a1, S1)

        # conv2 (8 -> 8) + 2x2 max pool -> a2 (20bb, 160), fully padded.
        out2 = conv(a1, b2_ref, bb2_ref, bb * S1 - 4)                # (36bb-4, 256)
        pool_into(a2, out2, p2_ref, c2_ref, bb * S2, 160)

        # conv3 (8 -> 16) + 2x2 max pool -> a3 (12bb, 192).
        out3 = conv(a2, b3_ref, bb3_ref, bb * S2 - 4)                # (20bb-4, 256)
        pool_into(a3, out3, p3_ref, c3_ref, bb * S3, 192)

        # conv4 (16 -> 16) + 2x2 max pool -> a4 (8bb, 128).
        out4 = conv(a3, b4_ref, bb4_ref, bb * S3 - 4)                # (12bb-4, 128)
        pool_into(a4, out4, p4_ref, c4_ref, bb * S4, 128)

        # conv5 (16 -> 32) + head: per-image global average (row-sum select +
        # gap matmul), ELU, fc1, ELU, fc2.
        # TODO(synk): nn.Dropout(p=0.2) is identity at inference; no mask.
        out5 = conv(a4, b5_ref, bb5_ref, bb * S4 - 4)                # (8bb-4, 128)
        g = jnp.dot(rs_ref[...], out5.astype(bf16), preferred_element_type=f32)
        g = _elu(jnp.dot(g.astype(bf16), gap_ref[...],
                         preferred_element_type=f32))                # (bb, 32)
        h1 = _elu(jnp.dot(g.astype(bf16), fw1_ref[...],
                          preferred_element_type=f32) + fb1_ref[...])
        o_ref[0] = (jnp.dot(h1.astype(bf16), fw2_ref[...],
                            preferred_element_type=f32) + fb2_ref[...])

    return kernel


def _pick_block(n):
    # >= 2 grid steps (v7x megacore), <= 8 stacked images (M up to ~288).
    return max(1, min(8, n // 2))


@partial(jax.jit, static_argnames=("bb",))
def net_forward(x_nchw, tables, *, bb):
    n = x_nchw.shape[0]
    assert x_nchw.shape[1:] == (1, 64, 64)
    nb = -(-n // bb)                       # number of grid steps
    npad = nb * bb
    x = x_nchw.astype(jnp.float32)
    if npad != n:
        x = jnp.concatenate(
            [x, jnp.zeros((npad - n, 1, 64, 64), jnp.float32)], axis=0)
    # (npad,1,64,64) -> (nb, bb*32, 128): lane = (row&1)*64 + col, metadata only.
    xr = x.reshape(nb, bb * 32, 128)

    in_specs = [pl.BlockSpec((1, bb * 32, 128), lambda i: (i, 0, 0))]
    for t in tables:                       # grid-invariant, whole-array VMEM
        in_specs.append(pl.BlockSpec(t.shape, lambda i, _nd=t.ndim: (0,) * _nd))

    out = pl.pallas_call(
        _build_net_kernel(bb),
        out_shape=jax.ShapeDtypeStruct((nb, bb, 2), jnp.float32),
        grid=(nb,),
        in_specs=in_specs,
        out_specs=pl.BlockSpec((1, bb, 2), lambda i: (i, 0, 0)),
        scratch_shapes=[
            pltpu.VMEM((36 * bb, 36), jnp.bfloat16),    # a0: pooled input, padded
            pltpu.VMEM((36 * bb, 288), jnp.bfloat16),   # a1: conv1 out, padded
            pltpu.VMEM((20 * bb, 160), jnp.bfloat16),   # a2: pool(conv2), padded
            pltpu.VMEM((12 * bb, 192), jnp.bfloat16),   # a3: pool(conv3), padded
            pltpu.VMEM((8 * bb, 128), jnp.bfloat16),    # a4: pool(conv4), padded
        ],
        compiler_params=pltpu.CompilerParams(
            dimension_semantics=("parallel",)),
    )(xr, *tables)
    return out.reshape(npad, 2)[:n]


# --------------------------------------------------------------------------
# Parameters (matches the PyTorch init: xavier_uniform(gain=sqrt(2)), bias=0.1)
# --------------------------------------------------------------------------
def init_params(key):
    gain = 2.0 ** 0.5

    def xavier(k, shape, fan_in, fan_out):
        bound = gain * (6.0 / (fan_in + fan_out)) ** 0.5
        return jax.random.uniform(k, shape, jnp.float32, -bound, bound)

    ks = jax.random.split(key, 7)
    convs = [(1, 8), (8, 8), (8, 16), (16, 16), (16, 32)]
    params = {}
    for i, (cin, cout) in enumerate(convs):
        params[f"w{i + 1}"] = xavier(ks[i], (3, 3, cin, cout), cin * 9, cout * 9)
        params[f"b{i + 1}"] = jnp.full((1, cout), 0.1, jnp.float32)
    params["fw1"] = xavier(ks[5], (32, 10), 32, 10)
    params["fb1"] = jnp.full((1, 10), 0.1, jnp.float32)
    params["fw2"] = xavier(ks[6], (10, 2), 10, 2)
    params["fb2"] = jnp.full((1, 2), 0.1, jnp.float32)
    return params


# --------------------------------------------------------------------------
# Pure-JAX reference (for the correctness self-check)
# --------------------------------------------------------------------------
def reference_forward(x_nchw, params):
    x = jnp.transpose(x_nchw, (0, 2, 3, 1)).astype(jnp.float32)      # NHWC
    n, h, w, _ = x.shape
    x = x.reshape(n, h // 2, 2, w // 2, 2, 1).mean(axis=(2, 4))      # avg pool 2x2

    def conv(x, wgt, b):
        y = lax.conv_general_dilated(
            x, wgt, window_strides=(1, 1), padding=((2, 2), (2, 2)),
            rhs_dilation=(2, 2), dimension_numbers=('NHWC', 'HWIO', 'NHWC'),
            precision=jax.lax.Precision.HIGHEST)
        return _elu(y + b.reshape(1, 1, 1, -1))

    def maxpool(x):
        n_, h_, w_, c_ = x.shape
        return x.reshape(n_, h_ // 2, 2, w_ // 2, 2, c_).max(axis=(2, 4))

    x = conv(x, params['w1'], params['b1'])
    x = conv(x, params['w2'], params['b2']); x = maxpool(x)
    x = conv(x, params['w3'], params['b3']); x = maxpool(x)
    x = conv(x, params['w4'], params['b4']); x = maxpool(x)
    x = conv(x, params['w5'], params['b5'])
    g = _elu(x.mean(axis=(1, 2)))
    h1 = _elu(g @ params['fw1'] + params['fb1'])
    return h1 @ params['fw2'] + params['fb2']


if __name__ == "__main__":
    key = jax.random.PRNGKey(0)
    kx, kp = jax.random.split(key)
    n = 4
    x = jax.random.normal(kx, (n, 1, 64, 64), jnp.float32)   # NCHW like PyTorch
    params = init_params(kp)

    bb = _pick_block(n)                   # 2 stacked images/step, grid of 2 steps
    tables = prepare_tables(params, bb)

    out = net_forward(x, tables, bb=bb)
    jax.block_until_ready(out)
    assert out.shape == (n, 2)

    ref = reference_forward(x, params)
    np.testing.assert_allclose(np.asarray(out), np.asarray(ref),
                               rtol=5e-2, atol=5e-2)
    print("KERNEL_OK")
</pallas_src>

<mosaic_0001>
module attributes {stable_mosaic.version = 11 : i64} {
  func.func @kernel(%arg0: i32, %arg1: memref<1x64x128xf32, #tpu.memory_space<vmem>>, %arg2: memref<128x36xbf16, #tpu.memory_space<vmem>>, %arg3: memref<3x36x288xbf16, #tpu.memory_space<vmem>>, %arg4: memref<1x288xf32, #tpu.memory_space<vmem>>, %arg5: memref<3x288x256xbf16, #tpu.memory_space<vmem>>, %arg6: memref<1x256xf32, #tpu.memory_space<vmem>>, %arg7: memref<80x68xbf16, #tpu.memory_space<vmem>>, %arg8: memref<256x320xbf16, #tpu.memory_space<vmem>>, %arg9: memref<3x160x256xbf16, #tpu.memory_space<vmem>>, %arg10: memref<1x256xf32, #tpu.memory_space<vmem>>, %arg11: memref<48x36xbf16, #tpu.memory_space<vmem>>, %arg12: memref<256x384xbf16, #tpu.memory_space<vmem>>, %arg13: memref<3x192x128xbf16, #tpu.memory_space<vmem>>, %arg14: memref<1x128xf32, #tpu.memory_space<vmem>>, %arg15: memref<32x20xbf16, #tpu.memory_space<vmem>>, %arg16: memref<128x256xbf16, #tpu.memory_space<vmem>>, %arg17: memref<3x128x128xbf16, #tpu.memory_space<vmem>>, %arg18: memref<1x128xf32, #tpu.memory_space<vmem>>, %arg19: memref<2x12xbf16, #tpu.memory_space<vmem>>, %arg20: memref<128x32xbf16, #tpu.memory_space<vmem>>, %arg21: memref<32x10xbf16, #tpu.memory_space<vmem>>, %arg22: memref<1x10xf32, #tpu.memory_space<vmem>>, %arg23: memref<10x2xbf16, #tpu.memory_space<vmem>>, %arg24: memref<1x2xf32, #tpu.memory_space<vmem>>, %arg25: memref<1x2x2xf32, #tpu.memory_space<vmem>>, %arg26: memref<72x36xbf16, #tpu.memory_space<vmem>>, %arg27: memref<72x288xbf16, #tpu.memory_space<vmem>>, %arg28: memref<40x160xbf16, #tpu.memory_space<vmem>>, %arg29: memref<24x192xbf16, #tpu.memory_space<vmem>>, %arg30: memref<16x128xbf16, #tpu.memory_space<vmem>>) attributes {dimension_semantics = [#tpu.dimension_semantics<parallel>], iteration_bounds = array<i64: 2>, scalar_prefetch = 0 : i64, scratch_operands = 5 : i64, tpu.core_type = #tpu.core_type<tc>, window_params = [{transform_indices = @transform_0, window_bounds = array<i64: 1, 64, 128>}, {pipeline_mode = #tpu.pipeline_mode<synchronous>, transform_indices = @transform_1, window_bounds = array<i64: 128, 36>}, {pipeline_mode = #tpu.pipeline_mode<synchronous>, transform_indices = @transform_2, window_bounds = array<i64: 3, 36, 288>}, {pipeline_mode = #tpu.pipeline_mode<synchronous>, transform_indices = @transform_3, window_bounds = array<i64: 1, 288>}, {pipeline_mode = #tpu.pipeline_mode<synchronous>, transform_indices = @transform_4, window_bounds = array<i64: 3, 288, 256>}, {pipeline_mode = #tpu.pipeline_mode<synchronous>, transform_indices = @transform_5, window_bounds = array<i64: 1, 256>}, {pipeline_mode = #tpu.pipeline_mode<synchronous>, transform_indices = @transform_6, window_bounds = array<i64: 80, 68>}, {pipeline_mode = #tpu.pipeline_mode<synchronous>, transform_indices = @transform_7, window_bounds = array<i64: 256, 320>}, {pipeline_mode = #tpu.pipeline_mode<synchronous>, transform_indices = @transform_8, window_bounds = array<i64: 3, 160, 256>}, {pipeline_mode = #tpu.pipeline_mode<synchronous>, transform_indices = @transform_9, window_bounds = array<i64: 1, 256>}, {pipeline_mode = #tpu.pipeline_mode<synchronous>, transform_indices = @transform_10, window_bounds = array<i64: 48, 36>}, {pipeline_mode = #tpu.pipeline_mode<synchronous>, transform_indices = @transform_11, window_bounds = array<i64: 256, 384>}, {pipeline_mode = #tpu.pipeline_mode<synchronous>, transform_indices = @transform_12, window_bounds = array<i64: 3, 192, 128>}, {pipeline_mode = #tpu.pipeline_mode<synchronous>, transform_indices = @transform_13, window_bounds = array<i64: 1, 128>}, {pipeline_mode = #tpu.pipeline_mode<synchronous>, transform_indices = @transform_14, window_bounds = array<i64: 32, 20>}, {pipeline_mode = #tpu.pipeline_mode<synchronous>, transform_indices = @transform_15, window_bounds = array<i64: 128, 256>}, {pipeline_mode = #tpu.pipeline_mode<synchronous>, transform_indices = @transform_16, window_bounds = array<i64: 3, 128, 128>}, {pipeline_mode = #tpu.pipeline_mode<synchronous>, transform_indices = @transform_17, window_bounds = array<i64: 1, 128>}, {pipeline_mode = #tpu.pipeline_mode<synchronous>, transform_indices = @transform_18, window_bounds = array<i64: 2, 12>}, {pipeline_mode = #tpu.pipeline_mode<synchronous>, transform_indices = @transform_19, window_bounds = array<i64: 128, 32>}, {pipeline_mode = #tpu.pipeline_mode<synchronous>, transform_indices = @transform_20, window_bounds = array<i64: 32, 10>}, {pipeline_mode = #tpu.pipeline_mode<synchronous>, transform_indices = @transform_21, window_bounds = array<i64: 1, 10>}, {pipeline_mode = #tpu.pipeline_mode<synchronous>, transform_indices = @transform_22, window_bounds = array<i64: 10, 2>}, {pipeline_mode = #tpu.pipeline_mode<synchronous>, transform_indices = @transform_23, window_bounds = array<i64: 1, 2>}, {transform_indices = @transform_24, window_bounds = array<i64: 1, 2, 2>}]} {
    %cst = arith.constant 0.000000e+00 : bf16
    %0 = vector.broadcast %cst : bf16 to vector<2x36xbf16>
    %c0 = arith.constant 0 : index
    %c0_0 = arith.constant 0 : index
    %1 = vector.load %arg26[%c0, %c0_0] : memref<72x36xbf16, #tpu.memory_space<vmem>>, vector<2x36xbf16>
    tpu.vector_store %arg26[%c0, %c0_0], %0 {strides = array<i32>} : memref<72x36xbf16, #tpu.memory_space<vmem>>, vector<2x36xbf16>,
    %c70 = arith.constant 70 : index
    %c0_1 = arith.constant 0 : index
    %2 = vector.load %arg26[%c70, %c0_1] : memref<72x36xbf16, #tpu.memory_space<vmem>>, vector<2x36xbf16>
    tpu.vector_store %arg26[%c70, %c0_1], %0 {strides = array<i32>} : memref<72x36xbf16, #tpu.memory_space<vmem>>, vector<2x36xbf16>,
    %cst_2 = arith.constant 0.000000e+00 : bf16
    %3 = vector.broadcast %cst_2 : bf16 to vector<4x36xbf16>
    %c34 = arith.constant 34 : index
    %c0_3 = arith.constant 0 : index
    %4 = vector.load %arg26[%c34, %c0_3] : memref<72x36xbf16, #tpu.memory_space<vmem>>, vector<4x36xbf16>
    tpu.vector_store %arg26[%c34, %c0_3], %3 {strides = array<i32>} : memref<72x36xbf16, #tpu.memory_space<vmem>>, vector<4x36xbf16>,
    %c0_4 = arith.constant 0 : index
    %c0_5 = arith.constant 0 : index
    %c0_6 = arith.constant 0 : index
    %5 = vector.load %arg1[%c0_4, %c0_5, %c0_6] : memref<1x64x128xf32, #tpu.memory_space<vmem>>, vector<1x64x128xf32>
    %6 = vector.shape_cast %5 : vector<1x64x128xf32> to vector<64x128xf32>
    %7 = arith.truncf %6 : vector<64x128xf32> to vector<64x128xbf16>
    %c0_7 = arith.constant 0 : index
    %c0_8 = arith.constant 0 : index
    %8 = vector.load %arg2[%c0_7, %c0_8] : memref<128x36xbf16, #tpu.memory_space<vmem>>, vector<128x36xbf16>
    %cst_9 = arith.constant dense<0.000000e+00> : vector<64x36xf32>
    %9 = tpu.matmul %7, %8, %cst_9 {dimension_numbers = #tpu.dot_dimension_numbers<[1], [0], [0], [1], [0, 0, 1, 1], [], []>} : vector<64x128xbf16>, vector<128x36xbf16>, vector<64x36xf32> -> vector<64x36xf32>
    %10 = vector.extract_strided_slice %9 {offsets = [0, 0], sizes = [32, 36], strides = [1, 1]} : vector<64x36xf32> to vector<32x36xf32>
    %11 = arith.truncf %10 : vector<32x36xf32> to vector<32x36xbf16>
    %c2 = arith.constant 2 : index
    %c0_10 = arith.constant 0 : index
    %12 = vector.load %arg26[%c2, %c0_10] : memref<72x36xbf16, #tpu.memory_space<vmem>>, vector<32x36xbf16>
    tpu.vector_store %arg26[%c2, %c0_10], %11 {strides = array<i32>} : memref<72x36xbf16, #tpu.memory_space<vmem>>, vector<32x36xbf16>,
    %13 = vector.extract_strided_slice %9 {offsets = [32, 0], sizes = [32, 36], strides = [1, 1]} : vector<64x36xf32> to vector<32x36xf32>
    %14 = arith.truncf %13 : vector<32x36xf32> to vector<32x36xbf16>
    %c38 = arith.constant 38 : index
    %c0_11 = arith.constant 0 : index
    %15 = vector.load %arg26[%c38, %c0_11] : memref<72x36xbf16, #tpu.memory_space<vmem>>, vector<32x36xbf16>
    tpu.vector_store %arg26[%c38, %c0_11], %14 {strides = array<i32>} : memref<72x36xbf16, #tpu.memory_space<vmem>>, vector<32x36xbf16>,
    %c0_12 = arith.constant 0 : index
    %c0_13 = arith.constant 0 : index
    %16 = vector.load %arg26[%c0_12, %c0_13] : memref<72x36xbf16, #tpu.memory_space<vmem>>, vector<68x36xbf16>
    %c0_14 = arith.constant 0 : index
    %c0_15 = arith.constant 0 : index
    %c0_16 = arith.constant 0 : index
    %17 = vector.load %arg3[%c0_14, %c0_15, %c0_16] : memref<3x36x288xbf16, #tpu.memory_space<vmem>>, vector<1x36x288xbf16>
    %18 = vector.shape_cast %17 : vector<1x36x288xbf16> to vector<36x288xbf16>
    %cst_17 = arith.constant dense<0.000000e+00> : vector<68x288xf32>
    %19 = tpu.matmul %16, %18, %cst_17 {dimension_numbers = #tpu.dot_dimension_numbers<[1], [0], [0], [1], [0, 0, 1, 1], [], []>} : vector<68x36xbf16>, vector<36x288xbf16>, vector<68x288xf32> -> vector<68x288xf32>
    %c2_18 = arith.constant 2 : index
    %c0_19 = arith.constant 0 : index
    %20 = vector.load %arg26[%c2_18, %c0_19] : memref<72x36xbf16, #tpu.memory_space<vmem>>, vector<68x36xbf16>
    %c1 = arith.constant 1 : index
    %c0_20 = arith.constant 0 : index
    %c0_21 = arith.constant 0 : index
    %21 = vector.load %arg3[%c1, %c0_20, %c0_21] : memref<3x36x288xbf16, #tpu.memory_space<vmem>>, vector<1x36x288xbf16>
    %22 = vector.shape_cast %21 : vector<1x36x288xbf16> to vector<36x288xbf16>
    %cst_22 = arith.constant dense<0.000000e+00> : vector<68x288xf32>
    %23 = tpu.matmul %20, %22, %cst_22 {dimension_numbers = #tpu.dot_dimension_numbers<[1], [0], [0], [1], [0, 0, 1, 1], [], []>} : vector<68x36xbf16>, vector<36x288xbf16>, vector<68x288xf32> -> vector<68x288xf32>
    %24 = arith.addf %19, %23 : vector<68x288xf32>
    %c4 = arith.constant 4 : index
    %c0_23 = arith.constant 0 : index
    %25 = vector.load %arg26[%c4, %c0_23] : memref<72x36xbf16, #tpu.memory_space<vmem>>, vector<68x36xbf16>
    %c2_24 = arith.constant 2 : index
    %c0_25 = arith.constant 0 : index
    %c0_26 = arith.constant 0 : index
    %26 = vector.load %arg3[%c2_24, %c0_25, %c0_26] : memref<3x36x288xbf16, #tpu.memory_space<vmem>>, vector<1x36x288xbf16>
    %27 = vector.shape_cast %26 : vector<1x36x288xbf16> to vector<36x288xbf16>
    %cst_27 = arith.constant dense<0.000000e+00> : vector<68x288xf32>
    %28 = tpu.matmul %25, %27, %cst_27 {dimension_numbers = #tpu.dot_dimension_numbers<[1], [0], [0], [1], [0, 0, 1, 1], [], []>} : vector<68x36xbf16>, vector<36x288xbf16>, vector<68x288xf32> -> vector<68x288xf32>
    %29 = arith.addf %24, %28 : vector<68x288xf32>
    %c0_28 = arith.constant 0 : index
    %c0_29 = arith.constant 0 : index
    %30 = vector.load %arg4[%c0_28, %c0_29] : memref<1x288xf32, #tpu.memory_space<vmem>>, vector<1x288xf32>
    %31 = vector.broadcast %30 : vector<1x288xf32> to vector<68x288xf32>
    %32 = arith.addf %29, %31 : vector<68x288xf32>
    %cst_30 = arith.constant 0.000000e+00 : f32
    %33 = vector.broadcast %cst_30 : f32 to vector<68x288xf32>
    %34 = arith.cmpf ogt, %32, %33 : vector<68x288xf32>
    %cst_31 = arith.constant 0.000000e+00 : f32
    %35 = vector.broadcast %cst_31 : f32 to vector<68x288xf32>
    %36 = arith.minimumf %32, %35 : vector<68x288xf32>
    %37 = math.exp %36 : vector<68x288xf32>
    %cst_32 = arith.constant 1.000000e+00 : f32
    %38 = vector.broadcast %cst_32 : f32 to vector<68x288xf32>
    %39 = arith.subf %37, %38 : vector<68x288xf32>
    %40 = arith.select %34, %32, %39 : vector<68x288xi1>, vector<68x288xf32>
    %41 = arith.truncf %40 : vector<68x288xf32> to vector<68x288xbf16>
    %c2_33 = arith.constant 2 : index
    %c0_34 = arith.constant 0 : index
    %42 = vector.load %arg27[%c2_33, %c0_34] : memref<72x288xbf16, #tpu.memory_space<vmem>>, vector<68x288xbf16>
    tpu.vector_store %arg27[%c2_33, %c0_34], %41 {strides = array<i32>} : memref<72x288xbf16, #tpu.memory_space<vmem>>, vector<68x288xbf16>,
    %cst_35 = arith.constant 0.000000e+00 : bf16
    %43 = vector.broadcast %cst_35 : bf16 to vector<2x288xbf16>
    %c0_36 = arith.constant 0 : index
    %c0_37 = arith.constant 0 : index
    %44 = vector.load %arg27[%c0_36, %c0_37] : memref<72x288xbf16, #tpu.memory_space<vmem>>, vector<2x288xbf16>
    tpu.vector_store %arg27[%c0_36, %c0_37], %43 {strides = array<i32>} : memref<72x288xbf16, #tpu.memory_space<vmem>>, vector<2x288xbf16>,
    %c70_38 = arith.constant 70 : index
    %c0_39 = arith.constant 0 : index
    %45 = vector.load %arg27[%c70_38, %c0_39] : memref<72x288xbf16, #tpu.memory_space<vmem>>, vector<2x288xbf16>
    tpu.vector_store %arg27[%c70_38, %c0_39], %43 {strides = array<i32>} : memref<72x288xbf16, #tpu.memory_space<vmem>>, vector<2x288xbf16>,
    %cst_40 = arith.constant 0.000000e+00 : bf16
    %46 = vector.broadcast %cst_40 : bf16 to vector<4x288xbf16>
    %c34_41 = arith.constant 34 : index
    %c0_42 = arith.constant 0 : index
    %47 = vector.load %arg27[%c34_41, %c0_42] : memref<72x288xbf16, #tpu.memory_space<vmem>>, vector<4x288xbf16>
    tpu.vector_store %arg27[%c34_41, %c0_42], %46 {strides = array<i32>} : memref<72x288xbf16, #tpu.memory_space<vmem>>, vector<4x288xbf16>,
    %c0_43 = arith.constant 0 : index
    %c0_44 = arith.constant 0 : index
    %48 = vector.load %arg27[%c0_43, %c0_44] : memref<72x288xbf16, #tpu.memory_space<vmem>>, vector<68x288xbf16>
    %c0_45 = arith.constant 0 : index
    %c0_46 = arith.constant 0 : index
    %c0_47 = arith.constant 0 : index
    %49 = vector.load %arg5[%c0_45, %c0_46, %c0_47] : memref<3x288x256xbf16, #tpu.memory_space<vmem>>, vector<1x288x256xbf16>
    %50 = vector.shape_cast %49 : vector<1x288x256xbf16> to vector<288x256xbf16>
    %cst_48 = arith.constant dense<0.000000e+00> : vector<68x256xf32>
    %51 = tpu.matmul %48, %50, %cst_48 {dimension_numbers = #tpu.dot_dimension_numbers<[1], [0], [0], [1], [0, 0, 1, 1], [], []>} : vector<68x288xbf16>, vector<288x256xbf16>, vector<68x256xf32> -> vector<68x256xf32>
    %c2_49 = arith.constant 2 : index
    %c0_50 = arith.constant 0 : index
    %52 = vector.load %arg27[%c2_49, %c0_50] : memref<72x288xbf16, #tpu.memory_space<vmem>>, vector<68x288xbf16>
    %c1_51 = arith.constant 1 : index
    %c0_52 = arith.constant 0 : index
    %c0_53 = arith.constant 0 : index
    %53 = vector.load %arg5[%c1_51, %c0_52, %c0_53] : memref<3x288x256xbf16, #tpu.memory_space<vmem>>, vector<1x288x256xbf16>
    %54 = vector.shape_cast %53 : vector<1x288x256xbf16> to vector<288x256xbf16>
    %cst_54 = arith.constant dense<0.000000e+00> : vector<68x256xf32>
    %55 = tpu.matmul %52, %54, %cst_54 {dimension_numbers = #tpu.dot_dimension_numbers<[1], [0], [0], [1], [0, 0, 1, 1], [], []>} : vector<68x288xbf16>, vector<288x256xbf16>, vector<68x256xf32> -> vector<68x256xf32>
    %56 = arith.addf %51, %55 : vector<68x256xf32>
    %c4_55 = arith.constant 4 : index
    %c0_56 = arith.constant 0 : index
    %57 = vector.load %arg27[%c4_55, %c0_56] : memref<72x288xbf16, #tpu.memory_space<vmem>>, vector<68x288xbf16>
    %c2_57 = arith.constant 2 : index
    %c0_58 = arith.constant 0 : index
    %c0_59 = arith.constant 0 : index
    %58 = vector.load %arg5[%c2_57, %c0_58, %c0_59] : memref<3x288x256xbf16, #tpu.memory_space<vmem>>, vector<1x288x256xbf16>
    %59 = vector.shape_cast %58 : vector<1x288x256xbf16> to vector<288x256xbf16>
    %cst_60 = arith.constant dense<0.000000e+00> : vector<68x256xf32>
    %60 = tpu.matmul %57, %59, %cst_60 {dimension_numbers = #tpu.dot_dimension_numbers<[1], [0], [0], [1], [0, 0, 1, 1], [], []>} : vector<68x288xbf16>, vector<288x256xbf16>, vector<68x256xf32> -> vector<68x256xf32>
    %61 = arith.addf %56, %60 : vector<68x256xf32>
    %c0_61 = arith.constant 0 : index
    %c0_62 = arith.constant 0 : index
    %62 = vector.load %arg6[%c0_61, %c0_62] : memref<1x256xf32, #tpu.memory_space<vmem>>, vector<1x256xf32>
    %63 = vector.broadcast %62 : vector<1x256xf32> to vector<68x256xf32>
    %64 = arith.addf %61, %63 : vector<68x256xf32>
    %cst_63 = arith.constant 0.000000e+00 : f32
    %65 = vector.broadcast %cst_63 : f32 to vector<68x256xf32>
    %66 = arith.cmpf ogt, %64, %65 : vector<68x256xf32>
    %cst_64 = arith.constant 0.000000e+00 : f32
    %67 = vector.broadcast %cst_64 : f32 to vector<68x256xf32>
    %68 = arith.minimumf %64, %67 : vector<68x256xf32>
    %69 = math.exp %68 : vector<68x256xf32>
    %cst_65 = arith.constant 1.000000e+00 : f32
    %70 = vector.broadcast %cst_65 : f32 to vector<68x256xf32>
    %71 = arith.subf %69, %70 : vector<68x256xf32>
    %72 = arith.select %66, %64, %71 : vector<68x256xi1>, vector<68x256xf32>
    %73 = arith.truncf %72 : vector<68x256xf32> to vector<68x256xbf16>
    %c0_66 = arith.constant 0 : index
    %c0_67 = arith.constant 0 : index
    %74 = vector.load %arg7[%c0_66, %c0_67] : memref<80x68xbf16, #tpu.memory_space<vmem>>, vector<80x68xbf16>
    %cst_68 = arith.constant dense<0.000000e+00> : vector<80x256xf32>
    %75 = tpu.matmul %74, %73, %cst_68 {dimension_numbers = #tpu.dot_dimension_numbers<[1], [0], [0], [1], [0, 0, 1, 1], [], []>} : vector<80x68xbf16>, vector<68x256xbf16>, vector<80x256xf32> -> vector<80x256xf32>
    %76 = vector.extract_strided_slice %75 {offsets = [0, 0], sizes = [40, 256], strides = [1, 1]} : vector<80x256xf32> to vector<40x256xf32>
    %77 = vector.extract_strided_slice %75 {offsets = [40, 0], sizes = [40, 256], strides = [1, 1]} : vector<80x256xf32> to vector<40x256xf32>
    %78 = arith.maximumf %76, %77 : vector<40x256xf32>
    %79 = arith.truncf %78 : vector<40x256xf32> to vector<40x256xbf16>
    %c0_69 = arith.constant 0 : index
    %c0_70 = arith.constant 0 : index
    %80 = vector.load %arg8[%c0_69, %c0_70] : memref<256x320xbf16, #tpu.memory_space<vmem>>, vector<256x320xbf16>
    %cst_71 = arith.constant dense<0.000000e+00> : vector<40x320xf32>
    %81 = tpu.matmul %79, %80, %cst_71 {dimension_numbers = #tpu.dot_dimension_numbers<[1], [0], [0], [1], [0, 0, 1, 1], [], []>} : vector<40x256xbf16>, vector<256x320xbf16>, vector<40x320xf32> -> vector<40x320xf32>
    %82 = vector.extract_strided_slice %81 {offsets = [0, 0], sizes = [40, 160], strides = [1, 1]} : vector<40x320xf32> to vector<40x160xf32>
    %83 = vector.extract_strided_slice %81 {offsets = [0, 160], sizes = [40, 160], strides = [1, 1]} : vector<40x320xf32> to vector<40x160xf32>
    %84 = arith.maximumf %82, %83 : vector<40x160xf32>
    %85 = arith.truncf %84 : vector<40x160xf32> to vector<40x160xbf16>
    %c0_72 = arith.constant 0 : index
    %c0_73 = arith.constant 0 : index
    %86 = vector.load %arg28[%c0_72, %c0_73] : memref<40x160xbf16, #tpu.memory_space<vmem>>, vector<40x160xbf16>
    tpu.vector_store %arg28[%c0_72, %c0_73], %85 {strides = array<i32>} : memref<40x160xbf16, #tpu.memory_space<vmem>>, vector<40x160xbf16>,
    %c0_74 = arith.constant 0 : index
    %c0_75 = arith.constant 0 : index
    %87 = vector.load %arg28[%c0_74, %c0_75] : memref<40x160xbf16, #tpu.memory_space<vmem>>, vector<36x160xbf16>
    %c0_76 = arith.constant 0 : index
    %c0_77 = arith.constant 0 : index
    %c0_78 = arith.constant 0 : index
    %88 = vector.load %arg9[%c0_76, %c0_77, %c0_78] : memref<3x160x256xbf16, #tpu.memory_space<vmem>>, vector<1x160x256xbf16>
    %89 = vector.shape_cast %88 : vector<1x160x256xbf16> to vector<160x256xbf16>
    %cst_79 = arith.constant dense<0.000000e+00> : vector<36x256xf32>
    %90 = tpu.matmul %87, %89, %cst_79 {dimension_numbers = #tpu.dot_dimension_numbers<[1], [0], [0], [1], [0, 0, 1, 1], [], []>} : vector<36x160xbf16>, vector<160x256xbf16>, vector<36x256xf32> -> vector<36x256xf32>
    %c2_80 = arith.constant 2 : index
    %c0_81 = arith.constant 0 : index
    %91 = vector.load %arg28[%c2_80, %c0_81] : memref<40x160xbf16, #tpu.memory_space<vmem>>, vector<36x160xbf16>
    %c1_82 = arith.constant 1 : index
    %c0_83 = arith.constant 0 : index
    %c0_84 = arith.constant 0 : index
    %92 = vector.load %arg9[%c1_82, %c0_83, %c0_84] : memref<3x160x256xbf16, #tpu.memory_space<vmem>>, vector<1x160x256xbf16>
    %93 = vector.shape_cast %92 : vector<1x160x256xbf16> to vector<160x256xbf16>
    %cst_85 = arith.constant dense<0.000000e+00> : vector<36x256xf32>
    %94 = tpu.matmul %91, %93, %cst_85 {dimension_numbers = #tpu.dot_dimension_numbers<[1], [0], [0], [1], [0, 0, 1, 1], [], []>} : vector<36x160xbf16>, vector<160x256xbf16>, vector<36x256xf32> -> vector<36x256xf32>
    %95 = arith.addf %90, %94 : vector<36x256xf32>
    %c4_86 = arith.constant 4 : index
    %c0_87 = arith.constant 0 : index
    %96 = vector.load %arg28[%c4_86, %c0_87] : memref<40x160xbf16, #tpu.memory_space<vmem>>, vector<36x160xbf16>
    %c2_88 = arith.constant 2 : index
    %c0_89 = arith.constant 0 : index
    %c0_90 = arith.constant 0 : index
    %97 = vector.load %arg9[%c2_88, %c0_89, %c0_90] : memref<3x160x256xbf16, #tpu.memory_space<vmem>>, vector<1x160x256xbf16>
    %98 = vector.shape_cast %97 : vector<1x160x256xbf16> to vector<160x256xbf16>
    %cst_91 = arith.constant dense<0.000000e+00> : vector<36x256xf32>
    %99 = tpu.matmul %96, %98, %cst_91 {dimension_numbers = #tpu.dot_dimension_numbers<[1], [0], [0], [1], [0, 0, 1, 1], [], []>} : vector<36x160xbf16>, vector<160x256xbf16>, vector<36x256xf32> -> vector<36x256xf32>
    %100 = arith.addf %95, %99 : vector<36x256xf32>
    %c0_92 = arith.constant 0 : index
    %c0_93 = arith.constant 0 : index
    %101 = vector.load %arg10[%c0_92, %c0_93] : memref<1x256xf32, #tpu.memory_space<vmem>>, vector<1x256xf32>
    %102 = vector.broadcast %101 : vector<1x256xf32> to vector<36x256xf32>
    %103 = arith.addf %100, %102 : vector<36x256xf32>
    %cst_94 = arith.constant 0.000000e+00 : f32
    %104 = vector.broadcast %cst_94 : f32 to vector<36x256xf32>
    %105 = arith.cmpf ogt, %103, %104 : vector<36x256xf32>
    %cst_95 = arith.constant 0.000000e+00 : f32
    %106 = vector.broadcast %cst_95 : f32 to vector<36x256xf32>
    %107 = arith.minimumf %103, %106 : vector<36x256xf32>
    %108 = math.exp %107 : vector<36x256xf32>
    %cst_96 = arith.constant 1.000000e+00 : f32
    %109 = vector.broadcast %cst_96 : f32 to vector<36x256xf32>
    %110 = arith.subf %108, %109 : vector<36x256xf32>
    %111 = arith.select %105, %103, %110 : vector<36x256xi1>, vector<36x256xf32>
    %112 = arith.truncf %111 : vector<36x256xf32> to vector<36x256xbf16>
    %c0_97 = arith.constant 0 : index
    %c0_98 = arith.constant 0 : index
    %113 = vector.load %arg11[%c0_97, %c0_98] : memref<48x36xbf16, #tpu.memory_space<vmem>>, vector<48x36xbf16>
    %cst_99 = arith.constant dense<0.000000e+00> : vector<48x256xf32>
    %114 = tpu.matmul %113, %112, %cst_99 {dimension_numbers = #tpu.dot_dimension_numbers<[1], [0], [0], [1], [0, 0, 1, 1], [], []>} : vector<48x36xbf16>, vector<36x256xbf16>, vector<48x256xf32> -> vector<48x256xf32>
    %115 = vector.extract_strided_slice %114 {offsets = [0, 0], sizes = [24, 256], strides = [1, 1]} : vector<48x256xf32> to vector<24x256xf32>
    %116 = vector.extract_strided_slice %114 {offsets = [24, 0], sizes = [24, 256], strides = [1, 1]} : vector<48x256xf32> to vector<24x256xf32>
    %117 = arith.maximumf %115, %116 : vector<24x256xf32>
    %118 = arith.truncf %117 : vector<24x256xf32> to vector<24x256xbf16>
    %c0_100 = arith.constant 0 : index
    %c0_101 = arith.constant 0 : index
    %119 = vector.load %arg12[%c0_100, %c0_101] : memref<256x384xbf16, #tpu.memory_space<vmem>>, vector<256x384xbf16>
    %cst_102 = arith.constant dense<0.000000e+00> : vector<24x384xf32>
    %120 = tpu.matmul %118, %119, %cst_102 {dimension_numbers = #tpu.dot_dimension_numbers<[1], [0], [0], [1], [0, 0, 1, 1], [], []>} : vector<24x256xbf16>, vector<256x384xbf16>, vector<24x384xf32> -> vector<24x384xf32>
    %121 = vector.extract_strided_slice %120 {offsets = [0, 0], sizes = [24, 192], strides = [1, 1]} : vector<24x384xf32> to vector<24x192xf32>
    %122 = vector.extract_strided_slice %120 {offsets = [0, 192], sizes = [24, 192], strides = [1, 1]} : vector<24x384xf32> to vector<24x192xf32>
    %123 = arith.maximumf %121, %122 : vector<24x192xf32>
    %124 = arith.truncf %123 : vector<24x192xf32> to vector<24x192xbf16>
    %c0_103 = arith.constant 0 : index
    %c0_104 = arith.constant 0 : index
    %125 = vector.load %arg29[%c0_103, %c0_104] : memref<24x192xbf16, #tpu.memory_space<vmem>>, vector<24x192xbf16>
    tpu.vector_store %arg29[%c0_103, %c0_104], %124 {strides = array<i32>} : memref<24x192xbf16, #tpu.memory_space<vmem>>, vector<24x192xbf16>,
    %c0_105 = arith.constant 0 : index
    %c0_106 = arith.constant 0 : index
    %126 = vector.load %arg29[%c0_105, %c0_106] : memref<24x192xbf16, #tpu.memory_space<vmem>>, vector<20x192xbf16>
    %c0_107 = arith.constant 0 : index
    %c0_108 = arith.constant 0 : index
    %c0_109 = arith.constant 0 : index
    %127 = vector.load %arg13[%c0_107, %c0_108, %c0_109] : memref<3x192x128xbf16, #tpu.memory_space<vmem>>, vector<1x192x128xbf16>
    %128 = vector.shape_cast %127 : vector<1x192x128xbf16> to vector<192x128xbf16>
    %cst_110 = arith.constant dense<0.000000e+00> : vector<20x128xf32>
    %129 = tpu.matmul %126, %128, %cst_110 {dimension_numbers = #tpu.dot_dimension_numbers<[1], [0], [0], [1], [0, 0, 1, 1], [], []>} : vector<20x192xbf16>, vector<192x128xbf16>, vector<20x128xf32> -> vector<20x128xf32>
    %c2_111 = arith.constant 2 : index
    %c0_112 = arith.constant 0 : index
    %130 = vector.load %arg29[%c2_111, %c0_112] : memref<24x192xbf16, #tpu.memory_space<vmem>>, vector<20x192xbf16>
    %c1_113 = arith.constant 1 : index
    %c0_114 = arith.constant 0 : index
    %c0_115 = arith.constant 0 : index
    %131 = vector.load %arg13[%c1_113, %c0_114, %c0_115] : memref<3x192x128xbf16, #tpu.memory_space<vmem>>, vector<1x192x128xbf16>
    %132 = vector.shape_cast %131 : vector<1x192x128xbf16> to vector<192x128xbf16>
    %cst_116 = arith.constant dense<0.000000e+00> : vector<20x128xf32>
    %133 = tpu.matmul %130, %132, %cst_116 {dimension_numbers = #tpu.dot_dimension_numbers<[1], [0], [0], [1], [0, 0, 1, 1], [], []>} : vector<20x192xbf16>, vector<192x128xbf16>, vector<20x128xf32> -> vector<20x128xf32>
    %134 = arith.addf %129, %133 : vector<20x128xf32>
    %c4_117 = arith.constant 4 : index
    %c0_118 = arith.constant 0 : index
    %135 = vector.load %arg29[%c4_117, %c0_118] : memref<24x192xbf16, #tpu.memory_space<vmem>>, vector<20x192xbf16>
    %c2_119 = arith.constant 2 : index
    %c0_120 = arith.constant 0 : index
    %c0_121 = arith.constant 0 : index
    %136 = vector.load %arg13[%c2_119, %c0_120, %c0_121] : memref<3x192x128xbf16, #tpu.memory_space<vmem>>, vector<1x192x128xbf16>
    %137 = vector.shape_cast %136 : vector<1x192x128xbf16> to vector<192x128xbf16>
    %cst_122 = arith.constant dense<0.000000e+00> : vector<20x128xf32>
    %138 = tpu.matmul %135, %137, %cst_122 {dimension_numbers = #tpu.dot_dimension_numbers<[1], [0], [0], [1], [0, 0, 1, 1], [], []>} : vector<20x192xbf16>, vector<192x128xbf16>, vector<20x128xf32> -> vector<20x128xf32>
    %139 = arith.addf %134, %138 : vector<20x128xf32>
    %c0_123 = arith.constant 0 : index
    %c0_124 = arith.constant 0 : index
    %140 = vector.load %arg14[%c0_123, %c0_124] : memref<1x128xf32, #tpu.memory_space<vmem>>, vector<1x128xf32>
    %141 = vector.broadcast %140 : vector<1x128xf32> to vector<20x128xf32>
    %142 = arith.addf %139, %141 : vector<20x128xf32>
    %cst_125 = arith.constant 0.000000e+00 : f32
    %143 = vector.broadcast %cst_125 : f32 to vector<20x128xf32>
    %144 = arith.cmpf ogt, %142, %143 : vector<20x128xf32>
    %cst_126 = arith.constant 0.000000e+00 : f32
    %145 = vector.broadcast %cst_126 : f32 to vector<20x128xf32>
    %146 = arith.minimumf %142, %145 : vector<20x128xf32>
    %147 = math.exp %146 : vector<20x128xf32>
    %cst_127 = arith.constant 1.000000e+00 : f32
    %148 = vector.broadcast %cst_127 : f32 to vector<20x128xf32>
    %149 = arith.subf %147, %148 : vector<20x128xf32>
    %150 = arith.select %144, %142, %149 : vector<20x128xi1>, vector<20x128xf32>
    %151 = arith.truncf %150 : vector<20x128xf32> to vector<20x128xbf16>
    %c0_128 = arith.constant 0 : index
    %c0_129 = arith.constant 0 : index
    %152 = vector.load %arg15[%c0_128, %c0_129] : memref<32x20xbf16, #tpu.memory_space<vmem>>, vector<32x20xbf16>
    %cst_130 = arith.constant dense<0.000000e+00> : vector<32x128xf32>
    %153 = tpu.matmul %152, %151, %cst_130 {dimension_numbers = #tpu.dot_dimension_numbers<[1], [0], [0], [1], [0, 0, 1, 1], [], []>} : vector<32x20xbf16>, vector<20x128xbf16>, vector<32x128xf32> -> vector<32x128xf32>
    %154 = vector.extract_strided_slice %153 {offsets = [0, 0], sizes = [16, 128], strides = [1, 1]} : vector<32x128xf32> to vector<16x128xf32>
    %155 = vector.extract_strided_slice %153 {offsets = [16, 0], sizes = [16, 128], strides = [1, 1]} : vector<32x128xf32> to vector<16x128xf32>
    %156 = arith.maximumf %154, %155 : vector<16x128xf32>
    %157 = arith.truncf %156 : vector<16x128xf32> to vector<16x128xbf16>
    %c0_131 = arith.constant 0 : index
    %c0_132 = arith.constant 0 : index
    %158 = vector.load %arg16[%c0_131, %c0_132] : memref<128x256xbf16, #tpu.memory_space<vmem>>, vector<128x256xbf16>
    %cst_133 = arith.constant dense<0.000000e+00> : vector<16x256xf32>
    %159 = tpu.matmul %157, %158, %cst_133 {dimension_numbers = #tpu.dot_dimension_numbers<[1], [0], [0], [1], [0, 0, 1, 1], [], []>} : vector<16x128xbf16>, vector<128x256xbf16>, vector<16x256xf32> -> vector<16x256xf32>
    %160 = vector.extract_strided_slice %159 {offsets = [0, 0], sizes = [16, 128], strides = [1, 1]} : vector<16x256xf32> to vector<16x128xf32>
    %161 = vector.extract_strided_slice %159 {offsets = [0, 128], sizes = [16, 128], strides = [1, 1]} : vector<16x256xf32> to vector<16x128xf32>
    %162 = arith.maximumf %160, %161 : vector<16x128xf32>
    %163 = arith.truncf %162 : vector<16x128xf32> to vector<16x128xbf16>
    %c0_134 = arith.constant 0 : index
    %c0_135 = arith.constant 0 : index
    %164 = vector.load %arg30[%c0_134, %c0_135] : memref<16x128xbf16, #tpu.memory_space<vmem>>, vector<16x128xbf16>
    tpu.vector_store %arg30[%c0_134, %c0_135], %163 {strides = array<i32>} : memref<16x128xbf16, #tpu.memory_space<vmem>>, vector<16x128xbf16>,
    %c0_136 = arith.constant 0 : index
    %c0_137 = arith.constant 0 : index
    %165 = vector.load %arg30[%c0_136, %c0_137] : memref<16x128xbf16, #tpu.memory_space<vmem>>, vector<12x128xbf16>
    %c0_138 = arith.constant 0 : index
    %c0_139 = arith.constant 0 : index
    %c0_140 = arith.constant 0 : index
    %166 = vector.load %arg17[%c0_138, %c0_139, %c0_140] : memref<3x128x128xbf16, #tpu.memory_space<vmem>>, vector<1x128x128xbf16>
    %167 = vector.shape_cast %166 : vector<1x128x128xbf16> to vector<128x128xbf16>
    %cst_141 = arith.constant dense<0.000000e+00> : vector<12x128xf32>
    %168 = tpu.matmul %165, %167, %cst_141 {dimension_numbers = #tpu.dot_dimension_numbers<[1], [0], [0], [1], [0, 0, 1, 1], [], []>} : vector<12x128xbf16>, vector<128x128xbf16>, vector<12x128xf32> -> vector<12x128xf32>
    %c2_142 = arith.constant 2 : index
    %c0_143 = arith.constant 0 : index
    %169 = vector.load %arg30[%c2_142, %c0_143] : memref<16x128xbf16, #tpu.memory_space<vmem>>, vector<12x128xbf16>
    %c1_144 = arith.constant 1 : index
    %c0_145 = arith.constant 0 : index
    %c0_146 = arith.constant 0 : index
    %170 = vector.load %arg17[%c1_144, %c0_145, %c0_146] : memref<3x128x128xbf16, #tpu.memory_space<vmem>>, vector<1x128x128xbf16>
    %171 = vector.shape_cast %170 : vector<1x128x128xbf16> to vector<128x128xbf16>
    %cst_147 = arith.constant dense<0.000000e+00> : vector<12x128xf32>
    %172 = tpu.matmul %169, %171, %cst_147 {dimension_numbers = #tpu.dot_dimension_numbers<[1], [0], [0], [1], [0, 0, 1, 1], [], []>} : vector<12x128xbf16>, vector<128x128xbf16>, vector<12x128xf32> -> vector<12x128xf32>
    %173 = arith.addf %168, %172 : vector<12x128xf32>
    %c4_148 = arith.constant 4 : index
    %c0_149 = arith.constant 0 : index
    %174 = vector.load %arg30[%c4_148, %c0_149] : memref<16x128xbf16, #tpu.memory_space<vmem>>, vector<12x128xbf16>
    %c2_150 = arith.constant 2 : index
    %c0_151 = arith.constant 0 : index
    %c0_152 = arith.constant 0 : index
    %175 = vector.load %arg17[%c2_150, %c0_151, %c0_152] : memref<3x128x128xbf16, #tpu.memory_space<vmem>>, vector<1x128x128xbf16>
    %176 = vector.shape_cast %175 : vector<1x128x128xbf16> to vector<128x128xbf16>
    %cst_153 = arith.constant dense<0.000000e+00> : vector<12x128xf32>
    %177 = tpu.matmul %174, %176, %cst_153 {dimension_numbers = #tpu.dot_dimension_numbers<[1], [0], [0], [1], [0, 0, 1, 1], [], []>} : vector<12x128xbf16>, vector<128x128xbf16>, vector<12x128xf32> -> vector<12x128xf32>
    %178 = arith.addf %173, %177 : vector<12x128xf32>
    %c0_154 = arith.constant 0 : index
    %c0_155 = arith.constant 0 : index
    %179 = vector.load %arg18[%c0_154, %c0_155] : memref<1x128xf32, #tpu.memory_space<vmem>>, vector<1x128xf32>
    %180 = vector.broadcast %179 : vector<1x128xf32> to vector<12x128xf32>
    %181 = arith.addf %178, %180 : vector<12x128xf32>
    %cst_156 = arith.constant 0.000000e+00 : f32
    %182 = vector.broadcast %cst_156 : f32 to vector<12x128xf32>
    %183 = arith.cmpf ogt, %181, %182 : vector<12x128xf32>
    %cst_157 = arith.constant 0.000000e+00 : f32
    %184 = vector.broadcast %cst_157 : f32 to vector<12x128xf32>
    %185 = arith.minimumf %181, %184 : vector<12x128xf32>
    %186 = math.exp %185 : vector<12x128xf32>
    %cst_158 = arith.constant 1.000000e+00 : f32
    %187 = vector.broadcast %cst_158 : f32 to vector<12x128xf32>
    %188 = arith.subf %186, %187 : vector<12x128xf32>
    %189 = arith.select %183, %181, %188 : vector<12x128xi1>, vector<12x128xf32>
    %c0_159 = arith.constant 0 : index
    %c0_160 = arith.constant 0 : index
    %190 = vector.load %arg19[%c0_159, %c0_160] : memref<2x12xbf16, #tpu.memory_space<vmem>>, vector<2x12xbf16>
    %191 = arith.truncf %189 : vector<12x128xf32> to vector<12x128xbf16>
    %cst_161 = arith.constant dense<0.000000e+00> : vector<2x128xf32>
    %192 = tpu.matmul %190, %191, %cst_161 {dimension_numbers = #tpu.dot_dimension_numbers<[1], [0], [0], [1], [0, 0, 1, 1], [], []>} : vector<2x12xbf16>, vector<12x128xbf16>, vector<2x128xf32> -> vector<2x128xf32>
    %193 = arith.truncf %192 : vector<2x128xf32> to vector<2x128xbf16>
    %c0_162 = arith.constant 0 : index
    %c0_163 = arith.constant 0 : index
    %194 = vector.load %arg20[%c0_162, %c0_163] : memref<128x32xbf16, #tpu.memory_space<vmem>>, vector<128x32xbf16>
    %cst_164 = arith.constant dense<0.000000e+00> : vector<2x32xf32>
    %195 = tpu.matmul %193, %194, %cst_164 {dimension_numbers = #tpu.dot_dimension_numbers<[1], [0], [0], [1], [0, 0, 1, 1], [], []>} : vector<2x128xbf16>, vector<128x32xbf16>, vector<2x32xf32> -> vector<2x32xf32>
    %cst_165 = arith.constant 0.000000e+00 : f32
    %196 = vector.broadcast %cst_165 : f32 to vector<2x32xf32>
    %197 = arith.cmpf ogt, %195, %196 : vector<2x32xf32>
    %cst_166 = arith.constant 0.000000e+00 : f32
    %198 = vector.broadcast %cst_166 : f32 to vector<2x32xf32>
    %199 = arith.minimumf %195, %198 : vector<2x32xf32>
    %200 = math.exp %199 : vector<2x32xf32>
    %cst_167 = arith.constant 1.000000e+00 : f32
    %201 = vector.broadcast %cst_167 : f32 to vector<2x32xf32>
    %202 = arith.subf %200, %201 : vector<2x32xf32>
    %203 = arith.select %197, %195, %202 : vector<2x32xi1>, vector<2x32xf32>
    %204 = arith.truncf %203 : vector<2x32xf32> to vector<2x32xbf16>
    %c0_168 = arith.constant 0 : index
    %c0_169 = arith.constant 0 : index
    %205 = vector.load %arg21[%c0_168, %c0_169] : memref<32x10xbf16, #tpu.memory_space<vmem>>, vector<32x10xbf16>
    %cst_170 = arith.constant dense<0.000000e+00> : vector<2x10xf32>
    %206 = tpu.matmul %204, %205, %cst_170 {dimension_numbers = #tpu.dot_dimension_numbers<[1], [0], [0], [1], [0, 0, 1, 1], [], []>} : vector<2x32xbf16>, vector<32x10xbf16>, vector<2x10xf32> -> vector<2x10xf32>
    %c0_171 = arith.constant 0 : index
    %c0_172 = arith.constant 0 : index
    %207 = vector.load %arg22[%c0_171, %c0_172] : memref<1x10xf32, #tpu.memory_space<vmem>>, vector<1x10xf32>
    %208 = vector.broadcast %207 : vector<1x10xf32> to vector<2x10xf32>
    %209 = arith.addf %206, %208 : vector<2x10xf32>
    %cst_173 = arith.constant 0.000000e+00 : f32
    %210 = vector.broadcast %cst_173 : f32 to vector<2x10xf32>
    %211 = arith.cmpf ogt, %209, %210 : vector<2x10xf32>
    %cst_174 = arith.constant 0.000000e+00 : f32
    %212 = vector.broadcast %cst_174 : f32 to vector<2x10xf32>
    %213 = arith.minimumf %209, %212 : vector<2x10xf32>
    %214 = math.exp %213 : vector<2x10xf32>
    %cst_175 = arith.constant 1.000000e+00 : f32
    %215 = vector.broadcast %cst_175 : f32 to vector<2x10xf32>
    %216 = arith.subf %214, %215 : vector<2x10xf32>
    %217 = arith.select %211, %209, %216 : vector<2x10xi1>, vector<2x10xf32>
    %218 = arith.truncf %217 : vector<2x10xf32> to vector<2x10xbf16>
    %c0_176 = arith.constant 0 : index
    %c0_177 = arith.constant 0 : index
    %219 = vector.load %arg23[%c0_176, %c0_177] : memref<10x2xbf16, #tpu.memory_space<vmem>>, vector<10x2xbf16>
    %cst_178 = arith.constant dense<0.000000e+00> : vector<2x2xf32>
    %220 = tpu.matmul %218, %219, %cst_178 {dimension_numbers = #tpu.dot_dimension_numbers<[1], [0], [0], [1], [0, 0, 1, 1], [], []>} : vector<2x10xbf16>, vector<10x2xbf16>, vector<2x2xf32> -> vector<2x2xf32>
    %c0_179 = arith.constant 0 : index
    %c0_180 = arith.constant 0 : index
    %221 = vector.load %arg24[%c0_179, %c0_180] : memref<1x2xf32, #tpu.memory_space<vmem>>, vector<1x2xf32>
    %222 = vector.broadcast %221 : vector<1x2xf32> to vector<2x2xf32>
    %223 = arith.addf %220, %222 : vector<2x2xf32>
    %c0_181 = arith.constant 0 : index
    %c0_182 = arith.constant 0 : index
    %c0_183 = arith.constant 0 : index
    %224 = vector.load %arg25[%c0_181, %c0_182, %c0_183] : memref<1x2x2xf32, #tpu.memory_space<vmem>>, vector<1x2x2xf32>
    %225 = vector.shape_cast %224 : vector<1x2x2xf32> to vector<2x2xf32>
    %226 = vector.shape_cast %223 : vector<2x2xf32> to vector<1x2x2xf32>
    tpu.vector_store %arg25[%c0_181, %c0_182, %c0_183], %226 {strides = array<i32>} : memref<1x2x2xf32, #tpu.memory_space<vmem>>, vector<1x2x2xf32>,
    return
  }
  func.func @transform_0(%arg0: i32) -> (i32, i32, i32) {
    %c0_i32 = arith.constant 0 : i32
    %c0_i32_0 = arith.constant 0 : i32
    %c0_i32_1 = arith.constant 0 : i32
    return %arg0, %c0_i32, %c0_i32_0 : i32, i32, i32
  }
  func.func @transform_1(%arg0: i32) -> (i32, i32) {
    %c0_i32 = arith.constant 0 : i32
    %c0_i32_0 = arith.constant 0 : i32
    %c0_i32_1 = arith.constant 0 : i32
    return %c0_i32, %c0_i32_0 : i32, i32
  }
  func.func @transform_2(%arg0: i32) -> (i32, i32, i32) {
    %c0_i32 = arith.constant 0 : i32
    %c0_i32_0 = arith.constant 0 : i32
    %c0_i32_1 = arith.constant 0 : i32
    %c0_i32_2 = arith.constant 0 : i32
    return %c0_i32, %c0_i32_0, %c0_i32_1 : i32, i32, i32
  }
  func.func @transform_3(%arg0: i32) -> (i32, i32) {
    %c0_i32 = arith.constant 0 : i32
    %c0_i32_0 = arith.constant 0 : i32
    %c0_i32_1 = arith.constant 0 : i32
    return %c0_i32, %c0_i32_0 : i32, i32
  }
  func.func @transform_4(%arg0: i32) -> (i32, i32, i32) {
    %c0_i32 = arith.constant 0 : i32
    %c0_i32_0 = arith.constant 0 : i32
    %c0_i32_1 = arith.constant 0 : i32
    %c0_i32_2 = arith.constant 0 : i32
    return %c0_i32, %c0_i32_0, %c0_i32_1 : i32, i32, i32
  }
  func.func @transform_5(%arg0: i32) -> (i32, i32) {
    %c0_i32 = arith.constant 0 : i32
    %c0_i32_0 = arith.constant 0 : i32
    %c0_i32_1 = arith.constant 0 : i32
    return %c0_i32, %c0_i32_0 : i32, i32
  }
  func.func @transform_6(%arg0: i32) -> (i32, i32) {
    %c0_i32 = arith.constant 0 : i32
    %c0_i32_0 = arith.constant 0 : i32
    %c0_i32_1 = arith.constant 0 : i32
    return %c0_i32, %c0_i32_0 : i32, i32
  }
  func.func @transform_7(%arg0: i32) -> (i32, i32) {
    %c0_i32 = arith.constant 0 : i32
    %c0_i32_0 = arith.constant 0 : i32
    %c0_i32_1 = arith.constant 0 : i32
    return %c0_i32, %c0_i32_0 : i32, i32
  }
  func.func @transform_8(%arg0: i32) -> (i32, i32, i32) {
    %c0_i32 = arith.constant 0 : i32
    %c0_i32_0 = arith.constant 0 : i32
    %c0_i32_1 = arith.constant 0 : i32
    %c0_i32_2 = arith.constant 0 : i32
    return %c0_i32, %c0_i32_0, %c0_i32_1 : i32, i32, i32
  }
  func.func @transform_9(%arg0: i32) -> (i32, i32) {
    %c0_i32 = arith.constant 0 : i32
    %c0_i32_0 = arith.constant 0 : i32
    %c0_i32_1 = arith.constant 0 : i32
    return %c0_i32, %c0_i32_0 : i32, i32
  }
  func.func @transform_10(%arg0: i32) -> (i32, i32) {
    %c0_i32 = arith.constant 0 : i32
    %c0_i32_0 = arith.constant 0 : i32
    %c0_i32_1 = arith.constant 0 : i32
    return %c0_i32, %c0_i32_0 : i32, i32
  }
  func.func @transform_11(%arg0: i32) -> (i32, i32) {
    %c0_i32 = arith.constant 0 : i32
    %c0_i32_0 = arith.constant 0 : i32
    %c0_i32_1 = arith.constant 0 : i32
    return %c0_i32, %c0_i32_0 : i32, i32
  }
  func.func @transform_12(%arg0: i32) -> (i32, i32, i32) {
    %c0_i32 = arith.constant 0 : i32
    %c0_i32_0 = arith.constant 0 : i32
    %c0_i32_1 = arith.constant 0 : i32
    %c0_i32_2 = arith.constant 0 : i32
    return %c0_i32, %c0_i32_0, %c0_i32_1 : i32, i32, i32
  }
  func.func @transform_13(%arg0: i32) -> (i32, i32) {
    %c0_i32 = arith.constant 0 : i32
    %c0_i32_0 = arith.constant 0 : i32
    %c0_i32_1 = arith.constant 0 : i32
    return %c0_i32, %c0_i32_0 : i32, i32
  }
  func.func @transform_14(%arg0: i32) -> (i32, i32) {
    %c0_i32 = arith.constant 0 : i32
    %c0_i32_0 = arith.constant 0 : i32
    %c0_i32_1 = arith.constant 0 : i32
    return %c0_i32, %c0_i32_0 : i32, i32
  }
  func.func @transform_15(%arg0: i32) -> (i32, i32) {
    %c0_i32 = arith.constant 0 : i32
    %c0_i32_0 = arith.constant 0 : i32
    %c0_i32_1 = arith.constant 0 : i32
    return %c0_i32, %c0_i32_0 : i32, i32
  }
  func.func @transform_16(%arg0: i32) -> (i32, i32, i32) {
    %c0_i32 = arith.constant 0 : i32
    %c0_i32_0 = arith.constant 0 : i32
    %c0_i32_1 = arith.constant 0 : i32
    %c0_i32_2 = arith.constant 0 : i32
    return %c0_i32, %c0_i32_0, %c0_i32_1 : i32, i32, i32
  }
  func.func @transform_17(%arg0: i32) -> (i32, i32) {
    %c0_i32 = arith.constant 0 : i32
    %c0_i32_0 = arith.constant 0 : i32
    %c0_i32_1 = arith.constant 0 : i32
    return %c0_i32, %c0_i32_0 : i32, i32
  }
  func.func @transform_18(%arg0: i32) -> (i32, i32) {
    %c0_i32 = arith.constant 0 : i32
    %c0_i32_0 = arith.constant 0 : i32
    %c0_i32_1 = arith.constant 0 : i32
    return %c0_i32, %c0_i32_0 : i32, i32
  }
  func.func @transform_19(%arg0: i32) -> (i32, i32) {
    %c0_i32 = arith.constant 0 : i32
    %c0_i32_0 = arith.constant 0 : i32
    %c0_i32_1 = arith.constant 0 : i32
    return %c0_i32, %c0_i32_0 : i32, i32
  }
  func.func @transform_20(%arg0: i32) -> (i32, i32) {
    %c0_i32 = arith.constant 0 : i32
    %c0_i32_0 = arith.constant 0 : i32
    %c0_i32_1 = arith.constant 0 : i32
    return %c0_i32, %c0_i32_0 : i32, i32
  }
  func.func @transform_21(%arg0: i32) -> (i32, i32) {
    %c0_i32 = arith.constant 0 : i32
    %c0_i32_0 = arith.constant 0 : i32
    %c0_i32_1 = arith.constant 0 : i32
    return %c0_i32, %c0_i32_0 : i32, i32
  }
  func.func @transform_22(%arg0: i32) -> (i32, i32) {
    %c0_i32 = arith.constant 0 : i32
    %c0_i32_0 = arith.constant 0 : i32
    %c0_i32_1 = arith.constant 0 : i32
    return %c0_i32, %c0_i32_0 : i32, i32
  }
  func.func @transform_23(%arg0: i32) -> (i32, i32) {
    %c0_i32 = arith.constant 0 : i32
    %c0_i32_0 = arith.constant 0 : i32
    %c0_i32_1 = arith.constant 0 : i32
    return %c0_i32, %c0_i32_0 : i32, i32
  }
  func.func @transform_24(%arg0: i32) -> (i32, i32, i32) {
    %c0_i32 = arith.constant 0 : i32
    %c0_i32_0 = arith.constant 0 : i32
    %c0_i32_1 = arith.constant 0 : i32
    return %arg0, %c0_i32, %c0_i32_0 : i32, i32, i32
  }
}

</mosaic_0001>

<llo_original>
// kernel: net_forward.1
$region0: #{net_forward.1}
  #allocation0 [shape = 'u32[]', space=smem, size = 0x4, offset = 0x4, fixed_abs, tag = 'smem constant byte address 0x4 - core index']
  #allocation1 [shape = 'u32[144,128]{1,0:T(1,128)}', space=vmem, size = 0x12000, scoped, tag = 'internal scratch']
  #allocation2 [shape = 'bf16[72,36]{1,0:T(8,128)(2,1)}', space=vmem, size = 0x4800, scoped, tag = 'scratch operand']
  #allocation3 [shape = 'bf16[72,288]{1,0:T(8,128)(2,1)}', space=vmem, size = 0xd800, scoped, tag = 'scratch operand']
  #allocation4 [shape = 'bf16[40,160]{1,0:T(8,128)(2,1)}', space=vmem, size = 0x5000, scoped, tag = 'scratch operand']
  #allocation5 [shape = 'bf16[24,192]{1,0:T(8,128)(2,1)}', space=vmem, size = 0x3000, scoped, tag = 'scratch operand']
  #allocation6 [shape = 'bf16[16,128]{1,0:T(8,128)(2,1)}', space=vmem, size = 0x1000, scoped, tag = 'scratch operand']
  %s0 = inlined_call_operand.vmem [shape: f32[2,64,128], index: 0, kind: input, shape index: {}]
  %s1 = inlined_call_operand.vmem [shape: bf16[128,36], index: 1, kind: input, shape index: {}]
  %s2 = inlined_call_operand.hbm [shape: bf16[3,36,288], index: 2, kind: input, shape index: {}]
  %s3 = inlined_call_operand.vmem [shape: f32[1,288], index: 3, kind: input, shape index: {}]
  %s4 = inlined_call_operand.vmem [shape: bf16[3,288,256], index: 4, kind: input, shape index: {}]
  %s5 = inlined_call_operand.vmem [shape: f32[1,256], index: 5, kind: input, shape index: {}]
  %s6 = inlined_call_operand.vmem [shape: bf16[80,68], index: 6, kind: input, shape index: {}]
  %s7 = inlined_call_operand.vmem [shape: bf16[256,320], index: 7, kind: input, shape index: {}]
  %s8 = inlined_call_operand.vmem [shape: bf16[3,160,256], index: 8, kind: input, shape index: {}]
  %s9 = inlined_call_operand.vmem [shape: f32[1,256], index: 9, kind: input, shape index: {}]
  %s10 = inlined_call_operand.vmem [shape: bf16[48,36], index: 10, kind: input, shape index: {}]
  %s11 = inlined_call_operand.hbm [shape: bf16[256,384], index: 11, kind: input, shape index: {}]
  %s12 = inlined_call_operand.hbm [shape: bf16[3,192,128], index: 12, kind: input, shape index: {}]
  %s13 = inlined_call_operand.vmem [shape: f32[1,128], index: 13, kind: input, shape index: {}]
  %s14 = inlined_call_operand.vmem [shape: bf16[32,20], index: 14, kind: input, shape index: {}]
  %s15 = inlined_call_operand.hbm [shape: bf16[128,256], index: 15, kind: input, shape index: {}]
  %s16 = inlined_call_operand.hbm [shape: bf16[3,128,128], index: 16, kind: input, shape index: {}]
  %s17 = inlined_call_operand.vmem [shape: f32[1,128], index: 17, kind: input, shape index: {}]
  %s18 = inlined_call_operand.vmem [shape: bf16[2,12], index: 18, kind: input, shape index: {}]
  %s19 = inlined_call_operand.vmem [shape: bf16[128,32], index: 19, kind: input, shape index: {}]
  %s20 = inlined_call_operand.vmem [shape: bf16[32,10], index: 20, kind: input, shape index: {}]
  %s21 = inlined_call_operand.vmem [shape: f32[1,10], index: 21, kind: input, shape index: {}]
  %s22 = inlined_call_operand.vmem [shape: bf16[10,2], index: 22, kind: input, shape index: {}]
  %s23 = inlined_call_operand.vmem [shape: f32[1,2], index: 23, kind: input, shape index: {}]
  %s24 = inlined_call_operand.vmem [shape: f32[2,2,2], index: 24, kind: output, shape index: {}]
  %s25 = sld [smem:[#allocation0]]
  $region149: #{net_forward.1} parent=0
    _
  %s27 = ssub.s32 1, %s25
  %s28 = scalar_select 0, %s27, %s25
  $region1: #{net_forward.1} parent=0
    #allocation7 [shape = 'u8[92160]{0}', space=vmem, size = 0x16800, scoped, tag = 'input window, operand 2, single buffered']
    #allocation8 [shape = 's32[2]{0}', space=sflag, size = 0x8, scoped, tag = 'scoped memory for net_forward.1']
    #allocation9 [shape = 'u8[196608]{0}', space=vmem, size = 0x30000, scoped, tag = 'input window, operand 11, single buffered']
    #allocation10 [shape = 's32[1]{0}', space=sflag, size = 0x4, scoped, tag = 'scoped memory for net_forward.1']
    #allocation11 [shape = 'u8[147456]{0}', space=vmem, size = 0x24000, scoped, tag = 'input window, operand 12, single buffered']
    #allocation12 [shape = 'u8[65536]{0}', space=vmem, size = 0x10000, scoped, tag = 'input window, operand 15, single buffered']
    #allocation13 [shape = 's32[1]{0}', space=sflag, size = 0x4, scoped, tag = 'scoped memory for net_forward.1']
    #allocation14 [shape = 'u8[98304]{0}', space=vmem, size = 0x18000, scoped, tag = 'input window, operand 16, single buffered']
    %29 = vsyncpa [#allocation8], 0
    %30 = vsyncpa [#allocation10], 0
    %31 = vsyncpa [#allocation13], 0
    loop: start=0, step=1, limit=4
    $region2: #{net_forward.1} parent=1 // loop_pre_header
      _
    $region3: #{net_forward.1} parent=1 // loop_header
      %s33 = sphi 0, %s37
      %p34 = scmp.ge.s32.totalorder %s33, 4
      %s43 = sphi 0, %s45
      %s46 = sphi 0, %s43
      %s47 = sphi 0, %s46
      %s63 = sphi 0, %s47
      %s67 = sphi 0, %s67
      %s69 = sphi 0, %s67
      %s70 = sphi 0, %s69
      %s84 = sphi 0, %s70
      %s88 = sphi 0, %s88
      %s90 = sphi 0, %s88
      %s91 = sphi 0, %s90
      %s105 = sphi 0, %s91
      %s109 = sphi 0, %s109
      %s111 = sphi 0, %s109
      %s112 = sphi 0, %s111
      %s126 = sphi 0, %s112
      %s130 = sphi 0, %s130
      %s132 = sphi 0, %s130
      %s133 = sphi 0, %s132
      %s147 = sphi 0, %s133
      %s151 = sphi 0, %s151
      %s153 = sphi 0, %s151
      %s154 = sphi 0, %s153
      %s168 = sphi 0, %s154
      %s172 = sphi 0, %s172
      %s174 = sphi 0, %s172
      %s175 = sphi 0, %s174
      %s189 = sphi 0, %s175
      %s193 = sphi 0, %s193
      %s195 = sphi 0, %s193
      %s196 = sphi 0, %s195
      %s210 = sphi 0, %s196
      %s214 = sphi 0, %s214
      %s216 = sphi 0, %s214
      %s217 = sphi 0, %s216
      %s231 = sphi 0, %s217
      %s235 = sphi 0, %s235
      %s237 = sphi 0, %s235
      %s238 = sphi 0, %s237
      %s252 = sphi 0, %s238
      %s256 = sphi 0, %s256
      %s258 = sphi 0, %s256
      %s259 = sphi 0, %s258
      %s273 = sphi 0, %s259
      %s277 = sphi 0, %s277
      %s279 = sphi 0, %s277
      %s280 = sphi 0, %s279
      %s294 = sphi 0, %s280
      %s298 = sphi 0, %s298
      %s300 = sphi 0, %s298
      %s301 = sphi 0, %s300
      %s315 = sphi 0, %s301
      %s319 = sphi 0, %s319
      %s321 = sphi 0, %s319
      %s322 = sphi 0, %s321
      %s336 = sphi 0, %s322
      %s340 = sphi 0, %s340
      %s342 = sphi 0, %s340
      %s343 = sphi 0, %s342
      %s357 = sphi 0, %s343
      %s361 = sphi 0, %s361
      %s363 = sphi 0, %s361
      %s364 = sphi 0, %s363
      %s378 = sphi 0, %s364
      %s382 = sphi 0, %s382
      %s384 = sphi 0, %s382
      %s385 = sphi 0, %s384
      %s399 = sphi 0, %s385
      %s403 = sphi 0, %s403
      %s405 = sphi 0, %s403
      %s406 = sphi 0, %s405
      %s420 = sphi 0, %s406
      %s424 = sphi 0, %s424
      %s426 = sphi 0, %s424
      %s427 = sphi 0, %s426
      %s441 = sphi 0, %s427
      %s445 = sphi 0, %s445
      %s447 = sphi 0, %s445
      %s448 = sphi 0, %s447
      %s462 = sphi 0, %s448
      %s466 = sphi 0, %s466
      %s468 = sphi 0, %s466
      %s469 = sphi 0, %s468
      %s483 = sphi 0, %s469
      %s487 = sphi 0, %s487
      %s489 = sphi 0, %s487
      %s490 = sphi 0, %s489
      %s504 = sphi 0, %s490
      %s508 = sphi 0, %s508
      %s510 = sphi 0, %s508
      %s511 = sphi 0, %s510
      %s525 = sphi 0, %s511
      %s529 = sphi 0, %s529
      %s531 = sphi 0, %s529
      %s532 = sphi 0, %s531
      %s546 = sphi 0, %s532
      %s552 = sphi 0, %s554
      %s555 = sphi 0, %s552
      %s556 = sphi 0, %s555
      %s572 = sphi 0, %s556
    $region4: #{net_forward.1} parent=1 // loop_header_branch
      %36 = sbr.rel (%p34) target = $region8
    $region5: #{net_forward.1} parent=1 // loop_body
      %s38 = ssub.s32 %s33, 1
      %s39 = ssub.s32 %s33, 2
      %s40 = sadd.s32 %s33, 1
      %s41 = ssub.s32 %s33, %s40
      %p42 = scmp.eq.s32.totalorder %s41, 0
      %s44 = sadd.s32 %s43, 1
      %s45 = scalar_select %p42, %s43, %s44
      %p48 = pneg %p42
      %p49 = scmp.eq.s32.totalorder %s33, 1
      %p50 = por %p48, %p49
      %p51 = scmp.ne.s32.totalorder %s43, %s46
      %p52 = scmp.eq.s32.totalorder %s33, 0
      %p53 = por %p51, %p52
      %p54 = scmp.ne.s32.totalorder %s43, %s46
      %p55 = scmp.eq.s32.totalorder %s38, 1
      %p56 = por %p54, %p55
      %p57 = scmp.ne.s32.totalorder %s46, %s47
      %p58 = scmp.eq.s32.totalorder %s38, 0
      %p59 = por %p57, %p58
      %p60 = scmp.ne.s32.totalorder %s46, %s47
      %p61 = scmp.eq.s32.totalorder %s39, 1
      %p62 = por %p60, %p61
      %p64 = scmp.ne.s32.totalorder %s47, %s63
      %p65 = scmp.eq.s32.totalorder %s39, 0
      %p66 = por %p64, %p65
      %s68 = sadd.s32 %s67, 1
      %p71 = scmp.eq.s32.totalorder %s33, 1
      %p72 = scmp.ne.s32.totalorder %s67, %s69
      %p73 = scmp.eq.s32.totalorder %s33, 0
      %p74 = por %p72, %p73
      %p75 = scmp.ne.s32.totalorder %s67, %s69
      %p76 = scmp.eq.s32.totalorder %s38, 1
      %p77 = por %p75, %p76
      %p78 = scmp.ne.s32.totalorder %s69, %s70
      %p79 = scmp.eq.s32.totalorder %s38, 0
      %p80 = por %p78, %p79
      %p81 = scmp.ne.s32.totalorder %s69, %s70
      %p82 = scmp.eq.s32.totalorder %s39, 1
      %p83 = por %p81, %p82
      %p85 = scmp.ne.s32.totalorder %s70, %s84
      %p86 = scmp.eq.s32.totalorder %s39, 0
      %p87 = por %p85, %p86
      %s89 = sadd.s32 %s88, 1
      %p92 = scmp.eq.s32.totalorder %s33, 1
      %p93 = scmp.ne.s32.totalorder %s88, %s90
      %p94 = scmp.eq.s32.totalorder %s33, 0
      %p95 = por %p93, %p94
      %p96 = scmp.ne.s32.totalorder %s88, %s90
      %p97 = scmp.eq.s32.totalorder %s38, 1
      %p98 = por %p96, %p97
      %p99 = scmp.ne.s32.totalorder %s90, %s91
      %p100 = scmp.eq.s32.totalorder %s38, 0
      %p101 = por %p99, %p100
      %p102 = scmp.ne.s32.totalorder %s90, %s91
      %p103 = scmp.eq.s32.totalorder %s39, 1
      %p104 = por %p102, %p103
      %p106 = scmp.ne.s32.totalorder %s91, %s105
      %p107 = scmp.eq.s32.totalorder %s39, 0
      %p108 = por %p106, %p107
      %s110 = sadd.s32 %s109, 1
      %p113 = scmp.eq.s32.totalorder %s33, 1
      %p114 = scmp.ne.s32.totalorder %s109, %s111
      %p115 = scmp.eq.s32.totalorder %s33, 0
      %p116 = por %p114, %p115
      %p117 = scmp.ne.s32.totalorder %s109, %s111
      %p118 = scmp.eq.s32.totalorder %s38, 1
      %p119 = por %p117, %p118
      %p120 = scmp.ne.s32.totalorder %s111, %s112
      %p121 = scmp.eq.s32.totalorder %s38, 0
      %p122 = por %p120, %p121
      %p123 = scmp.ne.s32.totalorder %s111, %s112
      %p124 = scmp.eq.s32.totalorder %s39, 1
      %p125 = por %p123, %p124
      %p127 = scmp.ne.s32.totalorder %s112, %s126
      %p128 = scmp.eq.s32.totalorder %s39, 0
      %p129 = por %p127, %p128
      %s131 = sadd.s32 %s130, 1
      %p134 = scmp.eq.s32.totalorder %s33, 1
      %p135 = scmp.ne.s32.totalorder %s130, %s132
      %p136 = scmp.eq.s32.totalorder %s33, 0
      %p137 = por %p135, %p136
      %p138 = scmp.ne.s32.totalorder %s130, %s132
      %p139 = scmp.eq.s32.totalorder %s38, 1
      %p140 = por %p138, %p139
      %p141 = scmp.ne.s32.totalorder %s132, %s133
      %p142 = scmp.eq.s32.totalorder %s38, 0
      %p143 = por %p141, %p142
      %p144 = scmp.ne.s32.totalorder %s132, %s133
      %p145 = scmp.eq.s32.totalorder %s39, 1
      %p146 = por %p144, %p145
      %p148 = scmp.ne.s32.totalorder %s133, %s147
      %p149 = scmp.eq.s32.totalorder %s39, 0
      %p150 = por %p148, %p149
      %s152 = sadd.s32 %s151, 1
      %p155 = scmp.eq.s32.totalorder %s33, 1
      %p156 = scmp.ne.s32.totalorder %s151, %s153
      %p157 = scmp.eq.s32.totalorder %s33, 0
      %p158 = por %p156, %p157
      %p159 = scmp.ne.s32.totalorder %s151, %s153
      %p160 = scmp.eq.s32.totalorder %s38, 1
      %p161 = por %p159, %p160
      %p162 = scmp.ne.s32.totalorder %s153, %s154
      %p163 = scmp.eq.s32.totalorder %s38, 0
      %p164 = por %p162, %p163
      %p165 = scmp.ne.s32.totalorder %s153, %s154
      %p166 = scmp.eq.s32.totalorder %s39, 1
      %p167 = por %p165, %p166
      %p169 = scmp.ne.s32.totalorder %s154, %s168
      %p170 = scmp.eq.s32.totalorder %s39, 0
      %p171 = por %p169, %p170
      %s173 = sadd.s32 %s172, 1
      %p176 = scmp.eq.s32.totalorder %s33, 1
      %p177 = scmp.ne.s32.totalorder %s172, %s174
      %p178 = scmp.eq.s32.totalorder %s33, 0
      %p179 = por %p177, %p178
      %p180 = scmp.ne.s32.totalorder %s172, %s174
      %p181 = scmp.eq.s32.totalorder %s38, 1
      %p182 = por %p180, %p181
      %p183 = scmp.ne.s32.totalorder %s174, %s175
      %p184 = scmp.eq.s32.totalorder %s38, 0
      %p185 = por %p183, %p184
      %p186 = scmp.ne.s32.totalorder %s174, %s175
      %p187 = scmp.eq.s32.totalorder %s39, 1
      %p188 = por %p186, %p187
      %p190 = scmp.ne.s32.totalorder %s175, %s189
      %p191 = scmp.eq.s32.totalorder %s39, 0
      %p192 = por %p190, %p191
      %s194 = sadd.s32 %s193, 1
      %p197 = scmp.eq.s32.totalorder %s33, 1
      %p198 = scmp.ne.s32.totalorder %s193, %s195
      %p199 = scmp.eq.s32.totalorder %s33, 0
      %p200 = por %p198, %p199
      %p201 = scmp.ne.s32.totalorder %s193, %s195
      %p202 = scmp.eq.s32.totalorder %s38, 1
      %p203 = por %p201, %p202
      %p204 = scmp.ne.s32.totalorder %s195, %s196
      %p205 = scmp.eq.s32.totalorder %s38, 0
      %p206 = por %p204, %p205
      %p207 = scmp.ne.s32.totalorder %s195, %s196
      %p208 = scmp.eq.s32.totalorder %s39, 1
      %p209 = por %p207, %p208
      %p211 = scmp.ne.s32.totalorder %s196, %s210
      %p212 = scmp.eq.s32.totalorder %s39, 0
      %p213 = por %p211, %p212
      %s215 = sadd.s32 %s214, 1
      %p218 = scmp.eq.s32.totalorder %s33, 1
      %p219 = scmp.ne.s32.totalorder %s214, %s216
      %p220 = scmp.eq.s32.totalorder %s33, 0
      %p221 = por %p219, %p220
      %p222 = scmp.ne.s32.totalorder %s214, %s216
      %p223 = scmp.eq.s32.totalorder %s38, 1
      %p224 = por %p222, %p223
      %p225 = scmp.ne.s32.totalorder %s216, %s217
      %p226 = scmp.eq.s32.totalorder %s38, 0
      %p227 = por %p225, %p226
      %p228 = scmp.ne.s32.totalorder %s216, %s217
      %p229 = scmp.eq.s32.totalorder %s39, 1
      %p230 = por %p228, %p229
      %p232 = scmp.ne.s32.totalorder %s217, %s231
      %p233 = scmp.eq.s32.totalorder %s39, 0
      %p234 = por %p232, %p233
      %s236 = sadd.s32 %s235, 1
      %p239 = scmp.eq.s32.totalorder %s33, 1
      %p240 = scmp.ne.s32.totalorder %s235, %s237
      %p241 = scmp.eq.s32.totalorder %s33, 0
      %p242 = por %p240, %p241
      %p243 = scmp.ne.s32.totalorder %s235, %s237
      %p244 = scmp.eq.s32.totalorder %s38, 1
      %p245 = por %p243, %p244
      %p246 = scmp.ne.s32.totalorder %s237, %s238
      %p247 = scmp.eq.s32.totalorder %s38, 0
      %p248 = por %p246, %p247
      %p249 = scmp.ne.s32.totalorder %s237, %s238
      %p250 = scmp.eq.s32.totalorder %s39, 1
      %p251 = por %p249, %p250
      %p253 = scmp.ne.s32.totalorder %s238, %s252
      %p254 = scmp.eq.s32.totalorder %s39, 0
      %p255 = por %p253, %p254
      %s257 = sadd.s32 %s256, 1
      %p260 = scmp.eq.s32.totalorder %s33, 1
      %p261 = scmp.ne.s32.totalorder %s256, %s258
      %p262 = scmp.eq.s32.totalorder %s33, 0
      %p263 = por %p261, %p262
      %p264 = scmp.ne.s32.totalorder %s256, %s258
      %p265 = scmp.eq.s32.totalorder %s38, 1
      %p266 = por %p264, %p265
      %p267 = scmp.ne.s32.totalorder %s258, %s259
      %p268 = scmp.eq.s32.totalorder %s38, 0
      %p269 = por %p267, %p268
      %p270 = scmp.ne.s32.totalorder %s258, %s259
      %p271 = scmp.eq.s32.totalorder %s39, 1
      %p272 = por %p270, %p271
      %p274 = scmp.ne.s32.totalorder %s259, %s273
      %p275 = scmp.eq.s32.totalorder %s39, 0
      %p276 = por %p274, %p275
      %s278 = sadd.s32 %s277, 1
      %p281 = scmp.eq.s32.totalorder %s33, 1
      %p282 = scmp.ne.s32.totalorder %s277, %s279
      %p283 = scmp.eq.s32.totalorder %s33, 0
      %p284 = por %p282, %p283
      %p285 = scmp.ne.s32.totalorder %s277, %s279
      %p286 = scmp.eq.s32.totalorder %s38, 1
      %p287 = por %p285, %p286
      %p288 = scmp.ne.s32.totalorder %s279, %s280
      %p289 = scmp.eq.s32.totalorder %s38, 0
      %p290 = por %p288, %p289
      %p291 = scmp.ne.s32.totalorder %s279, %s280
      %p292 = scmp.eq.s32.totalorder %s39, 1
      %p293 = por %p291, %p292
      %p295 = scmp.ne.s32.totalorder %s280, %s294
      %p296 = scmp.eq.s32.totalorder %s39, 0
      %p297 = por %p295, %p296
      %s299 = sadd.s32 %s298, 1
      %p302 = scmp.eq.s32.totalorder %s33, 1
      %p303 = scmp.ne.s32.totalorder %s298, %s300
      %p304 = scmp.eq.s32.totalorder %s33, 0
      %p305 = por %p303, %p304
      %p306 = scmp.ne.s32.totalorder %s298, %s300
      %p307 = scmp.eq.s32.totalorder %s38, 1
      %p308 = por %p306, %p307
      %p309 = scmp.ne.s32.totalorder %s300, %s301
      %p310 = scmp.eq.s32.totalorder %s38, 0
      %p311 = por %p309, %p310
      %p312 = scmp.ne.s32.totalorder %s300, %s301
      %p313 = scmp.eq.s32.totalorder %s39, 1
      %p314 = por %p312, %p313
      %p316 = scmp.ne.s32.totalorder %s301, %s315
      %p317 = scmp.eq.s32.totalorder %s39, 0
      %p318 = por %p316, %p317
      %s320 = sadd.s32 %s319, 1
      %p323 = scmp.eq.s32.totalorder %s33, 1
      %p324 = scmp.ne.s32.totalorder %s319, %s321
      %p325 = scmp.eq.s32.totalorder %s33, 0
      %p326 = por %p324, %p325
      %p327 = scmp.ne.s32.totalorder %s319, %s321
      %p328 = scmp.eq.s32.totalorder %s38, 1
      %p329 = por %p327, %p328
      %p330 = scmp.ne.s32.totalorder %s321, %s322
      %p331 = scmp.eq.s32.totalorder %s38, 0
      %p332 = por %p330, %p331
      %p333 = scmp.ne.s32.totalorder %s321, %s322
      %p334 = scmp.eq.s32.totalorder %s39, 1
      %p335 = por %p333, %p334
      %p337 = scmp.ne.s32.totalorder %s322, %s336
      %p338 = scmp.eq.s32.totalorder %s39, 0
      %p339 = por %p337, %p338
      %s341 = sadd.s32 %s340, 1
      %p344 = scmp.eq.s32.totalorder %s33, 1
      %p345 = scmp.ne.s32.totalorder %s340, %s342
      %p346 = scmp.eq.s32.totalorder %s33, 0
      %p347 = por %p345, %p346
      %p348 = scmp.ne.s32.totalorder %s340, %s342
      %p349 = scmp.eq.s32.totalorder %s38, 1
      %p350 = por %p348, %p349
      %p351 = scmp.ne.s32.totalorder %s342, %s343
      %p352 = scmp.eq.s32.totalorder %s38, 0
      %p353 = por %p351, %p352
      %p354 = scmp.ne.s32.totalorder %s342, %s343
      %p355 = scmp.eq.s32.totalorder %s39, 1
      %p356 = por %p354, %p355
      %p358 = scmp.ne.s32.totalorder %s343, %s357
      %p359 = scmp.eq.s32.totalorder %s39, 0
      %p360 = por %p358, %p359
      %s362 = sadd.s32 %s361, 1
      %p365 = scmp.eq.s32.totalorder %s33, 1
      %p366 = scmp.ne.s32.totalorder %s361, %s363
      %p367 = scmp.eq.s32.totalorder %s33, 0
      %p368 = por %p366, %p367
      %p369 = scmp.ne.s32.totalorder %s361, %s363
      %p370 = scmp.eq.s32.totalorder %s38, 1
      %p371 = por %p369, %p370
      %p372 = scmp.ne.s32.totalorder %s363, %s364
      %p373 = scmp.eq.s32.totalorder %s38, 0
      %p374 = por %p372, %p373
      %p375 = scmp.ne.s32.totalorder %s363, %s364
      %p376 = scmp.eq.s32.totalorder %s39, 1
      %p377 = por %p375, %p376
      %p379 = scmp.ne.s32.totalorder %s364, %s378
      %p380 = scmp.eq.s32.totalorder %s39, 0
      %p381 = por %p379, %p380
      %s383 = sadd.s32 %s382, 1
      %p386 = scmp.eq.s32.totalorder %s33, 1
      %p387 = scmp.ne.s32.totalorder %s382, %s384
      %p388 = scmp.eq.s32.totalorder %s33, 0
      %p389 = por %p387, %p388
      %p390 = scmp.ne.s32.totalorder %s382, %s384
      %p391 = scmp.eq.s32.totalorder %s38, 1
      %p392 = por %p390, %p391
      %p393 = scmp.ne.s32.totalorder %s384, %s385
      %p394 = scmp.eq.s32.totalorder %s38, 0
      %p395 = por %p393, %p394
      %p396 = scmp.ne.s32.totalorder %s384, %s385
      %p397 = scmp.eq.s32.totalorder %s39, 1
      %p398 = por %p396, %p397
      %p400 = scmp.ne.s32.totalorder %s385, %s399
      %p401 = scmp.eq.s32.totalorder %s39, 0
      %p402 = por %p400, %p401
      %s404 = sadd.s32 %s403, 1
      %p407 = scmp.eq.s32.totalorder %s33, 1
      %p408 = scmp.ne.s32.totalorder %s403, %s405
      %p409 = scmp.eq.s32.totalorder %s33, 0
      %p410 = por %p408, %p409
      %p411 = scmp.ne.s32.totalorder %s403, %s405
      %p412 = scmp.eq.s32.totalorder %s38, 1
      %p413 = por %p411, %p412
      %p414 = scmp.ne.s32.totalorder %s405, %s406
      %p415 = scmp.eq.s32.totalorder %s38, 0
      %p416 = por %p414, %p415
      %p417 = scmp.ne.s32.totalorder %s405, %s406
      %p418 = scmp.eq.s32.totalorder %s39, 1
      %p419 = por %p417, %p418
      %p421 = scmp.ne.s32.totalorder %s406, %s420
      %p422 = scmp.eq.s32.totalorder %s39, 0
      %p423 = por %p421, %p422
      %s425 = sadd.s32 %s424, 1
      %p428 = scmp.eq.s32.totalorder %s33, 1
      %p429 = scmp.ne.s32.totalorder %s424, %s426
      %p430 = scmp.eq.s32.totalorder %s33, 0
      %p431 = por %p429, %p430
      %p432 = scmp.ne.s32.totalorder %s424, %s426
      %p433 = scmp.eq.s32.totalorder %s38, 1
      %p434 = por %p432, %p433
      %p435 = scmp.ne.s32.totalorder %s426, %s427
      %p436 = scmp.eq.s32.totalorder %s38, 0
      %p437 = por %p435, %p436
      %p438 = scmp.ne.s32.totalorder %s426, %s427
      %p439 = scmp.eq.s32.totalorder %s39, 1
      %p440 = por %p438, %p439
      %p442 = scmp.ne.s32.totalorder %s427, %s441
      %p443 = scmp.eq.s32.totalorder %s39, 0
      %p444 = por %p442, %p443
      %s446 = sadd.s32 %s445, 1
      %p449 = scmp.eq.s32.totalorder %s33, 1
      %p450 = scmp.ne.s32.totalorder %s445, %s447
      %p451 = scmp.eq.s32.totalorder %s33, 0
      %p452 = por %p450, %p451
      %p453 = scmp.ne.s32.totalorder %s445, %s447
      %p454 = scmp.eq.s32.totalorder %s38, 1
      %p455 = por %p453, %p454
      %p456 = scmp.ne.s32.totalorder %s447, %s448
      %p457 = scmp.eq.s32.totalorder %s38, 0
      %p458 = por %p456, %p457
      %p459 = scmp.ne.s32.totalorder %s447, %s448
      %p460 = scmp.eq.s32.totalorder %s39, 1
      %p461 = por %p459, %p460
      %p463 = scmp.ne.s32.totalorder %s448, %s462
      %p464 = scmp.eq.s32.totalorder %s39, 0
      %p465 = por %p463, %p464
      %s467 = sadd.s32 %s466, 1
      %p470 = scmp.eq.s32.totalorder %s33, 1
      %p471 = scmp.ne.s32.totalorder %s466, %s468
      %p472 = scmp.eq.s32.totalorder %s33, 0
      %p473 = por %p471, %p472
      %p474 = scmp.ne.s32.totalorder %s466, %s468
      %p475 = scmp.eq.s32.totalorder %s38, 1
      %p476 = por %p474, %p475
      %p477 = scmp.ne.s32.totalorder %s468, %s469
      %p478 = scmp.eq.s32.totalorder %s38, 0
      %p479 = por %p477, %p478
      %p480 = scmp.ne.s32.totalorder %s468, %s469
      %p481 = scmp.eq.s32.totalorder %s39, 1
      %p482 = por %p480, %p481
      %p484 = scmp.ne.s32.totalorder %s469, %s483
      %p485 = scmp.eq.s32.totalorder %s39, 0
      %p486 = por %p484, %p485
      %s488 = sadd.s32 %s487, 1
      %p491 = scmp.eq.s32.totalorder %s33, 1
      %p492 = scmp.ne.s32.totalorder %s487, %s489
      %p493 = scmp.eq.s32.totalorder %s33, 0
      %p494 = por %p492, %p493
      %p495 = scmp.ne.s32.totalorder %s487, %s489
      %p496 = scmp.eq.s32.totalorder %s38, 1
      %p497 = por %p495, %p496
      %p498 = scmp.ne.s32.totalorder %s489, %s490
      %p499 = scmp.eq.s32.totalorder %s38, 0
      %p500 = por %p498, %p499
      %p501 = scmp.ne.s32.totalorder %s489, %s490
      %p502 = scmp.eq.s32.totalorder %s39, 1
      %p503 = por %p501, %p502
      %p505 = scmp.ne.s32.totalorder %s490, %s504
      %p506 = scmp.eq.s32.totalorder %s39, 0
      %p507 = por %p505, %p506
      %s509 = sadd.s32 %s508, 1
      %p512 = scmp.eq.s32.totalorder %s33, 1
      %p513 = scmp.ne.s32.totalorder %s508, %s510
      %p514 = scmp.eq.s32.totalorder %s33, 0
      %p515 = por %p513, %p514
      %p516 = scmp.ne.s32.totalorder %s508, %s510
      %p517 = scmp.eq.s32.totalorder %s38, 1
      %p518 = por %p516, %p517
      %p519 = scmp.ne.s32.totalorder %s510, %s511
      %p520 = scmp.eq.s32.totalorder %s38, 0
      %p521 = por %p519, %p520
      %p522 = scmp.ne.s32.totalorder %s510, %s511
      %p523 = scmp.eq.s32.totalorder %s39, 1
      %p524 = por %p522, %p523
      %p526 = scmp.ne.s32.totalorder %s511, %s525
      %p527 = scmp.eq.s32.totalorder %s39, 0
      %p528 = por %p526, %p527
      %s530 = sadd.s32 %s529, 1
      %p533 = scmp.eq.s32.totalorder %s33, 1
      %p534 = scmp.ne.s32.totalorder %s529, %s531
      %p535 = scmp.eq.s32.totalorder %s33, 0
      %p536 = por %p534, %p535
      %p537 = scmp.ne.s32.totalorder %s529, %s531
      %p538 = scmp.eq.s32.totalorder %s38, 1
      %p539 = por %p537, %p538
      %p540 = scmp.ne.s32.totalorder %s531, %s532
      %p541 = scmp.eq.s32.totalorder %s38, 0
      %p542 = por %p540, %p541
      %p543 = scmp.ne.s32.totalorder %s531, %s532
      %p544 = scmp.eq.s32.totalorder %s39, 1
      %p545 = por %p543, %p544
      %p547 = scmp.ne.s32.totalorder %s532, %s546
      %p548 = scmp.eq.s32.totalorder %s39, 0
      %p549 = por %p547, %p548
      %s550 = ssub.s32 %s33, %s40
      %p551 = scmp.eq.s32.totalorder %s550, 0
      %s553 = sadd.s32 %s552, 1
      %s554 = scalar_select %p551, %s552, %s553
      %p557 = pneg %p551
      %p558 = scmp.eq.s32.totalorder %s33, 1
      %p559 = por %p557, %p558
      %p560 = scmp.ne.s32.totalorder %s552, %s555
      %p561 = scmp.eq.s32.totalorder %s33, 0
      %p562 = por %p560, %p561
      %p563 = scmp.ne.s32.totalorder %s552, %s555
      %p564 = scmp.eq.s32.totalorder %s38, 1
      %p565 = por %p563, %p564
      %p566 = scmp.ne.s32.totalorder %s555, %s556
      %p567 = scmp.eq.s32.totalorder %s38, 0
      %p568 = por %p566, %p567
      %p569 = scmp.ne.s32.totalorder %s555, %s556
      %p570 = scmp.eq.s32.totalorder %s39, 1
      %p571 = por %p569, %p570
      %p573 = scmp.ne.s32.totalorder %s556, %s572
      %p574 = scmp.eq.s32.totalorder %s39, 0
      %p575 = por %p573, %p574
      %p576 = scmp.le.s32.totalorder 1, %s33
      %p577 = scmp.lt.s32.totalorder %s33, 3
      %p578 = pnand %p576, %p577
      %p579 = pneg %p578
      // Predicated region
      $region9: #{net_forward.1} parent=5 // pred_check
        _
      $region10: #{net_forward.1} parent=5 // pred_check_branch
        %581 = sbr.rel (%p578) target = $region12
      $region11: #{net_forward.1} parent=5 // pred_region
        %s582 = ssub.s32 %s33, 1
        // Predicated region
        $region13: #{net_forward.1} parent=11 // pred_check
          %p583 = pneg %p80
        $region14: #{net_forward.1} parent=11 // pred_check_branch
          %585 = sbr.rel (%p583) target = $region16
        $region15: #{net_forward.1} parent=11 // pred_region
          _
        $region16: #{net_forward.1} parent=11 // pred_fallthru
          _
        // Predicated region
        $region17: #{net_forward.1} parent=11 // pred_check
          %p586 = pneg %p101
        $region18: #{net_forward.1} parent=11 // pred_check_branch
          %588 = sbr.rel (%p586) target = $region20
        $region19: #{net_forward.1} parent=11 // pred_region
          %s590 = ssub.s32 2880, 2880
          %591 = vsyncadd [#allocation8], %s590
          %s592 = sshll.u32 [#allocation7], 4
          %s593 = int_to_ptr.vmem [resolvable:$true] %s592
          %598 = dma.hbm_to_vmem [thread:$0]  %s2, 2880, %s593, [#allocation8], 192, 192, 12
        $region20: #{net_forward.1} parent=11 // pred_fallthru
          _
        // Predicated region
        $region21: #{net_forward.1} parent=11 // pred_check
          %p599 = pneg %p122
        $region22: #{net_forward.1} parent=11 // pred_check_branch
          %601 = sbr.rel (%p599) target = $region24
        $region23: #{net_forward.1} parent=11 // pred_region
          _
        $region24: #{net_forward.1} parent=11 // pred_fallthru
          _
        // Predicated region
        $region25: #{net_forward.1} parent=11 // pred_check
          %p602 = pneg %p143
        $region26: #{net_forward.1} parent=11 // pred_check_branch
          %604 = sbr.rel (%p602) target = $region28
        $region27: #{net_forward.1} parent=11 // pred_region
          _
        $region28: #{net_forward.1} parent=11 // pred_fallthru
          _
        // Predicated region
        $region29: #{net_forward.1} parent=11 // pred_check
          %p605 = pneg %p164
        $region30: #{net_forward.1} parent=11 // pred_check_branch
          %607 = sbr.rel (%p605) target = $region32
        $region31: #{net_forward.1} parent=11 // pred_region
          _
        $region32: #{net_forward.1} parent=11 // pred_fallthru
          _
        // Predicated region
        $region33: #{net_forward.1} parent=11 // pred_check
          %p608 = pneg %p185
        $region34: #{net_forward.1} parent=11 // pred_check_branch
          %610 = sbr.rel (%p608) target = $region36
        $region35: #{net_forward.1} parent=11 // pred_region
          _
        $region36: #{net_forward.1} parent=11 // pred_fallthru
          _
        // Predicated region
        $region37: #{net_forward.1} parent=11 // pred_check
          %p611 = pneg %p206
        $region38: #{net_forward.1} parent=11 // pred_check_branch
          %613 = sbr.rel (%p611) target = $region40
        $region39: #{net_forward.1} parent=11 // pred_region
          _
        $region40: #{net_forward.1} parent=11 // pred_fallthru
          _
        // Predicated region
        $region41: #{net_forward.1} parent=11 // pred_check
          %p614 = pneg %p227
        $region42: #{net_forward.1} parent=11 // pred_check_branch
          %616 = sbr.rel (%p614) target = $region44
        $region43: #{net_forward.1} parent=11 // pred_region
          _
        $region44: #{net_forward.1} parent=11 // pred_fallthru
          _
        // Predicated region
        $region45: #{net_forward.1} parent=11 // pred_check
          %p617 = pneg %p248
        $region46: #{net_forward.1} parent=11 // pred_check_branch
          %619 = sbr.rel (%p617) target = $region48
        $region47: #{net_forward.1} parent=11 // pred_region
          _
        $region48: #{net_forward.1} parent=11 // pred_fallthru
          _
        // Predicated region
        $region49: #{net_forward.1} parent=11 // pred_check
          %p620 = pneg %p269
        $region50: #{net_forward.1} parent=11 // pred_check_branch
          %622 = sbr.rel (%p620) target = $region52
        $region51: #{net_forward.1} parent=11 // pred_region
          _
        $region52: #{net_forward.1} parent=11 // pred_fallthru
          _
        // Predicated region
        $region53: #{net_forward.1} parent=11 // pred_check
          %p623 = pneg %p290
        $region54: #{net_forward.1} parent=11 // pred_check_branch
          %625 = sbr.rel (%p623) target = $region56
        $region55: #{net_forward.1} parent=11 // pred_region
          %s627 = ssub.s32 6144, 6144
          %628 = vsyncadd [#allocation10], %s627
          %s629 = sshll.u32 [#allocation9], 4
          %s630 = int_to_ptr.vmem [resolvable:$true] %s629
          %635 = dma.hbm_to_vmem [thread:$0]  %s11, 6144, %s630, [#allocation10], 192, 192, 12
        $region56: #{net_forward.1} parent=11 // pred_fallthru
          _
        // Predicated region
        $region57: #{net_forward.1} parent=11 // pred_check
          %p636 = pneg %p311
        $region58: #{net_forward.1} parent=11 // pred_check_branch
          %638 = sbr.rel (%p636) target = $region60
        $region59: #{net_forward.1} parent=11 // pred_region
          %s640 = ssub.s32 4608, 4608
          %641 = vsyncadd [#allocation10], %s640
          %s642 = sshll.u32 [#allocation11], 4
          %s643 = int_to_ptr.vmem [resolvable:$true] %s642
          %648 = dma.hbm_to_vmem [thread:$0]  %s12, 4608, %s643, [#allocation10], 64, 64, 4
        $region60: #{net_forward.1} parent=11 // pred_fallthru
          _
        // Predicated region
        $region61: #{net_forward.1} parent=11 // pred_check
          %p649 = pneg %p332
        $region62: #{net_forward.1} parent=11 // pred_check_branch
          %651 = sbr.rel (%p649) target = $region64
        $region63: #{net_forward.1} parent=11 // pred_region
          _
        $region64: #{net_forward.1} parent=11 // pred_fallthru
          _
        // Predicated region
        $region65: #{net_forward.1} parent=11 // pred_check
          %p652 = pneg %p353
        $region66: #{net_forward.1} parent=11 // pred_check_branch
          %654 = sbr.rel (%p652) target = $region68
        $region67: #{net_forward.1} parent=11 // pred_region
          _
        $region68: #{net_forward.1} parent=11 // pred_fallthru
          _
        // Predicated region
        $region69: #{net_forward.1} parent=11 // pred_check
          %p655 = pneg %p374
        $region70: #{net_forward.1} parent=11 // pred_check_branch
          %657 = sbr.rel (%p655) target = $region72
        $region71: #{net_forward.1} parent=11 // pred_region
          %s659 = ssub.s32 2048, 2048
          %660 = vsyncadd [#allocation13], %s659
          %s661 = sshll.u32 [#allocation12], 4
          %s662 = int_to_ptr.vmem [resolvable:$true] %s661
          %667 = dma.hbm_to_vmem [thread:$0]  %s15, 2048, %s662, [#allocation13], 128, 128, 8
        $region72: #{net_forward.1} parent=11 // pred_fallthru
          _
        // Predicated region
        $region73: #{net_forward.1} parent=11 // pred_check
          %p668 = pneg %p395
        $region74: #{net_forward.1} parent=11 // pred_check_branch
          %670 = sbr.rel (%p668) target = $region76
        $region75: #{net_forward.1} parent=11 // pred_region
          %s672 = ssub.s32 3072, 3072
          %673 = vsyncadd [#allocation13], %s672
          %s674 = sshll.u32 [#allocation14], 4
          %s675 = int_to_ptr.vmem [resolvable:$true] %s674
          %680 = dma.hbm_to_vmem [thread:$0]  %s16, 3072, %s675, [#allocation13], 64, 64, 4
        $region76: #{net_forward.1} parent=11 // pred_fallthru
          _
        // Predicated region
        $region77: #{net_forward.1} parent=11 // pred_check
          %p681 = pneg %p416
        $region78: #{net_forward.1} parent=11 // pred_check_branch
          %683 = sbr.rel (%p681) target = $region80
        $region79: #{net_forward.1} parent=11 // pred_region
          _
        $region80: #{net_forward.1} parent=11 // pred_fallthru
          _
        // Predicated region
        $region81: #{net_forward.1} parent=11 // pred_check
          %p684 = pneg %p437
        $region82: #{net_forward.1} parent=11 // pred_check_branch
          %686 = sbr.rel (%p684) target = $region84
        $region83: #{net_forward.1} parent=11 // pred_region
          _
        $region84: #{net_forward.1} parent=11 // pred_fallthru
          _
        // Predicated region
        $region85: #{net_forward.1} parent=11 // pred_check
          %p687 = pneg %p458
        $region86: #{net_forward.1} parent=11 // pred_check_branch
          %689 = sbr.rel (%p687) target = $region88
        $region87: #{net_forward.1} parent=11 // pred_region
          _
        $region88: #{net_forward.1} parent=11 // pred_fallthru
          _
        // Predicated region
        $region89: #{net_forward.1} parent=11 // pred_check
          %p690 = pneg %p479
        $region90: #{net_forward.1} parent=11 // pred_check_branch
          %692 = sbr.rel (%p690) target = $region92
        $region91: #{net_forward.1} parent=11 // pred_region
          _
        $region92: #{net_forward.1} parent=11 // pred_fallthru
          _
        // Predicated region
        $region93: #{net_forward.1} parent=11 // pred_check
          %p693 = pneg %p500
        $region94: #{net_forward.1} parent=11 // pred_check_branch
          %695 = sbr.rel (%p693) target = $region96
        $region95: #{net_forward.1} parent=11 // pred_region
          _
        $region96: #{net_forward.1} parent=11 // pred_fallthru
          _
        // Predicated region
        $region97: #{net_forward.1} parent=11 // pred_check
          %p696 = pneg %p521
        $region98: #{net_forward.1} parent=11 // pred_check_branch
          %698 = sbr.rel (%p696) target = $region100
        $region99: #{net_forward.1} parent=11 // pred_region
          _
        $region100: #{net_forward.1} parent=11 // pred_fallthru
          _
        // Predicated region
        $region101: #{net_forward.1} parent=11 // pred_check
          %p699 = pneg %p542
        $region102: #{net_forward.1} parent=11 // pred_check_branch
          %701 = sbr.rel (%p699) target = $region104
        $region103: #{net_forward.1} parent=11 // pred_region
          _
        $region104: #{net_forward.1} parent=11 // pred_fallthru
          _
      $region12: #{net_forward.1} parent=5 // pred_fallthru
        _
      %p702 = scmp.lt.s32.totalorder %s33, 2
      // Predicated region
      $region105: #{net_forward.1} parent=5 // pred_check
        %p703 = pneg %p702
      $region106: #{net_forward.1} parent=5 // pred_check_branch
        %705 = sbr.rel (%p703) target = $region108
      $region107: #{net_forward.1} parent=5 // pred_region
        // Predicated region
        $region109: #{net_forward.1} parent=107 // pred_check
          %p706 = pneg %p53
        $region110: #{net_forward.1} parent=107 // pred_check_branch
          %708 = sbr.rel (%p706) target = $region112
        $region111: #{net_forward.1} parent=107 // pred_region
          %p709 = scmp.lt.s32.totalorder %s33, 1
          %s710 = scalar_select %p709, %s33, 1
          %s711 = smul.addr %s710, 8
          %s712 = smul.addr %s711, 8
          %s713 = scalar_lea.vmem %s0, %s712
        $region112: #{net_forward.1} parent=107 // pred_fallthru
          _
      $region108: #{net_forward.1} parent=5 // pred_fallthru
        _
      %p714 = scmp.le.s32.totalorder 1, %s33
      %p715 = scmp.lt.s32.totalorder %s33, 3
      %p716 = pnand %p714, %p715
      %p717 = pneg %p716
      // Predicated region
      $region113: #{net_forward.1} parent=5 // pred_check
        _
      $region114: #{net_forward.1} parent=5 // pred_check_branch
        %719 = sbr.rel (%p716) target = $region116
      $region115: #{net_forward.1} parent=5 // pred_region
        %s720 = ssub.s32 %s33, 1
        // Predicated region
        $region117: #{net_forward.1} parent=115 // pred_check
          %p721 = pneg %p101
        $region118: #{net_forward.1} parent=115 // pred_check_branch
          %723 = sbr.rel (%p721) target = $region120
        $region119: #{net_forward.1} parent=115 // pred_region
          %724 = dma.done [#allocation8], 2880
        $region120: #{net_forward.1} parent=115 // pred_fallthru
          _
        // Predicated region
        $region121: #{net_forward.1} parent=115 // pred_check
          %p725 = pneg %p290
        $region122: #{net_forward.1} parent=115 // pred_check_branch
          %727 = sbr.rel (%p725) target = $region124
        $region123: #{net_forward.1} parent=115 // pred_region
          %728 = dma.done [#allocation10], 6144
        $region124: #{net_forward.1} parent=115 // pred_fallthru
          _
        // Predicated region
        $region125: #{net_forward.1} parent=115 // pred_check
          %p729 = pneg %p311
        $region126: #{net_forward.1} parent=115 // pred_check_branch
          %731 = sbr.rel (%p729) target = $region128
        $region127: #{net_forward.1} parent=115 // pred_region
          %732 = dma.done [#allocation10], 4608
        $region128: #{net_forward.1} parent=115 // pred_fallthru
          _
        // Predicated region
        $region129: #{net_forward.1} parent=115 // pred_check
          %p733 = pneg %p374
        $region130: #{net_forward.1} parent=115 // pred_check_branch
          %735 = sbr.rel (%p733) target = $region132
        $region131: #{net_forward.1} parent=115 // pred_region
          %736 = dma.done [#allocation13], 2048
        $region132: #{net_forward.1} parent=115 // pred_fallthru
          _
        // Predicated region
        $region133: #{net_forward.1} parent=115 // pred_check
          %p737 = pneg %p395
        $region134: #{net_forward.1} parent=115 // pred_check_branch
          %739 = sbr.rel (%p737) target = $region136
        $region135: #{net_forward.1} parent=115 // pred_region
          %740 = dma.done [#allocation13], 3072
        $region136: #{net_forward.1} parent=115 // pred_fallthru
          _
        %p741 = scmp.lt.s32.totalorder %s38, 1
        %s742 = scalar_select %p741, %s38, 1
        %s743 = smul.addr %s742, 8
        %s744 = smul.addr %s743, 8
        %s745 = scalar_lea.vmem %s0, %s744
        %p746 = pneg %p59
        %p747 = pneg %p56
        %p748 = pneg %p80
        %p749 = pneg %p77
        %p750 = pneg %p101
        %p751 = pneg %p98
        %p752 = pneg %p122
        %p753 = pneg %p119
        %p754 = pneg %p143
        %p755 = pneg %p140
        %p756 = pneg %p164
        %p757 = pneg %p161
        %p758 = pneg %p185
        %p759 = pneg %p182
        %p760 = pneg %p206
        %p761 = pneg %p203
        %p762 = pneg %p227
        %p763 = pneg %p224
        %p764 = pneg %p248
        %p765 = pneg %p245
        %p766 = pneg %p269
        %p767 = pneg %p266
        %p768 = pneg %p290
        %p769 = pneg %p287
        %p770 = pneg %p311
        %p771 = pneg %p308
        %p772 = pneg %p332
        %p773 = pneg %p329
        %p774 = pneg %p353
        %p775 = pneg %p350
        %p776 = pneg %p374
        %p777 = pneg %p371
        %p778 = pneg %p395
        %p779 = pneg %p392
        %p780 = pneg %p416
        %p781 = pneg %p413
        %p782 = pneg %p437
        %p783 = pneg %p434
        %p784 = pneg %p458
        %p785 = pneg %p455
        %p786 = pneg %p479
        %p787 = pneg %p476
        %p788 = pneg %p500
        %p789 = pneg %p497
        %p790 = pneg %p521
        %p791 = pneg %p518
        %p792 = pneg %p542
        %p793 = pneg %p539
        %p794 = pneg %p568
        %p795 = pneg %p565
        %p796 = scmp.lt.s32.totalorder %s38, 1
        %s797 = scalar_select %p796, %s38, 1
        %s798 = smul.addr %s797, 2
        %s799 = scalar_lea.vmem %s24, %s798
        %p800 = scmp.lt.s32.totalorder %s38, 1
        %s801 = scalar_select %p800, %s38, 1
        %s802 = smul.addr %s801, 8
        %s803 = smul.addr %s802, 8
        %s804 = scalar_lea.vmem %s0, %s803
        %p805 = scmp.lt.s32.totalorder %s38, 1
        %s806 = scalar_select %p805, %s38, 1
        %s807 = smul.addr %s806, 2
        %s808 = scalar_lea.vmem %s24, %s807
        %vm810 = vcmask 286720
        %811 = vst.msk [vmem:[#allocation2] sm:$0x1] %vm810, 0
        %vm812 = vcmask 289795
        %813 = vst.msk [vmem:[#allocation2 + $0x20] sm:$0x8] %vm812, 0
        %vm814 = vcmask 288769
        %815 = vst.msk [vmem:[#allocation2 + $0x10] sm:$0x6] %vm814, 0
        %v816 = vld [vmem:[%s804] sm:$0xff]
        %v817 = vld [vmem:[%s804 + $0x8] sm:$0xff]
        %v818 = vld [vmem:[%s804 + $0x10] sm:$0xff]
        %v819 = vld [vmem:[%s804 + $0x18] sm:$0xff]
        %v820 = vld [vmem:[%s804 + $0x20] sm:$0xff]
        %v821 = vld [vmem:[%s804 + $0x28] sm:$0xff]
        %v822 = vld [vmem:[%s804 + $0x30] sm:$0xff]
        %v823 = vld [vmem:[%s804 + $0x38] sm:$0xff]
        %v824 = vpack.c.bf16 %v817, %v816
        %v825 = vpack.c.bf16 %v819, %v818
        %v826 = vpack.c.bf16 %v821, %v820
        %v827 = vpack.c.bf16 %v823, %v822
        %v828 = vld [vmem:[%s1] sm:$0xf]
        %v829 = vld [vmem:[%s1 + $0x4] sm:$0xf]
        %v830 = vld [vmem:[%s1 + $0x8] sm:$0xf]
        %v831 = vld [vmem:[%s1 + $0xc] sm:$0xf]
        %v832 = vld [vmem:[%s1 + $0x10] sm:$0xf]
        %v833 = vld [vmem:[%s1 + $0x14] sm:$0xf]
        %v834 = vld [vmem:[%s1 + $0x18] sm:$0xf]
        %v835 = vld [vmem:[%s1 + $0x1c] sm:$0xf]
        %v836 = vld [vmem:[%s1 + $0x20] sm:$0xf]
        %v837 = vld [vmem:[%s1 + $0x24] sm:$0xf]
        %v838 = vld [vmem:[%s1 + $0x28] sm:$0xf]
        %v839 = vld [vmem:[%s1 + $0x2c] sm:$0xf]
        %v840 = vld [vmem:[%s1 + $0x30] sm:$0xf]
        %v841 = vld [vmem:[%s1 + $0x34] sm:$0xf]
        %v842 = vld [vmem:[%s1 + $0x38] sm:$0xf]
        %v843 = vld [vmem:[%s1 + $0x3c] sm:$0xf]
        %v860 = vunpack.c.l.b16 %v828
        %v861 = vunpack.c.l.b16 %v829
        %v862 = vunpack.c.l.b16 %v830
        %v863 = vunpack.c.l.b16 %v831
        %v864 = vunpack.c.l.b16 %v832
        %v865 = vunpack.c.l.b16 %v833
        %v866 = vunpack.c.l.b16 %v834
        %v867 = vunpack.c.l.b16 %v835
        %v868 = vunpack.c.l.b16 %v836
        %v869 = vunpack.c.l.b16 %v837
        %v870 = vunpack.c.l.b16 %v838
        %v871 = vunpack.c.l.b16 %v839
        %v872 = vunpack.c.l.b16 %v840
        %v873 = vunpack.c.l.b16 %v841
        %v874 = vunpack.c.l.b16 %v842
        %v875 = vunpack.c.l.b16 %v843
        %v876 = vpack.c.b16 %v861, %v860
        %v877 = vpack.c.b16 %v863, %v862
        %v878 = vpack.c.b16 %v865, %v864
        %v879 = vpack.c.b16 %v867, %v866
        %v880 = vpack.c.b16 %v869, %v868
        %v881 = vpack.c.b16 %v871, %v870
        %v882 = vpack.c.b16 %v873, %v872
        %v883 = vpack.c.b16 %v875, %v874
        %892 = vmatprep.subr.bf16.mxu0 0
        %893 = vmatpush1.bf16.msra.mxu0 %v883
        %894 = vmatprep.subr.bf16.mxu0 0
        %895 = vmatpush1.bf16.msra.mxu0 %v882
        %896 = vmatprep.subr.bf16.mxu0 0
        %897 = vmatpush1.bf16.msra.mxu0 %v881
        %898 = vmatprep.subr.bf16.mxu0 0
        %899 = vmatpush1.bf16.msra.mxu0 %v880
        %900 = vmatprep.subr.bf16.mxu0 0
        %901 = vmatpush1.bf16.msra.mxu0 %v879
        %902 = vmatprep.subr.bf16.mxu0 0
        %903 = vmatpush1.bf16.msra.mxu0 %v878
        %904 = vmatprep.subr.bf16.mxu0 0
        %905 = vmatpush1.bf16.msra.mxu0 %v877
        %906 = vmatprep.subr.bf16.mxu0 0
        %907 = vmatpush1.bf16.msra.mxu0 %v876
        %908 = vmatprep.subr.bf16.mxu0 0
        %909 = vmatpush2.bf16.msra.mxu0 0
        %910 = vmatprep.subr.bf16.mxu0 0
        %911 = vmatpush2.bf16.msra.mxu0 0
        %912 = vmatprep.subr.bf16.mxu0 0
        %913 = vmatpush2.bf16.msra.mxu0 0
        %914 = vmatprep.subr.bf16.mxu0 0
        %915 = vmatpush2.bf16.msra.mxu0 0
        %916 = vmatprep.subr.bf16.mxu0 0
        %917 = vmatpush2.bf16.msra.mxu0 0
        %918 = vmatprep.subr.bf16.mxu0 0
        %919 = vmatpush2.bf16.msra.mxu0 0
        %920 = vmatprep.subr.bf16.mxu0 0
        %921 = vmatpush2.bf16.msra.mxu0 0
        %922 = vmatprep.subr.bf16.mxu0 0
        %923 = vmatpush2.bf16.msra.mxu0 0
        %924 = vmatprep.mubr.bf16.mxu0 0
        %925 = vmatmul.mubr.bf16.gmra.mxu0 %v824
        %v926 = vpop.f32.mrf.mxu0
        %v927 = vadd.f32 0.0, %v926
        %v928 = vpop.f32.mrf.mxu0
        %v929 = vpop.f32.mrf.mxu0
        %v930 = vadd.f32 0.0, %v929
        %v931 = vpop.f32.mrf.mxu0
        %932 = vmatprep.mubr.bf16.mxu0 0
        %933 = vmatmul.mubr.bf16.gmra.mxu0 %v825
        %v934 = vpop.f32.mrf.mxu0
        %v935 = vadd.f32 0.0, %v934
        %v936 = vpop.f32.mrf.mxu0
        %v937 = vpop.f32.mrf.mxu0
        %v938 = vadd.f32 0.0, %v937
        %v939 = vpop.f32.mrf.mxu0
        %940 = vmatprep.mubr.bf16.mxu0 0
        %941 = vmatmul.mubr.bf16.gmra.mxu0 %v826
        %v942 = vpop.f32.mrf.mxu0
        %v943 = vadd.f32 0.0, %v942
        %v944 = vpop.f32.mrf.mxu0
        %v945 = vpop.f32.mrf.mxu0
        %v946 = vadd.f32 0.0, %v945
        %v947 = vpop.f32.mrf.mxu0
        %948 = vmatprep.mubr.bf16.mxu0 0
        %949 = vmatmul.mubr.bf16.gmra.mxu0 %v827
        %v950 = vpop.f32.mrf.mxu0
        %v951 = vadd.f32 0.0, %v950
        %v952 = vpop.f32.mrf.mxu0
        %v953 = vpop.f32.mrf.mxu0
        %v954 = vadd.f32 0.0, %v953
        %v955 = vpop.f32.mrf.mxu0
        %956 = vdwg.mxu0
        %v957 = vpack.c.bf16 %v930, %v927
        %v958 = vpack.c.bf16 %v938, %v935
        %v961 = vunpack.c.l.b16 %v957
        %v962 = vunpack.c.h.b16 %v957
        %v963 = vunpack.c.l.b16 %v958
        %v964 = vunpack.c.h.b16 %v958
        %v965 = vpack.c.b16 %v961, %v961
        %v966 = vpack.c.b16 %v962, %v962
        %v967 = vpack.c.b16 %v963, %v963
        %v968 = vpack.c.b16 %v964, %v964
        %vm969 = vcmask 1040384
        %vm970 = vcmask 1044484
        %vm971 = vmor %vm969, %vm970
        %v972 = vrot.slane %v965, 7
        %v973 = vrot.slane %v972, 4
        %v974 = vrot.slane %v966, 7
        %v975 = vsel %vm971, %v973, %v974
        %v976 = vrot.slane %v974, 4
        %v977 = vrot.slane %v967, 7
        %v978 = vsel %vm971, %v976, %v977
        %v979 = vrot.slane %v977, 4
        %v980 = vrot.slane %v968, 7
        %v981 = vsel %vm971, %v979, %v980
        %v982 = vrot.slane %v980, 4
        %vm988 = vcmask 289793
        %989 = vst.msk [vmem:[#allocation2] sm:$0xe] %vm988, %v972
        %vm990 = vcmask 289792
        %991 = vst.msk [vmem:[#allocation2 + $0x4] sm:$0xf] %vm990, %v975
        %992 = vst.msk [vmem:[#allocation2 + $0x8] sm:$0xf] %vm990, %v978
        %993 = vst.msk [vmem:[#allocation2 + $0xc] sm:$0xf] %vm990, %v981
        %994 = vst.msk [vmem:[#allocation2 + $0x10] sm:$0x1] %vm810, %v982
        %v995 = vpack.c.bf16 %v946, %v943
        %v996 = vpack.c.bf16 %v954, %v951
        %v999 = vunpack.c.l.b16 %v995
        %v1000 = vunpack.c.h.b16 %v995
        %v1001 = vunpack.c.l.b16 %v996
        %v1002 = vunpack.c.h.b16 %v996
        %v1003 = vpack.c.b16 %v999, %v999
        %v1004 = vpack.c.b16 %v1000, %v1000
        %v1005 = vpack.c.b16 %v1001, %v1001
        %v1006 = vpack.c.b16 %v1002, %v1002
        %vm1007 = vcmask 1042432
        %vm1008 = vcmask 1046532
        %vm1009 = vmor %vm1007, %vm1008
        %v1010 = vrot.slane %v1003, 5
        %v1011 = vrot.slane %v1010, 4
        %v1012 = vrot.slane %v1004, 5
        %v1013 = vsel %vm1009, %v1011, %v1012
        %v1014 = vrot.slane %v1012, 4
        %v1015 = vrot.slane %v1005, 5
        %v1016 = vsel %vm1009, %v1014, %v1015
        %v1017 = vrot.slane %v1015, 4
        %v1018 = vrot.slane %v1006, 5
        %v1019 = vsel %vm1009, %v1017, %v1018
        %v1020 = vrot.slane %v1018, 4
        %1026 = vst.msk [vmem:[#allocation2 + $0x10] sm:$0x8] %vm812, %v1010
        %1027 = vst.msk [vmem:[#allocation2 + $0x14] sm:$0xf] %vm990, %v1013
        %1028 = vst.msk [vmem:[#allocation2 + $0x18] sm:$0xf] %vm990, %v1016
        %1029 = vst.msk [vmem:[#allocation2 + $0x1c] sm:$0xf] %vm990, %v1019
        %vm1030 = vcmask 288768
        %1031 = vst.msk [vmem:[#allocation2 + $0x20] sm:$0x7] %vm1030, %v1020
        %v1032 = vld [vmem:[#allocation2] sm:$0xf]
        %v1033 = vld [vmem:[#allocation2 + $0x4] sm:$0xf]
        %v1034 = vld [vmem:[#allocation2 + $0x8] sm:$0xf]
        %v1035 = vld [vmem:[#allocation2 + $0xc] sm:$0xf]
        %v1036 = vld [vmem:[#allocation2 + $0x10] sm:$0xf]
        %v1037 = vld [vmem:[#allocation2 + $0x14] sm:$0xf]
        %v1038 = vld [vmem:[#allocation2 + $0x18] sm:$0xf]
        %v1039 = vld [vmem:[#allocation2 + $0x1c] sm:$0xf]
        %v1040 = vld [vmem:[#allocation2 + $0x20] sm:$0x3]
        %v1041 = vld [vmem:[#allocation7] sm:$0xff]
        %v1042 = vld [vmem:[#allocation7 + $0x8] sm:$0xf]
        %v1043 = vld [vmem:[#allocation7 + $0xc] sm:$0xff]
        %v1044 = vld [vmem:[#allocation7 + $0x14] sm:$0xf]
        %v1045 = vld [vmem:[#allocation7 + $0x18] sm:$0xff]
        %v1046 = vld [vmem:[#allocation7 + $0x20] sm:$0xf]
        %v1047 = vld [vmem:[#allocation7 + $0x24] sm:$0xff]
        %v1048 = vld [vmem:[#allocation7 + $0x2c] sm:$0xf]
        %v1049 = vld [vmem:[#allocation7 + $0x30] sm:$0x33]
        %v1050 = vld [vmem:[#allocation7 + $0x38] sm:$0x3]
        %v1051 = vld [vmem:[#allocation2] sm:$0xe]
        %v1052 = vld [vmem:[#allocation2 + $0x20] sm:$0x7]
        %s1053 = scalar_lea.vmem [#allocation7], 60
        %v1054 = vld [vmem:[%s1053] sm:$0xff]
        %v1055 = vld [vmem:[%s1053 + $0x8] sm:$0xf]
        %v1056 = vld [vmem:[%s1053 + $0xc] sm:$0xff]
        %v1057 = vld [vmem:[%s1053 + $0x14] sm:$0xf]
        %v1058 = vld [vmem:[%s1053 + $0x18] sm:$0xff]
        %v1059 = vld [vmem:[%s1053 + $0x20] sm:$0xf]
        %v1060 = vld [vmem:[%s1053 + $0x24] sm:$0xff]
        %v1061 = vld [vmem:[%s1053 + $0x2c] sm:$0xf]
        %v1062 = vld [vmem:[%s1053 + $0x30] sm:$0x33]
        %v1063 = vld [vmem:[%s1053 + $0x38] sm:$0x3]
        %v1073 = vunpack.c.l.b16 %v1051
        %v1074 = vunpack.c.l.b16 %v1033
        %v1075 = vunpack.c.l.b16 %v1034
        %v1076 = vunpack.c.l.b16 %v1035
        %v1077 = vunpack.c.l.b16 %v1036
        %v1078 = vunpack.c.l.b16 %v1037
        %v1079 = vunpack.c.l.b16 %v1038
        %v1080 = vunpack.c.l.b16 %v1039
        %v1081 = vunpack.c.l.b16 %v1052
        %v1082 = vpack.c.b16 %v1074, %v1073
        %v1083 = vpack.c.b16 %v1076, %v1075
        %v1084 = vpack.c.b16 %v1078, %v1077
        %v1085 = vpack.c.b16 %v1080, %v1079
        %v1086 = vpack.c.b16 %v1081, %v1081
        %vm1087 = vcmask 1046528
        %v1088 = vrot.slane %v1082, 1
        %v1089 = vrot.slane %v1083, 1
        %v1090 = vsel %vm1087, %v1088, %v1089
        %v1091 = vrot.slane %v1084, 1
        %v1092 = vsel %vm1087, %v1089, %v1091
        %v1093 = vrot.slane %v1085, 1
        %v1094 = vsel %vm1087, %v1091, %v1093
        %v1095 = vrot.slane %v1086, 1
        %v1096 = vsel %vm1087, %v1093, %v1095
        %v1107 = vunpack.c.l.b16 %v1054
        %v1108 = vunpack.c.h.b16 %v1054
        %v1109 = vunpack.c.l.b16 %v1055
        %v1110 = vunpack.c.l.b16 %v1056
        %v1111 = vunpack.c.h.b16 %v1056
        %v1112 = vunpack.c.l.b16 %v1057
        %v1113 = vunpack.c.l.b16 %v1058
        %v1114 = vunpack.c.h.b16 %v1058
        %v1115 = vunpack.c.l.b16 %v1059
        %v1116 = vunpack.c.l.b16 %v1060
        %v1117 = vunpack.c.h.b16 %v1060
        %v1118 = vunpack.c.l.b16 %v1061
        %v1119 = vunpack.c.l.b16 %v1062
        %v1120 = vunpack.c.h.b16 %v1062
        %v1121 = vunpack.c.l.b16 %v1063
        %v1122 = vpack.c.b16 %v1110, %v1107
        %v1123 = vpack.c.b16 %v1111, %v1108
        %v1124 = vpack.c.b16 %v1112, %v1109
        %v1125 = vpack.c.b16 %v1116, %v1113
        %v1126 = vpack.c.b16 %v1117, %v1114
        %v1127 = vpack.c.b16 %v1118, %v1115
        %v1128 = vpack.c.b16 %v1119, %v1119
        %v1129 = vpack.c.b16 %v1120, %v1120
        %v1130 = vpack.c.b16 %v1121, %v1121
        %vm1137 = vcmask 293888
        %v1139 = vsel %vm1137, %v1090, 0
        %v1142 = vsel %vm1137, %v1092, 0
        %v1145 = vsel %vm1137, %v1094, 0
        %v1148 = vsel %vm1137, %v1096, 0
        %v1151 = vsel %vm1137, %v1095, 0
        %vm1153 = vcmask 1041408
        %v1155 = vsel %vm1153, %v1128, 0
        %v1158 = vsel %vm1153, %v1129, 0
        %v1161 = vsel %vm1153, %v1130, 0
        %1163 = vmatprep.subr.bf16.mxu0 0
        %1164 = vmatpush1.bf16.msra.mxu0 0
        %1165 = vmatprep.subr.bf16.mxu0 0
        %1166 = vmatpush1.bf16.msra.mxu0 0
        %1167 = vmatprep.subr.bf16.mxu0 0
        %1168 = vmatpush1.bf16.msra.mxu0 0
        %1169 = vmatprep.subr.bf16.mxu0 0
        %1170 = vmatpush1.bf16.msra.mxu0 0
        %1171 = vmatprep.subr.bf16.mxu0 0
        %1172 = vmatpush1.bf16.msra.mxu0 0
        %1173 = vmatprep.subr.bf16.mxu0 %v1158
        %1174 = vmatpush1.bf16.msra.mxu0 %v1155
        %1175 = vmatprep.subr.bf16.mxu0 %v1126
        %1176 = vmatpush1.bf16.msra.mxu0 %v1125
        %1177 = vmatprep.subr.bf16.mxu0 %v1123
        %1178 = vmatpush1.bf16.msra.mxu0 %v1122
        %1179 = vmatprep.subr.bf16.mxu0 0
        %1180 = vmatpush2.bf16.msra.mxu0 0
        %1181 = vmatprep.subr.bf16.mxu0 0
        %1182 = vmatpush2.bf16.msra.mxu0 0
        %1183 = vmatprep.subr.bf16.mxu0 0
        %1184 = vmatpush2.bf16.msra.mxu0 0
        %1185 = vmatprep.subr.bf16.mxu0 0
        %1186 = vmatpush2.bf16.msra.mxu0 0
        %1187 = vmatprep.subr.bf16.mxu0 0
        %1188 = vmatpush2.bf16.msra.mxu0 0
        %1189 = vmatprep.subr.bf16.mxu0 0
        %1190 = vmatpush2.bf16.msra.mxu0 0
        %1191 = vmatprep.subr.bf16.mxu0 0
        %1192 = vmatpush2.bf16.msra.mxu0 0
        %1193 = vmatprep.subr.bf16.mxu0 0
        %1194 = vmatpush2.bf16.msra.mxu0 0
        %1195 = vmatprep.mubr.bf16.mxu0 0
        %1196 = vmatmul.mubr.bf16.gmra.mxu0 %v1139
        %v1197 = vpop.f32.mrf.mxu0
        %v1198 = vadd.f32 0.0, %v1197
        %v1199 = vpop.f32.mrf.mxu0
        %v1200 = vadd.f32 0.0, %v1199
        %v1201 = vpop.f32.mrf.mxu0
        %v1202 = vadd.f32 0.0, %v1201
        %v1203 = vpop.f32.mrf.mxu0
        %v1204 = vadd.f32 0.0, %v1203
        %1205 = vmatprep.mubr.bf16.mxu0 0
        %1206 = vmatmul.mubr.bf16.gmra.mxu0 %v1142
        %v1207 = vpop.f32.mrf.mxu0
        %v1208 = vadd.f32 0.0, %v1207
        %v1209 = vpop.f32.mrf.mxu0
        %v1210 = vadd.f32 0.0, %v1209
        %v1211 = vpop.f32.mrf.mxu0
        %v1212 = vadd.f32 0.0, %v1211
        %v1213 = vpop.f32.mrf.mxu0
        %v1214 = vadd.f32 0.0, %v1213
        %1215 = vmatprep.mubr.bf16.mxu0 0
        %1216 = vmatmul.mubr.bf16.gmra.mxu0 %v1145
        %v1217 = vpop.f32.mrf.mxu0
        %v1218 = vadd.f32 0.0, %v1217
        %v1219 = vpop.f32.mrf.mxu0
        %v1220 = vadd.f32 0.0, %v1219
        %v1221 = vpop.f32.mrf.mxu0
        %v1222 = vadd.f32 0.0, %v1221
        %v1223 = vpop.f32.mrf.mxu0
        %v1224 = vadd.f32 0.0, %v1223
        %1225 = vmatprep.mubr.bf16.mxu0 0
        %1226 = vmatmul.mubr.bf16.gmra.mxu0 %v1148
        %v1227 = vpop.f32.mrf.mxu0
        %v1228 = vadd.f32 0.0, %v1227
        %v1229 = vpop.f32.mrf.mxu0
        %v1230 = vadd.f32 0.0, %v1229
        %v1231 = vpop.f32.mrf.mxu0
        %v1232 = vadd.f32 0.0, %v1231
        %v1233 = vpop.f32.mrf.mxu0
        %v1234 = vadd.f32 0.0, %v1233
        %1235 = vmatprep.mubr.bf16.mxu0 0
        %1236 = vmatmul.mubr.bf16.gmra.mxu0 %v1151
        %v1237 = vpop.f32.mrf.mxu0
        %v1238 = vadd.f32 0.0, %v1237
        %v1239 = vpop.f32.mrf.mxu0
        %v1240 = vadd.f32 0.0, %v1239
        %v1241 = vpop.f32.mrf.mxu0
        %v1242 = vpop.f32.mrf.mxu0
        %1243 = vdwg.mxu0
        %1244 = vmatprep.subr.bf16.mxu0 0
        %1245 = vmatpush1.bf16.msra.mxu0 0
        %1246 = vmatprep.subr.bf16.mxu0 0
        %1247 = vmatpush1.bf16.msra.mxu0 0
        %1248 = vmatprep.subr.bf16.mxu0 0
        %1249 = vmatpush1.bf16.msra.mxu0 0
        %1250 = vmatprep.subr.bf16.mxu0 0
        %1251 = vmatpush1.bf16.msra.mxu0 0
        %1252 = vmatprep.subr.bf16.mxu0 0
        %1253 = vmatpush1.bf16.msra.mxu0 0
        %1254 = vmatprep.subr.bf16.mxu0 0
        %1255 = vmatpush1.bf16.msra.mxu0 %v1161
        %1256 = vmatprep.subr.bf16.mxu0 0
        %1257 = vmatpush1.bf16.msra.mxu0 %v1127
        %1258 = vmatprep.subr.bf16.mxu0 0
        %1259 = vmatpush1.bf16.msra.mxu0 %v1124
        %1260 = vmatprep.subr.bf16.mxu0 0
        %1261 = vmatpush2.bf16.msra.mxu0 0
        %1262 = vmatprep.subr.bf16.mxu0 0
        %1263 = vmatpush2.bf16.msra.mxu0 0
        %1264 = vmatprep.subr.bf16.mxu0 0
        %1265 = vmatpush2.bf16.msra.mxu0 0
        %1266 = vmatprep.subr.bf16.mxu0 0
        %1267 = vmatpush2.bf16.msra.mxu0 0
        %1268 = vmatprep.subr.bf16.mxu0 0
        %1269 = vmatpush2.bf16.msra.mxu0 0
        %1270 = vmatprep.subr.bf16.mxu0 0
        %1271 = vmatpush2.bf16.msra.mxu0 0
        %1272 = vmatprep.subr.bf16.mxu0 0
        %1273 = vmatpush2.bf16.msra.mxu0 0
        %1274 = vmatprep.subr.bf16.mxu0 0
        %1275 = vmatpush2.bf16.msra.mxu0 0
        %1276 = vmatprep.mubr.bf16.mxu0 0
        %1277 = vmatmul.mubr.bf16.gmra.mxu0 %v1139
        %v1278 = vpop.f32.mrf.mxu0
        %v1279 = vadd.f32 0.0, %v1278
        %v1280 = vpop.f32.mrf.mxu0
        %v1281 = vpop.f32.mrf.mxu0
        %v1282 = vadd.f32 0.0, %v1281
        %v1283 = vpop.f32.mrf.mxu0
        %1284 = vmatprep.mubr.bf16.mxu0 0
        %1285 = vmatmul.mubr.bf16.gmra.mxu0 %v1142
        %v1286 = vpop.f32.mrf.mxu0
        %v1287 = vadd.f32 0.0, %v1286
        %v1288 = vpop.f32.mrf.mxu0
        %v1289 = vpop.f32.mrf.mxu0
        %v1290 = vadd.f32 0.0, %v1289
        %v1291 = vpop.f32.mrf.mxu0
        %1292 = vmatprep.mubr.bf16.mxu0 0
        %1293 = vmatmul.mubr.bf16.gmra.mxu0 %v1145
        %v1294 = vpop.f32.mrf.mxu0
        %v1295 = vadd.f32 0.0, %v1294
        %v1296 = vpop.f32.mrf.mxu0
        %v1297 = vpop.f32.mrf.mxu0
        %v1298 = vadd.f32 0.0, %v1297
        %v1299 = vpop.f32.mrf.mxu0
        %1300 = vmatprep.mubr.bf16.mxu0 0
        %1301 = vmatmul.mubr.bf16.gmra.mxu0 %v1148
        %v1302 = vpop.f32.mrf.mxu0
        %v1303 = vadd.f32 0.0, %v1302
        %v1304 = vpop.f32.mrf.mxu0
        %v1305 = vpop.f32.mrf.mxu0
        %v1306 = vadd.f32 0.0, %v1305
        %v1307 = vpop.f32.mrf.mxu0
        %1308 = vmatprep.mubr.bf16.mxu0 0
        %1309 = vmatmul.mubr.bf16.gmra.mxu0 %v1151
        %v1310 = vpop.f32.mrf.mxu0
        %v1311 = vadd.f32 0.0, %v1310
        %v1312 = vpop.f32.mrf.mxu0
        %v1313 = vpop.f32.mrf.mxu0
        %v1314 = vpop.f32.mrf.mxu0
        %1315 = vdwg.mxu0
        %v1318 = vunpack.c.l.b16 %v1032
        %v1319 = vunpack.c.l.b16 %v1040
        %v1320 = vpack.c.b16 %v1074, %v1318
        %v1321 = vpack.c.b16 %v1319, %v1319
        %v1332 = vunpack.c.l.b16 %v1041
        %v1333 = vunpack.c.h.b16 %v1041
        %v1334 = vunpack.c.l.b16 %v1042
        %v1335 = vunpack.c.l.b16 %v1043
        %v1336 = vunpack.c.h.b16 %v1043
        %v1337 = vunpack.c.l.b16 %v1044
        %v1338 = vunpack.c.l.b16 %v1045
        %v1339 = vunpack.c.h.b16 %v1045
        %v1340 = vunpack.c.l.b16 %v1046
        %v1341 = vunpack.c.l.b16 %v1047
        %v1342 = vunpack.c.h.b16 %v1047
        %v1343 = vunpack.c.l.b16 %v1048
        %v1344 = vunpack.c.l.b16 %v1049
        %v1345 = vunpack.c.h.b16 %v1049
        %v1346 = vunpack.c.l.b16 %v1050
        %v1347 = vpack.c.b16 %v1335, %v1332
        %v1348 = vpack.c.b16 %v1336, %v1333
        %v1349 = vpack.c.b16 %v1337, %v1334
        %v1350 = vpack.c.b16 %v1341, %v1338
        %v1351 = vpack.c.b16 %v1342, %v1339
        %v1352 = vpack.c.b16 %v1343, %v1340
        %v1353 = vpack.c.b16 %v1344, %v1344
        %v1354 = vpack.c.b16 %v1345, %v1345
        %v1355 = vpack.c.b16 %v1346, %v1346
        %v1363 = vsel %vm1137, %v1320, 0
        %v1366 = vsel %vm1137, %v1083, 0
        %v1369 = vsel %vm1137, %v1084, 0
        %v1372 = vsel %vm1137, %v1085, 0
        %v1375 = vsel %vm1137, %v1321, 0
        %v1378 = vsel %vm1153, %v1353, 0
        %v1381 = vsel %vm1153, %v1354, 0
        %v1384 = vsel %vm1153, %v1355, 0
        %1386 = vmatprep.subr.bf16.mxu0 0
        %1387 = vmatpush1.bf16.msra.mxu0 0
        %1388 = vmatprep.subr.bf16.mxu0 0
        %1389 = vmatpush1.bf16.msra.mxu0 0
        %1390 = vmatprep.subr.bf16.mxu0 0
        %1391 = vmatpush1.bf16.msra.mxu0 0
        %1392 = vmatprep.subr.bf16.mxu0 0
        %1393 = vmatpush1.bf16.msra.mxu0 0
        %1394 = vmatprep.subr.bf16.mxu0 0
        %1395 = vmatpush1.bf16.msra.mxu0 0
        %1396 = vmatprep.subr.bf16.mxu0 %v1381
        %1397 = vmatpush1.bf16.msra.mxu0 %v1378
        %1398 = vmatprep.subr.bf16.mxu0 %v1351
        %1399 = vmatpush1.bf16.msra.mxu0 %v1350
        %1400 = vmatprep.subr.bf16.mxu0 %v1348
        %1401 = vmatpush1.bf16.msra.mxu0 %v1347
        %1402 = vmatprep.subr.bf16.mxu0 0
        %1403 = vmatpush2.bf16.msra.mxu0 0
        %1404 = vmatprep.subr.bf16.mxu0 0
        %1405 = vmatpush2.bf16.msra.mxu0 0
        %1406 = vmatprep.subr.bf16.mxu0 0
        %1407 = vmatpush2.bf16.msra.mxu0 0
        %1408 = vmatprep.subr.bf16.mxu0 0
        %1409 = vmatpush2.bf16.msra.mxu0 0
        %1410 = vmatprep.subr.bf16.mxu0 0
        %1411 = vmatpush2.bf16.msra.mxu0 0
        %1412 = vmatprep.subr.bf16.mxu0 0
        %1413 = vmatpush2.bf16.msra.mxu0 0
        %1414 = vmatprep.subr.bf16.mxu0 0
        %1415 = vmatpush2.bf16.msra.mxu0 0
        %1416 = vmatprep.subr.bf16.mxu0 0
        %1417 = vmatpush2.bf16.msra.mxu0 0
        %1418 = vmatprep.mubr.bf16.mxu0 0
        %1419 = vmatmul.mubr.bf16.gmra.mxu0 %v1363
        %v1420 = vpop.f32.mrf.mxu0
        %v1421 = vadd.f32 %v1198, %v1420
        %v1422 = vpop.f32.mrf.mxu0
        %v1423 = vadd.f32 %v1200, %v1422
        %v1424 = vpop.f32.mrf.mxu0
        %v1425 = vadd.f32 %v1202, %v1424
        %v1426 = vpop.f32.mrf.mxu0
        %v1427 = vadd.f32 %v1204, %v1426
        %1428 = vmatprep.mubr.bf16.mxu0 0
        %1429 = vmatmul.mubr.bf16.gmra.mxu0 %v1366
        %v1430 = vpop.f32.mrf.mxu0
        %v1431 = vadd.f32 %v1208, %v1430
        %v1432 = vpop.f32.mrf.mxu0
        %v1433 = vadd.f32 %v1210, %v1432
        %v1434 = vpop.f32.mrf.mxu0
        %v1435 = vadd.f32 %v1212, %v1434
        %v1436 = vpop.f32.mrf.mxu0
        %v1437 = vadd.f32 %v1214, %v1436
        %1438 = vmatprep.mubr.bf16.mxu0 0
        %1439 = vmatmul.mubr.bf16.gmra.mxu0 %v1369
        %v1440 = vpop.f32.mrf.mxu0
        %v1441 = vadd.f32 %v1218, %v1440
        %v1442 = vpop.f32.mrf.mxu0
        %v1443 = vadd.f32 %v1220, %v1442
        %v1444 = vpop.f32.mrf.mxu0
        %v1445 = vadd.f32 %v1222, %v1444
        %v1446 = vpop.f32.mrf.mxu0
        %v1447 = vadd.f32 %v1224, %v1446
        %1448 = vmatprep.mubr.bf16.mxu0 0
        %1449 = vmatmul.mubr.bf16.gmra.mxu0 %v1372
        %v1450 = vpop.f32.mrf.mxu0
        %v1451 = vadd.f32 %v1228, %v1450
        %v1452 = vpop.f32.mrf.mxu0
        %v1453 = vadd.f32 %v1230, %v1452
        %v1454 = vpop.f32.mrf.mxu0
        %v1455 = vadd.f32 %v1232, %v1454
        %v1456 = vpop.f32.mrf.mxu0
        %v1457 = vadd.f32 %v1234, %v1456
        %1458 = vmatprep.mubr.bf16.mxu0 0
        %1459 = vmatmul.mubr.bf16.gmra.mxu0 %v1375
        %v1460 = vpop.f32.mrf.mxu0
        %v1461 = vadd.f32 %v1238, %v1460
        %v1462 = vpop.f32.mrf.mxu0
        %v1463 = vadd.f32 %v1240, %v1462
        %v1464 = vpop.f32.mrf.mxu0
        %v1465 = vpop.f32.mrf.mxu0
        %1466 = vdwg.mxu0
        %1467 = vmatprep.subr.bf16.mxu0 0
        %1468 = vmatpush1.bf16.msra.mxu0 0
        %1469 = vmatprep.subr.bf16.mxu0 0
        %1470 = vmatpush1.bf16.msra.mxu0 0
        %1471 = vmatprep.subr.bf16.mxu0 0
        %1472 = vmatpush1.bf16.msra.mxu0 0
        %1473 = vmatprep.subr.bf16.mxu0 0
        %1474 = vmatpush1.bf16.msra.mxu0 0
        %1475 = vmatprep.subr.bf16.mxu0 0
        %1476 = vmatpush1.bf16.msra.mxu0 0
        %1477 = vmatprep.subr.bf16.mxu0 0
        %1478 = vmatpush1.bf16.msra.mxu0 %v1384
        %1479 = vmatprep.subr.bf16.mxu0 0
        %1480 = vmatpush1.bf16.msra.mxu0 %v1352
        %1481 = vmatprep.subr.bf16.mxu0 0
        %1482 = vmatpush1.bf16.msra.mxu0 %v1349
        %1483 = vmatprep.subr.bf16.mxu0 0
        %1484 = vmatpush2.bf16.msra.mxu0 0
        %1485 = vmatprep.subr.bf16.mxu0 0
        %1486 = vmatpush2.bf16.msra.mxu0 0
        %1487 = vmatprep.subr.bf16.mxu0 0
        %1488 = vmatpush2.bf16.msra.mxu0 0
        %1489 = vmatprep.subr.bf16.mxu0 0
        %1490 = vmatpush2.bf16.msra.mxu0 0
        %1491 = vmatprep.subr.bf16.mxu0 0
        %1492 = vmatpush2.bf16.msra.mxu0 0
        %1493 = vmatprep.subr.bf16.mxu0 0
        %1494 = vmatpush2.bf16.msra.mxu0 0
        %1495 = vmatprep.subr.bf16.mxu0 0
        %1496 = vmatpush2.bf16.msra.mxu0 0
        %1497 = vmatprep.subr.bf16.mxu0 0
        %1498 = vmatpush2.bf16.msra.mxu0 0
        %1499 = vmatprep.mubr.bf16.mxu0 0
        %1500 = vmatmul.mubr.bf16.gmra.mxu0 %v1363
        %v1501 = vpop.f32.mrf.mxu0
        %v1502 = vadd.f32 %v1279, %v1501
        %v1503 = vpop.f32.mrf.mxu0
        %v1504 = vpop.f32.mrf.mxu0
        %v1505 = vadd.f32 %v1282, %v1504
        %v1506 = vpop.f32.mrf.mxu0
        %1507 = vmatprep.mubr.bf16.mxu0 0
        %1508 = vmatmul.mubr.bf16.gmra.mxu0 %v1366
        %v1509 = vpop.f32.mrf.mxu0
        %v1510 = vadd.f32 %v1287, %v1509
        %v1511 = vpop.f32.mrf.mxu0
        %v1512 = vpop.f32.mrf.mxu0
        %v1513 = vadd.f32 %v1290, %v1512
        %v1514 = vpop.f32.mrf.mxu0
        %1515 = vmatprep.mubr.bf16.mxu0 0
        %1516 = vmatmul.mubr.bf16.gmra.mxu0 %v1369
        %v1517 = vpop.f32.mrf.mxu0
        %v1518 = vadd.f32 %v1295, %v1517
        %v1519 = vpop.f32.mrf.mxu0
        %v1520 = vpop.f32.mrf.mxu0
        %v1521 = vadd.f32 %v1298, %v1520
        %v1522 = vpop.f32.mrf.mxu0
        %1523 = vmatprep.mubr.bf16.mxu0 0
        %1524 = vmatmul.mubr.bf16.gmra.mxu0 %v1372
        %v1525 = vpop.f32.mrf.mxu0
        %v1526 = vadd.f32 %v1303, %v1525
        %v1527 = vpop.f32.mrf.mxu0
        %v1528 = vpop.f32.mrf.mxu0
        %v1529 = vadd.f32 %v1306, %v1528
        %v1530 = vpop.f32.mrf.mxu0
        %1531 = vmatprep.mubr.bf16.mxu0 0
        %1532 = vmatmul.mubr.bf16.gmra.mxu0 %v1375
        %v1533 = vpop.f32.mrf.mxu0
        %v1534 = vadd.f32 %v1311, %v1533
        %v1535 = vpop.f32.mrf.mxu0
        %v1536 = vpop.f32.mrf.mxu0
        %v1537 = vpop.f32.mrf.mxu0
        %1538 = vdwg.mxu0
        %v1539 = vld [vmem:[#allocation2] sm:$0xc]
        %v1540 = vld [vmem:[#allocation2 + $0x20] sm:$0xf]
        %s1541 = scalar_lea.vmem [#allocation7], 120
        %v1542 = vld [vmem:[%s1541] sm:$0xff]
        %v1543 = vld [vmem:[%s1541 + $0x8] sm:$0xf]
        %v1544 = vld [vmem:[%s1541 + $0xc] sm:$0xff]
        %v1545 = vld [vmem:[%s1541 + $0x14] sm:$0xf]
        %v1546 = vld [vmem:[%s1541 + $0x18] sm:$0xff]
        %v1547 = vld [vmem:[%s1541 + $0x20] sm:$0xf]
        %v1548 = vld [vmem:[%s1541 + $0x24] sm:$0xff]
        %v1549 = vld [vmem:[%s1541 + $0x2c] sm:$0xf]
        %v1550 = vld [vmem:[%s1541 + $0x30] sm:$0x33]
        %v1551 = vld [vmem:[%s1541 + $0x38] sm:$0x3]
        %v1554 = vunpack.c.l.b16 %v1539
        %v1555 = vunpack.c.l.b16 %v1540
        %v1556 = vpack.c.b16 %v1074, %v1554
        %v1557 = vpack.c.b16 %v1555, %v1555
        %vm1558 = vcmask 1045504
        %v1559 = vrot.slane %v1556, 2
        %v1560 = vrot.slane %v1083, 2
        %v1561 = vsel %vm1558, %v1559, %v1560
        %v1562 = vrot.slane %v1084, 2
        %v1563 = vsel %vm1558, %v1560, %v1562
        %v1564 = vrot.slane %v1085, 2
        %v1565 = vsel %vm1558, %v1562, %v1564
        %v1566 = vrot.slane %v1557, 2
        %v1567 = vsel %vm1558, %v1564, %v1566
        %v1578 = vunpack.c.l.b16 %v1542
        %v1579 = vunpack.c.h.b16 %v1542
        %v1580 = vunpack.c.l.b16 %v1543
        %v1581 = vunpack.c.l.b16 %v1544
        %v1582 = vunpack.c.h.b16 %v1544
        %v1583 = vunpack.c.l.b16 %v1545
        %v1584 = vunpack.c.l.b16 %v1546
        %v1585 = vunpack.c.h.b16 %v1546
        %v1586 = vunpack.c.l.b16 %v1547
        %v1587 = vunpack.c.l.b16 %v1548
        %v1588 = vunpack.c.h.b16 %v1548
        %v1589 = vunpack.c.l.b16 %v1549
        %v1590 = vunpack.c.l.b16 %v1550
        %v1591 = vunpack.c.h.b16 %v1550
        %v1592 = vunpack.c.l.b16 %v1551
        %v1593 = vpack.c.b16 %v1581, %v1578
        %v1594 = vpack.c.b16 %v1582, %v1579
        %v1595 = vpack.c.b16 %v1583, %v1580
        %v1596 = vpack.c.b16 %v1587, %v1584
        %v1597 = vpack.c.b16 %v1588, %v1585
        %v1598 = vpack.c.b16 %v1589, %v1586
        %v1599 = vpack.c.b16 %v1590, %v1590
        %v1600 = vpack.c.b16 %v1591, %v1591
        %v1601 = vpack.c.b16 %v1592, %v1592
        %v1609 = vsel %vm1137, %v1561, 0
        %v1612 = vsel %vm1137, %v1563, 0
        %v1615 = vsel %vm1137, %v1565, 0
        %v1618 = vsel %vm1137, %v1567, 0
        %v1621 = vsel %vm1137, %v1566, 0
        %v1624 = vsel %vm1153, %v1599, 0
        %v1627 = vsel %vm1153, %v1600, 0
        %v1630 = vsel %vm1153, %v1601, 0
        %1632 = vmatprep.subr.bf16.mxu0 0
        %1633 = vmatpush1.bf16.msra.mxu0 0
        %1634 = vmatprep.subr.bf16.mxu0 0
        %1635 = vmatpush1.bf16.msra.mxu0 0
        %1636 = vmatprep.subr.bf16.mxu0 0
        %1637 = vmatpush1.bf16.msra.mxu0 0
        %1638 = vmatprep.subr.bf16.mxu0 0
        %1639 = vmatpush1.bf16.msra.mxu0 0
        %1640 = vmatprep.subr.bf16.mxu0 0
        %1641 = vmatpush1.bf16.msra.mxu0 0
        %1642 = vmatprep.subr.bf16.mxu0 %v1627
        %1643 = vmatpush1.bf16.msra.mxu0 %v1624
        %1644 = vmatprep.subr.bf16.mxu0 %v1597
        %1645 = vmatpush1.bf16.msra.mxu0 %v1596
        %1646 = vmatprep.subr.bf16.mxu0 %v1594
        %1647 = vmatpush1.bf16.msra.mxu0 %v1593
        %1648 = vmatprep.subr.bf16.mxu0 0
        %1649 = vmatpush2.bf16.msra.mxu0 0
        %1650 = vmatprep.subr.bf16.mxu0 0
        %1651 = vmatpush2.bf16.msra.mxu0 0
        %1652 = vmatprep.subr.bf16.mxu0 0
        %1653 = vmatpush2.bf16.msra.mxu0 0
        %1654 = vmatprep.subr.bf16.mxu0 0
        %1655 = vmatpush2.bf16.msra.mxu0 0
        %1656 = vmatprep.subr.bf16.mxu0 0
        %1657 = vmatpush2.bf16.msra.mxu0 0
        %1658 = vmatprep.subr.bf16.mxu0 0
        %1659 = vmatpush2.bf16.msra.mxu0 0
        %1660 = vmatprep.subr.bf16.mxu0 0
        %1661 = vmatpush2.bf16.msra.mxu0 0
        %1662 = vmatprep.subr.bf16.mxu0 0
        %1663 = vmatpush2.bf16.msra.mxu0 0
        %1664 = vmatprep.mubr.bf16.mxu0 0
        %1665 = vmatmul.mubr.bf16.gmra.mxu0 %v1609
        %v1666 = vpop.f32.mrf.mxu0
        %v1667 = vadd.f32 0.0, %v1666
        %v1668 = vpop.f32.mrf.mxu0
        %v1669 = vadd.f32 0.0, %v1668
        %v1670 = vpop.f32.mrf.mxu0
        %v1671 = vadd.f32 0.0, %v1670
        %v1672 = vpop.f32.mrf.mxu0
        %v1673 = vadd.f32 0.0, %v1672
        %1674 = vmatprep.mubr.bf16.mxu0 0
        %1675 = vmatmul.mubr.bf16.gmra.mxu0 %v1612
        %v1676 = vpop.f32.mrf.mxu0
        %v1677 = vadd.f32 0.0, %v1676
        %v1678 = vpop.f32.mrf.mxu0
        %v1679 = vadd.f32 0.0, %v1678
        %v1680 = vpop.f32.mrf.mxu0
        %v1681 = vadd.f32 0.0, %v1680
        %v1682 = vpop.f32.mrf.mxu0
        %v1683 = vadd.f32 0.0, %v1682
        %1684 = vmatprep.mubr.bf16.mxu0 0
        %1685 = vmatmul.mubr.bf16.gmra.mxu0 %v1615
        %v1686 = vpop.f32.mrf.mxu0
        %v1687 = vadd.f32 0.0, %v1686
        %v1688 = vpop.f32.mrf.mxu0
        %v1689 = vadd.f32 0.0, %v1688
        %v1690 = vpop.f32.mrf.mxu0
        %v1691 = vadd.f32 0.0, %v1690
        %v1692 = vpop.f32.mrf.mxu0
        %v1693 = vadd.f32 0.0, %v1692
        %1694 = vmatprep.mubr.bf16.mxu0 0
        %1695 = vmatmul.mubr.bf16.gmra.mxu0 %v1618
        %v1696 = vpop.f32.mrf.mxu0
        %v1697 = vadd.f32 0.0, %v1696
        %v1698 = vpop.f32.mrf.mxu0
        %v1699 = vadd.f32 0.0, %v1698
        %v1700 = vpop.f32.mrf.mxu0
        %v1701 = vadd.f32 0.0, %v1700
        %v1702 = vpop.f32.mrf.mxu0
        %v1703 = vadd.f32 0.0, %v1702
        %1704 = vmatprep.mubr.bf16.mxu0 0
        %1705 = vmatmul.mubr.bf16.gmra.mxu0 %v1621
        %v1706 = vpop.f32.mrf.mxu0
        %v1707 = vadd.f32 0.0, %v1706
        %v1708 = vpop.f32.mrf.mxu0
        %v1709 = vadd.f32 0.0, %v1708
        %v1710 = vpop.f32.mrf.mxu0
        %v1711 = vpop.f32.mrf.mxu0
        %1712 = vdwg.mxu0
        %1713 = vmatprep.subr.bf16.mxu0 0
        %1714 = vmatpush1.bf16.msra.mxu0 0
        %1715 = vmatprep.subr.bf16.mxu0 0
        %1716 = vmatpush1.bf16.msra.mxu0 0
        %1717 = vmatprep.subr.bf16.mxu0 0
        %1718 = vmatpush1.bf16.msra.mxu0 0
        %1719 = vmatprep.subr.bf16.mxu0 0
        %1720 = vmatpush1.bf16.msra.mxu0 0
        %1721 = vmatprep.subr.bf16.mxu0 0
        %1722 = vmatpush1.bf16.msra.mxu0 0
        %1723 = vmatprep.subr.bf16.mxu0 0
        %1724 = vmatpush1.bf16.msra.mxu0 %v1630
        %1725 = vmatprep.subr.bf16.mxu0 0
        %1726 = vmatpush1.bf16.msra.mxu0 %v1598
        %1727 = vmatprep.subr.bf16.mxu0 0
        %1728 = vmatpush1.bf16.msra.mxu0 %v1595
        %1729 = vmatprep.subr.bf16.mxu0 0
        %1730 = vmatpush2.bf16.msra.mxu0 0
        %1731 = vmatprep.subr.bf16.mxu0 0
        %1732 = vmatpush2.bf16.msra.mxu0 0
        %1733 = vmatprep.subr.bf16.mxu0 0
        %1734 = vmatpush2.bf16.msra.mxu0 0
        %1735 = vmatprep.subr.bf16.mxu0 0
        %1736 = vmatpush2.bf16.msra.mxu0 0
        %1737 = vmatprep.subr.bf16.mxu0 0
        %1738 = vmatpush2.bf16.msra.mxu0 0
        %1739 = vmatprep.subr.bf16.mxu0 0
        %1740 = vmatpush2.bf16.msra.mxu0 0
        %1741 = vmatprep.subr.bf16.mxu0 0
        %1742 = vmatpush2.bf16.msra.mxu0 0
        %1743 = vmatprep.subr.bf16.mxu0 0
        %1744 = vmatpush2.bf16.msra.mxu0 0
        %1745 = vmatprep.mubr.bf16.mxu0 0
        %1746 = vmatmul.mubr.bf16.gmra.mxu0 %v1609
        %v1747 = vpop.f32.mrf.mxu0
        %v1748 = vadd.f32 0.0, %v1747
        %v1749 = vpop.f32.mrf.mxu0
        %v1750 = vpop.f32.mrf.mxu0
        %v1751 = vadd.f32 0.0, %v1750
        %v1752 = vpop.f32.mrf.mxu0
        %1753 = vmatprep.mubr.bf16.mxu0 0
        %1754 = vmatmul.mubr.bf16.gmra.mxu0 %v1612
        %v1755 = vpop.f32.mrf.mxu0
        %v1756 = vadd.f32 0.0, %v1755
        %v1757 = vpop.f32.mrf.mxu0
        %v1758 = vpop.f32.mrf.mxu0
        %v1759 = vadd.f32 0.0, %v1758
        %v1760 = vpop.f32.mrf.mxu0
        %1761 = vmatprep.mubr.bf16.mxu0 0
        %1762 = vmatmul.mubr.bf16.gmra.mxu0 %v1615
        %v1763 = vpop.f32.mrf.mxu0
        %v1764 = vadd.f32 0.0, %v1763
        %v1765 = vpop.f32.mrf.mxu0
        %v1766 = vpop.f32.mrf.mxu0
        %v1767 = vadd.f32 0.0, %v1766
        %v1768 = vpop.f32.mrf.mxu0
        %1769 = vmatprep.mubr.bf16.mxu0 0
        %1770 = vmatmul.mubr.bf16.gmra.mxu0 %v1618
        %v1771 = vpop.f32.mrf.mxu0
        %v1772 = vadd.f32 0.0, %v1771
        %v1773 = vpop.f32.mrf.mxu0
        %v1774 = vpop.f32.mrf.mxu0
        %v1775 = vadd.f32 0.0, %v1774
        %v1776 = vpop.f32.mrf.mxu0
        %1777 = vmatprep.mubr.bf16.mxu0 0
        %1778 = vmatmul.mubr.bf16.gmra.mxu0 %v1621
        %v1779 = vpop.f32.mrf.mxu0
        %v1780 = vadd.f32 0.0, %v1779
        %v1781 = vpop.f32.mrf.mxu0
        %v1782 = vpop.f32.mrf.mxu0
        %v1783 = vpop.f32.mrf.mxu0
        %1784 = vdwg.mxu0
        %v1785 = vadd.f32 %v1421, %v1667
        %v1786 = vadd.f32 %v1423, %v1669
        %v1787 = vadd.f32 %v1502, %v1748
        %v1788 = vadd.f32 %v1425, %v1671
        %v1789 = vadd.f32 %v1427, %v1673
        %v1790 = vadd.f32 %v1505, %v1751
        %v1791 = vadd.f32 %v1431, %v1677
        %v1792 = vadd.f32 %v1433, %v1679
        %v1793 = vadd.f32 %v1510, %v1756
        %v1794 = vadd.f32 %v1435, %v1681
        %v1795 = vadd.f32 %v1437, %v1683
        %v1796 = vadd.f32 %v1513, %v1759
        %v1797 = vadd.f32 %v1441, %v1687
        %v1798 = vadd.f32 %v1443, %v1689
        %v1799 = vadd.f32 %v1518, %v1764
        %v1800 = vadd.f32 %v1445, %v1691
        %v1801 = vadd.f32 %v1447, %v1693
        %v1802 = vadd.f32 %v1521, %v1767
        %v1803 = vadd.f32 %v1451, %v1697
        %v1804 = vadd.f32 %v1453, %v1699
        %v1805 = vadd.f32 %v1526, %v1772
        %v1806 = vadd.f32 %v1455, %v1701
        %v1807 = vadd.f32 %v1457, %v1703
        %v1808 = vadd.f32 %v1529, %v1775
        %v1809 = vadd.f32 %v1461, %v1707
        %v1810 = vadd.f32 %v1463, %v1709
        %v1811 = vadd.f32 %v1534, %v1780
        %v1812 = vld [vmem:[%s3] sm:$0x7]
        %v1814 = vlaneseq
        %v1815 = vshrl.u32 %v1814, 7
        %v1816 = vsub.s32 0, %v1815
        %v1817 = vrot.slane %v1812, %v1816
        %v1818 = vlaneseq
        %v1819 = vshrl.u32 %v1818, 7
        %v1820 = vsub.s32 1, %v1819
        %v1821 = vrot.slane %v1812, %v1820
        %v1822 = vlaneseq
        %v1823 = vshrl.u32 %v1822, 7
        %v1824 = vsub.s32 2, %v1823
        %v1825 = vrot.slane %v1812, %v1824
        %v1829 = vadd.f32 %v1785, %v1817
        %v1830 = vadd.f32 %v1786, %v1821
        %v1831 = vadd.f32 %v1787, %v1825
        %v1832 = vadd.f32 %v1788, %v1817
        %v1833 = vadd.f32 %v1789, %v1821
        %v1834 = vadd.f32 %v1790, %v1825
        %v1835 = vadd.f32 %v1791, %v1817
        %v1836 = vadd.f32 %v1792, %v1821
        %v1837 = vadd.f32 %v1793, %v1825
        %v1838 = vadd.f32 %v1794, %v1817
        %v1839 = vadd.f32 %v1795, %v1821
        %v1840 = vadd.f32 %v1796, %v1825
        %v1841 = vadd.f32 %v1797, %v1817
        %v1842 = vadd.f32 %v1798, %v1821
        %v1843 = vadd.f32 %v1799, %v1825
        %v1844 = vadd.f32 %v1800, %v1817
        %v1845 = vadd.f32 %v1801, %v1821
        %v1846 = vadd.f32 %v1802, %v1825
        %v1847 = vadd.f32 %v1803, %v1817
        %v1848 = vadd.f32 %v1804, %v1821
        %v1849 = vadd.f32 %v1805, %v1825
        %v1850 = vadd.f32 %v1806, %v1817
        %v1851 = vadd.f32 %v1807, %v1821
        %v1852 = vadd.f32 %v1808, %v1825
        %v1853 = vadd.f32 %v1809, %v1817
        %v1854 = vadd.f32 %v1810, %v1821
        %v1855 = vadd.f32 %v1811, %v1825
        %vm1856 = vcmp.gt.f32.partialorder %v1829, 0.0
        %vm1857 = vcmp.gt.f32.partialorder %v1830, 0.0
        %vm1858 = vcmp.gt.f32.partialorder %v1831, 0.0
        %vm1859 = vcmp.gt.f32.partialorder %v1832, 0.0
        %vm1860 = vcmp.gt.f32.partialorder %v1833, 0.0
        %vm1861 = vcmp.gt.f32.partialorder %v1834, 0.0
        %vm1862 = vcmp.gt.f32.partialorder %v1835, 0.0
        %vm1863 = vcmp.gt.f32.partialorder %v1836, 0.0
        %vm1864 = vcmp.gt.f32.partialorder %v1837, 0.0
        %vm1865 = vcmp.gt.f32.partialorder %v1838, 0.0
        %vm1866 = vcmp.gt.f32.partialorder %v1839, 0.0
        %vm1867 = vcmp.gt.f32.partialorder %v1840, 0.0
        %vm1868 = vcmp.gt.f32.partialorder %v1841, 0.0
        %vm1869 = vcmp.gt.f32.partialorder %v1842, 0.0
        %vm1870 = vcmp.gt.f32.partialorder %v1843, 0.0
        %vm1871 = vcmp.gt.f32.partialorder %v1844, 0.0
        %vm1872 = vcmp.gt.f32.partialorder %v1845, 0.0
        %vm1873 = vcmp.gt.f32.partialorder %v1846, 0.0
        %vm1874 = vcmp.gt.f32.partialorder %v1847, 0.0
        %vm1875 = vcmp.gt.f32.partialorder %v1848, 0.0
        %vm1876 = vcmp.gt.f32.partialorder %v1849, 0.0
        %vm1877 = vcmp.gt.f32.partialorder %v1850, 0.0
        %vm1878 = vcmp.gt.f32.partialorder %v1851, 0.0
        %vm1879 = vcmp.gt.f32.partialorder %v1852, 0.0
        %vm1880 = vcmp.gt.f32.partialorder %v1853, 0.0
        %vm1881 = vcmp.gt.f32.partialorder %v1854, 0.0
        %vm1882 = vcmp.gt.f32.partialorder %v1855, 0.0
        %v1883 = vmin.f32 %v1829, 0.0
        %v1884 = vmin.f32 %v1830, 0.0
        %v1885 = vmin.f32 %v1831, 0.0
        %v1886 = vmin.f32 %v1832, 0.0
        %v1887 = vmin.f32 %v1833, 0.0
        %v1888 = vmin.f32 %v1834, 0.0
        %v1889 = vmin.f32 %v1835, 0.0
        %v1890 = vmin.f32 %v1836, 0.0
        %v1891 = vmin.f32 %v1837, 0.0
        %v1892 = vmin.f32 %v1838, 0.0
        %v1893 = vmin.f32 %v1839, 0.0
        %v1894 = vmin.f32 %v1840, 0.0
        %v1895 = vmin.f32 %v1841, 0.0
        %v1896 = vmin.f32 %v1842, 0.0
        %v1897 = vmin.f32 %v1843, 0.0
        %v1898 = vmin.f32 %v1844, 0.0
        %v1899 = vmin.f32 %v1845, 0.0
        %v1900 = vmin.f32 %v1846, 0.0
        %v1901 = vmin.f32 %v1847, 0.0
        %v1902 = vmin.f32 %v1848, 0.0
        %v1903 = vmin.f32 %v1849, 0.0
        %v1904 = vmin.f32 %v1850, 0.0
        %v1905 = vmin.f32 %v1851, 0.0
        %v1906 = vmin.f32 %v1852, 0.0
        %v1907 = vmin.f32 %v1853, 0.0
        %v1908 = vmin.f32 %v1854, 0.0
        %v1909 = vmin.f32 %v1855, 0.0
        %v1910 = vmul.f32 %v1883, 1.442695
        %v1911 = vpow.pop %v1910
        %v1912 = vmul.f32 %v1884, 1.442695
        %v1913 = vpow.pop %v1912
        %v1914 = vmul.f32 %v1885, 1.442695
        %v1915 = vpow.pop %v1914
        %v1916 = vmul.f32 %v1886, 1.442695
        %v1917 = vpow.pop %v1916
        %v1918 = vmul.f32 %v1887, 1.442695
        %v1919 = vpow.pop %v1918
        %v1920 = vmul.f32 %v1888, 1.442695
        %v1921 = vpow.pop %v1920
        %v1922 = vmul.f32 %v1889, 1.442695
        %v1923 = vpow.pop %v1922
        %v1924 = vmul.f32 %v1890, 1.442695
        %v1925 = vpow.pop %v1924
        %v1926 = vmul.f32 %v1891, 1.442695
        %v1927 = vpow.pop %v1926
        %v1928 = vmul.f32 %v1892, 1.442695
        %v1929 = vpow.pop %v1928
        %v1930 = vmul.f32 %v1893, 1.442695
        %v1931 = vpow.pop %v1930
        %v1932 = vmul.f32 %v1894, 1.442695
        %v1933 = vpow.pop %v1932
        %v1934 = vmul.f32 %v1895, 1.442695
        %v1935 = vpow.pop %v1934
        %v1936 = vmul.f32 %v1896, 1.442695
        %v1937 = vpow.pop %v1936
        %v1938 = vmul.f32 %v1897, 1.442695
        %v1939 = vpow.pop %v1938
        %v1940 = vmul.f32 %v1898, 1.442695
        %v1941 = vpow.pop %v1940
        %v1942 = vmul.f32 %v1899, 1.442695
        %v1943 = vpow.pop %v1942
        %v1944 = vmul.f32 %v1900, 1.442695
        %v1945 = vpow.pop %v1944
        %v1946 = vmul.f32 %v1901, 1.442695
        %v1947 = vpow.pop %v1946
        %v1948 = vmul.f32 %v1902, 1.442695
        %v1949 = vpow.pop %v1948
        %v1950 = vmul.f32 %v1903, 1.442695
        %v1951 = vpow.pop %v1950
        %v1952 = vmul.f32 %v1904, 1.442695
        %v1953 = vpow.pop %v1952
        %v1954 = vmul.f32 %v1905, 1.442695
        %v1955 = vpow.pop %v1954
        %v1956 = vmul.f32 %v1906, 1.442695
        %v1957 = vpow.pop %v1956
        %v1958 = vmul.f32 %v1907, 1.442695
        %v1959 = vpow.pop %v1958
        %v1960 = vmul.f32 %v1908, 1.442695
        %v1961 = vpow.pop %v1960
        %v1962 = vmul.f32 %v1909, 1.442695
        %v1963 = vpow.pop %v1962
        %v1964 = vsub.f32 %v1911, 1.0
        %v1965 = vsub.f32 %v1913, 1.0
        %v1966 = vsub.f32 %v1915, 1.0
        %v1967 = vsub.f32 %v1917, 1.0
        %v1968 = vsub.f32 %v1919, 1.0
        %v1969 = vsub.f32 %v1921, 1.0
        %v1970 = vsub.f32 %v1923, 1.0
        %v1971 = vsub.f32 %v1925, 1.0
        %v1972 = vsub.f32 %v1927, 1.0
        %v1973 = vsub.f32 %v1929, 1.0
        %v1974 = vsub.f32 %v1931, 1.0
        %v1975 = vsub.f32 %v1933, 1.0
        %v1976 = vsub.f32 %v1935, 1.0
        %v1977 = vsub.f32 %v1937, 1.0
        %v1978 = vsub.f32 %v1939, 1.0
        %v1979 = vsub.f32 %v1941, 1.0
        %v1980 = vsub.f32 %v1943, 1.0
        %v1981 = vsub.f32 %v1945, 1.0
        %v1982 = vsub.f32 %v1947, 1.0
        %v1983 = vsub.f32 %v1949, 1.0
        %v1984 = vsub.f32 %v1951, 1.0
        %v1985 = vsub.f32 %v1953, 1.0
        %v1986 = vsub.f32 %v1955, 1.0
        %v1987 = vsub.f32 %v1957, 1.0
        %v1988 = vsub.f32 %v1959, 1.0
        %v1989 = vsub.f32 %v1961, 1.0
        %v1990 = vsub.f32 %v1963, 1.0
        %v1991 = vsel %vm1856, %v1829, %v1964
        %v1992 = vsel %vm1857, %v1830, %v1965
        %v1993 = vsel %vm1858, %v1831, %v1966
        %v1994 = vsel %vm1859, %v1832, %v1967
        %v1995 = vsel %vm1860, %v1833, %v1968
        %v1996 = vsel %vm1861, %v1834, %v1969
        %v1997 = vsel %vm1862, %v1835, %v1970
        %v1998 = vsel %vm1863, %v1836, %v1971
        %v1999 = vsel %vm1864, %v1837, %v1972
        %v2000 = vsel %vm1865, %v1838, %v1973
        %v2001 = vsel %vm1866, %v1839, %v1974
        %v2002 = vsel %vm1867, %v1840, %v1975
        %v2003 = vsel %vm1868, %v1841, %v1976
        %v2004 = vsel %vm1869, %v1842, %v1977
        %v2005 = vsel %vm1870, %v1843, %v1978
        %v2006 = vsel %vm1871, %v1844, %v1979
        %v2007 = vsel %vm1872, %v1845, %v1980
        %v2008 = vsel %vm1873, %v1846, %v1981
        %v2009 = vsel %vm1874, %v1847, %v1982
        %v2010 = vsel %vm1875, %v1848, %v1983
        %v2011 = vsel %vm1876, %v1849, %v1984
        %v2012 = vsel %vm1877, %v1850, %v1985
        %v2013 = vsel %vm1878, %v1851, %v1986
        %v2014 = vsel %vm1879, %v1852, %v1987
        %v2015 = vsel %vm1880, %v1853, %v1988
        %v2016 = vsel %vm1881, %v1854, %v1989
        %v2017 = vsel %vm1882, %v1855, %v1990
        %v2018 = vpack.c.bf16 %v1994, %v1991
        %v2019 = vpack.c.bf16 %v1995, %v1992
        %v2020 = vpack.c.bf16 %v1996, %v1993
        %v2021 = vpack.c.bf16 %v2000, %v1997
        %v2022 = vpack.c.bf16 %v2001, %v1998
        %v2023 = vpack.c.bf16 %v2002, %v1999
        %v2024 = vpack.c.bf16 %v2006, %v2003
        %v2025 = vpack.c.bf16 %v2007, %v2004
        %v2026 = vpack.c.bf16 %v2008, %v2005
        %v2027 = vpack.c.bf16 %v2012, %v2009
        %v2028 = vpack.c.bf16 %v2013, %v2010
        %v2029 = vpack.c.bf16 %v2014, %v2011
        %v2030 = vpack.c.bf16 %v2015, %v2015
        %v2031 = vpack.c.bf16 %v2016, %v2016
        %v2032 = vpack.c.bf16 %v2017, %v2017
        %v2048 = vunpack.c.l.b16 %v2018
        %v2049 = vunpack.c.l.b16 %v2019
        %v2050 = vunpack.c.l.b16 %v2020
        %v2051 = vunpack.c.h.b16 %v2018
        %v2052 = vunpack.c.h.b16 %v2019
        %v2053 = vunpack.c.h.b16 %v2020
        %v2054 = vunpack.c.l.b16 %v2021
        %v2055 = vunpack.c.l.b16 %v2022
        %v2056 = vunpack.c.l.b16 %v2023
        %v2057 = vunpack.c.h.b16 %v2021
        %v2058 = vunpack.c.h.b16 %v2022
        %v2059 = vunpack.c.h.b16 %v2023
        %v2060 = vunpack.c.l.b16 %v2024
        %v2061 = vunpack.c.l.b16 %v2025
        %v2062 = vunpack.c.l.b16 %v2026
        %v2063 = vunpack.c.h.b16 %v2024
        %v2064 = vunpack.c.h.b16 %v2025
        %v2065 = vunpack.c.h.b16 %v2026
        %v2066 = vunpack.c.l.b16 %v2027
        %v2067 = vunpack.c.l.b16 %v2028
        %v2068 = vunpack.c.l.b16 %v2029
        %v2069 = vunpack.c.h.b16 %v2027
        %v2070 = vunpack.c.h.b16 %v2028
        %v2071 = vunpack.c.h.b16 %v2029
        %v2072 = vunpack.c.l.b16 %v2030
        %v2073 = vunpack.c.l.b16 %v2031
        %v2074 = vunpack.c.l.b16 %v2032
        %v2075 = vpack.c.b16 %v2049, %v2048
        %v2076 = vpack.c.b16 %v2050, %v2050
        %v2077 = vpack.c.b16 %v2052, %v2051
        %v2078 = vpack.c.b16 %v2053, %v2053
        %v2079 = vpack.c.b16 %v2055, %v2054
        %v2080 = vpack.c.b16 %v2056, %v2056
        %v2081 = vpack.c.b16 %v2058, %v2057
        %v2082 = vpack.c.b16 %v2059, %v2059
        %v2083 = vpack.c.b16 %v2061, %v2060
        %v2084 = vpack.c.b16 %v2062, %v2062
        %v2085 = vpack.c.b16 %v2064, %v2063
        %v2086 = vpack.c.b16 %v2065, %v2065
        %v2087 = vpack.c.b16 %v2067, %v2066
        %v2088 = vpack.c.b16 %v2068, %v2068
        %v2089 = vpack.c.b16 %v2070, %v2069
        %v2090 = vpack.c.b16 %v2071, %v2071
        %v2091 = vpack.c.b16 %v2073, %v2072
        %v2092 = vpack.c.b16 %v2074, %v2074
        %v2093 = vrot.slane %v2075, 7
        %v2094 = vrot.slane %v2076, 7
        %v2095 = vrot.slane %v2093, 4
        %v2096 = vrot.slane %v2077, 7
        %v2097 = vsel %vm971, %v2095, %v2096
        %v2098 = vrot.slane %v2094, 4
        %v2099 = vrot.slane %v2078, 7
        %v2100 = vsel %vm971, %v2098, %v2099
        %v2101 = vrot.slane %v2096, 4
        %v2102 = vrot.slane %v2079, 7
        %v2103 = vsel %vm971, %v2101, %v2102
        %v2104 = vrot.slane %v2099, 4
        %v2105 = vrot.slane %v2080, 7
        %v2106 = vsel %vm971, %v2104, %v2105
        %v2107 = vrot.slane %v2102, 4
        %v2108 = vrot.slane %v2081, 7
        %v2109 = vsel %vm971, %v2107, %v2108
        %v2110 = vrot.slane %v2105, 4
        %v2111 = vrot.slane %v2082, 7
        %v2112 = vsel %vm971, %v2110, %v2111
        %v2113 = vrot.slane %v2108, 4
        %v2114 = vrot.slane %v2083, 7
        %v2115 = vsel %vm971, %v2113, %v2114
        %v2116 = vrot.slane %v2111, 4
        %v2117 = vrot.slane %v2084, 7
        %v2118 = vsel %vm971, %v2116, %v2117
        %v2119 = vrot.slane %v2114, 4
        %v2120 = vrot.slane %v2085, 7
        %v2121 = vsel %vm971, %v2119, %v2120
        %v2122 = vrot.slane %v2117, 4
        %v2123 = vrot.slane %v2086, 7
        %v2124 = vsel %vm971, %v2122, %v2123
        %v2125 = vrot.slane %v2120, 4
        %v2126 = vrot.slane %v2087, 7
        %v2127 = vsel %vm971, %v2125, %v2126
        %v2128 = vrot.slane %v2123, 4
        %v2129 = vrot.slane %v2088, 7
        %v2130 = vsel %vm971, %v2128, %v2129
        %v2131 = vrot.slane %v2126, 4
        %v2132 = vrot.slane %v2089, 7
        %v2133 = vsel %vm971, %v2131, %v2132
        %v2134 = vrot.slane %v2129, 4
        %v2135 = vrot.slane %v2090, 7
        %v2136 = vsel %vm971, %v2134, %v2135
        %v2137 = vrot.slane %v2132, 4
        %v2138 = vrot.slane %v2091, 7
        %v2139 = vsel %vm971, %v2137, %v2138
        %v2140 = vrot.slane %v2135, 4
        %v2141 = vrot.slane %v2092, 7
        %v2142 = vsel %vm971, %v2140, %v2141
        %2161 = vst [vmem:[#allocation3] sm:$0xee] %v2093
        %vm2162 = vcmask 257025
        %2163 = vst.msk [vmem:[#allocation3 + $0x8] sm:$0xe] %vm2162, %v2094
        %2164 = vst [vmem:[#allocation3 + $0xc] sm:$0xff] %v2097
        %vm2165 = vcmask 257024
        %2166 = vst.msk [vmem:[#allocation3 + $0x14] sm:$0xf] %vm2165, %v2100
        %2167 = vst [vmem:[#allocation3 + $0x18] sm:$0xff] %v2103
        %2168 = vst.msk [vmem:[#allocation3 + $0x20] sm:$0xf] %vm2165, %v2106
        %2169 = vst [vmem:[#allocation3 + $0x24] sm:$0xff] %v2109
        %2170 = vst.msk [vmem:[#allocation3 + $0x2c] sm:$0xf] %vm2165, %v2112
        %2171 = vst [vmem:[#allocation3 + $0x30] sm:$0xff] %v2115
        %2172 = vst.msk [vmem:[#allocation3 + $0x38] sm:$0xf] %vm2165, %v2118
        %2173 = vst [vmem:[#allocation3 + $0x3c] sm:$0xff] %v2121
        %2174 = vst.msk [vmem:[#allocation3 + $0x44] sm:$0xf] %vm2165, %v2124
        %2175 = vst [vmem:[#allocation3 + $0x48] sm:$0xff] %v2127
        %2176 = vst.msk [vmem:[#allocation3 + $0x50] sm:$0xf] %vm2165, %v2130
        %2177 = vst [vmem:[#allocation3 + $0x54] sm:$0xff] %v2133
        %2178 = vst.msk [vmem:[#allocation3 + $0x5c] sm:$0xf] %vm2165, %v2136
        %2179 = vst [vmem:[#allocation3 + $0x60] sm:$0x77] %v2139
        %vm2180 = vcmask 256000
        %2181 = vst.msk [vmem:[#allocation3 + $0x68] sm:$0x7] %vm2180, %v2142
        %2182 = vst [vmem:[#allocation3] sm:$0x11] 0
        %vm2183 = vcmask 253952
        %2184 = vst.msk [vmem:[#allocation3 + $0x8] sm:$0x1] %vm2183, 0
        %2185 = vst [vmem:[#allocation3 + $0x60] sm:$0x88] 0
        %vm2186 = vcmask 257027
        %2187 = vst.msk [vmem:[#allocation3 + $0x68] sm:$0x8] %vm2186, 0
        %2188 = vst [vmem:[#allocation3 + $0x30] sm:$0x66] 0
        %vm2189 = vcmask 256001
        %2190 = vst.msk [vmem:[#allocation3 + $0x38] sm:$0x6] %vm2189, 0
        %v2191 = vld [vmem:[#allocation3] sm:$0xff]
        %v2192 = vld [vmem:[#allocation3 + $0x8] sm:$0xf]
        %v2193 = vld [vmem:[#allocation3 + $0xc] sm:$0xff]
        %v2194 = vld [vmem:[#allocation3 + $0x14] sm:$0xf]
        %v2195 = vld [vmem:[#allocation3 + $0x18] sm:$0xff]
        %v2196 = vld [vmem:[#allocation3 + $0x20] sm:$0xf]
        %v2197 = vld [vmem:[#allocation3 + $0x24] sm:$0xff]
        %v2198 = vld [vmem:[#allocation3 + $0x2c] sm:$0xf]
        %v2199 = vld [vmem:[#allocation3 + $0x30] sm:$0xff]
        %v2200 = vld [vmem:[#allocation3 + $0x38] sm:$0xf]
        %v2201 = vld [vmem:[#allocation3 + $0x3c] sm:$0xff]
        %v2202 = vld [vmem:[#allocation3 + $0x44] sm:$0xf]
        %v2203 = vld [vmem:[#allocation3 + $0x48] sm:$0xff]
        %v2204 = vld [vmem:[#allocation3 + $0x50] sm:$0xf]
        %v2205 = vld [vmem:[#allocation3 + $0x54] sm:$0xff]
        %v2206 = vld [vmem:[#allocation3 + $0x5c] sm:$0xf]
        %v2207 = vld [vmem:[#allocation3 + $0x60] sm:$0x33]
        %v2208 = vld [vmem:[#allocation3 + $0x68] sm:$0x3]
        %v2209 = vld [vmem:[%s4] sm:$0xff]
        %v2210 = vld [vmem:[%s4 + $0x8] sm:$0xff]
        %v2211 = vld [vmem:[%s4 + $0x10] sm:$0xff]
        %v2212 = vld [vmem:[%s4 + $0x18] sm:$0xff]
        %v2213 = vld [vmem:[%s4 + $0x20] sm:$0xff]
        %v2214 = vld [vmem:[%s4 + $0x28] sm:$0xff]
        %v2215 = vld [vmem:[%s4 + $0x30] sm:$0xff]
        %v2216 = vld [vmem:[%s4 + $0x38] sm:$0xff]
        %v2217 = vld [vmem:[%s4 + $0x40] sm:$0xff]
        %v2218 = vld [vmem:[%s4 + $0x48] sm:$0xff]
        %v2219 = vld [vmem:[%s4 + $0x50] sm:$0xff]
        %v2220 = vld [vmem:[%s4 + $0x58] sm:$0xff]
        %v2221 = vld [vmem:[%s4 + $0x60] sm:$0xff]
        %v2222 = vld [vmem:[%s4 + $0x68] sm:$0xff]
        %v2223 = vld [vmem:[%s4 + $0x70] sm:$0xff]
        %v2224 = vld [vmem:[%s4 + $0x78] sm:$0xff]
        %v2225 = vld [vmem:[%s4 + $0x80] sm:$0xff]
        %v2226 = vld [vmem:[%s4 + $0x88] sm:$0xff]
        %v2227 = vld [vmem:[%s4 + $0x90] sm:$0xff]
        %v2228 = vld [vmem:[%s4 + $0x98] sm:$0xff]
        %v2229 = vld [vmem:[%s4 + $0xa0] sm:$0xff]
        %v2230 = vld [vmem:[%s4 + $0xa8] sm:$0xff]
        %v2231 = vld [vmem:[%s4 + $0xb0] sm:$0xff]
        %v2232 = vld [vmem:[%s4 + $0xb8] sm:$0xff]
        %v2233 = vld [vmem:[%s4 + $0xc0] sm:$0xff]
        %v2234 = vld [vmem:[%s4 + $0xc8] sm:$0xff]
        %v2235 = vld [vmem:[%s4 + $0xd0] sm:$0xff]
        %v2236 = vld [vmem:[%s4 + $0xd8] sm:$0xff]
        %v2237 = vld [vmem:[%s4 + $0xe0] sm:$0xff]
        %v2238 = vld [vmem:[%s4 + $0xe8] sm:$0xff]
        %v2239 = vld [vmem:[%s4 + $0xf0] sm:$0xff]
        %v2240 = vld [vmem:[%s4 + $0xf8] sm:$0xff]
        %v2241 = vld [vmem:[%s4 + $0x100] sm:$0xff]
        %v2242 = vld [vmem:[%s4 + $0x108] sm:$0xff]
        %v2243 = vld [vmem:[%s4 + $0x110] sm:$0xff]
        %v2244 = vld [vmem:[%s4 + $0x118] sm:$0xff]
        %v2245 = vld [vmem:[#allocation3] sm:$0xee]
        %v2246 = vld [vmem:[#allocation3 + $0x8] sm:$0xe]
        %v2247 = vld [vmem:[#allocation3 + $0x60] sm:$0x77]
        %v2248 = vld [vmem:[#allocation3 + $0x68] sm:$0x7]
        %s2249 = scalar_lea.vmem %s4, 288
        %v2250 = vld [vmem:[%s2249] sm:$0xff]
        %v2251 = vld [vmem:[%s2249 + $0x8] sm:$0xff]
        %v2252 = vld [vmem:[%s2249 + $0x10] sm:$0xff]
        %v2253 = vld [vmem:[%s2249 + $0x18] sm:$0xff]
        %v2254 = vld [vmem:[%s2249 + $0x20] sm:$0xff]
        %v2255 = vld [vmem:[%s2249 + $0x28] sm:$0xff]
        %v2256 = vld [vmem:[%s2249 + $0x30] sm:$0xff]
        %v2257 = vld [vmem:[%s2249 + $0x38] sm:$0xff]
        %v2258 = vld [vmem:[%s2249 + $0x40] sm:$0xff]
        %v2259 = vld [vmem:[%s2249 + $0x48] sm:$0xff]
        %v2260 = vld [vmem:[%s2249 + $0x50] sm:$0xff]
        %v2261 = vld [vmem:[%s2249 + $0x58] sm:$0xff]
        %v2262 = vld [vmem:[%s2249 + $0x60] sm:$0xff]
        %v2263 = vld [vmem:[%s2249 + $0x68] sm:$0xff]
        %v2264 = vld [vmem:[%s2249 + $0x70] sm:$0xff]
        %v2265 = vld [vmem:[%s2249 + $0x78] sm:$0xff]
        %v2266 = vld [vmem:[%s2249 + $0x80] sm:$0xff]
        %v2267 = vld [vmem:[%s2249 + $0x88] sm:$0xff]
        %v2268 = vld [vmem:[%s2249 + $0x90] sm:$0xff]
        %v2269 = vld [vmem:[%s2249 + $0x98] sm:$0xff]
        %v2270 = vld [vmem:[%s2249 + $0xa0] sm:$0xff]
        %v2271 = vld [vmem:[%s2249 + $0xa8] sm:$0xff]
        %v2272 = vld [vmem:[%s2249 + $0xb0] sm:$0xff]
        %v2273 = vld [vmem:[%s2249 + $0xb8] sm:$0xff]
        %v2274 = vld [vmem:[%s2249 + $0xc0] sm:$0xff]
        %v2275 = vld [vmem:[%s2249 + $0xc8] sm:$0xff]
        %v2276 = vld [vmem:[%s2249 + $0xd0] sm:$0xff]
        %v2277 = vld [vmem:[%s2249 + $0xd8] sm:$0xff]
        %v2278 = vld [vmem:[%s2249 + $0xe0] sm:$0xff]
        %v2279 = vld [vmem:[%s2249 + $0xe8] sm:$0xff]
        %v2280 = vld [vmem:[%s2249 + $0xf0] sm:$0xff]
        %v2281 = vld [vmem:[%s2249 + $0xf8] sm:$0xff]
        %v2282 = vld [vmem:[%s2249 + $0x100] sm:$0xff]
        %v2283 = vld [vmem:[%s2249 + $0x108] sm:$0xff]
        %v2284 = vld [vmem:[%s2249 + $0x110] sm:$0xff]
        %v2285 = vld [vmem:[%s2249 + $0x118] sm:$0xff]
        %v2304 = vunpack.c.l.b16 %v2245
        %v2305 = vunpack.c.h.b16 %v2245
        %v2306 = vunpack.c.l.b16 %v2246
        %v2307 = vunpack.c.l.b16 %v2193
        %v2308 = vunpack.c.h.b16 %v2193
        %v2309 = vunpack.c.l.b16 %v2194
        %v2310 = vunpack.c.l.b16 %v2195
        %v2311 = vunpack.c.h.b16 %v2195
        %v2312 = vunpack.c.l.b16 %v2196
        %v2313 = vunpack.c.l.b16 %v2197
        %v2314 = vunpack.c.h.b16 %v2197
        %v2315 = vunpack.c.l.b16 %v2198
        %v2316 = vunpack.c.l.b16 %v2199
        %v2317 = vunpack.c.h.b16 %v2199
        %v2318 = vunpack.c.l.b16 %v2200
        %v2319 = vunpack.c.l.b16 %v2201
        %v2320 = vunpack.c.h.b16 %v2201
        %v2321 = vunpack.c.l.b16 %v2202
        %v2322 = vunpack.c.l.b16 %v2203
        %v2323 = vunpack.c.h.b16 %v2203
        %v2324 = vunpack.c.l.b16 %v2204
        %v2325 = vunpack.c.l.b16 %v2205
        %v2326 = vunpack.c.h.b16 %v2205
        %v2327 = vunpack.c.l.b16 %v2206
        %v2328 = vunpack.c.l.b16 %v2247
        %v2329 = vunpack.c.h.b16 %v2247
        %v2330 = vunpack.c.l.b16 %v2248
        %v2331 = vpack.c.b16 %v2307, %v2304
        %v2332 = vpack.c.b16 %v2308, %v2305
        %v2333 = vpack.c.b16 %v2309, %v2306
        %v2334 = vpack.c.b16 %v2313, %v2310
        %v2335 = vpack.c.b16 %v2314, %v2311
        %v2336 = vpack.c.b16 %v2315, %v2312
        %v2337 = vpack.c.b16 %v2319, %v2316
        %v2338 = vpack.c.b16 %v2320, %v2317
        %v2339 = vpack.c.b16 %v2321, %v2318
        %v2340 = vpack.c.b16 %v2325, %v2322
        %v2341 = vpack.c.b16 %v2326, %v2323
        %v2342 = vpack.c.b16 %v2327, %v2324
        %v2343 = vpack.c.b16 %v2328, %v2328
        %v2344 = vpack.c.b16 %v2329, %v2329
        %v2345 = vpack.c.b16 %v2330, %v2330
        %v2346 = vrot.slane %v2331, 1
        %v2347 = vrot.slane %v2334, 1
        %v2348 = vsel %vm1087, %v2346, %v2347
        %v2349 = vrot.slane %v2332, 1
        %v2350 = vrot.slane %v2335, 1
        %v2351 = vsel %vm1087, %v2349, %v2350
        %v2352 = vrot.slane %v2333, 1
        %v2353 = vrot.slane %v2336, 1
        %v2354 = vsel %vm1087, %v2352, %v2353
        %v2355 = vrot.slane %v2337, 1
        %v2356 = vsel %vm1087, %v2347, %v2355
        %v2357 = vrot.slane %v2338, 1
        %v2358 = vsel %vm1087, %v2350, %v2357
        %v2359 = vrot.slane %v2339, 1
        %v2360 = vsel %vm1087, %v2353, %v2359
        %v2361 = vrot.slane %v2340, 1
        %v2362 = vsel %vm1087, %v2355, %v2361
        %v2363 = vrot.slane %v2341, 1
        %v2364 = vsel %vm1087, %v2357, %v2363
        %v2365 = vrot.slane %v2342, 1
        %v2366 = vsel %vm1087, %v2359, %v2365
        %v2367 = vrot.slane %v2343, 1
        %v2368 = vsel %vm1087, %v2361, %v2367
        %v2369 = vrot.slane %v2344, 1
        %v2370 = vsel %vm1087, %v2363, %v2369
        %v2371 = vrot.slane %v2345, 1
        %v2372 = vsel %vm1087, %v2365, %v2371
        %v2419 = vunpack.c.l.b16 %v2250
        %v2420 = vunpack.c.h.b16 %v2250
        %v2421 = vunpack.c.l.b16 %v2251
        %v2422 = vunpack.c.h.b16 %v2251
        %v2423 = vunpack.c.l.b16 %v2252
        %v2424 = vunpack.c.h.b16 %v2252
        %v2425 = vunpack.c.l.b16 %v2253
        %v2426 = vunpack.c.h.b16 %v2253
        %v2427 = vunpack.c.l.b16 %v2254
        %v2428 = vunpack.c.h.b16 %v2254
        %v2429 = vunpack.c.l.b16 %v2255
        %v2430 = vunpack.c.h.b16 %v2255
        %v2431 = vunpack.c.l.b16 %v2256
        %v2432 = vunpack.c.h.b16 %v2256
        %v2433 = vunpack.c.l.b16 %v2257
        %v2434 = vunpack.c.h.b16 %v2257
        %v2435 = vunpack.c.l.b16 %v2258
        %v2436 = vunpack.c.h.b16 %v2258
        %v2437 = vunpack.c.l.b16 %v2259
        %v2438 = vunpack.c.h.b16 %v2259
        %v2439 = vunpack.c.l.b16 %v2260
        %v2440 = vunpack.c.h.b16 %v2260
        %v2441 = vunpack.c.l.b16 %v2261
        %v2442 = vunpack.c.h.b16 %v2261
        %v2443 = vunpack.c.l.b16 %v2262
        %v2444 = vunpack.c.h.b16 %v2262
        %v2445 = vunpack.c.l.b16 %v2263
        %v2446 = vunpack.c.h.b16 %v2263
        %v2447 = vunpack.c.l.b16 %v2264
        %v2448 = vunpack.c.h.b16 %v2264
        %v2449 = vunpack.c.l.b16 %v2265
        %v2450 = vunpack.c.h.b16 %v2265
        %v2451 = vunpack.c.l.b16 %v2266
        %v2452 = vunpack.c.h.b16 %v2266
        %v2453 = vunpack.c.l.b16 %v2267
        %v2454 = vunpack.c.h.b16 %v2267
        %v2455 = vunpack.c.l.b16 %v2268
        %v2456 = vunpack.c.h.b16 %v2268
        %v2457 = vunpack.c.l.b16 %v2269
        %v2458 = vunpack.c.h.b16 %v2269
        %v2459 = vunpack.c.l.b16 %v2270
        %v2460 = vunpack.c.h.b16 %v2270
        %v2461 = vunpack.c.l.b16 %v2271
        %v2462 = vunpack.c.h.b16 %v2271
        %v2463 = vunpack.c.l.b16 %v2272
        %v2464 = vunpack.c.h.b16 %v2272
        %v2465 = vunpack.c.l.b16 %v2273
        %v2466 = vunpack.c.h.b16 %v2273
        %v2467 = vunpack.c.l.b16 %v2274
        %v2468 = vunpack.c.h.b16 %v2274
        %v2469 = vunpack.c.l.b16 %v2275
        %v2470 = vunpack.c.h.b16 %v2275
        %v2471 = vunpack.c.l.b16 %v2276
        %v2472 = vunpack.c.h.b16 %v2276
        %v2473 = vunpack.c.l.b16 %v2277
        %v2474 = vunpack.c.h.b16 %v2277
        %v2475 = vunpack.c.l.b16 %v2278
        %v2476 = vunpack.c.h.b16 %v2278
        %v2477 = vunpack.c.l.b16 %v2279
        %v2478 = vunpack.c.h.b16 %v2279
        %v2479 = vunpack.c.l.b16 %v2280
        %v2480 = vunpack.c.h.b16 %v2280
        %v2481 = vunpack.c.l.b16 %v2281
        %v2482 = vunpack.c.h.b16 %v2281
        %v2483 = vunpack.c.l.b16 %v2282
        %v2484 = vunpack.c.h.b16 %v2282
        %v2485 = vunpack.c.l.b16 %v2283
        %v2486 = vunpack.c.h.b16 %v2283
        %v2487 = vunpack.c.l.b16 %v2284
        %v2488 = vunpack.c.h.b16 %v2284
        %v2489 = vunpack.c.l.b16 %v2285
        %v2490 = vunpack.c.h.b16 %v2285
        %v2491 = vpack.c.b16 %v2421, %v2419
        %v2492 = vpack.c.b16 %v2422, %v2420
        %v2493 = vpack.c.b16 %v2425, %v2423
        %v2494 = vpack.c.b16 %v2426, %v2424
        %v2495 = vpack.c.b16 %v2429, %v2427
        %v2496 = vpack.c.b16 %v2430, %v2428
        %v2497 = vpack.c.b16 %v2433, %v2431
        %v2498 = vpack.c.b16 %v2434, %v2432
        %v2499 = vpack.c.b16 %v2437, %v2435
        %v2500 = vpack.c.b16 %v2438, %v2436
        %v2501 = vpack.c.b16 %v2441, %v2439
        %v2502 = vpack.c.b16 %v2442, %v2440
        %v2503 = vpack.c.b16 %v2445, %v2443
        %v2504 = vpack.c.b16 %v2446, %v2444
        %v2505 = vpack.c.b16 %v2449, %v2447
        %v2506 = vpack.c.b16 %v2450, %v2448
        %v2507 = vpack.c.b16 %v2453, %v2451
        %v2508 = vpack.c.b16 %v2454, %v2452
        %v2509 = vpack.c.b16 %v2457, %v2455
        %v2510 = vpack.c.b16 %v2458, %v2456
        %v2511 = vpack.c.b16 %v2461, %v2459
        %v2512 = vpack.c.b16 %v2462, %v2460
        %v2513 = vpack.c.b16 %v2465, %v2463
        %v2514 = vpack.c.b16 %v2466, %v2464
        %v2515 = vpack.c.b16 %v2469, %v2467
        %v2516 = vpack.c.b16 %v2470, %v2468
        %v2517 = vpack.c.b16 %v2473, %v2471
        %v2518 = vpack.c.b16 %v2474, %v2472
        %v2519 = vpack.c.b16 %v2477, %v2475
        %v2520 = vpack.c.b16 %v2478, %v2476
        %v2521 = vpack.c.b16 %v2481, %v2479
        %v2522 = vpack.c.b16 %v2482, %v2480
        %v2523 = vpack.c.b16 %v2485, %v2483
        %v2524 = vpack.c.b16 %v2486, %v2484
        %v2525 = vpack.c.b16 %v2489, %v2487
        %v2526 = vpack.c.b16 %v2490, %v2488
        %vm2563 = vcmask 261120
        %v2565 = vsel %vm2563, %v2354, 0
        %v2568 = vsel %vm2563, %v2360, 0
        %v2571 = vsel %vm2563, %v2366, 0
        %v2574 = vsel %vm2563, %v2372, 0
        %v2577 = vsel %vm2563, %v2371, 0
        %2579 = vmatprep.subr.bf16.mxu0 %v2506
        %2580 = vmatpush1.bf16.msra.mxu0 %v2505
        %2581 = vmatprep.subr.bf16.mxu0 %v2504
        %2582 = vmatpush1.bf16.msra.mxu0 %v2503
        %2583 = vmatprep.subr.bf16.mxu0 %v2502
        %2584 = vmatpush1.bf16.msra.mxu0 %v2501
        %2585 = vmatprep.subr.bf16.mxu0 %v2500
        %2586 = vmatpush1.bf16.msra.mxu0 %v2499
        %2587 = vmatprep.subr.bf16.mxu0 %v2498
        %2588 = vmatpush1.bf16.msra.mxu0 %v2497
        %2589 = vmatprep.subr.bf16.mxu0 %v2496
        %2590 = vmatpush1.bf16.msra.mxu0 %v2495
        %2591 = vmatprep.subr.bf16.mxu0 %v2494
        %2592 = vmatpush1.bf16.msra.mxu0 %v2493
        %2593 = vmatprep.subr.bf16.mxu0 %v2492
        %2594 = vmatpush1.bf16.msra.mxu0 %v2491
        %2595 = vmatprep.subr.bf16.mxu0 %v2522
        %2596 = vmatpush2.bf16.msra.mxu0 %v2521
        %2597 = vmatprep.subr.bf16.mxu0 %v2520
        %2598 = vmatpush2.bf16.msra.mxu0 %v2519
        %2599 = vmatprep.subr.bf16.mxu0 %v2518
        %2600 = vmatpush2.bf16.msra.mxu0 %v2517
        %2601 = vmatprep.subr.bf16.mxu0 %v2516
        %2602 = vmatpush2.bf16.msra.mxu0 %v2515
        %2603 = vmatprep.subr.bf16.mxu0 %v2514
        %2604 = vmatpush2.bf16.msra.mxu0 %v2513
        %2605 = vmatprep.subr.bf16.mxu0 %v2512
        %2606 = vmatpush2.bf16.msra.mxu0 %v2511
        %2607 = vmatprep.subr.bf16.mxu0 %v2510
        %2608 = vmatpush2.bf16.msra.mxu0 %v2509
        %2609 = vmatprep.subr.bf16.mxu0 %v2508
        %2610 = vmatpush2.bf16.msra.mxu0 %v2507
        %2611 = vmatprep.mubr.bf16.mxu0 %v2351
        %2612 = vmatmul.mubr.bf16.gmra.mxu0 %v2348
        %v2613 = vpop.f32.mrf.mxu0
        %v2614 = vadd.f32 0.0, %v2613
        %v2615 = vpop.f32.mrf.mxu0
        %v2616 = vadd.f32 0.0, %v2615
        %v2617 = vpop.f32.mrf.mxu0
        %v2618 = vadd.f32 0.0, %v2617
        %v2619 = vpop.f32.mrf.mxu0
        %v2620 = vadd.f32 0.0, %v2619
        %2621 = vmatprep.mubr.bf16.mxu0 %v2358
        %2622 = vmatmul.mubr.bf16.gmra.mxu0 %v2356
        %v2623 = vpop.f32.mrf.mxu0
        %v2624 = vadd.f32 0.0, %v2623
        %v2625 = vpop.f32.mrf.mxu0
        %v2626 = vadd.f32 0.0, %v2625
        %v2627 = vpop.f32.mrf.mxu0
        %v2628 = vadd.f32 0.0, %v2627
        %v2629 = vpop.f32.mrf.mxu0
        %v2630 = vadd.f32 0.0, %v2629
        %2631 = vmatprep.mubr.bf16.mxu0 %v2364
        %2632 = vmatmul.mubr.bf16.gmra.mxu0 %v2362
        %v2633 = vpop.f32.mrf.mxu0
        %v2634 = vadd.f32 0.0, %v2633
        %v2635 = vpop.f32.mrf.mxu0
        %v2636 = vadd.f32 0.0, %v2635
        %v2637 = vpop.f32.mrf.mxu0
        %v2638 = vadd.f32 0.0, %v2637
        %v2639 = vpop.f32.mrf.mxu0
        %v2640 = vadd.f32 0.0, %v2639
        %2641 = vmatprep.mubr.bf16.mxu0 %v2370
        %2642 = vmatmul.mubr.bf16.gmra.mxu0 %v2368
        %v2643 = vpop.f32.mrf.mxu0
        %v2644 = vadd.f32 0.0, %v2643
        %v2645 = vpop.f32.mrf.mxu0
        %v2646 = vadd.f32 0.0, %v2645
        %v2647 = vpop.f32.mrf.mxu0
        %v2648 = vadd.f32 0.0, %v2647
        %v2649 = vpop.f32.mrf.mxu0
        %v2650 = vadd.f32 0.0, %v2649
        %2651 = vmatprep.mubr.bf16.mxu0 %v2369
        %2652 = vmatmul.mubr.bf16.gmra.mxu0 %v2367
        %v2653 = vpop.f32.mrf.mxu0
        %v2654 = vadd.f32 0.0, %v2653
        %v2655 = vpop.f32.mrf.mxu0
        %v2656 = vadd.f32 0.0, %v2655
        %v2657 = vpop.f32.mrf.mxu0
        %v2658 = vpop.f32.mrf.mxu0
        %2659 = vdwg.mxu0
        %2660 = vmatprep.subr.bf16.mxu0 0
        %2661 = vmatpush1.bf16.msra.mxu0 0
        %2662 = vmatprep.subr.bf16.mxu0 0
        %2663 = vmatpush1.bf16.msra.mxu0 0
        %2664 = vmatprep.subr.bf16.mxu0 0
        %2665 = vmatpush1.bf16.msra.mxu0 0
        %2666 = vmatprep.subr.bf16.mxu0 0
        %2667 = vmatpush1.bf16.msra.mxu0 0
        %2668 = vmatprep.subr.bf16.mxu0 0
        %2669 = vmatpush1.bf16.msra.mxu0 0
        %2670 = vmatprep.subr.bf16.mxu0 0
        %2671 = vmatpush1.bf16.msra.mxu0 0
        %2672 = vmatprep.subr.bf16.mxu0 %v2526
        %2673 = vmatpush1.bf16.msra.mxu0 %v2525
        %2674 = vmatprep.subr.bf16.mxu0 %v2524
        %2675 = vmatpush1.bf16.msra.mxu0 %v2523
        %2676 = vmatprep.subr.bf16.mxu0 0
        %2677 = vmatpush2.bf16.msra.mxu0 0
        %2678 = vmatprep.subr.bf16.mxu0 0
        %2679 = vmatpush2.bf16.msra.mxu0 0
        %2680 = vmatprep.subr.bf16.mxu0 0
        %2681 = vmatpush2.bf16.msra.mxu0 0
        %2682 = vmatprep.subr.bf16.mxu0 0
        %2683 = vmatpush2.bf16.msra.mxu0 0
        %2684 = vmatprep.subr.bf16.mxu0 0
        %2685 = vmatpush2.bf16.msra.mxu0 0
        %2686 = vmatprep.subr.bf16.mxu0 0
        %2687 = vmatpush2.bf16.msra.mxu0 0
        %2688 = vmatprep.subr.bf16.mxu0 0
        %2689 = vmatpush2.bf16.msra.mxu0 0
        %2690 = vmatprep.subr.bf16.mxu0 0
        %2691 = vmatpush2.bf16.msra.mxu0 0
        %2692 = vmatprep.mubr.bf16.mxu0 0
        %2693 = vmatmul.mubr.bf16.gmra.mxu0 %v2565
        %v2694 = vpop.f32.mrf.mxu0
        %v2695 = vadd.f32 %v2614, %v2694
        %v2696 = vpop.f32.mrf.mxu0
        %v2697 = vadd.f32 %v2616, %v2696
        %v2698 = vpop.f32.mrf.mxu0
        %v2699 = vadd.f32 %v2618, %v2698
        %v2700 = vpop.f32.mrf.mxu0
        %v2701 = vadd.f32 %v2620, %v2700
        %2702 = vmatprep.mubr.bf16.mxu0 0
        %2703 = vmatmul.mubr.bf16.gmra.mxu0 %v2568
        %v2704 = vpop.f32.mrf.mxu0
        %v2705 = vadd.f32 %v2624, %v2704
        %v2706 = vpop.f32.mrf.mxu0
        %v2707 = vadd.f32 %v2626, %v2706
        %v2708 = vpop.f32.mrf.mxu0
        %v2709 = vadd.f32 %v2628, %v2708
        %v2710 = vpop.f32.mrf.mxu0
        %v2711 = vadd.f32 %v2630, %v2710
        %2712 = vmatprep.mubr.bf16.mxu0 0
        %2713 = vmatmul.mubr.bf16.gmra.mxu0 %v2571
        %v2714 = vpop.f32.mrf.mxu0
        %v2715 = vadd.f32 %v2634, %v2714
        %v2716 = vpop.f32.mrf.mxu0
        %v2717 = vadd.f32 %v2636, %v2716
        %v2718 = vpop.f32.mrf.mxu0
        %v2719 = vadd.f32 %v2638, %v2718
        %v2720 = vpop.f32.mrf.mxu0
        %v2721 = vadd.f32 %v2640, %v2720
        %2722 = vmatprep.mubr.bf16.mxu0 0
        %2723 = vmatmul.mubr.bf16.gmra.mxu0 %v2574
        %v2724 = vpop.f32.mrf.mxu0
        %v2725 = vadd.f32 %v2644, %v2724
        %v2726 = vpop.f32.mrf.mxu0
        %v2727 = vadd.f32 %v2646, %v2726
        %v2728 = vpop.f32.mrf.mxu0
        %v2729 = vadd.f32 %v2648, %v2728
        %v2730 = vpop.f32.mrf.mxu0
        %v2731 = vadd.f32 %v2650, %v2730
        %2732 = vmatprep.mubr.bf16.mxu0 0
        %2733 = vmatmul.mubr.bf16.gmra.mxu0 %v2577
        %v2734 = vpop.f32.mrf.mxu0
        %v2735 = vadd.f32 %v2654, %v2734
        %v2736 = vpop.f32.mrf.mxu0
        %v2737 = vadd.f32 %v2656, %v2736
        %v2738 = vpop.f32.mrf.mxu0
        %v2739 = vpop.f32.mrf.mxu0
        %2740 = vdwg.mxu0
        %v2745 = vunpack.c.l.b16 %v2191
        %v2746 = vunpack.c.h.b16 %v2191
        %v2747 = vunpack.c.l.b16 %v2192
        %v2748 = vunpack.c.l.b16 %v2207
        %v2749 = vunpack.c.h.b16 %v2207
        %v2750 = vunpack.c.l.b16 %v2208
        %v2751 = vpack.c.b16 %v2307, %v2745
        %v2752 = vpack.c.b16 %v2308, %v2746
        %v2753 = vpack.c.b16 %v2309, %v2747
        %v2754 = vpack.c.b16 %v2748, %v2748
        %v2755 = vpack.c.b16 %v2749, %v2749
        %v2756 = vpack.c.b16 %v2750, %v2750
        %v2803 = vunpack.c.l.b16 %v2209
        %v2804 = vunpack.c.h.b16 %v2209
        %v2805 = vunpack.c.l.b16 %v2210
        %v2806 = vunpack.c.h.b16 %v2210
        %v2807 = vunpack.c.l.b16 %v2211
        %v2808 = vunpack.c.h.b16 %v2211
        %v2809 = vunpack.c.l.b16 %v2212
        %v2810 = vunpack.c.h.b16 %v2212
        %v2811 = vunpack.c.l.b16 %v2213
        %v2812 = vunpack.c.h.b16 %v2213
        %v2813 = vunpack.c.l.b16 %v2214
        %v2814 = vunpack.c.h.b16 %v2214
        %v2815 = vunpack.c.l.b16 %v2215
        %v2816 = vunpack.c.h.b16 %v2215
        %v2817 = vunpack.c.l.b16 %v2216
        %v2818 = vunpack.c.h.b16 %v2216
        %v2819 = vunpack.c.l.b16 %v2217
        %v2820 = vunpack.c.h.b16 %v2217
        %v2821 = vunpack.c.l.b16 %v2218
        %v2822 = vunpack.c.h.b16 %v2218
        %v2823 = vunpack.c.l.b16 %v2219
        %v2824 = vunpack.c.h.b16 %v2219
        %v2825 = vunpack.c.l.b16 %v2220
        %v2826 = vunpack.c.h.b16 %v2220
        %v2827 = vunpack.c.l.b16 %v2221
        %v2828 = vunpack.c.h.b16 %v2221
        %v2829 = vunpack.c.l.b16 %v2222
        %v2830 = vunpack.c.h.b16 %v2222
        %v2831 = vunpack.c.l.b16 %v2223
        %v2832 = vunpack.c.h.b16 %v2223
        %v2833 = vunpack.c.l.b16 %v2224
        %v2834 = vunpack.c.h.b16 %v2224
        %v2835 = vunpack.c.l.b16 %v2225
        %v2836 = vunpack.c.h.b16 %v2225
        %v2837 = vunpack.c.l.b16 %v2226
        %v2838 = vunpack.c.h.b16 %v2226
        %v2839 = vunpack.c.l.b16 %v2227
        %v2840 = vunpack.c.h.b16 %v2227
        %v2841 = vunpack.c.l.b16 %v2228
        %v2842 = vunpack.c.h.b16 %v2228
        %v2843 = vunpack.c.l.b16 %v2229
        %v2844 = vunpack.c.h.b16 %v2229
        %v2845 = vunpack.c.l.b16 %v2230
        %v2846 = vunpack.c.h.b16 %v2230
        %v2847 = vunpack.c.l.b16 %v2231
        %v2848 = vunpack.c.h.b16 %v2231
        %v2849 = vunpack.c.l.b16 %v2232
        %v2850 = vunpack.c.h.b16 %v2232
        %v2851 = vunpack.c.l.b16 %v2233
        %v2852 = vunpack.c.h.b16 %v2233
        %v2853 = vunpack.c.l.b16 %v2234
        %v2854 = vunpack.c.h.b16 %v2234
        %v2855 = vunpack.c.l.b16 %v2235
        %v2856 = vunpack.c.h.b16 %v2235
        %v2857 = vunpack.c.l.b16 %v2236
        %v2858 = vunpack.c.h.b16 %v2236
        %v2859 = vunpack.c.l.b16 %v2237
        %v2860 = vunpack.c.h.b16 %v2237
        %v2861 = vunpack.c.l.b16 %v2238
        %v2862 = vunpack.c.h.b16 %v2238
        %v2863 = vunpack.c.l.b16 %v2239
        %v2864 = vunpack.c.h.b16 %v2239
        %v2865 = vunpack.c.l.b16 %v2240
        %v2866 = vunpack.c.h.b16 %v2240
        %v2867 = vunpack.c.l.b16 %v2241
        %v2868 = vunpack.c.h.b16 %v2241
        %v2869 = vunpack.c.l.b16 %v2242
        %v2870 = vunpack.c.h.b16 %v2242
        %v2871 = vunpack.c.l.b16 %v2243
        %v2872 = vunpack.c.h.b16 %v2243
        %v2873 = vunpack.c.l.b16 %v2244
        %v2874 = vunpack.c.h.b16 %v2244
        %v2875 = vpack.c.b16 %v2805, %v2803
        %v2876 = vpack.c.b16 %v2806, %v2804
        %v2877 = vpack.c.b16 %v2809, %v2807
        %v2878 = vpack.c.b16 %v2810, %v2808
        %v2879 = vpack.c.b16 %v2813, %v2811
        %v2880 = vpack.c.b16 %v2814, %v2812
        %v2881 = vpack.c.b16 %v2817, %v2815
        %v2882 = vpack.c.b16 %v2818, %v2816
        %v2883 = vpack.c.b16 %v2821, %v2819
        %v2884 = vpack.c.b16 %v2822, %v2820
        %v2885 = vpack.c.b16 %v2825, %v2823
        %v2886 = vpack.c.b16 %v2826, %v2824
        %v2887 = vpack.c.b16 %v2829, %v2827
        %v2888 = vpack.c.b16 %v2830, %v2828
        %v2889 = vpack.c.b16 %v2833, %v2831
        %v2890 = vpack.c.b16 %v2834, %v2832
        %v2891 = vpack.c.b16 %v2837, %v2835
        %v2892 = vpack.c.b16 %v2838, %v2836
        %v2893 = vpack.c.b16 %v2841, %v2839
        %v2894 = vpack.c.b16 %v2842, %v2840
        %v2895 = vpack.c.b16 %v2845, %v2843
        %v2896 = vpack.c.b16 %v2846, %v2844
        %v2897 = vpack.c.b16 %v2849, %v2847
        %v2898 = vpack.c.b16 %v2850, %v2848
        %v2899 = vpack.c.b16 %v2853, %v2851
        %v2900 = vpack.c.b16 %v2854, %v2852
        %v2901 = vpack.c.b16 %v2857, %v2855
        %v2902 = vpack.c.b16 %v2858, %v2856
        %v2903 = vpack.c.b16 %v2861, %v2859
        %v2904 = vpack.c.b16 %v2862, %v2860
        %v2905 = vpack.c.b16 %v2865, %v2863
        %v2906 = vpack.c.b16 %v2866, %v2864
        %v2907 = vpack.c.b16 %v2869, %v2867
        %v2908 = vpack.c.b16 %v2870, %v2868
        %v2909 = vpack.c.b16 %v2873, %v2871
        %v2910 = vpack.c.b16 %v2874, %v2872
        %v2948 = vsel %vm2563, %v2753, 0
        %v2951 = vsel %vm2563, %v2336, 0
        %v2954 = vsel %vm2563, %v2339, 0
        %v2957 = vsel %vm2563, %v2342, 0
        %v2960 = vsel %vm2563, %v2756, 0
        %2962 = vmatprep.subr.bf16.mxu0 %v2890
        %2963 = vmatpush1.bf16.msra.mxu0 %v2889
        %2964 = vmatprep.subr.bf16.mxu0 %v2888
        %2965 = vmatpush1.bf16.msra.mxu0 %v2887
        %2966 = vmatprep.subr.bf16.mxu0 %v2886
        %2967 = vmatpush1.bf16.msra.mxu0 %v2885
        %2968 = vmatprep.subr.bf16.mxu0 %v2884
        %2969 = vmatpush1.bf16.msra.mxu0 %v2883
        %2970 = vmatprep.subr.bf16.mxu0 %v2882
        %2971 = vmatpush1.bf16.msra.mxu0 %v2881
        %2972 = vmatprep.subr.bf16.mxu0 %v2880
        %2973 = vmatpush1.bf16.msra.mxu0 %v2879
        %2974 = vmatprep.subr.bf16.mxu0 %v2878
        %2975 = vmatpush1.bf16.msra.mxu0 %v2877
        %2976 = vmatprep.subr.bf16.mxu0 %v2876
        %2977 = vmatpush1.bf16.msra.mxu0 %v2875
        %2978 = vmatprep.subr.bf16.mxu0 %v2906
        %2979 = vmatpush2.bf16.msra.mxu0 %v2905
        %2980 = vmatprep.subr.bf16.mxu0 %v2904
        %2981 = vmatpush2.bf16.msra.mxu0 %v2903
        %2982 = vmatprep.subr.bf16.mxu0 %v2902
        %2983 = vmatpush2.bf16.msra.mxu0 %v2901
        %2984 = vmatprep.subr.bf16.mxu0 %v2900
        %2985 = vmatpush2.bf16.msra.mxu0 %v2899
        %2986 = vmatprep.subr.bf16.mxu0 %v2898
        %2987 = vmatpush2.bf16.msra.mxu0 %v2897
        %2988 = vmatprep.subr.bf16.mxu0 %v2896
        %2989 = vmatpush2.bf16.msra.mxu0 %v2895
        %2990 = vmatprep.subr.bf16.mxu0 %v2894
        %2991 = vmatpush2.bf16.msra.mxu0 %v2893
        %2992 = vmatprep.subr.bf16.mxu0 %v2892
        %2993 = vmatpush2.bf16.msra.mxu0 %v2891
        %2994 = vmatprep.mubr.bf16.mxu0 %v2752
        %2995 = vmatmul.mubr.bf16.gmra.mxu0 %v2751
        %v2996 = vpop.f32.mrf.mxu0
        %v2997 = vadd.f32 %v2695, %v2996
        %v2998 = vpop.f32.mrf.mxu0
        %v2999 = vadd.f32 %v2697, %v2998
        %v3000 = vpop.f32.mrf.mxu0
        %v3001 = vadd.f32 %v2699, %v3000
        %v3002 = vpop.f32.mrf.mxu0
        %v3003 = vadd.f32 %v2701, %v3002
        %3004 = vmatprep.mubr.bf16.mxu0 %v2335
        %3005 = vmatmul.mubr.bf16.gmra.mxu0 %v2334
        %v3006 = vpop.f32.mrf.mxu0
        %v3007 = vadd.f32 %v2705, %v3006
        %v3008 = vpop.f32.mrf.mxu0
        %v3009 = vadd.f32 %v2707, %v3008
        %v3010 = vpop.f32.mrf.mxu0
        %v3011 = vadd.f32 %v2709, %v3010
        %v3012 = vpop.f32.mrf.mxu0
        %v3013 = vadd.f32 %v2711, %v3012
        %3014 = vmatprep.mubr.bf16.mxu0 %v2338
        %3015 = vmatmul.mubr.bf16.gmra.mxu0 %v2337
        %v3016 = vpop.f32.mrf.mxu0
        %v3017 = vadd.f32 %v2715, %v3016
        %v3018 = vpop.f32.mrf.mxu0
        %v3019 = vadd.f32 %v2717, %v3018
        %v3020 = vpop.f32.mrf.mxu0
        %v3021 = vadd.f32 %v2719, %v3020
        %v3022 = vpop.f32.mrf.mxu0
        %v3023 = vadd.f32 %v2721, %v3022
        %3024 = vmatprep.mubr.bf16.mxu0 %v2341
        %3025 = vmatmul.mubr.bf16.gmra.mxu0 %v2340
        %v3026 = vpop.f32.mrf.mxu0
        %v3027 = vadd.f32 %v2725, %v3026
        %v3028 = vpop.f32.mrf.mxu0
        %v3029 = vadd.f32 %v2727, %v3028
        %v3030 = vpop.f32.mrf.mxu0
        %v3031 = vadd.f32 %v2729, %v3030
        %v3032 = vpop.f32.mrf.mxu0
        %v3033 = vadd.f32 %v2731, %v3032
        %3034 = vmatprep.mubr.bf16.mxu0 %v2755
        %3035 = vmatmul.mubr.bf16.gmra.mxu0 %v2754
        %v3036 = vpop.f32.mrf.mxu0
        %v3037 = vadd.f32 %v2735, %v3036
        %v3038 = vpop.f32.mrf.mxu0
        %v3039 = vadd.f32 %v2737, %v3038
        %v3040 = vpop.f32.mrf.mxu0
        %v3041 = vpop.f32.mrf.mxu0
        %3042 = vdwg.mxu0
        %3043 = vmatprep.subr.bf16.mxu0 0
        %3044 = vmatpush1.bf16.msra.mxu0 0
        %3045 = vmatprep.subr.bf16.mxu0 0
        %3046 = vmatpush1.bf16.msra.mxu0 0
        %3047 = vmatprep.subr.bf16.mxu0 0
        %3048 = vmatpush1.bf16.msra.mxu0 0
        %3049 = vmatprep.subr.bf16.mxu0 0
        %3050 = vmatpush1.bf16.msra.mxu0 0
        %3051 = vmatprep.subr.bf16.mxu0 0
        %3052 = vmatpush1.bf16.msra.mxu0 0
        %3053 = vmatprep.subr.bf16.mxu0 0
        %3054 = vmatpush1.bf16.msra.mxu0 0
        %3055 = vmatprep.subr.bf16.mxu0 %v2910
        %3056 = vmatpush1.bf16.msra.mxu0 %v2909
        %3057 = vmatprep.subr.bf16.mxu0 %v2908
        %3058 = vmatpush1.bf16.msra.mxu0 %v2907
        %3059 = vmatprep.subr.bf16.mxu0 0
        %3060 = vmatpush2.bf16.msra.mxu0 0
        %3061 = vmatprep.subr.bf16.mxu0 0
        %3062 = vmatpush2.bf16.msra.mxu0 0
        %3063 = vmatprep.subr.bf16.mxu0 0
        %3064 = vmatpush2.bf16.msra.mxu0 0
        %3065 = vmatprep.subr.bf16.mxu0 0
        %3066 = vmatpush2.bf16.msra.mxu0 0
        %3067 = vmatprep.subr.bf16.mxu0 0
        %3068 = vmatpush2.bf16.msra.mxu0 0
        %3069 = vmatprep.subr.bf16.mxu0 0
        %3070 = vmatpush2.bf16.msra.mxu0 0
        %3071 = vmatprep.subr.bf16.mxu0 0
        %3072 = vmatpush2.bf16.msra.mxu0 0
        %3073 = vmatprep.subr.bf16.mxu0 0
        %3074 = vmatpush2.bf16.msra.mxu0 0
        %3075 = vmatprep.mubr.bf16.mxu0 0
        %3076 = vmatmul.mubr.bf16.gmra.mxu0 %v2948
        %v3077 = vpop.f32.mrf.mxu0
        %v3078 = vadd.f32 %v2997, %v3077
        %v3079 = vpop.f32.mrf.mxu0
        %v3080 = vadd.f32 %v2999, %v3079
        %v3081 = vpop.f32.mrf.mxu0
        %v3082 = vadd.f32 %v3001, %v3081
        %v3083 = vpop.f32.mrf.mxu0
        %v3084 = vadd.f32 %v3003, %v3083
        %3085 = vmatprep.mubr.bf16.mxu0 0
        %3086 = vmatmul.mubr.bf16.gmra.mxu0 %v2951
        %v3087 = vpop.f32.mrf.mxu0
        %v3088 = vadd.f32 %v3007, %v3087
        %v3089 = vpop.f32.mrf.mxu0
        %v3090 = vadd.f32 %v3009, %v3089
        %v3091 = vpop.f32.mrf.mxu0
        %v3092 = vadd.f32 %v3011, %v3091
        %v3093 = vpop.f32.mrf.mxu0
        %v3094 = vadd.f32 %v3013, %v3093
        %3095 = vmatprep.mubr.bf16.mxu0 0
        %3096 = vmatmul.mubr.bf16.gmra.mxu0 %v2954
        %v3097 = vpop.f32.mrf.mxu0
        %v3098 = vadd.f32 %v3017, %v3097
        %v3099 = vpop.f32.mrf.mxu0
        %v3100 = vadd.f32 %v3019, %v3099
        %v3101 = vpop.f32.mrf.mxu0
        %v3102 = vadd.f32 %v3021, %v3101
        %v3103 = vpop.f32.mrf.mxu0
        %v3104 = vadd.f32 %v3023, %v3103
        %3105 = vmatprep.mubr.bf16.mxu0 0
        %3106 = vmatmul.mubr.bf16.gmra.mxu0 %v2957
        %v3107 = vpop.f32.mrf.mxu0
        %v3108 = vadd.f32 %v3027, %v3107
        %v3109 = vpop.f32.mrf.mxu0
        %v3110 = vadd.f32 %v3029, %v3109
        %v3111 = vpop.f32.mrf.mxu0
        %v3112 = vadd.f32 %v3031, %v3111
        %v3113 = vpop.f32.mrf.mxu0
        %v3114 = vadd.f32 %v3033, %v3113
        %3115 = vmatprep.mubr.bf16.mxu0 0
        %3116 = vmatmul.mubr.bf16.gmra.mxu0 %v2960
        %v3117 = vpop.f32.mrf.mxu0
        %v3118 = vadd.f32 %v3037, %v3117
        %v3119 = vpop.f32.mrf.mxu0
        %v3120 = vadd.f32 %v3039, %v3119
        %v3121 = vpop.f32.mrf.mxu0
        %v3122 = vpop.f32.mrf.mxu0
        %3123 = vdwg.mxu0
        %v3124 = vld [vmem:[#allocation3] sm:$0xcc]
        %v3125 = vld [vmem:[#allocation3 + $0x8] sm:$0xc]
        %v3126 = vld [vmem:[#allocation3 + $0x60] sm:$0xff]
        %v3127 = vld [vmem:[#allocation3 + $0x68] sm:$0xf]
        %s3128 = scalar_lea.vmem %s4, 576
        %v3129 = vld [vmem:[%s3128] sm:$0xff]
        %v3130 = vld [vmem:[%s3128 + $0x8] sm:$0xff]
        %v3131 = vld [vmem:[%s3128 + $0x10] sm:$0xff]
        %v3132 = vld [vmem:[%s3128 + $0x18] sm:$0xff]
        %v3133 = vld [vmem:[%s3128 + $0x20] sm:$0xff]
        %v3134 = vld [vmem:[%s3128 + $0x28] sm:$0xff]
        %v3135 = vld [vmem:[%s3128 + $0x30] sm:$0xff]
        %v3136 = vld [vmem:[%s3128 + $0x38] sm:$0xff]
        %v3137 = vld [vmem:[%s3128 + $0x40] sm:$0xff]
        %v3138 = vld [vmem:[%s3128 + $0x48] sm:$0xff]
        %v3139 = vld [vmem:[%s3128 + $0x50] sm:$0xff]
        %v3140 = vld [vmem:[%s3128 + $0x58] sm:$0xff]
        %v3141 = vld [vmem:[%s3128 + $0x60] sm:$0xff]
        %v3142 = vld [vmem:[%s3128 + $0x68] sm:$0xff]
        %v3143 = vld [vmem:[%s3128 + $0x70] sm:$0xff]
        %v3144 = vld [vmem:[%s3128 + $0x78] sm:$0xff]
        %v3145 = vld [vmem:[%s3128 + $0x80] sm:$0xff]
        %v3146 = vld [vmem:[%s3128 + $0x88] sm:$0xff]
        %v3147 = vld [vmem:[%s3128 + $0x90] sm:$0xff]
        %v3148 = vld [vmem:[%s3128 + $0x98] sm:$0xff]
        %v3149 = vld [vmem:[%s3128 + $0xa0] sm:$0xff]
        %v3150 = vld [vmem:[%s3128 + $0xa8] sm:$0xff]
        %v3151 = vld [vmem:[%s3128 + $0xb0] sm:$0xff]
        %v3152 = vld [vmem:[%s3128 + $0xb8] sm:$0xff]
        %v3153 = vld [vmem:[%s3128 + $0xc0] sm:$0xff]
        %v3154 = vld [vmem:[%s3128 + $0xc8] sm:$0xff]
        %v3155 = vld [vmem:[%s3128 + $0xd0] sm:$0xff]
        %v3156 = vld [vmem:[%s3128 + $0xd8] sm:$0xff]
        %v3157 = vld [vmem:[%s3128 + $0xe0] sm:$0xff]
        %v3158 = vld [vmem:[%s3128 + $0xe8] sm:$0xff]
        %v3159 = vld [vmem:[%s3128 + $0xf0] sm:$0xff]
        %v3160 = vld [vmem:[%s3128 + $0xf8] sm:$0xff]
        %v3161 = vld [vmem:[%s3128 + $0x100] sm:$0xff]
        %v3162 = vld [vmem:[%s3128 + $0x108] sm:$0xff]
        %v3163 = vld [vmem:[%s3128 + $0x110] sm:$0xff]
        %v3164 = vld [vmem:[%s3128 + $0x118] sm:$0xff]
        %v3169 = vunpack.c.l.b16 %v3124
        %v3170 = vunpack.c.h.b16 %v3124
        %v3171 = vunpack.c.l.b16 %v3125
        %v3172 = vunpack.c.l.b16 %v3126
        %v3173 = vunpack.c.h.b16 %v3126
        %v3174 = vunpack.c.l.b16 %v3127
        %v3175 = vpack.c.b16 %v2307, %v3169
        %v3176 = vpack.c.b16 %v2308, %v3170
        %v3177 = vpack.c.b16 %v2309, %v3171
        %v3178 = vpack.c.b16 %v3172, %v3172
        %v3179 = vpack.c.b16 %v3173, %v3173
        %v3180 = vpack.c.b16 %v3174, %v3174
        %v3181 = vrot.slane %v3175, 2
        %v3182 = vrot.slane %v2334, 2
        %v3183 = vsel %vm1558, %v3181, %v3182
        %v3184 = vrot.slane %v3176, 2
        %v3185 = vrot.slane %v2335, 2
        %v3186 = vsel %vm1558, %v3184, %v3185
        %v3187 = vrot.slane %v3177, 2
        %v3188 = vrot.slane %v2336, 2
        %v3189 = vsel %vm1558, %v3187, %v3188
        %v3190 = vrot.slane %v2337, 2
        %v3191 = vsel %vm1558, %v3182, %v3190
        %v3192 = vrot.slane %v2338, 2
        %v3193 = vsel %vm1558, %v3185, %v3192
        %v3194 = vrot.slane %v2339, 2
        %v3195 = vsel %vm1558, %v3188, %v3194
        %v3196 = vrot.slane %v2340, 2
        %v3197 = vsel %vm1558, %v3190, %v3196
        %v3198 = vrot.slane %v2341, 2
        %v3199 = vsel %vm1558, %v3192, %v3198
        %v3200 = vrot.slane %v2342, 2
        %v3201 = vsel %vm1558, %v3194, %v3200
        %v3202 = vrot.slane %v3178, 2
        %v3203 = vsel %vm1558, %v3196, %v3202
        %v3204 = vrot.slane %v3179, 2
        %v3205 = vsel %vm1558, %v3198, %v3204
        %v3206 = vrot.slane %v3180, 2
        %v3207 = vsel %vm1558, %v3200, %v3206
        %v3254 = vunpack.c.l.b16 %v3129
        %v3255 = vunpack.c.h.b16 %v3129
        %v3256 = vunpack.c.l.b16 %v3130
        %v3257 = vunpack.c.h.b16 %v3130
        %v3258 = vunpack.c.l.b16 %v3131
        %v3259 = vunpack.c.h.b16 %v3131
        %v3260 = vunpack.c.l.b16 %v3132
        %v3261 = vunpack.c.h.b16 %v3132
        %v3262 = vunpack.c.l.b16 %v3133
        %v3263 = vunpack.c.h.b16 %v3133
        %v3264 = vunpack.c.l.b16 %v3134
        %v3265 = vunpack.c.h.b16 %v3134
        %v3266 = vunpack.c.l.b16 %v3135
        %v3267 = vunpack.c.h.b16 %v3135
        %v3268 = vunpack.c.l.b16 %v3136
        %v3269 = vunpack.c.h.b16 %v3136
        %v3270 = vunpack.c.l.b16 %v3137
        %v3271 = vunpack.c.h.b16 %v3137
        %v3272 = vunpack.c.l.b16 %v3138
        %v3273 = vunpack.c.h.b16 %v3138
        %v3274 = vunpack.c.l.b16 %v3139
        %v3275 = vunpack.c.h.b16 %v3139
        %v3276 = vunpack.c.l.b16 %v3140
        %v3277 = vunpack.c.h.b16 %v3140
        %v3278 = vunpack.c.l.b16 %v3141
        %v3279 = vunpack.c.h.b16 %v3141
        %v3280 = vunpack.c.l.b16 %v3142
        %v3281 = vunpack.c.h.b16 %v3142
        %v3282 = vunpack.c.l.b16 %v3143
        %v3283 = vunpack.c.h.b16 %v3143
        %v3284 = vunpack.c.l.b16 %v3144
        %v3285 = vunpack.c.h.b16 %v3144
        %v3286 = vunpack.c.l.b16 %v3145
        %v3287 = vunpack.c.h.b16 %v3145
        %v3288 = vunpack.c.l.b16 %v3146
        %v3289 = vunpack.c.h.b16 %v3146
        %v3290 = vunpack.c.l.b16 %v3147
        %v3291 = vunpack.c.h.b16 %v3147
        %v3292 = vunpack.c.l.b16 %v3148
        %v3293 = vunpack.c.h.b16 %v3148
        %v3294 = vunpack.c.l.b16 %v3149
        %v3295 = vunpack.c.h.b16 %v3149
        %v3296 = vunpack.c.l.b16 %v3150
        %v3297 = vunpack.c.h.b16 %v3150
        %v3298 = vunpack.c.l.b16 %v3151
        %v3299 = vunpack.c.h.b16 %v3151
        %v3300 = vunpack.c.l.b16 %v3152
        %v3301 = vunpack.c.h.b16 %v3152
        %v3302 = vunpack.c.l.b16 %v3153
        %v3303 = vunpack.c.h.b16 %v3153
        %v3304 = vunpack.c.l.b16 %v3154
        %v3305 = vunpack.c.h.b16 %v3154
        %v3306 = vunpack.c.l.b16 %v3155
        %v3307 = vunpack.c.h.b16 %v3155
        %v3308 = vunpack.c.l.b16 %v3156
        %v3309 = vunpack.c.h.b16 %v3156
        %v3310 = vunpack.c.l.b16 %v3157
        %v3311 = vunpack.c.h.b16 %v3157
        %v3312 = vunpack.c.l.b16 %v3158
        %v3313 = vunpack.c.h.b16 %v3158
        %v3314 = vunpack.c.l.b16 %v3159
        %v3315 = vunpack.c.h.b16 %v3159
        %v3316 = vunpack.c.l.b16 %v3160
        %v3317 = vunpack.c.h.b16 %v3160
        %v3318 = vunpack.c.l.b16 %v3161
        %v3319 = vunpack.c.h.b16 %v3161
        %v3320 = vunpack.c.l.b16 %v3162
        %v3321 = vunpack.c.h.b16 %v3162
        %v3322 = vunpack.c.l.b16 %v3163
        %v3323 = vunpack.c.h.b16 %v3163
        %v3324 = vunpack.c.l.b16 %v3164
        %v3325 = vunpack.c.h.b16 %v3164
        %v3326 = vpack.c.b16 %v3256, %v3254
        %v3327 = vpack.c.b16 %v3257, %v3255
        %v3328 = vpack.c.b16 %v3260, %v3258
        %v3329 = vpack.c.b16 %v3261, %v3259
        %v3330 = vpack.c.b16 %v3264, %v3262
        %v3331 = vpack.c.b16 %v3265, %v3263
        %v3332 = vpack.c.b16 %v3268, %v3266
        %v3333 = vpack.c.b16 %v3269, %v3267
        %v3334 = vpack.c.b16 %v3272, %v3270
        %v3335 = vpack.c.b16 %v3273, %v3271
        %v3336 = vpack.c.b16 %v3276, %v3274
        %v3337 = vpack.c.b16 %v3277, %v3275
        %v3338 = vpack.c.b16 %v3280, %v3278
        %v3339 = vpack.c.b16 %v3281, %v3279
        %v3340 = vpack.c.b16 %v3284, %v3282
        %v3341 = vpack.c.b16 %v3285, %v3283
        %v3342 = vpack.c.b16 %v3288, %v3286
        %v3343 = vpack.c.b16 %v3289, %v3287
        %v3344 = vpack.c.b16 %v3292, %v3290
        %v3345 = vpack.c.b16 %v3293, %v3291
        %v3346 = vpack.c.b16 %v3296, %v3294
        %v3347 = vpack.c.b16 %v3297, %v3295
        %v3348 = vpack.c.b16 %v3300, %v3298
        %v3349 = vpack.c.b16 %v3301, %v3299
        %v3350 = vpack.c.b16 %v3304, %v3302
        %v3351 = vpack.c.b16 %v3305, %v3303
        %v3352 = vpack.c.b16 %v3308, %v3306
        %v3353 = vpack.c.b16 %v3309, %v3307
        %v3354 = vpack.c.b16 %v3312, %v3310
        %v3355 = vpack.c.b16 %v3313, %v3311
        %v3356 = vpack.c.b16 %v3316, %v3314
        %v3357 = vpack.c.b16 %v3317, %v3315
        %v3358 = vpack.c.b16 %v3320, %v3318
        %v3359 = vpack.c.b16 %v3321, %v3319
        %v3360 = vpack.c.b16 %v3324, %v3322
        %v3361 = vpack.c.b16 %v3325, %v3323
        %v3399 = vsel %vm2563, %v3189, 0
        %v3402 = vsel %vm2563, %v3195, 0
        %v3405 = vsel %vm2563, %v3201, 0
        %v3408 = vsel %vm2563, %v3207, 0
        %v3411 = vsel %vm2563, %v3206, 0
        %3413 = vmatprep.subr.bf16.mxu0 %v3341
        %3414 = vmatpush1.bf16.msra.mxu0 %v3340
        %3415 = vmatprep.subr.bf16.mxu0 %v3339
        %3416 = vmatpush1.bf16.msra.mxu0 %v3338
        %3417 = vmatprep.subr.bf16.mxu0 %v3337
        %3418 = vmatpush1.bf16.msra.mxu0 %v3336
        %3419 = vmatprep.subr.bf16.mxu0 %v3335
        %3420 = vmatpush1.bf16.msra.mxu0 %v3334
        %3421 = vmatprep.subr.bf16.mxu0 %v3333
        %3422 = vmatpush1.bf16.msra.mxu0 %v3332
        %3423 = vmatprep.subr.bf16.mxu0 %v3331
        %3424 = vmatpush1.bf16.msra.mxu0 %v3330
        %3425 = vmatprep.subr.bf16.mxu0 %v3329
        %3426 = vmatpush1.bf16.msra.mxu0 %v3328
        %3427 = vmatprep.subr.bf16.mxu0 %v3327
        %3428 = vmatpush1.bf16.msra.mxu0 %v3326
        %3429 = vmatprep.subr.bf16.mxu0 %v3357
        %3430 = vmatpush2.bf16.msra.mxu0 %v3356
        %3431 = vmatprep.subr.bf16.mxu0 %v3355
        %3432 = vmatpush2.bf16.msra.mxu0 %v3354
        %3433 = vmatprep.subr.bf16.mxu0 %v3353
        %3434 = vmatpush2.bf16.msra.mxu0 %v3352
        %3435 = vmatprep.subr.bf16.mxu0 %v3351
        %3436 = vmatpush2.bf16.msra.mxu0 %v3350
        %3437 = vmatprep.subr.bf16.mxu0 %v3349
        %3438 = vmatpush2.bf16.msra.mxu0 %v3348
        %3439 = vmatprep.subr.bf16.mxu0 %v3347
        %3440 = vmatpush2.bf16.msra.mxu0 %v3346
        %3441 = vmatprep.subr.bf16.mxu0 %v3345
        %3442 = vmatpush2.bf16.msra.mxu0 %v3344
        %3443 = vmatprep.subr.bf16.mxu0 %v3343
        %3444 = vmatpush2.bf16.msra.mxu0 %v3342
        %3445 = vmatprep.mubr.bf16.mxu0 %v3186
        %3446 = vmatmul.mubr.bf16.gmra.mxu0 %v3183
        %v3447 = vpop.f32.mrf.mxu0
        %v3448 = vadd.f32 0.0, %v3447
        %v3449 = vpop.f32.mrf.mxu0
        %v3450 = vadd.f32 0.0, %v3449
        %v3451 = vpop.f32.mrf.mxu0
        %v3452 = vadd.f32 0.0, %v3451
        %v3453 = vpop.f32.mrf.mxu0
        %v3454 = vadd.f32 0.0, %v3453
        %3455 = vmatprep.mubr.bf16.mxu0 %v3193
        %3456 = vmatmul.mubr.bf16.gmra.mxu0 %v3191
        %v3457 = vpop.f32.mrf.mxu0
        %v3458 = vadd.f32 0.0, %v3457
        %v3459 = vpop.f32.mrf.mxu0
        %v3460 = vadd.f32 0.0, %v3459
        %v3461 = vpop.f32.mrf.mxu0
        %v3462 = vadd.f32 0.0, %v3461
        %v3463 = vpop.f32.mrf.mxu0
        %v3464 = vadd.f32 0.0, %v3463
        %3465 = vmatprep.mubr.bf16.mxu0 %v3199
        %3466 = vmatmul.mubr.bf16.gmra.mxu0 %v3197
        %v3467 = vpop.f32.mrf.mxu0
        %v3468 = vadd.f32 0.0, %v3467
        %v3469 = vpop.f32.mrf.mxu0
        %v3470 = vadd.f32 0.0, %v3469
        %v3471 = vpop.f32.mrf.mxu0
        %v3472 = vadd.f32 0.0, %v3471
        %v3473 = vpop.f32.mrf.mxu0
        %v3474 = vadd.f32 0.0, %v3473
        %3475 = vmatprep.mubr.bf16.mxu0 %v3205
        %3476 = vmatmul.mubr.bf16.gmra.mxu0 %v3203
        %v3477 = vpop.f32.mrf.mxu0
        %v3478 = vadd.f32 0.0, %v3477
        %v3479 = vpop.f32.mrf.mxu0
        %v3480 = vadd.f32 0.0, %v3479
        %v3481 = vpop.f32.mrf.mxu0
        %v3482 = vadd.f32 0.0, %v3481
        %v3483 = vpop.f32.mrf.mxu0
        %v3484 = vadd.f32 0.0, %v3483
        %3485 = vmatprep.mubr.bf16.mxu0 %v3204
        %3486 = vmatmul.mubr.bf16.gmra.mxu0 %v3202
        %v3487 = vpop.f32.mrf.mxu0
        %v3488 = vadd.f32 0.0, %v3487
        %v3489 = vpop.f32.mrf.mxu0
        %v3490 = vadd.f32 0.0, %v3489
        %v3491 = vpop.f32.mrf.mxu0
        %v3492 = vpop.f32.mrf.mxu0
        %3493 = vdwg.mxu0
        %3494 = vmatprep.subr.bf16.mxu0 0
        %3495 = vmatpush1.bf16.msra.mxu0 0
        %3496 = vmatprep.subr.bf16.mxu0 0
        %3497 = vmatpush1.bf16.msra.mxu0 0
        %3498 = vmatprep.subr.bf16.mxu0 0
        %3499 = vmatpush1.bf16.msra.mxu0 0
        %3500 = vmatprep.subr.bf16.mxu0 0
        %3501 = vmatpush1.bf16.msra.mxu0 0
        %3502 = vmatprep.subr.bf16.mxu0 0
        %3503 = vmatpush1.bf16.msra.mxu0 0
        %3504 = vmatprep.subr.bf16.mxu0 0
        %3505 = vmatpush1.bf16.msra.mxu0 0
        %3506 = vmatprep.subr.bf16.mxu0 %v3361
        %3507 = vmatpush1.bf16.msra.mxu0 %v3360
        %3508 = vmatprep.subr.bf16.mxu0 %v3359
        %3509 = vmatpush1.bf16.msra.mxu0 %v3358
        %3510 = vmatprep.subr.bf16.mxu0 0
        %3511 = vmatpush2.bf16.msra.mxu0 0
        %3512 = vmatprep.subr.bf16.mxu0 0
        %3513 = vmatpush2.bf16.msra.mxu0 0
        %3514 = vmatprep.subr.bf16.mxu0 0
        %3515 = vmatpush2.bf16.msra.mxu0 0
        %3516 = vmatprep.subr.bf16.mxu0 0
        %3517 = vmatpush2.bf16.msra.mxu0 0
        %3518 = vmatprep.subr.bf16.mxu0 0
        %3519 = vmatpush2.bf16.msra.mxu0 0
        %3520 = vmatprep.subr.bf16.mxu0 0
        %3521 = vmatpush2.bf16.msra.mxu0 0
        %3522 = vmatprep.subr.bf16.mxu0 0
        %3523 = vmatpush2.bf16.msra.mxu0 0
        %3524 = vmatprep.subr.bf16.mxu0 0
        %3525 = vmatpush2.bf16.msra.mxu0 0
        %3526 = vmatprep.mubr.bf16.mxu0 0
        %3527 = vmatmul.mubr.bf16.gmra.mxu0 %v3399
        %v3528 = vpop.f32.mrf.mxu0
        %v3529 = vadd.f32 %v3448, %v3528
        %v3530 = vpop.f32.mrf.mxu0
        %v3531 = vadd.f32 %v3450, %v3530
        %v3532 = vpop.f32.mrf.mxu0
        %v3533 = vadd.f32 %v3452, %v3532
        %v3534 = vpop.f32.mrf.mxu0
        %v3535 = vadd.f32 %v3454, %v3534
        %3536 = vmatprep.mubr.bf16.mxu0 0
        %3537 = vmatmul.mubr.bf16.gmra.mxu0 %v3402
        %v3538 = vpop.f32.mrf.mxu0
        %v3539 = vadd.f32 %v3458, %v3538
        %v3540 = vpop.f32.mrf.mxu0
        %v3541 = vadd.f32 %v3460, %v3540
        %v3542 = vpop.f32.mrf.mxu0
        %v3543 = vadd.f32 %v3462, %v3542
        %v3544 = vpop.f32.mrf.mxu0
        %v3545 = vadd.f32 %v3464, %v3544
        %3546 = vmatprep.mubr.bf16.mxu0 0
        %3547 = vmatmul.mubr.bf16.gmra.mxu0 %v3405
        %v3548 = vpop.f32.mrf.mxu0
        %v3549 = vadd.f32 %v3468, %v3548
        %v3550 = vpop.f32.mrf.mxu0
        %v3551 = vadd.f32 %v3470, %v3550
        %v3552 = vpop.f32.mrf.mxu0
        %v3553 = vadd.f32 %v3472, %v3552
        %v3554 = vpop.f32.mrf.mxu0
        %v3555 = vadd.f32 %v3474, %v3554
        %3556 = vmatprep.mubr.bf16.mxu0 0
        %3557 = vmatmul.mubr.bf16.gmra.mxu0 %v3408
        %v3558 = vpop.f32.mrf.mxu0
        %v3559 = vadd.f32 %v3478, %v3558
        %v3560 = vpop.f32.mrf.mxu0
        %v3561 = vadd.f32 %v3480, %v3560
        %v3562 = vpop.f32.mrf.mxu0
        %v3563 = vadd.f32 %v3482, %v3562
        %v3564 = vpop.f32.mrf.mxu0
        %v3565 = vadd.f32 %v3484, %v3564
        %3566 = vmatprep.mubr.bf16.mxu0 0
        %3567 = vmatmul.mubr.bf16.gmra.mxu0 %v3411
        %v3568 = vpop.f32.mrf.mxu0
        %v3569 = vadd.f32 %v3488, %v3568
        %v3570 = vpop.f32.mrf.mxu0
        %v3571 = vadd.f32 %v3490, %v3570
        %v3572 = vpop.f32.mrf.mxu0
        %v3573 = vpop.f32.mrf.mxu0
        %3574 = vdwg.mxu0
        %v3575 = vadd.f32 %v3078, %v3529
        %v3576 = vadd.f32 %v3080, %v3531
        %v3577 = vadd.f32 %v3082, %v3533
        %v3578 = vadd.f32 %v3084, %v3535
        %v3579 = vadd.f32 %v3088, %v3539
        %v3580 = vadd.f32 %v3090, %v3541
        %v3581 = vadd.f32 %v3092, %v3543
        %v3582 = vadd.f32 %v3094, %v3545
        %v3583 = vadd.f32 %v3098, %v3549
        %v3584 = vadd.f32 %v3100, %v3551
        %v3585 = vadd.f32 %v3102, %v3553
        %v3586 = vadd.f32 %v3104, %v3555
        %v3587 = vadd.f32 %v3108, %v3559
        %v3588 = vadd.f32 %v3110, %v3561
        %v3589 = vadd.f32 %v3112, %v3563
        %v3590 = vadd.f32 %v3114, %v3565
        %v3591 = vadd.f32 %v3118, %v3569
        %v3592 = vadd.f32 %v3120, %v3571
        %v3593 = vld [vmem:[%s5] sm:$0x3]
        %v3595 = vlaneseq
        %v3596 = vshrl.u32 %v3595, 7
        %v3597 = vsub.s32 0, %v3596
        %v3598 = vrot.slane %v3593, %v3597
        %v3599 = vlaneseq
        %v3600 = vshrl.u32 %v3599, 7
        %v3601 = vsub.s32 1, %v3600
        %v3602 = vrot.slane %v3593, %v3601
        %v3605 = vadd.f32 %v3575, %v3598
        %v3606 = vadd.f32 %v3576, %v3602
        %v3607 = vadd.f32 %v3577, %v3598
        %v3608 = vadd.f32 %v3578, %v3602
        %v3609 = vadd.f32 %v3579, %v3598
        %v3610 = vadd.f32 %v3580, %v3602
        %v3611 = vadd.f32 %v3581, %v3598
        %v3612 = vadd.f32 %v3582, %v3602
        %v3613 = vadd.f32 %v3583, %v3598
        %v3614 = vadd.f32 %v3584, %v3602
        %v3615 = vadd.f32 %v3585, %v3598
        %v3616 = vadd.f32 %v3586, %v3602
        %v3617 = vadd.f32 %v3587, %v3598
        %v3618 = vadd.f32 %v3588, %v3602
        %v3619 = vadd.f32 %v3589, %v3598
        %v3620 = vadd.f32 %v3590, %v3602
        %v3621 = vadd.f32 %v3591, %v3598
        %v3622 = vadd.f32 %v3592, %v3602
        %vm3623 = vcmp.gt.f32.partialorder %v3605, 0.0
        %vm3624 = vcmp.gt.f32.partialorder %v3606, 0.0
        %vm3625 = vcmp.gt.f32.partialorder %v3607, 0.0
        %vm3626 = vcmp.gt.f32.partialorder %v3608, 0.0
        %vm3627 = vcmp.gt.f32.partialorder %v3609, 0.0
        %vm3628 = vcmp.gt.f32.partialorder %v3610, 0.0
        %vm3629 = vcmp.gt.f32.partialorder %v3611, 0.0
        %vm3630 = vcmp.gt.f32.partialorder %v3612, 0.0
        %vm3631 = vcmp.gt.f32.partialorder %v3613, 0.0
        %vm3632 = vcmp.gt.f32.partialorder %v3614, 0.0
        %vm3633 = vcmp.gt.f32.partialorder %v3615, 0.0
        %vm3634 = vcmp.gt.f32.partialorder %v3616, 0.0
        %vm3635 = vcmp.gt.f32.partialorder %v3617, 0.0
        %vm3636 = vcmp.gt.f32.partialorder %v3618, 0.0
        %vm3637 = vcmp.gt.f32.partialorder %v3619, 0.0
        %vm3638 = vcmp.gt.f32.partialorder %v3620, 0.0
        %vm3639 = vcmp.gt.f32.partialorder %v3621, 0.0
        %vm3640 = vcmp.gt.f32.partialorder %v3622, 0.0
        %v3641 = vmin.f32 %v3605, 0.0
        %v3642 = vmin.f32 %v3606, 0.0
        %v3643 = vmin.f32 %v3607, 0.0
        %v3644 = vmin.f32 %v3608, 0.0
        %v3645 = vmin.f32 %v3609, 0.0
        %v3646 = vmin.f32 %v3610, 0.0
        %v3647 = vmin.f32 %v3611, 0.0
        %v3648 = vmin.f32 %v3612, 0.0
        %v3649 = vmin.f32 %v3613, 0.0
        %v3650 = vmin.f32 %v3614, 0.0
        %v3651 = vmin.f32 %v3615, 0.0
        %v3652 = vmin.f32 %v3616, 0.0
        %v3653 = vmin.f32 %v3617, 0.0
        %v3654 = vmin.f32 %v3618, 0.0
        %v3655 = vmin.f32 %v3619, 0.0
        %v3656 = vmin.f32 %v3620, 0.0
        %v3657 = vmin.f32 %v3621, 0.0
        %v3658 = vmin.f32 %v3622, 0.0
        %v3659 = vmul.f32 %v3641, 1.442695
        %v3660 = vpow.pop %v3659
        %v3661 = vmul.f32 %v3642, 1.442695
        %v3662 = vpow.pop %v3661
        %v3663 = vmul.f32 %v3643, 1.442695
        %v3664 = vpow.pop %v3663
        %v3665 = vmul.f32 %v3644, 1.442695
        %v3666 = vpow.pop %v3665
        %v3667 = vmul.f32 %v3645, 1.442695
        %v3668 = vpow.pop %v3667
        %v3669 = vmul.f32 %v3646, 1.442695
        %v3670 = vpow.pop %v3669
        %v3671 = vmul.f32 %v3647, 1.442695
        %v3672 = vpow.pop %v3671
        %v3673 = vmul.f32 %v3648, 1.442695
        %v3674 = vpow.pop %v3673
        %v3675 = vmul.f32 %v3649, 1.442695
        %v3676 = vpow.pop %v3675
        %v3677 = vmul.f32 %v3650, 1.442695
        %v3678 = vpow.pop %v3677
        %v3679 = vmul.f32 %v3651, 1.442695
        %v3680 = vpow.pop %v3679
        %v3681 = vmul.f32 %v3652, 1.442695
        %v3682 = vpow.pop %v3681
        %v3683 = vmul.f32 %v3653, 1.442695
        %v3684 = vpow.pop %v3683
        %v3685 = vmul.f32 %v3654, 1.442695
        %v3686 = vpow.pop %v3685
        %v3687 = vmul.f32 %v3655, 1.442695
        %v3688 = vpow.pop %v3687
        %v3689 = vmul.f32 %v3656, 1.442695
        %v3690 = vpow.pop %v3689
        %v3691 = vmul.f32 %v3657, 1.442695
        %v3692 = vpow.pop %v3691
        %v3693 = vmul.f32 %v3658, 1.442695
        %v3694 = vpow.pop %v3693
        %v3695 = vsub.f32 %v3660, 1.0
        %v3696 = vsub.f32 %v3662, 1.0
        %v3697 = vsub.f32 %v3664, 1.0
        %v3698 = vsub.f32 %v3666, 1.0
        %v3699 = vsub.f32 %v3668, 1.0
        %v3700 = vsub.f32 %v3670, 1.0
        %v3701 = vsub.f32 %v3672, 1.0
        %v3702 = vsub.f32 %v3674, 1.0
        %v3703 = vsub.f32 %v3676, 1.0
        %v3704 = vsub.f32 %v3678, 1.0
        %v3705 = vsub.f32 %v3680, 1.0
        %v3706 = vsub.f32 %v3682, 1.0
        %v3707 = vsub.f32 %v3684, 1.0
        %v3708 = vsub.f32 %v3686, 1.0
        %v3709 = vsub.f32 %v3688, 1.0
        %v3710 = vsub.f32 %v3690, 1.0
        %v3711 = vsub.f32 %v3692, 1.0
        %v3712 = vsub.f32 %v3694, 1.0
        %v3713 = vsel %vm3623, %v3605, %v3695
        %v3714 = vsel %vm3624, %v3606, %v3696
        %v3715 = vsel %vm3625, %v3607, %v3697
        %v3716 = vsel %vm3626, %v3608, %v3698
        %v3717 = vsel %vm3627, %v3609, %v3699
        %v3718 = vsel %vm3628, %v3610, %v3700
        %v3719 = vsel %vm3629, %v3611, %v3701
        %v3720 = vsel %vm3630, %v3612, %v3702
        %v3721 = vsel %vm3631, %v3613, %v3703
        %v3722 = vsel %vm3632, %v3614, %v3704
        %v3723 = vsel %vm3633, %v3615, %v3705
        %v3724 = vsel %vm3634, %v3616, %v3706
        %v3725 = vsel %vm3635, %v3617, %v3707
        %v3726 = vsel %vm3636, %v3618, %v3708
        %v3727 = vsel %vm3637, %v3619, %v3709
        %v3728 = vsel %vm3638, %v3620, %v3710
        %v3729 = vsel %vm3639, %v3621, %v3711
        %v3730 = vsel %vm3640, %v3622, %v3712
        %v3731 = vpack.c.bf16 %v3715, %v3713
        %v3732 = vpack.c.bf16 %v3716, %v3714
        %v3733 = vpack.c.bf16 %v3719, %v3717
        %v3734 = vpack.c.bf16 %v3720, %v3718
        %v3735 = vpack.c.bf16 %v3723, %v3721
        %v3736 = vpack.c.bf16 %v3724, %v3722
        %v3737 = vpack.c.bf16 %v3727, %v3725
        %v3738 = vpack.c.bf16 %v3728, %v3726
        %v3739 = vpack.c.bf16 %v3729, %v3729
        %v3740 = vpack.c.bf16 %v3730, %v3730
        %v3741 = vld [vmem:[%s6] sm:$0xf]
        %v3742 = vld [vmem:[%s6 + $0x4] sm:$0xf]
        %v3743 = vld [vmem:[%s6 + $0x8] sm:$0xf]
        %v3744 = vld [vmem:[%s6 + $0xc] sm:$0xf]
        %v3745 = vld [vmem:[%s6 + $0x10] sm:$0xf]
        %v3746 = vld [vmem:[%s6 + $0x14] sm:$0xf]
        %v3747 = vld [vmem:[%s6 + $0x18] sm:$0xf]
        %v3748 = vld [vmem:[%s6 + $0x1c] sm:$0xf]
        %v3749 = vld [vmem:[%s6 + $0x20] sm:$0xf]
        %v3750 = vld [vmem:[%s6 + $0x24] sm:$0xf]
        %v3761 = vunpack.c.l.b16 %v3741
        %v3762 = vunpack.c.l.b16 %v3742
        %v3763 = vunpack.c.l.b16 %v3743
        %v3764 = vunpack.c.l.b16 %v3744
        %v3765 = vunpack.c.l.b16 %v3745
        %v3766 = vunpack.c.l.b16 %v3746
        %v3767 = vunpack.c.l.b16 %v3747
        %v3768 = vunpack.c.l.b16 %v3748
        %v3769 = vunpack.c.l.b16 %v3749
        %v3770 = vunpack.c.l.b16 %v3750
        %v3771 = vpack.c.b16 %v3762, %v3761
        %v3772 = vpack.c.b16 %v3764, %v3763
        %v3773 = vpack.c.b16 %v3766, %v3765
        %v3774 = vpack.c.b16 %v3768, %v3767
        %v3775 = vpack.c.b16 %v3770, %v3769
        %vm3776 = vcmask 556032
        %v3778 = vsel %vm3776, %v3771, 0
        %v3781 = vsel %vm3776, %v3772, 0
        %v3784 = vsel %vm3776, %v3773, 0
        %v3787 = vsel %vm3776, %v3774, 0
        %v3790 = vsel %vm3776, %v3775, 0
        %v3793 = vsel %vm1153, %v3739, 0
        %v3796 = vsel %vm1153, %v3740, 0
        %3798 = vmatprep.subr.bf16.mxu0 0
        %3799 = vmatpush1.bf16.msra.mxu0 0
        %3800 = vmatprep.subr.bf16.mxu0 0
        %3801 = vmatpush1.bf16.msra.mxu0 0
        %3802 = vmatprep.subr.bf16.mxu0 0
        %3803 = vmatpush1.bf16.msra.mxu0 0
        %3804 = vmatprep.subr.bf16.mxu0 %v3796
        %3805 = vmatpush1.bf16.msra.mxu0 %v3793
        %3806 = vmatprep.subr.bf16.mxu0 %v3738
        %3807 = vmatpush1.bf16.msra.mxu0 %v3737
        %3808 = vmatprep.subr.bf16.mxu0 %v3736
        %3809 = vmatpush1.bf16.msra.mxu0 %v3735
        %3810 = vmatprep.subr.bf16.mxu0 %v3734
        %3811 = vmatpush1.bf16.msra.mxu0 %v3733
        %3812 = vmatprep.subr.bf16.mxu0 %v3732
        %3813 = vmatpush1.bf16.msra.mxu0 %v3731
        %3814 = vmatprep.subr.bf16.mxu0 0
        %3815 = vmatpush2.bf16.msra.mxu0 0
        %3816 = vmatprep.subr.bf16.mxu0 0
        %3817 = vmatpush2.bf16.msra.mxu0 0
        %3818 = vmatprep.subr.bf16.mxu0 0
        %3819 = vmatpush2.bf16.msra.mxu0 0
        %3820 = vmatprep.subr.bf16.mxu0 0
        %3821 = vmatpush2.bf16.msra.mxu0 0
        %3822 = vmatprep.subr.bf16.mxu0 0
        %3823 = vmatpush2.bf16.msra.mxu0 0
        %3824 = vmatprep.subr.bf16.mxu0 0
        %3825 = vmatpush2.bf16.msra.mxu0 0
        %3826 = vmatprep.subr.bf16.mxu0 0
        %3827 = vmatpush2.bf16.msra.mxu0 0
        %3828 = vmatprep.subr.bf16.mxu0 0
        %3829 = vmatpush2.bf16.msra.mxu0 0
        %3830 = vmatprep.mubr.bf16.mxu0 0
        %3831 = vmatmul.mubr.bf16.gmra.mxu0 %v3778
        %v3832 = vpop.f32.mrf.mxu0
        %v3833 = vadd.f32 0.0, %v3832
        %v3834 = vpop.f32.mrf.mxu0
        %v3835 = vadd.f32 0.0, %v3834
        %v3836 = vpop.f32.mrf.mxu0
        %v3837 = vadd.f32 0.0, %v3836
        %v3838 = vpop.f32.mrf.mxu0
        %v3839 = vadd.f32 0.0, %v3838
        %3840 = vmatprep.mubr.bf16.mxu0 0
        %3841 = vmatmul.mubr.bf16.gmra.mxu0 %v3781
        %v3842 = vpop.f32.mrf.mxu0
        %v3843 = vadd.f32 0.0, %v3842
        %v3844 = vpop.f32.mrf.mxu0
        %v3845 = vadd.f32 0.0, %v3844
        %v3846 = vpop.f32.mrf.mxu0
        %v3847 = vadd.f32 0.0, %v3846
        %v3848 = vpop.f32.mrf.mxu0
        %v3849 = vadd.f32 0.0, %v3848
        %3850 = vmatprep.mubr.bf16.mxu0 0
        %3851 = vmatmul.mubr.bf16.gmra.mxu0 %v3784
        %v3852 = vpop.f32.mrf.mxu0
        %v3853 = vadd.f32 0.0, %v3852
        %v3854 = vpop.f32.mrf.mxu0
        %v3855 = vadd.f32 0.0, %v3854
        %v3856 = vpop.f32.mrf.mxu0
        %v3857 = vadd.f32 0.0, %v3856
        %v3858 = vpop.f32.mrf.mxu0
        %v3859 = vadd.f32 0.0, %v3858
        %3860 = vmatprep.mubr.bf16.mxu0 0
        %3861 = vmatmul.mubr.bf16.gmra.mxu0 %v3787
        %v3862 = vpop.f32.mrf.mxu0
        %v3863 = vadd.f32 0.0, %v3862
        %v3864 = vpop.f32.mrf.mxu0
        %v3865 = vadd.f32 0.0, %v3864
        %v3866 = vpop.f32.mrf.mxu0
        %v3867 = vadd.f32 0.0, %v3866
        %v3868 = vpop.f32.mrf.mxu0
        %v3869 = vadd.f32 0.0, %v3868
        %3870 = vmatprep.mubr.bf16.mxu0 0
        %3871 = vmatmul.mubr.bf16.gmra.mxu0 %v3790
        %v3872 = vpop.f32.mrf.mxu0
        %v3873 = vadd.f32 0.0, %v3872
        %v3874 = vpop.f32.mrf.mxu0
        %v3875 = vadd.f32 0.0, %v3874
        %v3876 = vpop.f32.mrf.mxu0
        %v3877 = vadd.f32 0.0, %v3876
        %v3878 = vpop.f32.mrf.mxu0
        %v3879 = vadd.f32 0.0, %v3878
        %3880 = vdwg.mxu0
        %v3881 = vmax.f32 %v3833, %v3857
        %v3882 = vmax.f32 %v3835, %v3859
        %v3883 = vmax.f32 %v3837, %v3863
        %v3884 = vmax.f32 %v3839, %v3865
        %v3885 = vmax.f32 %v3843, %v3867
        %v3886 = vmax.f32 %v3845, %v3869
        %v3887 = vmax.f32 %v3847, %v3873
        %v3888 = vmax.f32 %v3849, %v3875
        %v3889 = vmax.f32 %v3853, %v3877
        %v3890 = vmax.f32 %v3855, %v3879
        %v3891 = vpack.c.bf16 %v3883, %v3881
        %v3892 = vpack.c.bf16 %v3884, %v3882
        %v3893 = vpack.c.bf16 %v3887, %v3885
        %v3894 = vpack.c.bf16 %v3888, %v3886
        %v3895 = vpack.c.bf16 %v3889, %v3889
        %v3896 = vpack.c.bf16 %v3890, %v3890
        %v3897 = vld [vmem:[%s7] sm:$0xff]
        %v3898 = vld [vmem:[%s7 + $0x8] sm:$0xf]
        %v3899 = vld [vmem:[%s7 + $0xc] sm:$0xff]
        %v3900 = vld [vmem:[%s7 + $0x14] sm:$0xf]
        %v3901 = vld [vmem:[%s7 + $0x18] sm:$0xff]
        %v3902 = vld [vmem:[%s7 + $0x20] sm:$0xf]
        %v3903 = vld [vmem:[%s7 + $0x24] sm:$0xff]
        %v3904 = vld [vmem:[%s7 + $0x2c] sm:$0xf]
        %v3905 = vld [vmem:[%s7 + $0x30] sm:$0xff]
        %v3906 = vld [vmem:[%s7 + $0x38] sm:$0xf]
        %v3907 = vld [vmem:[%s7 + $0x3c] sm:$0xff]
        %v3908 = vld [vmem:[%s7 + $0x44] sm:$0xf]
        %v3909 = vld [vmem:[%s7 + $0x48] sm:$0xff]
        %v3910 = vld [vmem:[%s7 + $0x50] sm:$0xf]
        %v3911 = vld [vmem:[%s7 + $0x54] sm:$0xff]
        %v3912 = vld [vmem:[%s7 + $0x5c] sm:$0xf]
        %v3913 = vld [vmem:[%s7 + $0x60] sm:$0xff]
        %v3914 = vld [vmem:[%s7 + $0x68] sm:$0xf]
        %v3915 = vld [vmem:[%s7 + $0x6c] sm:$0xff]
        %v3916 = vld [vmem:[%s7 + $0x74] sm:$0xf]
        %v3917 = vld [vmem:[%s7 + $0x78] sm:$0xff]
        %v3918 = vld [vmem:[%s7 + $0x80] sm:$0xf]
        %v3919 = vld [vmem:[%s7 + $0x84] sm:$0xff]
        %v3920 = vld [vmem:[%s7 + $0x8c] sm:$0xf]
        %v3921 = vld [vmem:[%s7 + $0x90] sm:$0xff]
        %v3922 = vld [vmem:[%s7 + $0x98] sm:$0xf]
        %v3923 = vld [vmem:[%s7 + $0x9c] sm:$0xff]
        %v3924 = vld [vmem:[%s7 + $0xa4] sm:$0xf]
        %v3925 = vld [vmem:[%s7 + $0xa8] sm:$0xff]
        %v3926 = vld [vmem:[%s7 + $0xb0] sm:$0xf]
        %v3927 = vld [vmem:[%s7 + $0xb4] sm:$0xff]
        %v3928 = vld [vmem:[%s7 + $0xbc] sm:$0xf]
        %v3929 = vld [vmem:[%s7 + $0xc0] sm:$0xff]
        %v3930 = vld [vmem:[%s7 + $0xc8] sm:$0xf]
        %v3931 = vld [vmem:[%s7 + $0xcc] sm:$0xff]
        %v3932 = vld [vmem:[%s7 + $0xd4] sm:$0xf]
        %v3933 = vld [vmem:[%s7 + $0xd8] sm:$0xff]
        %v3934 = vld [vmem:[%s7 + $0xe0] sm:$0xf]
        %v3935 = vld [vmem:[%s7 + $0xe4] sm:$0xff]
        %v3936 = vld [vmem:[%s7 + $0xec] sm:$0xf]
        %v3937 = vld [vmem:[%s7 + $0xf0] sm:$0xff]
        %v3938 = vld [vmem:[%s7 + $0xf8] sm:$0xf]
        %v3939 = vld [vmem:[%s7 + $0xfc] sm:$0xff]
        %v3940 = vld [vmem:[%s7 + $0x104] sm:$0xf]
        %v3941 = vld [vmem:[%s7 + $0x108] sm:$0xff]
        %v3942 = vld [vmem:[%s7 + $0x110] sm:$0xf]
        %v3943 = vld [vmem:[%s7 + $0x114] sm:$0xff]
        %v3944 = vld [vmem:[%s7 + $0x11c] sm:$0xf]
        %v3945 = vld [vmem:[%s7 + $0x120] sm:$0xff]
        %v3946 = vld [vmem:[%s7 + $0x128] sm:$0xf]
        %v3947 = vld [vmem:[%s7 + $0x12c] sm:$0xff]
        %v3948 = vld [vmem:[%s7 + $0x134] sm:$0xf]
        %v3949 = vld [vmem:[%s7 + $0x138] sm:$0xff]
        %v3950 = vld [vmem:[%s7 + $0x140] sm:$0xf]
        %v3951 = vld [vmem:[%s7 + $0x144] sm:$0xff]
        %v3952 = vld [vmem:[%s7 + $0x14c] sm:$0xf]
        %v3953 = vld [vmem:[%s7 + $0x150] sm:$0xff]
        %v3954 = vld [vmem:[%s7 + $0x158] sm:$0xf]
        %v3955 = vld [vmem:[%s7 + $0x15c] sm:$0xff]
        %v3956 = vld [vmem:[%s7 + $0x164] sm:$0xf]
        %v3957 = vld [vmem:[%s7 + $0x168] sm:$0xff]
        %v3958 = vld [vmem:[%s7 + $0x170] sm:$0xf]
        %v3959 = vld [vmem:[%s7 + $0x174] sm:$0xff]
        %v3960 = vld [vmem:[%s7 + $0x17c] sm:$0xf]
        %v4025 = vunpack.c.l.b16 %v3897
        %v4026 = vunpack.c.h.b16 %v3897
        %v4027 = vunpack.c.l.b16 %v3898
        %v4028 = vunpack.c.l.b16 %v3899
        %v4029 = vunpack.c.h.b16 %v3899
        %v4030 = vunpack.c.l.b16 %v3900
        %v4031 = vunpack.c.l.b16 %v3901
        %v4032 = vunpack.c.h.b16 %v3901
        %v4033 = vunpack.c.l.b16 %v3902
        %v4034 = vunpack.c.l.b16 %v3903
        %v4035 = vunpack.c.h.b16 %v3903
        %v4036 = vunpack.c.l.b16 %v3904
        %v4037 = vunpack.c.l.b16 %v3905
        %v4038 = vunpack.c.h.b16 %v3905
        %v4039 = vunpack.c.l.b16 %v3906
        %v4040 = vunpack.c.l.b16 %v3907
        %v4041 = vunpack.c.h.b16 %v3907
        %v4042 = vunpack.c.l.b16 %v3908
        %v4043 = vunpack.c.l.b16 %v3909
        %v4044 = vunpack.c.h.b16 %v3909
        %v4045 = vunpack.c.l.b16 %v3910
        %v4046 = vunpack.c.l.b16 %v3911
        %v4047 = vunpack.c.h.b16 %v3911
        %v4048 = vunpack.c.l.b16 %v3912
        %v4049 = vunpack.c.l.b16 %v3913
        %v4050 = vunpack.c.h.b16 %v3913
        %v4051 = vunpack.c.l.b16 %v3914
        %v4052 = vunpack.c.l.b16 %v3915
        %v4053 = vunpack.c.h.b16 %v3915
        %v4054 = vunpack.c.l.b16 %v3916
        %v4055 = vunpack.c.l.b16 %v3917
        %v4056 = vunpack.c.h.b16 %v3917
        %v4057 = vunpack.c.l.b16 %v3918
        %v4058 = vunpack.c.l.b16 %v3919
        %v4059 = vunpack.c.h.b16 %v3919
        %v4060 = vunpack.c.l.b16 %v3920
        %v4061 = vunpack.c.l.b16 %v3921
        %v4062 = vunpack.c.h.b16 %v3921
        %v4063 = vunpack.c.l.b16 %v3922
        %v4064 = vunpack.c.l.b16 %v3923
        %v4065 = vunpack.c.h.b16 %v3923
        %v4066 = vunpack.c.l.b16 %v3924
        %v4067 = vunpack.c.l.b16 %v3925
        %v4068 = vunpack.c.h.b16 %v3925
        %v4069 = vunpack.c.l.b16 %v3926
        %v4070 = vunpack.c.l.b16 %v3927
        %v4071 = vunpack.c.h.b16 %v3927
        %v4072 = vunpack.c.l.b16 %v3928
        %v4073 = vunpack.c.l.b16 %v3929
        %v4074 = vunpack.c.h.b16 %v3929
        %v4075 = vunpack.c.l.b16 %v3930
        %v4076 = vunpack.c.l.b16 %v3931
        %v4077 = vunpack.c.h.b16 %v3931
        %v4078 = vunpack.c.l.b16 %v3932
        %v4079 = vunpack.c.l.b16 %v3933
        %v4080 = vunpack.c.h.b16 %v3933
        %v4081 = vunpack.c.l.b16 %v3934
        %v4082 = vunpack.c.l.b16 %v3935
        %v4083 = vunpack.c.h.b16 %v3935
        %v4084 = vunpack.c.l.b16 %v3936
        %v4085 = vunpack.c.l.b16 %v3937
        %v4086 = vunpack.c.h.b16 %v3937
        %v4087 = vunpack.c.l.b16 %v3938
        %v4088 = vunpack.c.l.b16 %v3939
        %v4089 = vunpack.c.h.b16 %v3939
        %v4090 = vunpack.c.l.b16 %v3940
        %v4091 = vunpack.c.l.b16 %v3941
        %v4092 = vunpack.c.h.b16 %v3941
        %v4093 = vunpack.c.l.b16 %v3942
        %v4094 = vunpack.c.l.b16 %v3943
        %v4095 = vunpack.c.h.b16 %v3943
        %v4096 = vunpack.c.l.b16 %v3944
        %v4097 = vunpack.c.l.b16 %v3945
        %v4098 = vunpack.c.h.b16 %v3945
        %v4099 = vunpack.c.l.b16 %v3946
        %v4100 = vunpack.c.l.b16 %v3947
        %v4101 = vunpack.c.h.b16 %v3947
        %v4102 = vunpack.c.l.b16 %v3948
        %v4103 = vunpack.c.l.b16 %v3949
        %v4104 = vunpack.c.h.b16 %v3949
        %v4105 = vunpack.c.l.b16 %v3950
        %v4106 = vunpack.c.l.b16 %v3951
        %v4107 = vunpack.c.h.b16 %v3951
        %v4108 = vunpack.c.l.b16 %v3952
        %v4109 = vunpack.c.l.b16 %v3953
        %v4110 = vunpack.c.h.b16 %v3953
        %v4111 = vunpack.c.l.b16 %v3954
        %v4112 = vunpack.c.l.b16 %v3955
        %v4113 = vunpack.c.h.b16 %v3955
        %v4114 = vunpack.c.l.b16 %v3956
        %v4115 = vunpack.c.l.b16 %v3957
        %v4116 = vunpack.c.h.b16 %v3957
        %v4117 = vunpack.c.l.b16 %v3958
        %v4118 = vunpack.c.l.b16 %v3959
        %v4119 = vunpack.c.h.b16 %v3959
        %v4120 = vunpack.c.l.b16 %v3960
        %v4121 = vpack.c.b16 %v4028, %v4025
        %v4122 = vpack.c.b16 %v4029, %v4026
        %v4123 = vpack.c.b16 %v4030, %v4027
        %v4124 = vpack.c.b16 %v4034, %v4031
        %v4125 = vpack.c.b16 %v4035, %v4032
        %v4126 = vpack.c.b16 %v4036, %v4033
        %v4127 = vpack.c.b16 %v4040, %v4037
        %v4128 = vpack.c.b16 %v4041, %v4038
        %v4129 = vpack.c.b16 %v4042, %v4039
        %v4130 = vpack.c.b16 %v4046, %v4043
        %v4131 = vpack.c.b16 %v4047, %v4044
        %v4132 = vpack.c.b16 %v4048, %v4045
        %v4133 = vpack.c.b16 %v4052, %v4049
        %v4134 = vpack.c.b16 %v4053, %v4050
        %v4135 = vpack.c.b16 %v4054, %v4051
        %v4136 = vpack.c.b16 %v4058, %v4055
        %v4137 = vpack.c.b16 %v4059, %v4056
        %v4138 = vpack.c.b16 %v4060, %v4057
        %v4139 = vpack.c.b16 %v4064, %v4061
        %v4140 = vpack.c.b16 %v4065, %v4062
        %v4141 = vpack.c.b16 %v4066, %v4063
        %v4142 = vpack.c.b16 %v4070, %v4067
        %v4143 = vpack.c.b16 %v4071, %v4068
        %v4144 = vpack.c.b16 %v4072, %v4069
        %v4145 = vpack.c.b16 %v4076, %v4073
        %v4146 = vpack.c.b16 %v4077, %v4074
        %v4147 = vpack.c.b16 %v4078, %v4075
        %v4148 = vpack.c.b16 %v4082, %v4079
        %v4149 = vpack.c.b16 %v4083, %v4080
        %v4150 = vpack.c.b16 %v4084, %v4081
        %v4151 = vpack.c.b16 %v4088, %v4085
        %v4152 = vpack.c.b16 %v4089, %v4086
        %v4153 = vpack.c.b16 %v4090, %v4087
        %v4154 = vpack.c.b16 %v4094, %v4091
        %v4155 = vpack.c.b16 %v4095, %v4092
        %v4156 = vpack.c.b16 %v4096, %v4093
        %v4157 = vpack.c.b16 %v4100, %v4097
        %v4158 = vpack.c.b16 %v4101, %v4098
        %v4159 = vpack.c.b16 %v4102, %v4099
        %v4160 = vpack.c.b16 %v4106, %v4103
        %v4161 = vpack.c.b16 %v4107, %v4104
        %v4162 = vpack.c.b16 %v4108, %v4105
        %v4163 = vpack.c.b16 %v4112, %v4109
        %v4164 = vpack.c.b16 %v4113, %v4110
        %v4165 = vpack.c.b16 %v4114, %v4111
        %v4166 = vpack.c.b16 %v4118, %v4115
        %v4167 = vpack.c.b16 %v4119, %v4116
        %v4168 = vpack.c.b16 %v4120, %v4117
        %4217 = vmatprep.subr.bf16.mxu0 %v4143
        %4218 = vmatpush1.bf16.msra.mxu0 %v4142
        %4219 = vmatprep.subr.bf16.mxu0 %v4140
        %4220 = vmatpush1.bf16.msra.mxu0 %v4139
        %4221 = vmatprep.subr.bf16.mxu0 %v4137
        %4222 = vmatpush1.bf16.msra.mxu0 %v4136
        %4223 = vmatprep.subr.bf16.mxu0 %v4134
        %4224 = vmatpush1.bf16.msra.mxu0 %v4133
        %4225 = vmatprep.subr.bf16.mxu0 %v4131
        %4226 = vmatpush1.bf16.msra.mxu0 %v4130
        %4227 = vmatprep.subr.bf16.mxu0 %v4128
        %4228 = vmatpush1.bf16.msra.mxu0 %v4127
        %4229 = vmatprep.subr.bf16.mxu0 %v4125
        %4230 = vmatpush1.bf16.msra.mxu0 %v4124
        %4231 = vmatprep.subr.bf16.mxu0 %v4122
        %4232 = vmatpush1.bf16.msra.mxu0 %v4121
        %4233 = vmatprep.subr.bf16.mxu0 %v4167
        %4234 = vmatpush2.bf16.msra.mxu0 %v4166
        %4235 = vmatprep.subr.bf16.mxu0 %v4164
        %4236 = vmatpush2.bf16.msra.mxu0 %v4163
        %4237 = vmatprep.subr.bf16.mxu0 %v4161
        %4238 = vmatpush2.bf16.msra.mxu0 %v4160
        %4239 = vmatprep.subr.bf16.mxu0 %v4158
        %4240 = vmatpush2.bf16.msra.mxu0 %v4157
        %4241 = vmatprep.subr.bf16.mxu0 %v4155
        %4242 = vmatpush2.bf16.msra.mxu0 %v4154
        %4243 = vmatprep.subr.bf16.mxu0 %v4152
        %4244 = vmatpush2.bf16.msra.mxu0 %v4151
        %4245 = vmatprep.subr.bf16.mxu0 %v4149
        %4246 = vmatpush2.bf16.msra.mxu0 %v4148
        %4247 = vmatprep.subr.bf16.mxu0 %v4146
        %4248 = vmatpush2.bf16.msra.mxu0 %v4145
        %4249 = vmatprep.mubr.bf16.mxu0 %v3892
        %4250 = vmatmul.mubr.bf16.gmra.mxu0 %v3891
        %v4251 = vpop.f32.mrf.mxu0
        %v4252 = vadd.f32 0.0, %v4251
        %v4253 = vpop.f32.mrf.mxu0
        %v4254 = vadd.f32 0.0, %v4253
        %v4255 = vpop.f32.mrf.mxu0
        %v4256 = vadd.f32 0.0, %v4255
        %v4257 = vpop.f32.mrf.mxu0
        %v4258 = vadd.f32 0.0, %v4257
        %4259 = vmatprep.mubr.bf16.mxu0 %v3894
        %4260 = vmatmul.mubr.bf16.gmra.mxu0 %v3893
        %v4261 = vpop.f32.mrf.mxu0
        %v4262 = vadd.f32 0.0, %v4261
        %v4263 = vpop.f32.mrf.mxu0
        %v4264 = vadd.f32 0.0, %v4263
        %v4265 = vpop.f32.mrf.mxu0
        %v4266 = vadd.f32 0.0, %v4265
        %v4267 = vpop.f32.mrf.mxu0
        %v4268 = vadd.f32 0.0, %v4267
        %4269 = vmatprep.mubr.bf16.mxu0 %v3896
        %4270 = vmatmul.mubr.bf16.gmra.mxu0 %v3895
        %v4271 = vpop.f32.mrf.mxu0
        %v4272 = vadd.f32 0.0, %v4271
        %v4273 = vpop.f32.mrf.mxu0
        %v4274 = vadd.f32 0.0, %v4273
        %v4275 = vpop.f32.mrf.mxu0
        %v4276 = vpop.f32.mrf.mxu0
        %4277 = vdwg.mxu0
        %4278 = vmatprep.subr.bf16.mxu0 0
        %4279 = vmatpush1.bf16.msra.mxu0 %v4144
        %4280 = vmatprep.subr.bf16.mxu0 0
        %4281 = vmatpush1.bf16.msra.mxu0 %v4141
        %4282 = vmatprep.subr.bf16.mxu0 0
        %4283 = vmatpush1.bf16.msra.mxu0 %v4138
        %4284 = vmatprep.subr.bf16.mxu0 0
        %4285 = vmatpush1.bf16.msra.mxu0 %v4135
        %4286 = vmatprep.subr.bf16.mxu0 0
        %4287 = vmatpush1.bf16.msra.mxu0 %v4132
        %4288 = vmatprep.subr.bf16.mxu0 0
        %4289 = vmatpush1.bf16.msra.mxu0 %v4129
        %4290 = vmatprep.subr.bf16.mxu0 0
        %4291 = vmatpush1.bf16.msra.mxu0 %v4126
        %4292 = vmatprep.subr.bf16.mxu0 0
        %4293 = vmatpush1.bf16.msra.mxu0 %v4123
        %4294 = vmatprep.subr.bf16.mxu0 0
        %4295 = vmatpush2.bf16.msra.mxu0 %v4168
        %4296 = vmatprep.subr.bf16.mxu0 0
        %4297 = vmatpush2.bf16.msra.mxu0 %v4165
        %4298 = vmatprep.subr.bf16.mxu0 0
        %4299 = vmatpush2.bf16.msra.mxu0 %v4162
        %4300 = vmatprep.subr.bf16.mxu0 0
        %4301 = vmatpush2.bf16.msra.mxu0 %v4159
        %4302 = vmatprep.subr.bf16.mxu0 0
        %4303 = vmatpush2.bf16.msra.mxu0 %v4156
        %4304 = vmatprep.subr.bf16.mxu0 0
        %4305 = vmatpush2.bf16.msra.mxu0 %v4153
        %4306 = vmatprep.subr.bf16.mxu0 0
        %4307 = vmatpush2.bf16.msra.mxu0 %v4150
        %4308 = vmatprep.subr.bf16.mxu0 0
        %4309 = vmatpush2.bf16.msra.mxu0 %v4147
        %4310 = vmatprep.mubr.bf16.mxu0 %v3892
        %4311 = vmatmul.mubr.bf16.gmra.mxu0 %v3891
        %v4312 = vpop.f32.mrf.mxu0
        %v4313 = vadd.f32 0.0, %v4312
        %v4314 = vpop.f32.mrf.mxu0
        %v4315 = vpop.f32.mrf.mxu0
        %v4316 = vadd.f32 0.0, %v4315
        %v4317 = vpop.f32.mrf.mxu0
        %4318 = vmatprep.mubr.bf16.mxu0 %v3894
        %4319 = vmatmul.mubr.bf16.gmra.mxu0 %v3893
        %v4320 = vpop.f32.mrf.mxu0
        %v4321 = vadd.f32 0.0, %v4320
        %v4322 = vpop.f32.mrf.mxu0
        %v4323 = vpop.f32.mrf.mxu0
        %v4324 = vadd.f32 0.0, %v4323
        %v4325 = vpop.f32.mrf.mxu0
        %4326 = vmatprep.mubr.bf16.mxu0 %v3896
        %4327 = vmatmul.mubr.bf16.gmra.mxu0 %v3895
        %v4328 = vpop.f32.mrf.mxu0
        %v4329 = vadd.f32 0.0, %v4328
        %v4330 = vpop.f32.mrf.mxu0
        %v4331 = vpop.f32.mrf.mxu0
        %v4332 = vpop.f32.mrf.mxu0
        %4333 = vdwg.mxu0
        %4344 = vrot.lane.b32.xlu0 %v4254, 96
        %v4345 = vpop.permute.xlu0 %4344
        %4346 = vrot.lane.b32.xlu0 %v4313, 96
        %v4347 = vpop.permute.xlu0 %4346
        %4348 = vrot.lane.b32.xlu0 %v4258, 96
        %v4349 = vpop.permute.xlu0 %4348
        %4350 = vrot.lane.b32.xlu0 %v4316, 96
        %v4351 = vpop.permute.xlu0 %4350
        %4352 = vrot.lane.b32.xlu0 %v4264, 96
        %v4353 = vpop.permute.xlu0 %4352
        %4354 = vrot.lane.b32.xlu0 %v4321, 96
        %v4355 = vpop.permute.xlu0 %4354
        %4356 = vrot.lane.b32.xlu0 %v4268, 96
        %v4357 = vpop.permute.xlu0 %4356
        %4358 = vrot.lane.b32.xlu0 %v4324, 96
        %v4359 = vpop.permute.xlu0 %4358
        %4360 = vrot.lane.b32.xlu0 %v4274, 96
        %v4361 = vpop.permute.xlu0 %4360
        %4362 = vrot.lane.b32.xlu0 %v4329, 96
        %v4363 = vpop.permute.xlu0 %4362
        %vm4364 = vcmask 785408
        %v4365 = vsel %vm4364, %v4345, %v4347
        %v4366 = vsel %vm4364, %v4349, %v4351
        %v4367 = vsel %vm4364, %v4353, %v4355
        %v4368 = vsel %vm4364, %v4357, %v4359
        %v4369 = vsel %vm4364, %v4361, %v4363
        %v4380 = vmax.f32 %v4252, %v4365
        %v4381 = vmax.f32 %v4254, %v4347
        %v4382 = vmax.f32 %v4256, %v4366
        %v4383 = vmax.f32 %v4258, %v4351
        %v4384 = vmax.f32 %v4262, %v4367
        %v4385 = vmax.f32 %v4264, %v4355
        %v4386 = vmax.f32 %v4266, %v4368
        %v4387 = vmax.f32 %v4268, %v4359
        %v4388 = vmax.f32 %v4272, %v4369
        %v4389 = vmax.f32 %v4274, %v4363
        %v4390 = vpack.c.bf16 %v4382, %v4380
        %v4391 = vpack.c.bf16 %v4383, %v4381
        %v4392 = vpack.c.bf16 %v4386, %v4384
        %v4393 = vpack.c.bf16 %v4387, %v4385
        %v4394 = vpack.c.bf16 %v4388, %v4388
        %v4395 = vpack.c.bf16 %v4389, %v4389
        %v4402 = vunpack.c.l.b16 %v4390
        %v4403 = vunpack.c.l.b16 %v4391
        %v4404 = vunpack.c.h.b16 %v4390
        %v4405 = vunpack.c.h.b16 %v4391
        %v4406 = vunpack.c.l.b16 %v4392
        %v4407 = vunpack.c.l.b16 %v4393
        %v4408 = vunpack.c.h.b16 %v4392
        %v4409 = vunpack.c.h.b16 %v4393
        %v4410 = vunpack.c.l.b16 %v4394
        %v4411 = vunpack.c.l.b16 %v4395
        %v4412 = vpack.c.b16 %v4403, %v4402
        %v4413 = vpack.c.b16 %v4405, %v4404
        %v4414 = vpack.c.b16 %v4407, %v4406
        %v4415 = vpack.c.b16 %v4409, %v4408
        %v4416 = vpack.c.b16 %v4411, %v4410
        %vm4422 = vcmask 1043456
        %vm4423 = vcmask 261124
        %vm4424 = vmor %vm4423, %vm4422
        %4425 = vst.msk [vmem:[#allocation4] sm:$0xff] %vm4424, %v4412
        %4426 = vst.msk [vmem:[#allocation4 + $0x8] sm:$0xff] %vm4424, %v4413
        %4427 = vst.msk [vmem:[#allocation4 + $0x10] sm:$0xff] %vm4424, %v4414
        %4428 = vst.msk [vmem:[#allocation4 + $0x18] sm:$0xff] %vm4424, %v4415
        %4429 = vst.msk [vmem:[#allocation4 + $0x20] sm:$0xff] %vm4424, %v4416
        %v4430 = vld [vmem:[#allocation4] sm:$0xff]
        %v4431 = vld [vmem:[#allocation4 + $0x8] sm:$0xff]
        %v4432 = vld [vmem:[#allocation4 + $0x10] sm:$0xff]
        %v4433 = vld [vmem:[#allocation4 + $0x18] sm:$0xff]
        %v4434 = vld [vmem:[#allocation4 + $0x20] sm:$0x33]
        %v4435 = vld [vmem:[%s8] sm:$0xff]
        %v4436 = vld [vmem:[%s8 + $0x8] sm:$0xff]
        %v4437 = vld [vmem:[%s8 + $0x10] sm:$0xff]
        %v4438 = vld [vmem:[%s8 + $0x18] sm:$0xff]
        %v4439 = vld [vmem:[%s8 + $0x20] sm:$0xff]
        %v4440 = vld [vmem:[%s8 + $0x28] sm:$0xff]
        %v4441 = vld [vmem:[%s8 + $0x30] sm:$0xff]
        %v4442 = vld [vmem:[%s8 + $0x38] sm:$0xff]
        %v4443 = vld [vmem:[%s8 + $0x40] sm:$0xff]
        %v4444 = vld [vmem:[%s8 + $0x48] sm:$0xff]
        %v4445 = vld [vmem:[%s8 + $0x50] sm:$0xff]
        %v4446 = vld [vmem:[%s8 + $0x58] sm:$0xff]
        %v4447 = vld [vmem:[%s8 + $0x60] sm:$0xff]
        %v4448 = vld [vmem:[%s8 + $0x68] sm:$0xff]
        %v4449 = vld [vmem:[%s8 + $0x70] sm:$0xff]
        %v4450 = vld [vmem:[%s8 + $0x78] sm:$0xff]
        %v4451 = vld [vmem:[%s8 + $0x80] sm:$0xff]
        %v4452 = vld [vmem:[%s8 + $0x88] sm:$0xff]
        %v4453 = vld [vmem:[%s8 + $0x90] sm:$0xff]
        %v4454 = vld [vmem:[%s8 + $0x98] sm:$0xff]
        %v4455 = vld [vmem:[#allocation4] sm:$0xee]
        %v4456 = vld [vmem:[#allocation4 + $0x20] sm:$0x77]
        %s4457 = scalar_lea.vmem %s8, 160
        %v4458 = vld [vmem:[%s4457] sm:$0xff]
        %v4459 = vld [vmem:[%s4457 + $0x8] sm:$0xff]
        %v4460 = vld [vmem:[%s4457 + $0x10] sm:$0xff]
        %v4461 = vld [vmem:[%s4457 + $0x18] sm:$0xff]
        %v4462 = vld [vmem:[%s4457 + $0x20] sm:$0xff]
        %v4463 = vld [vmem:[%s4457 + $0x28] sm:$0xff]
        %v4464 = vld [vmem:[%s4457 + $0x30] sm:$0xff]
        %v4465 = vld [vmem:[%s4457 + $0x38] sm:$0xff]
        %v4466 = vld [vmem:[%s4457 + $0x40] sm:$0xff]
        %v4467 = vld [vmem:[%s4457 + $0x48] sm:$0xff]
        %v4468 = vld [vmem:[%s4457 + $0x50] sm:$0xff]
        %v4469 = vld [vmem:[%s4457 + $0x58] sm:$0xff]
        %v4470 = vld [vmem:[%s4457 + $0x60] sm:$0xff]
        %v4471 = vld [vmem:[%s4457 + $0x68] sm:$0xff]
        %v4472 = vld [vmem:[%s4457 + $0x70] sm:$0xff]
        %v4473 = vld [vmem:[%s4457 + $0x78] sm:$0xff]
        %v4474 = vld [vmem:[%s4457 + $0x80] sm:$0xff]
        %v4475 = vld [vmem:[%s4457 + $0x88] sm:$0xff]
        %v4476 = vld [vmem:[%s4457 + $0x90] sm:$0xff]
        %v4477 = vld [vmem:[%s4457 + $0x98] sm:$0xff]
        %v4483 = vunpack.c.l.b16 %v4455
        %v4484 = vunpack.c.h.b16 %v4455
        %v4485 = vunpack.c.l.b16 %v4431
        %v4486 = vunpack.c.h.b16 %v4431
        %v4487 = vunpack.c.l.b16 %v4432
        %v4488 = vunpack.c.h.b16 %v4432
        %v4489 = vunpack.c.l.b16 %v4433
        %v4490 = vunpack.c.h.b16 %v4433
        %v4491 = vunpack.c.l.b16 %v4456
        %v4492 = vunpack.c.h.b16 %v4456
        %v4493 = vpack.c.b16 %v4485, %v4483
        %v4494 = vpack.c.b16 %v4486, %v4484
        %v4495 = vpack.c.b16 %v4489, %v4487
        %v4496 = vpack.c.b16 %v4490, %v4488
        %v4497 = vpack.c.b16 %v4491, %v4491
        %v4498 = vpack.c.b16 %v4492, %v4492
        %v4499 = vrot.slane %v4493, 1
        %v4500 = vrot.slane %v4495, 1
        %v4501 = vsel %vm1087, %v4499, %v4500
        %v4502 = vrot.slane %v4494, 1
        %v4503 = vrot.slane %v4496, 1
        %v4504 = vsel %vm1087, %v4502, %v4503
        %v4505 = vrot.slane %v4497, 1
        %v4506 = vsel %vm1087, %v4500, %v4505
        %v4507 = vrot.slane %v4498, 1
        %v4508 = vsel %vm1087, %v4503, %v4507
        %v4532 = vunpack.c.l.b16 %v4458
        %v4533 = vunpack.c.h.b16 %v4458
        %v4534 = vunpack.c.l.b16 %v4459
        %v4535 = vunpack.c.h.b16 %v4459
        %v4536 = vunpack.c.l.b16 %v4460
        %v4537 = vunpack.c.h.b16 %v4460
        %v4538 = vunpack.c.l.b16 %v4461
        %v4539 = vunpack.c.h.b16 %v4461
        %v4540 = vunpack.c.l.b16 %v4462
        %v4541 = vunpack.c.h.b16 %v4462
        %v4542 = vunpack.c.l.b16 %v4463
        %v4543 = vunpack.c.h.b16 %v4463
        %v4544 = vunpack.c.l.b16 %v4464
        %v4545 = vunpack.c.h.b16 %v4464
        %v4546 = vunpack.c.l.b16 %v4465
        %v4547 = vunpack.c.h.b16 %v4465
        %v4548 = vunpack.c.l.b16 %v4466
        %v4549 = vunpack.c.h.b16 %v4466
        %v4550 = vunpack.c.l.b16 %v4467
        %v4551 = vunpack.c.h.b16 %v4467
        %v4552 = vunpack.c.l.b16 %v4468
        %v4553 = vunpack.c.h.b16 %v4468
        %v4554 = vunpack.c.l.b16 %v4469
        %v4555 = vunpack.c.h.b16 %v4469
        %v4556 = vunpack.c.l.b16 %v4470
        %v4557 = vunpack.c.h.b16 %v4470
        %v4558 = vunpack.c.l.b16 %v4471
        %v4559 = vunpack.c.h.b16 %v4471
        %v4560 = vunpack.c.l.b16 %v4472
        %v4561 = vunpack.c.h.b16 %v4472
        %v4562 = vunpack.c.l.b16 %v4473
        %v4563 = vunpack.c.h.b16 %v4473
        %v4564 = vunpack.c.l.b16 %v4474
        %v4565 = vunpack.c.h.b16 %v4474
        %v4566 = vunpack.c.l.b16 %v4475
        %v4567 = vunpack.c.h.b16 %v4475
        %v4568 = vunpack.c.l.b16 %v4476
        %v4569 = vunpack.c.h.b16 %v4476
        %v4570 = vunpack.c.l.b16 %v4477
        %v4571 = vunpack.c.h.b16 %v4477
        %v4572 = vpack.c.b16 %v4534, %v4532
        %v4573 = vpack.c.b16 %v4535, %v4533
        %v4574 = vpack.c.b16 %v4538, %v4536
        %v4575 = vpack.c.b16 %v4539, %v4537
        %v4576 = vpack.c.b16 %v4542, %v4540
        %v4577 = vpack.c.b16 %v4543, %v4541
        %v4578 = vpack.c.b16 %v4546, %v4544
        %v4579 = vpack.c.b16 %v4547, %v4545
        %v4580 = vpack.c.b16 %v4550, %v4548
        %v4581 = vpack.c.b16 %v4551, %v4549
        %v4582 = vpack.c.b16 %v4554, %v4552
        %v4583 = vpack.c.b16 %v4555, %v4553
        %v4584 = vpack.c.b16 %v4558, %v4556
        %v4585 = vpack.c.b16 %v4559, %v4557
        %v4586 = vpack.c.b16 %v4562, %v4560
        %v4587 = vpack.c.b16 %v4563, %v4561
        %v4588 = vpack.c.b16 %v4566, %v4564
        %v4589 = vpack.c.b16 %v4567, %v4565
        %v4590 = vpack.c.b16 %v4570, %v4568
        %v4591 = vpack.c.b16 %v4571, %v4569
        %v4613 = vsel %vm2563, %v4504, 0
        %v4616 = vsel %vm2563, %v4508, 0
        %v4619 = vsel %vm2563, %v4507, 0
        %4621 = vmatprep.subr.bf16.mxu0 %v4587
        %4622 = vmatpush1.bf16.msra.mxu0 %v4586
        %4623 = vmatprep.subr.bf16.mxu0 %v4585
        %4624 = vmatpush1.bf16.msra.mxu0 %v4584
        %4625 = vmatprep.subr.bf16.mxu0 %v4583
        %4626 = vmatpush1.bf16.msra.mxu0 %v4582
        %4627 = vmatprep.subr.bf16.mxu0 %v4581
        %4628 = vmatpush1.bf16.msra.mxu0 %v4580
        %4629 = vmatprep.subr.bf16.mxu0 %v4579
        %4630 = vmatpush1.bf16.msra.mxu0 %v4578
        %4631 = vmatprep.subr.bf16.mxu0 %v4577
        %4632 = vmatpush1.bf16.msra.mxu0 %v4576
        %4633 = vmatprep.subr.bf16.mxu0 %v4575
        %4634 = vmatpush1.bf16.msra.mxu0 %v4574
        %4635 = vmatprep.subr.bf16.mxu0 %v4573
        %4636 = vmatpush1.bf16.msra.mxu0 %v4572
        %4637 = vmatprep.subr.bf16.mxu0 0
        %4638 = vmatpush2.bf16.msra.mxu0 0
        %4639 = vmatprep.subr.bf16.mxu0 0
        %4640 = vmatpush2.bf16.msra.mxu0 0
        %4641 = vmatprep.subr.bf16.mxu0 0
        %4642 = vmatpush2.bf16.msra.mxu0 0
        %4643 = vmatprep.subr.bf16.mxu0 0
        %4644 = vmatpush2.bf16.msra.mxu0 0
        %4645 = vmatprep.subr.bf16.mxu0 0
        %4646 = vmatpush2.bf16.msra.mxu0 0
        %4647 = vmatprep.subr.bf16.mxu0 0
        %4648 = vmatpush2.bf16.msra.mxu0 0
        %4649 = vmatprep.subr.bf16.mxu0 %v4591
        %4650 = vmatpush2.bf16.msra.mxu0 %v4590
        %4651 = vmatprep.subr.bf16.mxu0 %v4589
        %4652 = vmatpush2.bf16.msra.mxu0 %v4588
        %4653 = vmatprep.mubr.bf16.mxu0 %v4613
        %4654 = vmatmul.mubr.bf16.gmra.mxu0 %v4501
        %v4655 = vpop.f32.mrf.mxu0
        %v4656 = vadd.f32 0.0, %v4655
        %v4657 = vpop.f32.mrf.mxu0
        %v4658 = vadd.f32 0.0, %v4657
        %v4659 = vpop.f32.mrf.mxu0
        %v4660 = vadd.f32 0.0, %v4659
        %v4661 = vpop.f32.mrf.mxu0
        %v4662 = vadd.f32 0.0, %v4661
        %4663 = vmatprep.mubr.bf16.mxu0 %v4616
        %4664 = vmatmul.mubr.bf16.gmra.mxu0 %v4506
        %v4665 = vpop.f32.mrf.mxu0
        %v4666 = vadd.f32 0.0, %v4665
        %v4667 = vpop.f32.mrf.mxu0
        %v4668 = vadd.f32 0.0, %v4667
        %v4669 = vpop.f32.mrf.mxu0
        %v4670 = vadd.f32 0.0, %v4669
        %v4671 = vpop.f32.mrf.mxu0
        %v4672 = vadd.f32 0.0, %v4671
        %4673 = vmatprep.mubr.bf16.mxu0 %v4619
        %4674 = vmatmul.mubr.bf16.gmra.mxu0 %v4505
        %v4675 = vpop.f32.mrf.mxu0
        %v4676 = vadd.f32 0.0, %v4675
        %v4677 = vpop.f32.mrf.mxu0
        %v4678 = vadd.f32 0.0, %v4677
        %v4679 = vpop.f32.mrf.mxu0
        %v4680 = vpop.f32.mrf.mxu0
        %4681 = vdwg.mxu0
        %v4684 = vunpack.c.l.b16 %v4430
        %v4685 = vunpack.c.h.b16 %v4430
        %v4686 = vunpack.c.l.b16 %v4434
        %v4687 = vunpack.c.h.b16 %v4434
        %v4688 = vpack.c.b16 %v4485, %v4684
        %v4689 = vpack.c.b16 %v4486, %v4685
        %v4690 = vpack.c.b16 %v4686, %v4686
        %v4691 = vpack.c.b16 %v4687, %v4687
        %v4715 = vunpack.c.l.b16 %v4435
        %v4716 = vunpack.c.h.b16 %v4435
        %v4717 = vunpack.c.l.b16 %v4436
        %v4718 = vunpack.c.h.b16 %v4436
        %v4719 = vunpack.c.l.b16 %v4437
        %v4720 = vunpack.c.h.b16 %v4437
        %v4721 = vunpack.c.l.b16 %v4438
        %v4722 = vunpack.c.h.b16 %v4438
        %v4723 = vunpack.c.l.b16 %v4439
        %v4724 = vunpack.c.h.b16 %v4439
        %v4725 = vunpack.c.l.b16 %v4440
        %v4726 = vunpack.c.h.b16 %v4440
        %v4727 = vunpack.c.l.b16 %v4441
        %v4728 = vunpack.c.h.b16 %v4441
        %v4729 = vunpack.c.l.b16 %v4442
        %v4730 = vunpack.c.h.b16 %v4442
        %v4731 = vunpack.c.l.b16 %v4443
        %v4732 = vunpack.c.h.b16 %v4443
        %v4733 = vunpack.c.l.b16 %v4444
        %v4734 = vunpack.c.h.b16 %v4444
        %v4735 = vunpack.c.l.b16 %v4445
        %v4736 = vunpack.c.h.b16 %v4445
        %v4737 = vunpack.c.l.b16 %v4446
        %v4738 = vunpack.c.h.b16 %v4446
        %v4739 = vunpack.c.l.b16 %v4447
        %v4740 = vunpack.c.h.b16 %v4447
        %v4741 = vunpack.c.l.b16 %v4448
        %v4742 = vunpack.c.h.b16 %v4448
        %v4743 = vunpack.c.l.b16 %v4449
        %v4744 = vunpack.c.h.b16 %v4449
        %v4745 = vunpack.c.l.b16 %v4450
        %v4746 = vunpack.c.h.b16 %v4450
        %v4747 = vunpack.c.l.b16 %v4451
        %v4748 = vunpack.c.h.b16 %v4451
        %v4749 = vunpack.c.l.b16 %v4452
        %v4750 = vunpack.c.h.b16 %v4452
        %v4751 = vunpack.c.l.b16 %v4453
        %v4752 = vunpack.c.h.b16 %v4453
        %v4753 = vunpack.c.l.b16 %v4454
        %v4754 = vunpack.c.h.b16 %v4454
        %v4755 = vpack.c.b16 %v4717, %v4715
        %v4756 = vpack.c.b16 %v4718, %v4716
        %v4757 = vpack.c.b16 %v4721, %v4719
        %v4758 = vpack.c.b16 %v4722, %v4720
        %v4759 = vpack.c.b16 %v4725, %v4723
        %v4760 = vpack.c.b16 %v4726, %v4724
        %v4761 = vpack.c.b16 %v4729, %v4727
        %v4762 = vpack.c.b16 %v4730, %v4728
        %v4763 = vpack.c.b16 %v4733, %v4731
        %v4764 = vpack.c.b16 %v4734, %v4732
        %v4765 = vpack.c.b16 %v4737, %v4735
        %v4766 = vpack.c.b16 %v4738, %v4736
        %v4767 = vpack.c.b16 %v4741, %v4739
        %v4768 = vpack.c.b16 %v4742, %v4740
        %v4769 = vpack.c.b16 %v4745, %v4743
        %v4770 = vpack.c.b16 %v4746, %v4744
        %v4771 = vpack.c.b16 %v4749, %v4747
        %v4772 = vpack.c.b16 %v4750, %v4748
        %v4773 = vpack.c.b16 %v4753, %v4751
        %v4774 = vpack.c.b16 %v4754, %v4752
        %v4796 = vsel %vm2563, %v4689, 0
        %v4799 = vsel %vm2563, %v4496, 0
        %v4802 = vsel %vm2563, %v4691, 0
        %4804 = vmatprep.subr.bf16.mxu0 %v4770
        %4805 = vmatpush1.bf16.msra.mxu0 %v4769
        %4806 = vmatprep.subr.bf16.mxu0 %v4768
        %4807 = vmatpush1.bf16.msra.mxu0 %v4767
        %4808 = vmatprep.subr.bf16.mxu0 %v4766
        %4809 = vmatpush1.bf16.msra.mxu0 %v4765
        %4810 = vmatprep.subr.bf16.mxu0 %v4764
        %4811 = vmatpush1.bf16.msra.mxu0 %v4763
        %4812 = vmatprep.subr.bf16.mxu0 %v4762
        %4813 = vmatpush1.bf16.msra.mxu0 %v4761
        %4814 = vmatprep.subr.bf16.mxu0 %v4760
        %4815 = vmatpush1.bf16.msra.mxu0 %v4759
        %4816 = vmatprep.subr.bf16.mxu0 %v4758
        %4817 = vmatpush1.bf16.msra.mxu0 %v4757
        %4818 = vmatprep.subr.bf16.mxu0 %v4756
        %4819 = vmatpush1.bf16.msra.mxu0 %v4755
        %4820 = vmatprep.subr.bf16.mxu0 0
        %4821 = vmatpush2.bf16.msra.mxu0 0
        %4822 = vmatprep.subr.bf16.mxu0 0
        %4823 = vmatpush2.bf16.msra.mxu0 0
        %4824 = vmatprep.subr.bf16.mxu0 0
        %4825 = vmatpush2.bf16.msra.mxu0 0
        %4826 = vmatprep.subr.bf16.mxu0 0
        %4827 = vmatpush2.bf16.msra.mxu0 0
        %4828 = vmatprep.subr.bf16.mxu0 0
        %4829 = vmatpush2.bf16.msra.mxu0 0
        %4830 = vmatprep.subr.bf16.mxu0 0
        %4831 = vmatpush2.bf16.msra.mxu0 0
        %4832 = vmatprep.subr.bf16.mxu0 %v4774
        %4833 = vmatpush2.bf16.msra.mxu0 %v4773
        %4834 = vmatprep.subr.bf16.mxu0 %v4772
        %4835 = vmatpush2.bf16.msra.mxu0 %v4771
        %4836 = vmatprep.mubr.bf16.mxu0 %v4796
        %4837 = vmatmul.mubr.bf16.gmra.mxu0 %v4688
        %v4838 = vpop.f32.mrf.mxu0
        %v4839 = vadd.f32 %v4656, %v4838
        %v4840 = vpop.f32.mrf.mxu0
        %v4841 = vadd.f32 %v4658, %v4840
        %v4842 = vpop.f32.mrf.mxu0
        %v4843 = vadd.f32 %v4660, %v4842
        %v4844 = vpop.f32.mrf.mxu0
        %v4845 = vadd.f32 %v4662, %v4844
        %4846 = vmatprep.mubr.bf16.mxu0 %v4799
        %4847 = vmatmul.mubr.bf16.gmra.mxu0 %v4495
        %v4848 = vpop.f32.mrf.mxu0
        %v4849 = vadd.f32 %v4666, %v4848
        %v4850 = vpop.f32.mrf.mxu0
        %v4851 = vadd.f32 %v4668, %v4850
        %v4852 = vpop.f32.mrf.mxu0
        %v4853 = vadd.f32 %v4670, %v4852
        %v4854 = vpop.f32.mrf.mxu0
        %v4855 = vadd.f32 %v4672, %v4854
        %4856 = vmatprep.mubr.bf16.mxu0 %v4802
        %4857 = vmatmul.mubr.bf16.gmra.mxu0 %v4690
        %v4858 = vpop.f32.mrf.mxu0
        %v4859 = vadd.f32 %v4676, %v4858
        %v4860 = vpop.f32.mrf.mxu0
        %v4861 = vadd.f32 %v4678, %v4860
        %v4862 = vpop.f32.mrf.mxu0
        %v4863 = vpop.f32.mrf.mxu0
        %4864 = vdwg.mxu0
        %v4865 = vld [vmem:[#allocation4] sm:$0xcc]
        %v4866 = vld [vmem:[#allocation4 + $0x20] sm:$0xff]
        %s4867 = scalar_lea.vmem %s8, 320
        %v4868 = vld [vmem:[%s4867] sm:$0xff]
        %v4869 = vld [vmem:[%s4867 + $0x8] sm:$0xff]
        %v4870 = vld [vmem:[%s4867 + $0x10] sm:$0xff]
        %v4871 = vld [vmem:[%s4867 + $0x18] sm:$0xff]
        %v4872 = vld [vmem:[%s4867 + $0x20] sm:$0xff]
        %v4873 = vld [vmem:[%s4867 + $0x28] sm:$0xff]
        %v4874 = vld [vmem:[%s4867 + $0x30] sm:$0xff]
        %v4875 = vld [vmem:[%s4867 + $0x38] sm:$0xff]
        %v4876 = vld [vmem:[%s4867 + $0x40] sm:$0xff]
        %v4877 = vld [vmem:[%s4867 + $0x48] sm:$0xff]
        %v4878 = vld [vmem:[%s4867 + $0x50] sm:$0xff]
        %v4879 = vld [vmem:[%s4867 + $0x58] sm:$0xff]
        %v4880 = vld [vmem:[%s4867 + $0x60] sm:$0xff]
        %v4881 = vld [vmem:[%s4867 + $0x68] sm:$0xff]
        %v4882 = vld [vmem:[%s4867 + $0x70] sm:$0xff]
        %v4883 = vld [vmem:[%s4867 + $0x78] sm:$0xff]
        %v4884 = vld [vmem:[%s4867 + $0x80] sm:$0xff]
        %v4885 = vld [vmem:[%s4867 + $0x88] sm:$0xff]
        %v4886 = vld [vmem:[%s4867 + $0x90] sm:$0xff]
        %v4887 = vld [vmem:[%s4867 + $0x98] sm:$0xff]
        %v4890 = vunpack.c.l.b16 %v4865
        %v4891 = vunpack.c.h.b16 %v4865
        %v4892 = vunpack.c.l.b16 %v4866
        %v4893 = vunpack.c.h.b16 %v4866
        %v4894 = vpack.c.b16 %v4485, %v4890
        %v4895 = vpack.c.b16 %v4486, %v4891
        %v4896 = vpack.c.b16 %v4892, %v4892
        %v4897 = vpack.c.b16 %v4893, %v4893
        %v4898 = vrot.slane %v4894, 2
        %v4899 = vrot.slane %v4495, 2
        %v4900 = vsel %vm1558, %v4898, %v4899
        %v4901 = vrot.slane %v4895, 2
        %v4902 = vrot.slane %v4496, 2
        %v4903 = vsel %vm1558, %v4901, %v4902
        %v4904 = vrot.slane %v4896, 2
        %v4905 = vsel %vm1558, %v4899, %v4904
        %v4906 = vrot.slane %v4897, 2
        %v4907 = vsel %vm1558, %v4902, %v4906
        %v4931 = vunpack.c.l.b16 %v4868
        %v4932 = vunpack.c.h.b16 %v4868
        %v4933 = vunpack.c.l.b16 %v4869
        %v4934 = vunpack.c.h.b16 %v4869
        %v4935 = vunpack.c.l.b16 %v4870
        %v4936 = vunpack.c.h.b16 %v4870
        %v4937 = vunpack.c.l.b16 %v4871
        %v4938 = vunpack.c.h.b16 %v4871
        %v4939 = vunpack.c.l.b16 %v4872
        %v4940 = vunpack.c.h.b16 %v4872
        %v4941 = vunpack.c.l.b16 %v4873
        %v4942 = vunpack.c.h.b16 %v4873
        %v4943 = vunpack.c.l.b16 %v4874
        %v4944 = vunpack.c.h.b16 %v4874
        %v4945 = vunpack.c.l.b16 %v4875
        %v4946 = vunpack.c.h.b16 %v4875
        %v4947 = vunpack.c.l.b16 %v4876
        %v4948 = vunpack.c.h.b16 %v4876
        %v4949 = vunpack.c.l.b16 %v4877
        %v4950 = vunpack.c.h.b16 %v4877
        %v4951 = vunpack.c.l.b16 %v4878
        %v4952 = vunpack.c.h.b16 %v4878
        %v4953 = vunpack.c.l.b16 %v4879
        %v4954 = vunpack.c.h.b16 %v4879
        %v4955 = vunpack.c.l.b16 %v4880
        %v4956 = vunpack.c.h.b16 %v4880
        %v4957 = vunpack.c.l.b16 %v4881
        %v4958 = vunpack.c.h.b16 %v4881
        %v4959 = vunpack.c.l.b16 %v4882
        %v4960 = vunpack.c.h.b16 %v4882
        %v4961 = vunpack.c.l.b16 %v4883
        %v4962 = vunpack.c.h.b16 %v4883
        %v4963 = vunpack.c.l.b16 %v4884
        %v4964 = vunpack.c.h.b16 %v4884
        %v4965 = vunpack.c.l.b16 %v4885
        %v4966 = vunpack.c.h.b16 %v4885
        %v4967 = vunpack.c.l.b16 %v4886
        %v4968 = vunpack.c.h.b16 %v4886
        %v4969 = vunpack.c.l.b16 %v4887
        %v4970 = vunpack.c.h.b16 %v4887
        %v4971 = vpack.c.b16 %v4933, %v4931
        %v4972 = vpack.c.b16 %v4934, %v4932
        %v4973 = vpack.c.b16 %v4937, %v4935
        %v4974 = vpack.c.b16 %v4938, %v4936
        %v4975 = vpack.c.b16 %v4941, %v4939
        %v4976 = vpack.c.b16 %v4942, %v4940
        %v4977 = vpack.c.b16 %v4945, %v4943
        %v4978 = vpack.c.b16 %v4946, %v4944
        %v4979 = vpack.c.b16 %v4949, %v4947
        %v4980 = vpack.c.b16 %v4950, %v4948
        %v4981 = vpack.c.b16 %v4953, %v4951
        %v4982 = vpack.c.b16 %v4954, %v4952
        %v4983 = vpack.c.b16 %v4957, %v4955
        %v4984 = vpack.c.b16 %v4958, %v4956
        %v4985 = vpack.c.b16 %v4961, %v4959
        %v4986 = vpack.c.b16 %v4962, %v4960
        %v4987 = vpack.c.b16 %v4965, %v4963
        %v4988 = vpack.c.b16 %v4966, %v4964
        %v4989 = vpack.c.b16 %v4969, %v4967
        %v4990 = vpack.c.b16 %v4970, %v4968
        %v5012 = vsel %vm2563, %v4903, 0
        %v5015 = vsel %vm2563, %v4907, 0
        %v5018 = vsel %vm2563, %v4906, 0
        %5020 = vmatprep.subr.bf16.mxu0 %v4986
        %5021 = vmatpush1.bf16.msra.mxu0 %v4985
        %5022 = vmatprep.subr.bf16.mxu0 %v4984
        %5023 = vmatpush1.bf16.msra.mxu0 %v4983
        %5024 = vmatprep.subr.bf16.mxu0 %v4982
        %5025 = vmatpush1.bf16.msra.mxu0 %v4981
        %5026 = vmatprep.subr.bf16.mxu0 %v4980
        %5027 = vmatpush1.bf16.msra.mxu0 %v4979
        %5028 = vmatprep.subr.bf16.mxu0 %v4978
        %5029 = vmatpush1.bf16.msra.mxu0 %v4977
        %5030 = vmatprep.subr.bf16.mxu0 %v4976
        %5031 = vmatpush1.bf16.msra.mxu0 %v4975
        %5032 = vmatprep.subr.bf16.mxu0 %v4974
        %5033 = vmatpush1.bf16.msra.mxu0 %v4973
        %5034 = vmatprep.subr.bf16.mxu0 %v4972
        %5035 = vmatpush1.bf16.msra.mxu0 %v4971
        %5036 = vmatprep.subr.bf16.mxu0 0
        %5037 = vmatpush2.bf16.msra.mxu0 0
        %5038 = vmatprep.subr.bf16.mxu0 0
        %5039 = vmatpush2.bf16.msra.mxu0 0
        %5040 = vmatprep.subr.bf16.mxu0 0
        %5041 = vmatpush2.bf16.msra.mxu0 0
        %5042 = vmatprep.subr.bf16.mxu0 0
        %5043 = vmatpush2.bf16.msra.mxu0 0
        %5044 = vmatprep.subr.bf16.mxu0 0
        %5045 = vmatpush2.bf16.msra.mxu0 0
        %5046 = vmatprep.subr.bf16.mxu0 0
        %5047 = vmatpush2.bf16.msra.mxu0 0
        %5048 = vmatprep.subr.bf16.mxu0 %v4990
        %5049 = vmatpush2.bf16.msra.mxu0 %v4989
        %5050 = vmatprep.subr.bf16.mxu0 %v4988
        %5051 = vmatpush2.bf16.msra.mxu0 %v4987
        %5052 = vmatprep.mubr.bf16.mxu0 %v5012
        %5053 = vmatmul.mubr.bf16.gmra.mxu0 %v4900
        %v5054 = vpop.f32.mrf.mxu0
        %v5055 = vadd.f32 0.0, %v5054
        %v5056 = vpop.f32.mrf.mxu0
        %v5057 = vadd.f32 0.0, %v5056
        %v5058 = vpop.f32.mrf.mxu0
        %v5059 = vadd.f32 0.0, %v5058
        %v5060 = vpop.f32.mrf.mxu0
        %v5061 = vadd.f32 0.0, %v5060
        %5062 = vmatprep.mubr.bf16.mxu0 %v5015
        %5063 = vmatmul.mubr.bf16.gmra.mxu0 %v4905
        %v5064 = vpop.f32.mrf.mxu0
        %v5065 = vadd.f32 0.0, %v5064
        %v5066 = vpop.f32.mrf.mxu0
        %v5067 = vadd.f32 0.0, %v5066
        %v5068 = vpop.f32.mrf.mxu0
        %v5069 = vadd.f32 0.0, %v5068
        %v5070 = vpop.f32.mrf.mxu0
        %v5071 = vadd.f32 0.0, %v5070
        %5072 = vmatprep.mubr.bf16.mxu0 %v5018
        %5073 = vmatmul.mubr.bf16.gmra.mxu0 %v4904
        %v5074 = vpop.f32.mrf.mxu0
        %v5075 = vadd.f32 0.0, %v5074
        %v5076 = vpop.f32.mrf.mxu0
        %v5077 = vadd.f32 0.0, %v5076
        %v5078 = vpop.f32.mrf.mxu0
        %v5079 = vpop.f32.mrf.mxu0
        %5080 = vdwg.mxu0
        %v5081 = vadd.f32 %v4839, %v5055
        %v5082 = vadd.f32 %v4841, %v5057
        %v5083 = vadd.f32 %v4843, %v5059
        %v5084 = vadd.f32 %v4845, %v5061
        %v5085 = vadd.f32 %v4849, %v5065
        %v5086 = vadd.f32 %v4851, %v5067
        %v5087 = vadd.f32 %v4853, %v5069
        %v5088 = vadd.f32 %v4855, %v5071
        %v5089 = vadd.f32 %v4859, %v5075
        %v5090 = vadd.f32 %v4861, %v5077
        %v5091 = vld [vmem:[%s9] sm:$0x3]
        %v5093 = vlaneseq
        %v5094 = vshrl.u32 %v5093, 7
        %v5095 = vsub.s32 0, %v5094
        %v5096 = vrot.slane %v5091, %v5095
        %v5097 = vlaneseq
        %v5098 = vshrl.u32 %v5097, 7
        %v5099 = vsub.s32 1, %v5098
        %v5100 = vrot.slane %v5091, %v5099
        %v5103 = vadd.f32 %v5081, %v5096
        %v5104 = vadd.f32 %v5082, %v5100
        %v5105 = vadd.f32 %v5083, %v5096
        %v5106 = vadd.f32 %v5084, %v5100
        %v5107 = vadd.f32 %v5085, %v5096
        %v5108 = vadd.f32 %v5086, %v5100
        %v5109 = vadd.f32 %v5087, %v5096
        %v5110 = vadd.f32 %v5088, %v5100
        %v5111 = vadd.f32 %v5089, %v5096
        %v5112 = vadd.f32 %v5090, %v5100
        %vm5113 = vcmp.gt.f32.partialorder %v5103, 0.0
        %vm5114 = vcmp.gt.f32.partialorder %v5104, 0.0
        %vm5115 = vcmp.gt.f32.partialorder %v5105, 0.0
        %vm5116 = vcmp.gt.f32.partialorder %v5106, 0.0
        %vm5117 = vcmp.gt.f32.partialorder %v5107, 0.0
        %vm5118 = vcmp.gt.f32.partialorder %v5108, 0.0
        %vm5119 = vcmp.gt.f32.partialorder %v5109, 0.0
        %vm5120 = vcmp.gt.f32.partialorder %v5110, 0.0
        %vm5121 = vcmp.gt.f32.partialorder %v5111, 0.0
        %vm5122 = vcmp.gt.f32.partialorder %v5112, 0.0
        %v5123 = vmin.f32 %v5103, 0.0
        %v5124 = vmin.f32 %v5104, 0.0
        %v5125 = vmin.f32 %v5105, 0.0
        %v5126 = vmin.f32 %v5106, 0.0
        %v5127 = vmin.f32 %v5107, 0.0
        %v5128 = vmin.f32 %v5108, 0.0
        %v5129 = vmin.f32 %v5109, 0.0
        %v5130 = vmin.f32 %v5110, 0.0
        %v5131 = vmin.f32 %v5111, 0.0
        %v5132 = vmin.f32 %v5112, 0.0
        %v5133 = vmul.f32 %v5123, 1.442695
        %v5134 = vpow.pop %v5133
        %v5135 = vmul.f32 %v5124, 1.442695
        %v5136 = vpow.pop %v5135
        %v5137 = vmul.f32 %v5125, 1.442695
        %v5138 = vpow.pop %v5137
        %v5139 = vmul.f32 %v5126, 1.442695
        %v5140 = vpow.pop %v5139
        %v5141 = vmul.f32 %v5127, 1.442695
        %v5142 = vpow.pop %v5141
        %v5143 = vmul.f32 %v5128, 1.442695
        %v5144 = vpow.pop %v5143
        %v5145 = vmul.f32 %v5129, 1.442695
        %v5146 = vpow.pop %v5145
        %v5147 = vmul.f32 %v5130, 1.442695
        %v5148 = vpow.pop %v5147
        %v5149 = vmul.f32 %v5131, 1.442695
        %v5150 = vpow.pop %v5149
        %v5151 = vmul.f32 %v5132, 1.442695
        %v5152 = vpow.pop %v5151
        %v5153 = vsub.f32 %v5134, 1.0
        %v5154 = vsub.f32 %v5136, 1.0
        %v5155 = vsub.f32 %v5138, 1.0
        %v5156 = vsub.f32 %v5140, 1.0
        %v5157 = vsub.f32 %v5142, 1.0
        %v5158 = vsub.f32 %v5144, 1.0
        %v5159 = vsub.f32 %v5146, 1.0
        %v5160 = vsub.f32 %v5148, 1.0
        %v5161 = vsub.f32 %v5150, 1.0
        %v5162 = vsub.f32 %v5152, 1.0
        %v5163 = vsel %vm5113, %v5103, %v5153
        %v5164 = vsel %vm5114, %v5104, %v5154
        %v5165 = vsel %vm5115, %v5105, %v5155
        %v5166 = vsel %vm5116, %v5106, %v5156
        %v5167 = vsel %vm5117, %v5107, %v5157
        %v5168 = vsel %vm5118, %v5108, %v5158
        %v5169 = vsel %vm5119, %v5109, %v5159
        %v5170 = vsel %vm5120, %v5110, %v5160
        %v5171 = vsel %vm5121, %v5111, %v5161
        %v5172 = vsel %vm5122, %v5112, %v5162
        %v5173 = vpack.c.bf16 %v5165, %v5163
        %v5174 = vpack.c.bf16 %v5166, %v5164
        %v5175 = vpack.c.bf16 %v5169, %v5167
        %v5176 = vpack.c.bf16 %v5170, %v5168
        %v5177 = vpack.c.bf16 %v5171, %v5171
        %v5178 = vpack.c.bf16 %v5172, %v5172
        %v5179 = vld [vmem:[%s10] sm:$0xf]
        %v5180 = vld [vmem:[%s10 + $0x4] sm:$0xf]
        %v5181 = vld [vmem:[%s10 + $0x8] sm:$0xf]
        %v5182 = vld [vmem:[%s10 + $0xc] sm:$0xf]
        %v5183 = vld [vmem:[%s10 + $0x10] sm:$0xf]
        %v5184 = vld [vmem:[%s10 + $0x14] sm:$0xf]
        %v5191 = vunpack.c.l.b16 %v5179
        %v5192 = vunpack.c.l.b16 %v5180
        %v5193 = vunpack.c.l.b16 %v5181
        %v5194 = vunpack.c.l.b16 %v5182
        %v5195 = vunpack.c.l.b16 %v5183
        %v5196 = vunpack.c.l.b16 %v5184
        %v5197 = vpack.c.b16 %v5192, %v5191
        %v5198 = vpack.c.b16 %v5194, %v5193
        %v5199 = vpack.c.b16 %v5196, %v5195
        %v5201 = vsel %vm1137, %v5197, 0
        %v5204 = vsel %vm1137, %v5198, 0
        %v5207 = vsel %vm1137, %v5199, 0
        %v5210 = vsel %vm1153, %v5177, 0
        %v5213 = vsel %vm1153, %v5178, 0
        %5215 = vmatprep.subr.bf16.mxu0 0
        %5216 = vmatpush1.bf16.msra.mxu0 0
        %5217 = vmatprep.subr.bf16.mxu0 0
        %5218 = vmatpush1.bf16.msra.mxu0 0
        %5219 = vmatprep.subr.bf16.mxu0 0
        %5220 = vmatpush1.bf16.msra.mxu0 0
        %5221 = vmatprep.subr.bf16.mxu0 0
        %5222 = vmatpush1.bf16.msra.mxu0 0
        %5223 = vmatprep.subr.bf16.mxu0 0
        %5224 = vmatpush1.bf16.msra.mxu0 0
        %5225 = vmatprep.subr.bf16.mxu0 %v5213
        %5226 = vmatpush1.bf16.msra.mxu0 %v5210
        %5227 = vmatprep.subr.bf16.mxu0 %v5176
        %5228 = vmatpush1.bf16.msra.mxu0 %v5175
        %5229 = vmatprep.subr.bf16.mxu0 %v5174
        %5230 = vmatpush1.bf16.msra.mxu0 %v5173
        %5231 = vmatprep.subr.bf16.mxu0 0
        %5232 = vmatpush2.bf16.msra.mxu0 0
        %5233 = vmatprep.subr.bf16.mxu0 0
        %5234 = vmatpush2.bf16.msra.mxu0 0
        %5235 = vmatprep.subr.bf16.mxu0 0
        %5236 = vmatpush2.bf16.msra.mxu0 0
        %5237 = vmatprep.subr.bf16.mxu0 0
        %5238 = vmatpush2.bf16.msra.mxu0 0
        %5239 = vmatprep.subr.bf16.mxu0 0
        %5240 = vmatpush2.bf16.msra.mxu0 0
        %5241 = vmatprep.subr.bf16.mxu0 0
        %5242 = vmatpush2.bf16.msra.mxu0 0
        %5243 = vmatprep.subr.bf16.mxu0 0
        %5244 = vmatpush2.bf16.msra.mxu0 0
        %5245 = vmatprep.subr.bf16.mxu0 0
        %5246 = vmatpush2.bf16.msra.mxu0 0
        %5247 = vmatprep.mubr.bf16.mxu0 0
        %5248 = vmatmul.mubr.bf16.gmra.mxu0 %v5201
        %v5249 = vpop.f32.mrf.mxu0
        %v5250 = vadd.f32 0.0, %v5249
        %v5251 = vpop.f32.mrf.mxu0
        %v5252 = vadd.f32 0.0, %v5251
        %v5253 = vpop.f32.mrf.mxu0
        %v5254 = vadd.f32 0.0, %v5253
        %v5255 = vpop.f32.mrf.mxu0
        %v5256 = vadd.f32 0.0, %v5255
        %5257 = vmatprep.mubr.bf16.mxu0 0
        %5258 = vmatmul.mubr.bf16.gmra.mxu0 %v5204
        %v5259 = vpop.f32.mrf.mxu0
        %v5260 = vadd.f32 0.0, %v5259
        %v5261 = vpop.f32.mrf.mxu0
        %v5262 = vadd.f32 0.0, %v5261
        %v5263 = vpop.f32.mrf.mxu0
        %v5264 = vadd.f32 0.0, %v5263
        %v5265 = vpop.f32.mrf.mxu0
        %v5266 = vadd.f32 0.0, %v5265
        %5267 = vmatprep.mubr.bf16.mxu0 0
        %5268 = vmatmul.mubr.bf16.gmra.mxu0 %v5207
        %v5269 = vpop.f32.mrf.mxu0
        %v5270 = vadd.f32 0.0, %v5269
        %v5271 = vpop.f32.mrf.mxu0
        %v5272 = vadd.f32 0.0, %v5271
        %v5273 = vpop.f32.mrf.mxu0
        %v5274 = vadd.f32 0.0, %v5273
        %v5275 = vpop.f32.mrf.mxu0
        %v5276 = vadd.f32 0.0, %v5275
        %5277 = vdwg.mxu0
        %v5278 = vmax.f32 %v5250, %v5264
        %v5279 = vmax.f32 %v5252, %v5266
        %v5280 = vmax.f32 %v5254, %v5270
        %v5281 = vmax.f32 %v5256, %v5272
        %v5282 = vmax.f32 %v5260, %v5274
        %v5283 = vmax.f32 %v5262, %v5276
        %v5284 = vpack.c.bf16 %v5280, %v5278
        %v5285 = vpack.c.bf16 %v5281, %v5279
        %v5286 = vpack.c.bf16 %v5282, %v5282
        %v5287 = vpack.c.bf16 %v5283, %v5283
        %v5288 = vld [vmem:[#allocation9] sm:$0xff]
        %v5289 = vld [vmem:[#allocation9 + $0x8] sm:$0xf]
        %v5290 = vld [vmem:[#allocation9 + $0xc] sm:$0xff]
        %v5291 = vld [vmem:[#allocation9 + $0x14] sm:$0xf]
        %v5292 = vld [vmem:[#allocation9 + $0x18] sm:$0xff]
        %v5293 = vld [vmem:[#allocation9 + $0x20] sm:$0xf]
        %v5294 = vld [vmem:[#allocation9 + $0x24] sm:$0xff]
        %v5295 = vld [vmem:[#allocation9 + $0x2c] sm:$0xf]
        %v5296 = vld [vmem:[#allocation9 + $0x30] sm:$0xff]
        %v5297 = vld [vmem:[#allocation9 + $0x38] sm:$0xf]
        %v5298 = vld [vmem:[#allocation9 + $0x3c] sm:$0xff]
        %v5299 = vld [vmem:[#allocation9 + $0x44] sm:$0xf]
        %v5300 = vld [vmem:[#allocation9 + $0x48] sm:$0xff]
        %v5301 = vld [vmem:[#allocation9 + $0x50] sm:$0xf]
        %v5302 = vld [vmem:[#allocation9 + $0x54] sm:$0xff]
        %v5303 = vld [vmem:[#allocation9 + $0x5c] sm:$0xf]
        %v5304 = vld [vmem:[#allocation9 + $0x60] sm:$0xff]
        %v5305 = vld [vmem:[#allocation9 + $0x68] sm:$0xf]
        %v5306 = vld [vmem:[#allocation9 + $0x6c] sm:$0xff]
        %v5307 = vld [vmem:[#allocation9 + $0x74] sm:$0xf]
        %v5308 = vld [vmem:[#allocation9 + $0x78] sm:$0xff]
        %v5309 = vld [vmem:[#allocation9 + $0x80] sm:$0xf]
        %v5310 = vld [vmem:[#allocation9 + $0x84] sm:$0xff]
        %v5311 = vld [vmem:[#allocation9 + $0x8c] sm:$0xf]
        %v5312 = vld [vmem:[#allocation9 + $0x90] sm:$0xff]
        %v5313 = vld [vmem:[#allocation9 + $0x98] sm:$0xf]
        %v5314 = vld [vmem:[#allocation9 + $0x9c] sm:$0xff]
        %v5315 = vld [vmem:[#allocation9 + $0xa4] sm:$0xf]
        %v5316 = vld [vmem:[#allocation9 + $0xa8] sm:$0xff]
        %v5317 = vld [vmem:[#allocation9 + $0xb0] sm:$0xf]
        %v5318 = vld [vmem:[#allocation9 + $0xb4] sm:$0xff]
        %v5319 = vld [vmem:[#allocation9 + $0xbc] sm:$0xf]
        %v5320 = vld [vmem:[#allocation9 + $0xc0] sm:$0xff]
        %v5321 = vld [vmem:[#allocation9 + $0xc8] sm:$0xf]
        %v5322 = vld [vmem:[#allocation9 + $0xcc] sm:$0xff]
        %v5323 = vld [vmem:[#allocation9 + $0xd4] sm:$0xf]
        %v5324 = vld [vmem:[#allocation9 + $0xd8] sm:$0xff]
        %v5325 = vld [vmem:[#allocation9 + $0xe0] sm:$0xf]
        %v5326 = vld [vmem:[#allocation9 + $0xe4] sm:$0xff]
        %v5327 = vld [vmem:[#allocation9 + $0xec] sm:$0xf]
        %v5328 = vld [vmem:[#allocation9 + $0xf0] sm:$0xff]
        %v5329 = vld [vmem:[#allocation9 + $0xf8] sm:$0xf]
        %v5330 = vld [vmem:[#allocation9 + $0xfc] sm:$0xff]
        %v5331 = vld [vmem:[#allocation9 + $0x104] sm:$0xf]
        %v5332 = vld [vmem:[#allocation9 + $0x108] sm:$0xff]
        %v5333 = vld [vmem:[#allocation9 + $0x110] sm:$0xf]
        %v5334 = vld [vmem:[#allocation9 + $0x114] sm:$0xff]
        %v5335 = vld [vmem:[#allocation9 + $0x11c] sm:$0xf]
        %v5336 = vld [vmem:[#allocation9 + $0x120] sm:$0xff]
        %v5337 = vld [vmem:[#allocation9 + $0x128] sm:$0xf]
        %v5338 = vld [vmem:[#allocation9 + $0x12c] sm:$0xff]
        %v5339 = vld [vmem:[#allocation9 + $0x134] sm:$0xf]
        %v5340 = vld [vmem:[#allocation9 + $0x138] sm:$0xff]
        %v5341 = vld [vmem:[#allocation9 + $0x140] sm:$0xf]
        %v5342 = vld [vmem:[#allocation9 + $0x144] sm:$0xff]
        %v5343 = vld [vmem:[#allocation9 + $0x14c] sm:$0xf]
        %v5344 = vld [vmem:[#allocation9 + $0x150] sm:$0xff]
        %v5345 = vld [vmem:[#allocation9 + $0x158] sm:$0xf]
        %v5346 = vld [vmem:[#allocation9 + $0x15c] sm:$0xff]
        %v5347 = vld [vmem:[#allocation9 + $0x164] sm:$0xf]
        %v5348 = vld [vmem:[#allocation9 + $0x168] sm:$0xff]
        %v5349 = vld [vmem:[#allocation9 + $0x170] sm:$0xf]
        %v5350 = vld [vmem:[#allocation9 + $0x174] sm:$0xff]
        %v5351 = vld [vmem:[#allocation9 + $0x17c] sm:$0xf]
        %v5416 = vunpack.c.l.b16 %v5288
        %v5417 = vunpack.c.h.b16 %v5288
        %v5418 = vunpack.c.l.b16 %v5289
        %v5419 = vunpack.c.l.b16 %v5290
        %v5420 = vunpack.c.h.b16 %v5290
        %v5421 = vunpack.c.l.b16 %v5291
        %v5422 = vunpack.c.l.b16 %v5292
        %v5423 = vunpack.c.h.b16 %v5292
        %v5424 = vunpack.c.l.b16 %v5293
        %v5425 = vunpack.c.l.b16 %v5294
        %v5426 = vunpack.c.h.b16 %v5294
        %v5427 = vunpack.c.l.b16 %v5295
        %v5428 = vunpack.c.l.b16 %v5296
        %v5429 = vunpack.c.h.b16 %v5296
        %v5430 = vunpack.c.l.b16 %v5297
        %v5431 = vunpack.c.l.b16 %v5298
        %v5432 = vunpack.c.h.b16 %v5298
        %v5433 = vunpack.c.l.b16 %v5299
        %v5434 = vunpack.c.l.b16 %v5300
        %v5435 = vunpack.c.h.b16 %v5300
        %v5436 = vunpack.c.l.b16 %v5301
        %v5437 = vunpack.c.l.b16 %v5302
        %v5438 = vunpack.c.h.b16 %v5302
        %v5439 = vunpack.c.l.b16 %v5303
        %v5440 = vunpack.c.l.b16 %v5304
        %v5441 = vunpack.c.h.b16 %v5304
        %v5442 = vunpack.c.l.b16 %v5305
        %v5443 = vunpack.c.l.b16 %v5306
        %v5444 = vunpack.c.h.b16 %v5306
        %v5445 = vunpack.c.l.b16 %v5307
        %v5446 = vunpack.c.l.b16 %v5308
        %v5447 = vunpack.c.h.b16 %v5308
        %v5448 = vunpack.c.l.b16 %v5309
        %v5449 = vunpack.c.l.b16 %v5310
        %v5450 = vunpack.c.h.b16 %v5310
        %v5451 = vunpack.c.l.b16 %v5311
        %v5452 = vunpack.c.l.b16 %v5312
        %v5453 = vunpack.c.h.b16 %v5312
        %v5454 = vunpack.c.l.b16 %v5313
        %v5455 = vunpack.c.l.b16 %v5314
        %v5456 = vunpack.c.h.b16 %v5314
        %v5457 = vunpack.c.l.b16 %v5315
        %v5458 = vunpack.c.l.b16 %v5316
        %v5459 = vunpack.c.h.b16 %v5316
        %v5460 = vunpack.c.l.b16 %v5317
        %v5461 = vunpack.c.l.b16 %v5318
        %v5462 = vunpack.c.h.b16 %v5318
        %v5463 = vunpack.c.l.b16 %v5319
        %v5464 = vunpack.c.l.b16 %v5320
        %v5465 = vunpack.c.h.b16 %v5320
        %v5466 = vunpack.c.l.b16 %v5321
        %v5467 = vunpack.c.l.b16 %v5322
        %v5468 = vunpack.c.h.b16 %v5322
        %v5469 = vunpack.c.l.b16 %v5323
        %v5470 = vunpack.c.l.b16 %v5324
        %v5471 = vunpack.c.h.b16 %v5324
        %v5472 = vunpack.c.l.b16 %v5325
        %v5473 = vunpack.c.l.b16 %v5326
        %v5474 = vunpack.c.h.b16 %v5326
        %v5475 = vunpack.c.l.b16 %v5327
        %v5476 = vunpack.c.l.b16 %v5328
        %v5477 = vunpack.c.h.b16 %v5328
        %v5478 = vunpack.c.l.b16 %v5329
        %v5479 = vunpack.c.l.b16 %v5330
        %v5480 = vunpack.c.h.b16 %v5330
        %v5481 = vunpack.c.l.b16 %v5331
        %v5482 = vunpack.c.l.b16 %v5332
        %v5483 = vunpack.c.h.b16 %v5332
        %v5484 = vunpack.c.l.b16 %v5333
        %v5485 = vunpack.c.l.b16 %v5334
        %v5486 = vunpack.c.h.b16 %v5334
        %v5487 = vunpack.c.l.b16 %v5335
        %v5488 = vunpack.c.l.b16 %v5336
        %v5489 = vunpack.c.h.b16 %v5336
        %v5490 = vunpack.c.l.b16 %v5337
        %v5491 = vunpack.c.l.b16 %v5338
        %v5492 = vunpack.c.h.b16 %v5338
        %v5493 = vunpack.c.l.b16 %v5339
        %v5494 = vunpack.c.l.b16 %v5340
        %v5495 = vunpack.c.h.b16 %v5340
        %v5496 = vunpack.c.l.b16 %v5341
        %v5497 = vunpack.c.l.b16 %v5342
        %v5498 = vunpack.c.h.b16 %v5342
        %v5499 = vunpack.c.l.b16 %v5343
        %v5500 = vunpack.c.l.b16 %v5344
        %v5501 = vunpack.c.h.b16 %v5344
        %v5502 = vunpack.c.l.b16 %v5345
        %v5503 = vunpack.c.l.b16 %v5346
        %v5504 = vunpack.c.h.b16 %v5346
        %v5505 = vunpack.c.l.b16 %v5347
        %v5506 = vunpack.c.l.b16 %v5348
        %v5507 = vunpack.c.h.b16 %v5348
        %v5508 = vunpack.c.l.b16 %v5349
        %v5509 = vunpack.c.l.b16 %v5350
        %v5510 = vunpack.c.h.b16 %v5350
        %v5511 = vunpack.c.l.b16 %v5351
        %v5512 = vpack.c.b16 %v5419, %v5416
        %v5513 = vpack.c.b16 %v5420, %v5417
        %v5514 = vpack.c.b16 %v5421, %v5418
        %v5515 = vpack.c.b16 %v5425, %v5422
        %v5516 = vpack.c.b16 %v5426, %v5423
        %v5517 = vpack.c.b16 %v5427, %v5424
        %v5518 = vpack.c.b16 %v5431, %v5428
        %v5519 = vpack.c.b16 %v5432, %v5429
        %v5520 = vpack.c.b16 %v5433, %v5430
        %v5521 = vpack.c.b16 %v5437, %v5434
        %v5522 = vpack.c.b16 %v5438, %v5435
        %v5523 = vpack.c.b16 %v5439, %v5436
        %v5524 = vpack.c.b16 %v5443, %v5440
        %v5525 = vpack.c.b16 %v5444, %v5441
        %v5526 = vpack.c.b16 %v5445, %v5442
        %v5527 = vpack.c.b16 %v5449, %v5446
        %v5528 = vpack.c.b16 %v5450, %v5447
        %v5529 = vpack.c.b16 %v5451, %v5448
        %v5530 = vpack.c.b16 %v5455, %v5452
        %v5531 = vpack.c.b16 %v5456, %v5453
        %v5532 = vpack.c.b16 %v5457, %v5454
        %v5533 = vpack.c.b16 %v5461, %v5458
        %v5534 = vpack.c.b16 %v5462, %v5459
        %v5535 = vpack.c.b16 %v5463, %v5460
        %v5536 = vpack.c.b16 %v5467, %v5464
        %v5537 = vpack.c.b16 %v5468, %v5465
        %v5538 = vpack.c.b16 %v5469, %v5466
        %v5539 = vpack.c.b16 %v5473, %v5470
        %v5540 = vpack.c.b16 %v5474, %v5471
        %v5541 = vpack.c.b16 %v5475, %v5472
        %v5542 = vpack.c.b16 %v5479, %v5476
        %v5543 = vpack.c.b16 %v5480, %v5477
        %v5544 = vpack.c.b16 %v5481, %v5478
        %v5545 = vpack.c.b16 %v5485, %v5482
        %v5546 = vpack.c.b16 %v5486, %v5483
        %v5547 = vpack.c.b16 %v5487, %v5484
        %v5548 = vpack.c.b16 %v5491, %v5488
        %v5549 = vpack.c.b16 %v5492, %v5489
        %v5550 = vpack.c.b16 %v5493, %v5490
        %v5551 = vpack.c.b16 %v5497, %v5494
        %v5552 = vpack.c.b16 %v5498, %v5495
        %v5553 = vpack.c.b16 %v5499, %v5496
        %v5554 = vpack.c.b16 %v5503, %v5500
        %v5555 = vpack.c.b16 %v5504, %v5501
        %v5556 = vpack.c.b16 %v5505, %v5502
        %v5557 = vpack.c.b16 %v5509, %v5506
        %v5558 = vpack.c.b16 %v5510, %v5507
        %v5559 = vpack.c.b16 %v5511, %v5508
        %5608 = vmatprep.subr.bf16.mxu0 %v5534
        %5609 = vmatpush1.bf16.msra.mxu0 %v5533
        %5610 = vmatprep.subr.bf16.mxu0 %v5531
        %5611 = vmatpush1.bf16.msra.mxu0 %v5530
        %5612 = vmatprep.subr.bf16.mxu0 %v5528
        %5613 = vmatpush1.bf16.msra.mxu0 %v5527
        %5614 = vmatprep.subr.bf16.mxu0 %v5525
        %5615 = vmatpush1.bf16.msra.mxu0 %v5524
        %5616 = vmatprep.subr.bf16.mxu0 %v5522
        %5617 = vmatpush1.bf16.msra.mxu0 %v5521
        %5618 = vmatprep.subr.bf16.mxu0 %v5519
        %5619 = vmatpush1.bf16.msra.mxu0 %v5518
        %5620 = vmatprep.subr.bf16.mxu0 %v5516
        %5621 = vmatpush1.bf16.msra.mxu0 %v5515
        %5622 = vmatprep.subr.bf16.mxu0 %v5513
        %5623 = vmatpush1.bf16.msra.mxu0 %v5512
        %5624 = vmatprep.subr.bf16.mxu0 %v5558
        %5625 = vmatpush2.bf16.msra.mxu0 %v5557
        %5626 = vmatprep.subr.bf16.mxu0 %v5555
        %5627 = vmatpush2.bf16.msra.mxu0 %v5554
        %5628 = vmatprep.subr.bf16.mxu0 %v5552
        %5629 = vmatpush2.bf16.msra.mxu0 %v5551
        %5630 = vmatprep.subr.bf16.mxu0 %v5549
        %5631 = vmatpush2.bf16.msra.mxu0 %v5548
        %5632 = vmatprep.subr.bf16.mxu0 %v5546
        %5633 = vmatpush2.bf16.msra.mxu0 %v5545
        %5634 = vmatprep.subr.bf16.mxu0 %v5543
        %5635 = vmatpush2.bf16.msra.mxu0 %v5542
        %5636 = vmatprep.subr.bf16.mxu0 %v5540
        %5637 = vmatpush2.bf16.msra.mxu0 %v5539
        %5638 = vmatprep.subr.bf16.mxu0 %v5537
        %5639 = vmatpush2.bf16.msra.mxu0 %v5536
        %5640 = vmatprep.mubr.bf16.mxu0 %v5285
        %5641 = vmatmul.mubr.bf16.gmra.mxu0 %v5284
        %v5642 = vpop.f32.mrf.mxu0
        %v5643 = vadd.f32 0.0, %v5642
        %v5644 = vpop.f32.mrf.mxu0
        %v5645 = vadd.f32 0.0, %v5644
        %v5646 = vpop.f32.mrf.mxu0
        %v5647 = vadd.f32 0.0, %v5646
        %v5648 = vpop.f32.mrf.mxu0
        %v5649 = vadd.f32 0.0, %v5648
        %5650 = vmatprep.mubr.bf16.mxu0 %v5287
        %5651 = vmatmul.mubr.bf16.gmra.mxu0 %v5286
        %v5652 = vpop.f32.mrf.mxu0
        %v5653 = vadd.f32 0.0, %v5652
        %v5654 = vpop.f32.mrf.mxu0
        %v5655 = vadd.f32 0.0, %v5654
        %v5656 = vpop.f32.mrf.mxu0
        %v5657 = vpop.f32.mrf.mxu0
        %5658 = vdwg.mxu0
        %5659 = vmatprep.subr.bf16.mxu0 0
        %5660 = vmatpush1.bf16.msra.mxu0 %v5535
        %5661 = vmatprep.subr.bf16.mxu0 0
        %5662 = vmatpush1.bf16.msra.mxu0 %v5532
        %5663 = vmatprep.subr.bf16.mxu0 0
        %5664 = vmatpush1.bf16.msra.mxu0 %v5529
        %5665 = vmatprep.subr.bf16.mxu0 0
        %5666 = vmatpush1.bf16.msra.mxu0 %v5526
        %5667 = vmatprep.subr.bf16.mxu0 0
        %5668 = vmatpush1.bf16.msra.mxu0 %v5523
        %5669 = vmatprep.subr.bf16.mxu0 0
        %5670 = vmatpush1.bf16.msra.mxu0 %v5520
        %5671 = vmatprep.subr.bf16.mxu0 0
        %5672 = vmatpush1.bf16.msra.mxu0 %v5517
        %5673 = vmatprep.subr.bf16.mxu0 0
        %5674 = vmatpush1.bf16.msra.mxu0 %v5514
        %5675 = vmatprep.subr.bf16.mxu0 0
        %5676 = vmatpush2.bf16.msra.mxu0 %v5559
        %5677 = vmatprep.subr.bf16.mxu0 0
        %5678 = vmatpush2.bf16.msra.mxu0 %v5556
        %5679 = vmatprep.subr.bf16.mxu0 0
        %5680 = vmatpush2.bf16.msra.mxu0 %v5553
        %5681 = vmatprep.subr.bf16.mxu0 0
        %5682 = vmatpush2.bf16.msra.mxu0 %v5550
        %5683 = vmatprep.subr.bf16.mxu0 0
        %5684 = vmatpush2.bf16.msra.mxu0 %v5547
        %5685 = vmatprep.subr.bf16.mxu0 0
        %5686 = vmatpush2.bf16.msra.mxu0 %v5544
        %5687 = vmatprep.subr.bf16.mxu0 0
        %5688 = vmatpush2.bf16.msra.mxu0 %v5541
        %5689 = vmatprep.subr.bf16.mxu0 0
        %5690 = vmatpush2.bf16.msra.mxu0 %v5538
        %5691 = vmatprep.mubr.bf16.mxu0 %v5285
        %5692 = vmatmul.mubr.bf16.gmra.mxu0 %v5284
        %v5693 = vpop.f32.mrf.mxu0
        %v5694 = vadd.f32 0.0, %v5693
        %v5695 = vpop.f32.mrf.mxu0
        %v5696 = vpop.f32.mrf.mxu0
        %v5697 = vadd.f32 0.0, %v5696
        %v5698 = vpop.f32.mrf.mxu0
        %5699 = vmatprep.mubr.bf16.mxu0 %v5287
        %5700 = vmatmul.mubr.bf16.gmra.mxu0 %v5286
        %v5701 = vpop.f32.mrf.mxu0
        %v5702 = vadd.f32 0.0, %v5701
        %v5703 = vpop.f32.mrf.mxu0
        %v5704 = vpop.f32.mrf.mxu0
        %v5705 = vpop.f32.mrf.mxu0
        %5706 = vdwg.mxu0
        %5713 = vrot.lane.b32.xlu0 %v5645, 64
        %v5714 = vpop.permute.xlu0 %5713
        %5715 = vrot.lane.b32.xlu0 %v5694, 64
        %v5716 = vpop.permute.xlu0 %5715
        %5717 = vrot.lane.b32.xlu0 %v5649, 64
        %v5718 = vpop.permute.xlu0 %5717
        %5719 = vrot.lane.b32.xlu0 %v5697, 64
        %v5720 = vpop.permute.xlu0 %5719
        %5721 = vrot.lane.b32.xlu0 %v5655, 64
        %v5722 = vpop.permute.xlu0 %5721
        %5723 = vrot.lane.b32.xlu0 %v5702, 64
        %v5724 = vpop.permute.xlu0 %5723
        %vm5725 = vcmask 523264
        %v5726 = vsel %vm5725, %v5714, %v5716
        %v5727 = vsel %vm5725, %v5718, %v5720
        %v5728 = vsel %vm5725, %v5722, %v5724
        %v5735 = vmax.f32 %v5643, %v5726
        %v5736 = vmax.f32 %v5645, %v5716
        %v5737 = vmax.f32 %v5647, %v5727
        %v5738 = vmax.f32 %v5649, %v5720
        %v5739 = vmax.f32 %v5653, %v5728
        %v5740 = vmax.f32 %v5655, %v5724
        %v5741 = vpack.c.bf16 %v5737, %v5735
        %v5742 = vpack.c.bf16 %v5738, %v5736
        %v5743 = vpack.c.bf16 %v5739, %v5739
        %v5744 = vpack.c.bf16 %v5740, %v5740
        %v5749 = vunpack.c.l.b16 %v5741
        %v5750 = vunpack.c.l.b16 %v5742
        %v5751 = vunpack.c.h.b16 %v5741
        %v5752 = vunpack.c.h.b16 %v5742
        %v5753 = vunpack.c.l.b16 %v5743
        %v5754 = vunpack.c.l.b16 %v5744
        %v5755 = vpack.c.b16 %v5750, %v5749
        %v5756 = vpack.c.b16 %v5752, %v5751
        %v5757 = vpack.c.b16 %v5754, %v5753
        %vm5761 = vcmask 523268
        %vm5762 = vmor %vm5761, %vm4422
        %5763 = vst.msk [vmem:[#allocation5] sm:$0xff] %vm5762, %v5755
        %5764 = vst.msk [vmem:[#allocation5 + $0x8] sm:$0xff] %vm5762, %v5756
        %5765 = vst.msk [vmem:[#allocation5 + $0x10] sm:$0xff] %vm5762, %v5757
        %v5766 = vld [vmem:[#allocation5] sm:$0xff]
        %v5767 = vld [vmem:[#allocation5 + $0x8] sm:$0xff]
        %v5768 = vld [vmem:[#allocation5 + $0x10] sm:$0x33]
        %v5769 = vld [vmem:[#allocation11] sm:$0xf]
        %v5770 = vld [vmem:[#allocation11 + $0x4] sm:$0xf]
        %v5771 = vld [vmem:[#allocation11 + $0x8] sm:$0xf]
        %v5772 = vld [vmem:[#allocation11 + $0xc] sm:$0xf]
        %v5773 = vld [vmem:[#allocation11 + $0x10] sm:$0xf]
        %v5774 = vld [vmem:[#allocation11 + $0x14] sm:$0xf]
        %v5775 = vld [vmem:[#allocation11 + $0x18] sm:$0xf]
        %v5776 = vld [vmem:[#allocation11 + $0x1c] sm:$0xf]
        %v5777 = vld [vmem:[#allocation11 + $0x20] sm:$0xf]
        %v5778 = vld [vmem:[#allocation11 + $0x24] sm:$0xf]
        %v5779 = vld [vmem:[#allocation11 + $0x28] sm:$0xf]
        %v5780 = vld [vmem:[#allocation11 + $0x2c] sm:$0xf]
        %v5781 = vld [vmem:[#allocation11 + $0x30] sm:$0xf]
        %v5782 = vld [vmem:[#allocation11 + $0x34] sm:$0xf]
        %v5783 = vld [vmem:[#allocation11 + $0x38] sm:$0xf]
        %v5784 = vld [vmem:[#allocation11 + $0x3c] sm:$0xf]
        %v5785 = vld [vmem:[#allocation11 + $0x40] sm:$0xf]
        %v5786 = vld [vmem:[#allocation11 + $0x44] sm:$0xf]
        %v5787 = vld [vmem:[#allocation11 + $0x48] sm:$0xf]
        %v5788 = vld [vmem:[#allocation11 + $0x4c] sm:$0xf]
        %v5789 = vld [vmem:[#allocation11 + $0x50] sm:$0xf]
        %v5790 = vld [vmem:[#allocation11 + $0x54] sm:$0xf]
        %v5791 = vld [vmem:[#allocation11 + $0x58] sm:$0xf]
        %v5792 = vld [vmem:[#allocation11 + $0x5c] sm:$0xf]
        %v5793 = vld [vmem:[#allocation5] sm:$0xee]
        %v5794 = vld [vmem:[#allocation5 + $0x10] sm:$0x77]
        %s5795 = scalar_lea.vmem [#allocation11], 96
        %v5796 = vld [vmem:[%s5795] sm:$0xf]
        %v5797 = vld [vmem:[%s5795 + $0x4] sm:$0xf]
        %v5798 = vld [vmem:[%s5795 + $0x8] sm:$0xf]
        %v5799 = vld [vmem:[%s5795 + $0xc] sm:$0xf]
        %v5800 = vld [vmem:[%s5795 + $0x10] sm:$0xf]
        %v5801 = vld [vmem:[%s5795 + $0x14] sm:$0xf]
        %v5802 = vld [vmem:[%s5795 + $0x18] sm:$0xf]
        %v5803 = vld [vmem:[%s5795 + $0x1c] sm:$0xf]
        %v5804 = vld [vmem:[%s5795 + $0x20] sm:$0xf]
        %v5805 = vld [vmem:[%s5795 + $0x24] sm:$0xf]
        %v5806 = vld [vmem:[%s5795 + $0x28] sm:$0xf]
        %v5807 = vld [vmem:[%s5795 + $0x2c] sm:$0xf]
        %v5808 = vld [vmem:[%s5795 + $0x30] sm:$0xf]
        %v5809 = vld [vmem:[%s5795 + $0x34] sm:$0xf]
        %v5810 = vld [vmem:[%s5795 + $0x38] sm:$0xf]
        %v5811 = vld [vmem:[%s5795 + $0x3c] sm:$0xf]
        %v5812 = vld [vmem:[%s5795 + $0x40] sm:$0xf]
        %v5813 = vld [vmem:[%s5795 + $0x44] sm:$0xf]
        %v5814 = vld [vmem:[%s5795 + $0x48] sm:$0xf]
        %v5815 = vld [vmem:[%s5795 + $0x4c] sm:$0xf]
        %v5816 = vld [vmem:[%s5795 + $0x50] sm:$0xf]
        %v5817 = vld [vmem:[%s5795 + $0x54] sm:$0xf]
        %v5818 = vld [vmem:[%s5795 + $0x58] sm:$0xf]
        %v5819 = vld [vmem:[%s5795 + $0x5c] sm:$0xf]
        %v5823 = vunpack.c.l.b16 %v5793
        %v5824 = vunpack.c.h.b16 %v5793
        %v5825 = vunpack.c.l.b16 %v5767
        %v5826 = vunpack.c.h.b16 %v5767
        %v5827 = vunpack.c.l.b16 %v5794
        %v5828 = vunpack.c.h.b16 %v5794
        %v5829 = vpack.c.b16 %v5825, %v5823
        %v5830 = vpack.c.b16 %v5826, %v5824
        %v5831 = vpack.c.b16 %v5827, %v5827
        %v5832 = vpack.c.b16 %v5828, %v5828
        %v5833 = vrot.slane %v5829, 1
        %v5834 = vrot.slane %v5831, 1
        %v5835 = vsel %vm1087, %v5833, %v5834
        %v5836 = vrot.slane %v5830, 1
        %v5837 = vrot.slane %v5832, 1
        %v5838 = vsel %vm1087, %v5836, %v5837
        %v5865 = vunpack.c.l.b16 %v5796
        %v5866 = vunpack.c.l.b16 %v5797
        %v5867 = vunpack.c.l.b16 %v5798
        %v5868 = vunpack.c.l.b16 %v5799
        %v5869 = vunpack.c.l.b16 %v5800
        %v5870 = vunpack.c.l.b16 %v5801
        %v5871 = vunpack.c.l.b16 %v5802
        %v5872 = vunpack.c.l.b16 %v5803
        %v5873 = vunpack.c.l.b16 %v5804
        %v5874 = vunpack.c.l.b16 %v5805
        %v5875 = vunpack.c.l.b16 %v5806
        %v5876 = vunpack.c.l.b16 %v5807
        %v5877 = vunpack.c.l.b16 %v5808
        %v5878 = vunpack.c.l.b16 %v5809
        %v5879 = vunpack.c.l.b16 %v5810
        %v5880 = vunpack.c.l.b16 %v5811
        %v5881 = vunpack.c.l.b16 %v5812
        %v5882 = vunpack.c.l.b16 %v5813
        %v5883 = vunpack.c.l.b16 %v5814
        %v5884 = vunpack.c.l.b16 %v5815
        %v5885 = vunpack.c.l.b16 %v5816
        %v5886 = vunpack.c.l.b16 %v5817
        %v5887 = vunpack.c.l.b16 %v5818
        %v5888 = vunpack.c.l.b16 %v5819
        %v5889 = vpack.c.b16 %v5866, %v5865
        %v5890 = vpack.c.b16 %v5868, %v5867
        %v5891 = vpack.c.b16 %v5870, %v5869
        %v5892 = vpack.c.b16 %v5872, %v5871
        %v5893 = vpack.c.b16 %v5874, %v5873
        %v5894 = vpack.c.b16 %v5876, %v5875
        %v5895 = vpack.c.b16 %v5878, %v5877
        %v5896 = vpack.c.b16 %v5880, %v5879
        %v5897 = vpack.c.b16 %v5882, %v5881
        %v5898 = vpack.c.b16 %v5884, %v5883
        %v5899 = vpack.c.b16 %v5886, %v5885
        %v5900 = vpack.c.b16 %v5888, %v5887
        %v5914 = vsel %vm5725, %v5838, 0
        %v5917 = vsel %vm5725, %v5837, 0
        %5919 = vmatprep.subr.bf16.mxu0 0
        %5920 = vmatpush1.bf16.msra.mxu0 %v5896
        %5921 = vmatprep.subr.bf16.mxu0 0
        %5922 = vmatpush1.bf16.msra.mxu0 %v5895
        %5923 = vmatprep.subr.bf16.mxu0 0
        %5924 = vmatpush1.bf16.msra.mxu0 %v5894
        %5925 = vmatprep.subr.bf16.mxu0 0
        %5926 = vmatpush1.bf16.msra.mxu0 %v5893
        %5927 = vmatprep.subr.bf16.mxu0 0
        %5928 = vmatpush1.bf16.msra.mxu0 %v5892
        %5929 = vmatprep.subr.bf16.mxu0 0
        %5930 = vmatpush1.bf16.msra.mxu0 %v5891
        %5931 = vmatprep.subr.bf16.mxu0 0
        %5932 = vmatpush1.bf16.msra.mxu0 %v5890
        %5933 = vmatprep.subr.bf16.mxu0 0
        %5934 = vmatpush1.bf16.msra.mxu0 %v5889
        %5935 = vmatprep.subr.bf16.mxu0 0
        %5936 = vmatpush2.bf16.msra.mxu0 0
        %5937 = vmatprep.subr.bf16.mxu0 0
        %5938 = vmatpush2.bf16.msra.mxu0 0
        %5939 = vmatprep.subr.bf16.mxu0 0
        %5940 = vmatpush2.bf16.msra.mxu0 0
        %5941 = vmatprep.subr.bf16.mxu0 0
        %5942 = vmatpush2.bf16.msra.mxu0 0
        %5943 = vmatprep.subr.bf16.mxu0 0
        %5944 = vmatpush2.bf16.msra.mxu0 %v5900
        %5945 = vmatprep.subr.bf16.mxu0 0
        %5946 = vmatpush2.bf16.msra.mxu0 %v5899
        %5947 = vmatprep.subr.bf16.mxu0 0
        %5948 = vmatpush2.bf16.msra.mxu0 %v5898
        %5949 = vmatprep.subr.bf16.mxu0 0
        %5950 = vmatpush2.bf16.msra.mxu0 %v5897
        %5951 = vmatprep.mubr.bf16.mxu0 %v5914
        %5952 = vmatmul.mubr.bf16.gmra.mxu0 %v5835
        %v5953 = vpop.f32.mrf.mxu0
        %v5954 = vadd.f32 0.0, %v5953
        %v5955 = vpop.f32.mrf.mxu0
        %v5956 = vpop.f32.mrf.mxu0
        %v5957 = vadd.f32 0.0, %v5956
        %v5958 = vpop.f32.mrf.mxu0
        %5959 = vmatprep.mubr.bf16.mxu0 %v5917
        %5960 = vmatmul.mubr.bf16.gmra.mxu0 %v5834
        %v5961 = vpop.f32.mrf.mxu0
        %v5962 = vadd.f32 0.0, %v5961
        %v5963 = vpop.f32.mrf.mxu0
        %v5964 = vpop.f32.mrf.mxu0
        %v5965 = vpop.f32.mrf.mxu0
        %5966 = vdwg.mxu0
        %v5969 = vunpack.c.l.b16 %v5766
        %v5970 = vunpack.c.h.b16 %v5766
        %v5971 = vunpack.c.l.b16 %v5768
        %v5972 = vunpack.c.h.b16 %v5768
        %v5973 = vpack.c.b16 %v5825, %v5969
        %v5974 = vpack.c.b16 %v5826, %v5970
        %v5975 = vpack.c.b16 %v5971, %v5971
        %v5976 = vpack.c.b16 %v5972, %v5972
        %v6003 = vunpack.c.l.b16 %v5769
        %v6004 = vunpack.c.l.b16 %v5770
        %v6005 = vunpack.c.l.b16 %v5771
        %v6006 = vunpack.c.l.b16 %v5772
        %v6007 = vunpack.c.l.b16 %v5773
        %v6008 = vunpack.c.l.b16 %v5774
        %v6009 = vunpack.c.l.b16 %v5775
        %v6010 = vunpack.c.l.b16 %v5776
        %v6011 = vunpack.c.l.b16 %v5777
        %v6012 = vunpack.c.l.b16 %v5778
        %v6013 = vunpack.c.l.b16 %v5779
        %v6014 = vunpack.c.l.b16 %v5780
        %v6015 = vunpack.c.l.b16 %v5781
        %v6016 = vunpack.c.l.b16 %v5782
        %v6017 = vunpack.c.l.b16 %v5783
        %v6018 = vunpack.c.l.b16 %v5784
        %v6019 = vunpack.c.l.b16 %v5785
        %v6020 = vunpack.c.l.b16 %v5786
        %v6021 = vunpack.c.l.b16 %v5787
        %v6022 = vunpack.c.l.b16 %v5788
        %v6023 = vunpack.c.l.b16 %v5789
        %v6024 = vunpack.c.l.b16 %v5790
        %v6025 = vunpack.c.l.b16 %v5791
        %v6026 = vunpack.c.l.b16 %v5792
        %v6027 = vpack.c.b16 %v6004, %v6003
        %v6028 = vpack.c.b16 %v6006, %v6005
        %v6029 = vpack.c.b16 %v6008, %v6007
        %v6030 = vpack.c.b16 %v6010, %v6009
        %v6031 = vpack.c.b16 %v6012, %v6011
        %v6032 = vpack.c.b16 %v6014, %v6013
        %v6033 = vpack.c.b16 %v6016, %v6015
        %v6034 = vpack.c.b16 %v6018, %v6017
        %v6035 = vpack.c.b16 %v6020, %v6019
        %v6036 = vpack.c.b16 %v6022, %v6021
        %v6037 = vpack.c.b16 %v6024, %v6023
        %v6038 = vpack.c.b16 %v6026, %v6025
        %v6052 = vsel %vm5725, %v5974, 0
        %v6055 = vsel %vm5725, %v5976, 0
        %6057 = vmatprep.subr.bf16.mxu0 0
        %6058 = vmatpush1.bf16.msra.mxu0 %v6034
        %6059 = vmatprep.subr.bf16.mxu0 0
        %6060 = vmatpush1.bf16.msra.mxu0 %v6033
        %6061 = vmatprep.subr.bf16.mxu0 0
        %6062 = vmatpush1.bf16.msra.mxu0 %v6032
        %6063 = vmatprep.subr.bf16.mxu0 0
        %6064 = vmatpush1.bf16.msra.mxu0 %v6031
        %6065 = vmatprep.subr.bf16.mxu0 0
        %6066 = vmatpush1.bf16.msra.mxu0 %v6030
        %6067 = vmatprep.subr.bf16.mxu0 0
        %6068 = vmatpush1.bf16.msra.mxu0 %v6029
        %6069 = vmatprep.subr.bf16.mxu0 0
        %6070 = vmatpush1.bf16.msra.mxu0 %v6028
        %6071 = vmatprep.subr.bf16.mxu0 0
        %6072 = vmatpush1.bf16.msra.mxu0 %v6027
        %6073 = vmatprep.subr.bf16.mxu0 0
        %6074 = vmatpush2.bf16.msra.mxu0 0
        %6075 = vmatprep.subr.bf16.mxu0 0
        %6076 = vmatpush2.bf16.msra.mxu0 0
        %6077 = vmatprep.subr.bf16.mxu0 0
        %6078 = vmatpush2.bf16.msra.mxu0 0
        %6079 = vmatprep.subr.bf16.mxu0 0
        %6080 = vmatpush2.bf16.msra.mxu0 0
        %6081 = vmatprep.subr.bf16.mxu0 0
        %6082 = vmatpush2.bf16.msra.mxu0 %v6038
        %6083 = vmatprep.subr.bf16.mxu0 0
        %6084 = vmatpush2.bf16.msra.mxu0 %v6037
        %6085 = vmatprep.subr.bf16.mxu0 0
        %6086 = vmatpush2.bf16.msra.mxu0 %v6036
        %6087 = vmatprep.subr.bf16.mxu0 0
        %6088 = vmatpush2.bf16.msra.mxu0 %v6035
        %6089 = vmatprep.mubr.bf16.mxu0 %v6052
        %6090 = vmatmul.mubr.bf16.gmra.mxu0 %v5973
        %v6091 = vpop.f32.mrf.mxu0
        %v6092 = vadd.f32 %v5954, %v6091
        %v6093 = vpop.f32.mrf.mxu0
        %v6094 = vpop.f32.mrf.mxu0
        %v6095 = vadd.f32 %v5957, %v6094
        %v6096 = vpop.f32.mrf.mxu0
        %6097 = vmatprep.mubr.bf16.mxu0 %v6055
        %6098 = vmatmul.mubr.bf16.gmra.mxu0 %v5975
        %v6099 = vpop.f32.mrf.mxu0
        %v6100 = vadd.f32 %v5962, %v6099
        %v6101 = vpop.f32.mrf.mxu0
        %v6102 = vpop.f32.mrf.mxu0
        %v6103 = vpop.f32.mrf.mxu0
        %6104 = vdwg.mxu0
        %v6105 = vld [vmem:[#allocation5] sm:$0xcc]
        %v6106 = vld [vmem:[#allocation5 + $0x10] sm:$0xff]
        %s6107 = scalar_lea.vmem [#allocation11], 192
        %v6108 = vld [vmem:[%s6107] sm:$0xf]
        %v6109 = vld [vmem:[%s6107 + $0x4] sm:$0xf]
        %v6110 = vld [vmem:[%s6107 + $0x8] sm:$0xf]
        %v6111 = vld [vmem:[%s6107 + $0xc] sm:$0xf]
        %v6112 = vld [vmem:[%s6107 + $0x10] sm:$0xf]
        %v6113 = vld [vmem:[%s6107 + $0x14] sm:$0xf]
        %v6114 = vld [vmem:[%s6107 + $0x18] sm:$0xf]
        %v6115 = vld [vmem:[%s6107 + $0x1c] sm:$0xf]
        %v6116 = vld [vmem:[%s6107 + $0x20] sm:$0xf]
        %v6117 = vld [vmem:[%s6107 + $0x24] sm:$0xf]
        %v6118 = vld [vmem:[%s6107 + $0x28] sm:$0xf]
        %v6119 = vld [vmem:[%s6107 + $0x2c] sm:$0xf]
        %v6120 = vld [vmem:[%s6107 + $0x30] sm:$0xf]
        %v6121 = vld [vmem:[%s6107 + $0x34] sm:$0xf]
        %v6122 = vld [vmem:[%s6107 + $0x38] sm:$0xf]
        %v6123 = vld [vmem:[%s6107 + $0x3c] sm:$0xf]
        %v6124 = vld [vmem:[%s6107 + $0x40] sm:$0xf]
        %v6125 = vld [vmem:[%s6107 + $0x44] sm:$0xf]
        %v6126 = vld [vmem:[%s6107 + $0x48] sm:$0xf]
        %v6127 = vld [vmem:[%s6107 + $0x4c] sm:$0xf]
        %v6128 = vld [vmem:[%s6107 + $0x50] sm:$0xf]
        %v6129 = vld [vmem:[%s6107 + $0x54] sm:$0xf]
        %v6130 = vld [vmem:[%s6107 + $0x58] sm:$0xf]
        %v6131 = vld [vmem:[%s6107 + $0x5c] sm:$0xf]
        %v6134 = vunpack.c.l.b16 %v6105
        %v6135 = vunpack.c.h.b16 %v6105
        %v6136 = vunpack.c.l.b16 %v6106
        %v6137 = vunpack.c.h.b16 %v6106
        %v6138 = vpack.c.b16 %v5825, %v6134
        %v6139 = vpack.c.b16 %v5826, %v6135
        %v6140 = vpack.c.b16 %v6136, %v6136
        %v6141 = vpack.c.b16 %v6137, %v6137
        %v6142 = vrot.slane %v6138, 2
        %v6143 = vrot.slane %v6140, 2
        %v6144 = vsel %vm1558, %v6142, %v6143
        %v6145 = vrot.slane %v6139, 2
        %v6146 = vrot.slane %v6141, 2
        %v6147 = vsel %vm1558, %v6145, %v6146
        %v6174 = vunpack.c.l.b16 %v6108
        %v6175 = vunpack.c.l.b16 %v6109
        %v6176 = vunpack.c.l.b16 %v6110
        %v6177 = vunpack.c.l.b16 %v6111
        %v6178 = vunpack.c.l.b16 %v6112
        %v6179 = vunpack.c.l.b16 %v6113
        %v6180 = vunpack.c.l.b16 %v6114
        %v6181 = vunpack.c.l.b16 %v6115
        %v6182 = vunpack.c.l.b16 %v6116
        %v6183 = vunpack.c.l.b16 %v6117
        %v6184 = vunpack.c.l.b16 %v6118
        %v6185 = vunpack.c.l.b16 %v6119
        %v6186 = vunpack.c.l.b16 %v6120
        %v6187 = vunpack.c.l.b16 %v6121
        %v6188 = vunpack.c.l.b16 %v6122
        %v6189 = vunpack.c.l.b16 %v6123
        %v6190 = vunpack.c.l.b16 %v6124
        %v6191 = vunpack.c.l.b16 %v6125
        %v6192 = vunpack.c.l.b16 %v6126
        %v6193 = vunpack.c.l.b16 %v6127
        %v6194 = vunpack.c.l.b16 %v6128
        %v6195 = vunpack.c.l.b16 %v6129
        %v6196 = vunpack.c.l.b16 %v6130
        %v6197 = vunpack.c.l.b16 %v6131
        %v6198 = vpack.c.b16 %v6175, %v6174
        %v6199 = vpack.c.b16 %v6177, %v6176
        %v6200 = vpack.c.b16 %v6179, %v6178
        %v6201 = vpack.c.b16 %v6181, %v6180
        %v6202 = vpack.c.b16 %v6183, %v6182
        %v6203 = vpack.c.b16 %v6185, %v6184
        %v6204 = vpack.c.b16 %v6187, %v6186
        %v6205 = vpack.c.b16 %v6189, %v6188
        %v6206 = vpack.c.b16 %v6191, %v6190
        %v6207 = vpack.c.b16 %v6193, %v6192
        %v6208 = vpack.c.b16 %v6195, %v6194
        %v6209 = vpack.c.b16 %v6197, %v6196
        %v6223 = vsel %vm5725, %v6147, 0
        %v6226 = vsel %vm5725, %v6146, 0
        %6228 = vmatprep.subr.bf16.mxu0 0
        %6229 = vmatpush1.bf16.msra.mxu0 %v6205
        %6230 = vmatprep.subr.bf16.mxu0 0
        %6231 = vmatpush1.bf16.msra.mxu0 %v6204
        %6232 = vmatprep.subr.bf16.mxu0 0
        %6233 = vmatpush1.bf16.msra.mxu0 %v6203
        %6234 = vmatprep.subr.bf16.mxu0 0
        %6235 = vmatpush1.bf16.msra.mxu0 %v6202
        %6236 = vmatprep.subr.bf16.mxu0 0
        %6237 = vmatpush1.bf16.msra.mxu0 %v6201
        %6238 = vmatprep.subr.bf16.mxu0 0
        %6239 = vmatpush1.bf16.msra.mxu0 %v6200
        %6240 = vmatprep.subr.bf16.mxu0 0
        %6241 = vmatpush1.bf16.msra.mxu0 %v6199
        %6242 = vmatprep.subr.bf16.mxu0 0
        %6243 = vmatpush1.bf16.msra.mxu0 %v6198
        %6244 = vmatprep.subr.bf16.mxu0 0
        %6245 = vmatpush2.bf16.msra.mxu0 0
        %6246 = vmatprep.subr.bf16.mxu0 0
        %6247 = vmatpush2.bf16.msra.mxu0 0
        %6248 = vmatprep.subr.bf16.mxu0 0
        %6249 = vmatpush2.bf16.msra.mxu0 0
        %6250 = vmatprep.subr.bf16.mxu0 0
        %6251 = vmatpush2.bf16.msra.mxu0 0
        %6252 = vmatprep.subr.bf16.mxu0 0
        %6253 = vmatpush2.bf16.msra.mxu0 %v6209
        %6254 = vmatprep.subr.bf16.mxu0 0
        %6255 = vmatpush2.bf16.msra.mxu0 %v6208
        %6256 = vmatprep.subr.bf16.mxu0 0
        %6257 = vmatpush2.bf16.msra.mxu0 %v6207
        %6258 = vmatprep.subr.bf16.mxu0 0
        %6259 = vmatpush2.bf16.msra.mxu0 %v6206
        %6260 = vmatprep.mubr.bf16.mxu0 %v6223
        %6261 = vmatmul.mubr.bf16.gmra.mxu0 %v6144
        %v6262 = vpop.f32.mrf.mxu0
        %v6263 = vadd.f32 0.0, %v6262
        %v6264 = vpop.f32.mrf.mxu0
        %v6265 = vpop.f32.mrf.mxu0
        %v6266 = vadd.f32 0.0, %v6265
        %v6267 = vpop.f32.mrf.mxu0
        %6268 = vmatprep.mubr.bf16.mxu0 %v6226
        %6269 = vmatmul.mubr.bf16.gmra.mxu0 %v6143
        %v6270 = vpop.f32.mrf.mxu0
        %v6271 = vadd.f32 0.0, %v6270
        %v6272 = vpop.f32.mrf.mxu0
        %v6273 = vpop.f32.mrf.mxu0
        %v6274 = vpop.f32.mrf.mxu0
        %6275 = vdwg.mxu0
        %v6276 = vadd.f32 %v6092, %v6263
        %v6277 = vadd.f32 %v6095, %v6266
        %v6278 = vadd.f32 %v6100, %v6271
        %v6279 = vld [vmem:[%s13] sm:$0x1]
        %v6281 = vlaneseq
        %v6282 = vshrl.u32 %v6281, 7
        %v6283 = vsub.s32 0, %v6282
        %v6284 = vrot.slane %v6279, %v6283
        %v6286 = vadd.f32 %v6276, %v6284
        %v6287 = vadd.f32 %v6277, %v6284
        %v6288 = vadd.f32 %v6278, %v6284
        %vm6289 = vcmp.gt.f32.partialorder %v6286, 0.0
        %vm6290 = vcmp.gt.f32.partialorder %v6287, 0.0
        %vm6291 = vcmp.gt.f32.partialorder %v6288, 0.0
        %v6292 = vmin.f32 %v6286, 0.0
        %v6293 = vmin.f32 %v6287, 0.0
        %v6294 = vmin.f32 %v6288, 0.0
        %v6295 = vmul.f32 %v6292, 1.442695
        %v6296 = vpow.pop %v6295
        %v6297 = vmul.f32 %v6293, 1.442695
        %v6298 = vpow.pop %v6297
        %v6299 = vmul.f32 %v6294, 1.442695
        %v6300 = vpow.pop %v6299
        %v6301 = vsub.f32 %v6296, 1.0
        %v6302 = vsub.f32 %v6298, 1.0
        %v6303 = vsub.f32 %v6300, 1.0
        %v6304 = vsel %vm6289, %v6286, %v6301
        %v6305 = vsel %vm6290, %v6287, %v6302
        %v6306 = vsel %vm6291, %v6288, %v6303
        %v6307 = vpack.c.bf16 %v6305, %v6304
        %v6308 = vpack.c.bf16 %v6306, %v6306
        %v6309 = vld [vmem:[%s14] sm:$0xf]
        %v6310 = vld [vmem:[%s14 + $0x4] sm:$0xf]
        %v6311 = vld [vmem:[%s14 + $0x8] sm:$0xf]
        %v6312 = vld [vmem:[%s14 + $0xc] sm:$0xf]
        %v6317 = vunpack.c.l.b16 %v6309
        %v6318 = vunpack.c.l.b16 %v6310
        %v6319 = vunpack.c.l.b16 %v6311
        %v6320 = vunpack.c.l.b16 %v6312
        %v6321 = vpack.c.b16 %v6318, %v6317
        %v6322 = vpack.c.b16 %v6320, %v6319
        %vm6323 = vcmask 162816
        %v6325 = vsel %vm6323, %v6321, 0
        %v6328 = vsel %vm6323, %v6322, 0
        %v6331 = vsel %vm1153, %v6308, 0
        %6333 = vmatprep.subr.bf16.mxu0 0
        %6334 = vmatpush1.bf16.msra.mxu0 0
        %6335 = vmatprep.subr.bf16.mxu0 0
        %6336 = vmatpush1.bf16.msra.mxu0 0
        %6337 = vmatprep.subr.bf16.mxu0 0
        %6338 = vmatpush1.bf16.msra.mxu0 0
        %6339 = vmatprep.subr.bf16.mxu0 0
        %6340 = vmatpush1.bf16.msra.mxu0 0
        %6341 = vmatprep.subr.bf16.mxu0 0
        %6342 = vmatpush1.bf16.msra.mxu0 0
        %6343 = vmatprep.subr.bf16.mxu0 0
        %6344 = vmatpush1.bf16.msra.mxu0 0
        %6345 = vmatprep.subr.bf16.mxu0 0
        %6346 = vmatpush1.bf16.msra.mxu0 %v6331
        %6347 = vmatprep.subr.bf16.mxu0 0
        %6348 = vmatpush1.bf16.msra.mxu0 %v6307
        %6349 = vmatprep.subr.bf16.mxu0 0
        %6350 = vmatpush2.bf16.msra.mxu0 0
        %6351 = vmatprep.subr.bf16.mxu0 0
        %6352 = vmatpush2.bf16.msra.mxu0 0
        %6353 = vmatprep.subr.bf16.mxu0 0
        %6354 = vmatpush2.bf16.msra.mxu0 0
        %6355 = vmatprep.subr.bf16.mxu0 0
        %6356 = vmatpush2.bf16.msra.mxu0 0
        %6357 = vmatprep.subr.bf16.mxu0 0
        %6358 = vmatpush2.bf16.msra.mxu0 0
        %6359 = vmatprep.subr.bf16.mxu0 0
        %6360 = vmatpush2.bf16.msra.mxu0 0
        %6361 = vmatprep.subr.bf16.mxu0 0
        %6362 = vmatpush2.bf16.msra.mxu0 0
        %6363 = vmatprep.subr.bf16.mxu0 0
        %6364 = vmatpush2.bf16.msra.mxu0 0
        %6365 = vmatprep.mubr.bf16.mxu0 0
        %6366 = vmatmul.mubr.bf16.gmra.mxu0 %v6325
        %v6367 = vpop.f32.mrf.mxu0
        %v6368 = vadd.f32 0.0, %v6367
        %v6369 = vpop.f32.mrf.mxu0
        %v6370 = vpop.f32.mrf.mxu0
        %v6371 = vadd.f32 0.0, %v6370
        %v6372 = vpop.f32.mrf.mxu0
        %6373 = vmatprep.mubr.bf16.mxu0 0
        %6374 = vmatmul.mubr.bf16.gmra.mxu0 %v6328
        %v6375 = vpop.f32.mrf.mxu0
        %v6376 = vadd.f32 0.0, %v6375
        %v6377 = vpop.f32.mrf.mxu0
        %v6378 = vpop.f32.mrf.mxu0
        %v6379 = vadd.f32 0.0, %v6378
        %v6380 = vpop.f32.mrf.mxu0
        %6381 = vdwg.mxu0
        %v6382 = vmax.f32 %v6368, %v6376
        %v6383 = vmax.f32 %v6371, %v6379
        %v6384 = vpack.c.bf16 %v6383, %v6382
        %v6385 = vld [vmem:[#allocation12] sm:$0xff]
        %v6386 = vld [vmem:[#allocation12 + $0x8] sm:$0xff]
        %v6387 = vld [vmem:[#allocation12 + $0x10] sm:$0xff]
        %v6388 = vld [vmem:[#allocation12 + $0x18] sm:$0xff]
        %v6389 = vld [vmem:[#allocation12 + $0x20] sm:$0xff]
        %v6390 = vld [vmem:[#allocation12 + $0x28] sm:$0xff]
        %v6391 = vld [vmem:[#allocation12 + $0x30] sm:$0xff]
        %v6392 = vld [vmem:[#allocation12 + $0x38] sm:$0xff]
        %v6393 = vld [vmem:[#allocation12 + $0x40] sm:$0xff]
        %v6394 = vld [vmem:[#allocation12 + $0x48] sm:$0xff]
        %v6395 = vld [vmem:[#allocation12 + $0x50] sm:$0xff]
        %v6396 = vld [vmem:[#allocation12 + $0x58] sm:$0xff]
        %v6397 = vld [vmem:[#allocation12 + $0x60] sm:$0xff]
        %v6398 = vld [vmem:[#allocation12 + $0x68] sm:$0xff]
        %v6399 = vld [vmem:[#allocation12 + $0x70] sm:$0xff]
        %v6400 = vld [vmem:[#allocation12 + $0x78] sm:$0xff]
        %v6417 = vunpack.c.l.b16 %v6385
        %v6418 = vunpack.c.h.b16 %v6385
        %v6419 = vunpack.c.l.b16 %v6386
        %v6420 = vunpack.c.h.b16 %v6386
        %v6421 = vunpack.c.l.b16 %v6387
        %v6422 = vunpack.c.h.b16 %v6387
        %v6423 = vunpack.c.l.b16 %v6388
        %v6424 = vunpack.c.h.b16 %v6388
        %v6425 = vunpack.c.l.b16 %v6389
        %v6426 = vunpack.c.h.b16 %v6389
        %v6427 = vunpack.c.l.b16 %v6390
        %v6428 = vunpack.c.h.b16 %v6390
        %v6429 = vunpack.c.l.b16 %v6391
        %v6430 = vunpack.c.h.b16 %v6391
        %v6431 = vunpack.c.l.b16 %v6392
        %v6432 = vunpack.c.h.b16 %v6392
        %v6433 = vunpack.c.l.b16 %v6393
        %v6434 = vunpack.c.h.b16 %v6393
        %v6435 = vunpack.c.l.b16 %v6394
        %v6436 = vunpack.c.h.b16 %v6394
        %v6437 = vunpack.c.l.b16 %v6395
        %v6438 = vunpack.c.h.b16 %v6395
        %v6439 = vunpack.c.l.b16 %v6396
        %v6440 = vunpack.c.h.b16 %v6396
        %v6441 = vunpack.c.l.b16 %v6397
        %v6442 = vunpack.c.h.b16 %v6397
        %v6443 = vunpack.c.l.b16 %v6398
        %v6444 = vunpack.c.h.b16 %v6398
        %v6445 = vunpack.c.l.b16 %v6399
        %v6446 = vunpack.c.h.b16 %v6399
        %v6447 = vunpack.c.l.b16 %v6400
        %v6448 = vunpack.c.h.b16 %v6400
        %v6449 = vpack.c.b16 %v6419, %v6417
        %v6450 = vpack.c.b16 %v6420, %v6418
        %v6451 = vpack.c.b16 %v6423, %v6421
        %v6452 = vpack.c.b16 %v6424, %v6422
        %v6453 = vpack.c.b16 %v6427, %v6425
        %v6454 = vpack.c.b16 %v6428, %v6426
        %v6455 = vpack.c.b16 %v6431, %v6429
        %v6456 = vpack.c.b16 %v6432, %v6430
        %v6457 = vpack.c.b16 %v6435, %v6433
        %v6458 = vpack.c.b16 %v6436, %v6434
        %v6459 = vpack.c.b16 %v6439, %v6437
        %v6460 = vpack.c.b16 %v6440, %v6438
        %v6461 = vpack.c.b16 %v6443, %v6441
        %v6462 = vpack.c.b16 %v6444, %v6442
        %v6463 = vpack.c.b16 %v6447, %v6445
        %v6464 = vpack.c.b16 %v6448, %v6446
        %6481 = vmatprep.subr.bf16.mxu0 %v6464
        %6482 = vmatpush1.bf16.msra.mxu0 %v6463
        %6483 = vmatprep.subr.bf16.mxu0 %v6462
        %6484 = vmatpush1.bf16.msra.mxu0 %v6461
        %6485 = vmatprep.subr.bf16.mxu0 %v6460
        %6486 = vmatpush1.bf16.msra.mxu0 %v6459
        %6487 = vmatprep.subr.bf16.mxu0 %v6458
        %6488 = vmatpush1.bf16.msra.mxu0 %v6457
        %6489 = vmatprep.subr.bf16.mxu0 %v6456
        %6490 = vmatpush1.bf16.msra.mxu0 %v6455
        %6491 = vmatprep.subr.bf16.mxu0 %v6454
        %6492 = vmatpush1.bf16.msra.mxu0 %v6453
        %6493 = vmatprep.subr.bf16.mxu0 %v6452
        %6494 = vmatpush1.bf16.msra.mxu0 %v6451
        %6495 = vmatprep.subr.bf16.mxu0 %v6450
        %6496 = vmatpush1.bf16.msra.mxu0 %v6449
        %6497 = vmatprep.subr.bf16.mxu0 0
        %6498 = vmatpush2.bf16.msra.mxu0 0
        %6499 = vmatprep.subr.bf16.mxu0 0
        %6500 = vmatpush2.bf16.msra.mxu0 0
        %6501 = vmatprep.subr.bf16.mxu0 0
        %6502 = vmatpush2.bf16.msra.mxu0 0
        %6503 = vmatprep.subr.bf16.mxu0 0
        %6504 = vmatpush2.bf16.msra.mxu0 0
        %6505 = vmatprep.subr.bf16.mxu0 0
        %6506 = vmatpush2.bf16.msra.mxu0 0
        %6507 = vmatprep.subr.bf16.mxu0 0
        %6508 = vmatpush2.bf16.msra.mxu0 0
        %6509 = vmatprep.subr.bf16.mxu0 0
        %6510 = vmatpush2.bf16.msra.mxu0 0
        %6511 = vmatprep.subr.bf16.mxu0 0
        %6512 = vmatpush2.bf16.msra.mxu0 0
        %6513 = vmatprep.mubr.bf16.mxu0 0
        %6514 = vmatmul.mubr.bf16.gmra.mxu0 %v6384
        %v6515 = vpop.f32.mrf.mxu0
        %v6516 = vadd.f32 0.0, %v6515
        %v6517 = vpop.f32.mrf.mxu0
        %v6518 = vadd.f32 0.0, %v6517
        %v6519 = vpop.f32.mrf.mxu0
        %v6520 = vadd.f32 0.0, %v6519
        %v6521 = vpop.f32.mrf.mxu0
        %v6522 = vadd.f32 0.0, %v6521
        %6523 = vdwg.mxu0
        %v6524 = vmax.f32 %v6516, %v6518
        %v6525 = vmax.f32 %v6520, %v6522
        %v6526 = vpack.c.bf16 %v6525, %v6524
        %v6528 = vunpack.c.l.b16 %v6526
        %v6529 = vunpack.c.h.b16 %v6526
        %v6530 = vpack.c.b16 %v6528, %v6528
        %v6531 = vpack.c.b16 %v6529, %v6529
        %6534 = vst [vmem:[#allocation6] sm:$0xf] %v6530
        %6535 = vst [vmem:[#allocation6 + $0x4] sm:$0xf] %v6531
        %v6536 = vld [vmem:[#allocation6] sm:$0xf]
        %v6537 = vld [vmem:[#allocation6 + $0x4] sm:$0x3]
        %v6538 = vld [vmem:[#allocation14] sm:$0xf]
        %v6539 = vld [vmem:[#allocation14 + $0x4] sm:$0xf]
        %v6540 = vld [vmem:[#allocation14 + $0x8] sm:$0xf]
        %v6541 = vld [vmem:[#allocation14 + $0xc] sm:$0xf]
        %v6542 = vld [vmem:[#allocation14 + $0x10] sm:$0xf]
        %v6543 = vld [vmem:[#allocation14 + $0x14] sm:$0xf]
        %v6544 = vld [vmem:[#allocation14 + $0x18] sm:$0xf]
        %v6545 = vld [vmem:[#allocation14 + $0x1c] sm:$0xf]
        %v6546 = vld [vmem:[#allocation14 + $0x20] sm:$0xf]
        %v6547 = vld [vmem:[#allocation14 + $0x24] sm:$0xf]
        %v6548 = vld [vmem:[#allocation14 + $0x28] sm:$0xf]
        %v6549 = vld [vmem:[#allocation14 + $0x2c] sm:$0xf]
        %v6550 = vld [vmem:[#allocation14 + $0x30] sm:$0xf]
        %v6551 = vld [vmem:[#allocation14 + $0x34] sm:$0xf]
        %v6552 = vld [vmem:[#allocation14 + $0x38] sm:$0xf]
        %v6553 = vld [vmem:[#allocation14 + $0x3c] sm:$0xf]
        %v6554 = vld [vmem:[#allocation6] sm:$0xe]
        %v6555 = vld [vmem:[#allocation6 + $0x4] sm:$0x7]
        %s6556 = scalar_lea.vmem [#allocation14], 64
        %v6557 = vld [vmem:[%s6556] sm:$0xf]
        %v6558 = vld [vmem:[%s6556 + $0x4] sm:$0xf]
        %v6559 = vld [vmem:[%s6556 + $0x8] sm:$0xf]
        %v6560 = vld [vmem:[%s6556 + $0xc] sm:$0xf]
        %v6561 = vld [vmem:[%s6556 + $0x10] sm:$0xf]
        %v6562 = vld [vmem:[%s6556 + $0x14] sm:$0xf]
        %v6563 = vld [vmem:[%s6556 + $0x18] sm:$0xf]
        %v6564 = vld [vmem:[%s6556 + $0x1c] sm:$0xf]
        %v6565 = vld [vmem:[%s6556 + $0x20] sm:$0xf]
        %v6566 = vld [vmem:[%s6556 + $0x24] sm:$0xf]
        %v6567 = vld [vmem:[%s6556 + $0x28] sm:$0xf]
        %v6568 = vld [vmem:[%s6556 + $0x2c] sm:$0xf]
        %v6569 = vld [vmem:[%s6556 + $0x30] sm:$0xf]
        %v6570 = vld [vmem:[%s6556 + $0x34] sm:$0xf]
        %v6571 = vld [vmem:[%s6556 + $0x38] sm:$0xf]
        %v6572 = vld [vmem:[%s6556 + $0x3c] sm:$0xf]
        %v6575 = vunpack.c.l.b16 %v6554
        %v6576 = vunpack.c.l.b16 %v6555
        %v6577 = vpack.c.b16 %v6576, %v6575
        %v6578 = vrot.slane %v6577, 1
        %v6596 = vunpack.c.l.b16 %v6557
        %v6597 = vunpack.c.l.b16 %v6558
        %v6598 = vunpack.c.l.b16 %v6559
        %v6599 = vunpack.c.l.b16 %v6560
        %v6600 = vunpack.c.l.b16 %v6561
        %v6601 = vunpack.c.l.b16 %v6562
        %v6602 = vunpack.c.l.b16 %v6563
        %v6603 = vunpack.c.l.b16 %v6564
        %v6604 = vunpack.c.l.b16 %v6565
        %v6605 = vunpack.c.l.b16 %v6566
        %v6606 = vunpack.c.l.b16 %v6567
        %v6607 = vunpack.c.l.b16 %v6568
        %v6608 = vunpack.c.l.b16 %v6569
        %v6609 = vunpack.c.l.b16 %v6570
        %v6610 = vunpack.c.l.b16 %v6571
        %v6611 = vunpack.c.l.b16 %v6572
        %v6612 = vpack.c.b16 %v6597, %v6596
        %v6613 = vpack.c.b16 %v6599, %v6598
        %v6614 = vpack.c.b16 %v6601, %v6600
        %v6615 = vpack.c.b16 %v6603, %v6602
        %v6616 = vpack.c.b16 %v6605, %v6604
        %v6617 = vpack.c.b16 %v6607, %v6606
        %v6618 = vpack.c.b16 %v6609, %v6608
        %v6619 = vpack.c.b16 %v6611, %v6610
        %6628 = vmatprep.subr.bf16.mxu0 0
        %6629 = vmatpush1.bf16.msra.mxu0 %v6619
        %6630 = vmatprep.subr.bf16.mxu0 0
        %6631 = vmatpush1.bf16.msra.mxu0 %v6618
        %6632 = vmatprep.subr.bf16.mxu0 0
        %6633 = vmatpush1.bf16.msra.mxu0 %v6617
        %6634 = vmatprep.subr.bf16.mxu0 0
        %6635 = vmatpush1.bf16.msra.mxu0 %v6616
        %6636 = vmatprep.subr.bf16.mxu0 0
        %6637 = vmatpush1.bf16.msra.mxu0 %v6615
        %6638 = vmatprep.subr.bf16.mxu0 0
        %6639 = vmatpush1.bf16.msra.mxu0 %v6614
        %6640 = vmatprep.subr.bf16.mxu0 0
        %6641 = vmatpush1.bf16.msra.mxu0 %v6613
        %6642 = vmatprep.subr.bf16.mxu0 0
        %6643 = vmatpush1.bf16.msra.mxu0 %v6612
        %6644 = vmatprep.subr.bf16.mxu0 0
        %6645 = vmatpush2.bf16.msra.mxu0 0
        %6646 = vmatprep.subr.bf16.mxu0 0
        %6647 = vmatpush2.bf16.msra.mxu0 0
        %6648 = vmatprep.subr.bf16.mxu0 0
        %6649 = vmatpush2.bf16.msra.mxu0 0
        %6650 = vmatprep.subr.bf16.mxu0 0
        %6651 = vmatpush2.bf16.msra.mxu0 0
        %6652 = vmatprep.subr.bf16.mxu0 0
        %6653 = vmatpush2.bf16.msra.mxu0 0
        %6654 = vmatprep.subr.bf16.mxu0 0
        %6655 = vmatpush2.bf16.msra.mxu0 0
        %6656 = vmatprep.subr.bf16.mxu0 0
        %6657 = vmatpush2.bf16.msra.mxu0 0
        %6658 = vmatprep.subr.bf16.mxu0 0
        %6659 = vmatpush2.bf16.msra.mxu0 0
        %6660 = vmatprep.mubr.bf16.mxu0 0
        %6661 = vmatmul.mubr.bf16.gmra.mxu0 %v6578
        %v6662 = vpop.f32.mrf.mxu0
        %v6663 = vadd.f32 0.0, %v6662
        %v6664 = vpop.f32.mrf.mxu0
        %v6665 = vpop.f32.mrf.mxu0
        %v6666 = vadd.f32 0.0, %v6665
        %v6667 = vpop.f32.mrf.mxu0
        %6668 = vdwg.mxu0
        %v6671 = vunpack.c.l.b16 %v6536
        %v6672 = vunpack.c.l.b16 %v6537
        %v6673 = vpack.c.b16 %v6672, %v6671
        %v6691 = vunpack.c.l.b16 %v6538
        %v6692 = vunpack.c.l.b16 %v6539
        %v6693 = vunpack.c.l.b16 %v6540
        %v6694 = vunpack.c.l.b16 %v6541
        %v6695 = vunpack.c.l.b16 %v6542
        %v6696 = vunpack.c.l.b16 %v6543
        %v6697 = vunpack.c.l.b16 %v6544
        %v6698 = vunpack.c.l.b16 %v6545
        %v6699 = vunpack.c.l.b16 %v6546
        %v6700 = vunpack.c.l.b16 %v6547
        %v6701 = vunpack.c.l.b16 %v6548
        %v6702 = vunpack.c.l.b16 %v6549
        %v6703 = vunpack.c.l.b16 %v6550
        %v6704 = vunpack.c.l.b16 %v6551
        %v6705 = vunpack.c.l.b16 %v6552
        %v6706 = vunpack.c.l.b16 %v6553
        %v6707 = vpack.c.b16 %v6692, %v6691
        %v6708 = vpack.c.b16 %v6694, %v6693
        %v6709 = vpack.c.b16 %v6696, %v6695
        %v6710 = vpack.c.b16 %v6698, %v6697
        %v6711 = vpack.c.b16 %v6700, %v6699
        %v6712 = vpack.c.b16 %v6702, %v6701
        %v6713 = vpack.c.b16 %v6704, %v6703
        %v6714 = vpack.c.b16 %v6706, %v6705
        %6723 = vmatprep.subr.bf16.mxu0 0
        %6724 = vmatpush1.bf16.msra.mxu0 %v6714
        %6725 = vmatprep.subr.bf16.mxu0 0
        %6726 = vmatpush1.bf16.msra.mxu0 %v6713
        %6727 = vmatprep.subr.bf16.mxu0 0
        %6728 = vmatpush1.bf16.msra.mxu0 %v6712
        %6729 = vmatprep.subr.bf16.mxu0 0
        %6730 = vmatpush1.bf16.msra.mxu0 %v6711
        %6731 = vmatprep.subr.bf16.mxu0 0
        %6732 = vmatpush1.bf16.msra.mxu0 %v6710
        %6733 = vmatprep.subr.bf16.mxu0 0
        %6734 = vmatpush1.bf16.msra.mxu0 %v6709
        %6735 = vmatprep.subr.bf16.mxu0 0
        %6736 = vmatpush1.bf16.msra.mxu0 %v6708
        %6737 = vmatprep.subr.bf16.mxu0 0
        %6738 = vmatpush1.bf16.msra.mxu0 %v6707
        %6739 = vmatprep.subr.bf16.mxu0 0
        %6740 = vmatpush2.bf16.msra.mxu0 0
        %6741 = vmatprep.subr.bf16.mxu0 0
        %6742 = vmatpush2.bf16.msra.mxu0 0
        %6743 = vmatprep.subr.bf16.mxu0 0
        %6744 = vmatpush2.bf16.msra.mxu0 0
        %6745 = vmatprep.subr.bf16.mxu0 0
        %6746 = vmatpush2.bf16.msra.mxu0 0
        %6747 = vmatprep.subr.bf16.mxu0 0
        %6748 = vmatpush2.bf16.msra.mxu0 0
        %6749 = vmatprep.subr.bf16.mxu0 0
        %6750 = vmatpush2.bf16.msra.mxu0 0
        %6751 = vmatprep.subr.bf16.mxu0 0
        %6752 = vmatpush2.bf16.msra.mxu0 0
        %6753 = vmatprep.subr.bf16.mxu0 0
        %6754 = vmatpush2.bf16.msra.mxu0 0
        %6755 = vmatprep.mubr.bf16.mxu0 0
        %6756 = vmatmul.mubr.bf16.gmra.mxu0 %v6673
        %v6757 = vpop.f32.mrf.mxu0
        %v6758 = vadd.f32 %v6663, %v6757
        %v6759 = vpop.f32.mrf.mxu0
        %v6760 = vpop.f32.mrf.mxu0
        %v6761 = vadd.f32 %v6666, %v6760
        %v6762 = vpop.f32.mrf.mxu0
        %6763 = vdwg.mxu0
        %v6764 = vld [vmem:[#allocation6] sm:$0xc]
        %v6765 = vld [vmem:[#allocation6 + $0x4] sm:$0xf]
        %s6766 = scalar_lea.vmem [#allocation14], 128
        %v6767 = vld [vmem:[%s6766] sm:$0xf]
        %v6768 = vld [vmem:[%s6766 + $0x4] sm:$0xf]
        %v6769 = vld [vmem:[%s6766 + $0x8] sm:$0xf]
        %v6770 = vld [vmem:[%s6766 + $0xc] sm:$0xf]
        %v6771 = vld [vmem:[%s6766 + $0x10] sm:$0xf]
        %v6772 = vld [vmem:[%s6766 + $0x14] sm:$0xf]
        %v6773 = vld [vmem:[%s6766 + $0x18] sm:$0xf]
        %v6774 = vld [vmem:[%s6766 + $0x1c] sm:$0xf]
        %v6775 = vld [vmem:[%s6766 + $0x20] sm:$0xf]
        %v6776 = vld [vmem:[%s6766 + $0x24] sm:$0xf]
        %v6777 = vld [vmem:[%s6766 + $0x28] sm:$0xf]
        %v6778 = vld [vmem:[%s6766 + $0x2c] sm:$0xf]
        %v6779 = vld [vmem:[%s6766 + $0x30] sm:$0xf]
        %v6780 = vld [vmem:[%s6766 + $0x34] sm:$0xf]
        %v6781 = vld [vmem:[%s6766 + $0x38] sm:$0xf]
        %v6782 = vld [vmem:[%s6766 + $0x3c] sm:$0xf]
        %v6785 = vunpack.c.l.b16 %v6764
        %v6786 = vunpack.c.l.b16 %v6765
        %v6787 = vpack.c.b16 %v6786, %v6785
        %v6788 = vrot.slane %v6787, 2
        %v6806 = vunpack.c.l.b16 %v6767
        %v6807 = vunpack.c.l.b16 %v6768
        %v6808 = vunpack.c.l.b16 %v6769
        %v6809 = vunpack.c.l.b16 %v6770
        %v6810 = vunpack.c.l.b16 %v6771
        %v6811 = vunpack.c.l.b16 %v6772
        %v6812 = vunpack.c.l.b16 %v6773
        %v6813 = vunpack.c.l.b16 %v6774
        %v6814 = vunpack.c.l.b16 %v6775
        %v6815 = vunpack.c.l.b16 %v6776
        %v6816 = vunpack.c.l.b16 %v6777
        %v6817 = vunpack.c.l.b16 %v6778
        %v6818 = vunpack.c.l.b16 %v6779
        %v6819 = vunpack.c.l.b16 %v6780
        %v6820 = vunpack.c.l.b16 %v6781
        %v6821 = vunpack.c.l.b16 %v6782
        %v6822 = vpack.c.b16 %v6807, %v6806
        %v6823 = vpack.c.b16 %v6809, %v6808
        %v6824 = vpack.c.b16 %v6811, %v6810
        %v6825 = vpack.c.b16 %v6813, %v6812
        %v6826 = vpack.c.b16 %v6815, %v6814
        %v6827 = vpack.c.b16 %v6817, %v6816
        %v6828 = vpack.c.b16 %v6819, %v6818
        %v6829 = vpack.c.b16 %v6821, %v6820
        %6838 = vmatprep.subr.bf16.mxu0 0
        %6839 = vmatpush1.bf16.msra.mxu0 %v6829
        %6840 = vmatprep.subr.bf16.mxu0 0
        %6841 = vmatpush1.bf16.msra.mxu0 %v6828
        %6842 = vmatprep.subr.bf16.mxu0 0
        %6843 = vmatpush1.bf16.msra.mxu0 %v6827
        %6844 = vmatprep.subr.bf16.mxu0 0
        %6845 = vmatpush1.bf16.msra.mxu0 %v6826
        %6846 = vmatprep.subr.bf16.mxu0 0
        %6847 = vmatpush1.bf16.msra.mxu0 %v6825
        %6848 = vmatprep.subr.bf16.mxu0 0
        %6849 = vmatpush1.bf16.msra.mxu0 %v6824
        %6850 = vmatprep.subr.bf16.mxu0 0
        %6851 = vmatpush1.bf16.msra.mxu0 %v6823
        %6852 = vmatprep.subr.bf16.mxu0 0
        %6853 = vmatpush1.bf16.msra.mxu0 %v6822
        %6854 = vmatprep.subr.bf16.mxu0 0
        %6855 = vmatpush2.bf16.msra.mxu0 0
        %6856 = vmatprep.subr.bf16.mxu0 0
        %6857 = vmatpush2.bf16.msra.mxu0 0
        %6858 = vmatprep.subr.bf16.mxu0 0
        %6859 = vmatpush2.bf16.msra.mxu0 0
        %6860 = vmatprep.subr.bf16.mxu0 0
        %6861 = vmatpush2.bf16.msra.mxu0 0
        %6862 = vmatprep.subr.bf16.mxu0 0
        %6863 = vmatpush2.bf16.msra.mxu0 0
        %6864 = vmatprep.subr.bf16.mxu0 0
        %6865 = vmatpush2.bf16.msra.mxu0 0
        %6866 = vmatprep.subr.bf16.mxu0 0
        %6867 = vmatpush2.bf16.msra.mxu0 0
        %6868 = vmatprep.subr.bf16.mxu0 0
        %6869 = vmatpush2.bf16.msra.mxu0 0
        %6870 = vmatprep.mubr.bf16.mxu0 0
        %6871 = vmatmul.mubr.bf16.gmra.mxu0 %v6788
        %v6872 = vpop.f32.mrf.mxu0
        %v6873 = vadd.f32 0.0, %v6872
        %v6874 = vpop.f32.mrf.mxu0
        %v6875 = vpop.f32.mrf.mxu0
        %v6876 = vadd.f32 0.0, %v6875
        %v6877 = vpop.f32.mrf.mxu0
        %6878 = vdwg.mxu0
        %v6879 = vadd.f32 %v6758, %v6873
        %v6880 = vadd.f32 %v6761, %v6876
        %v6881 = vld [vmem:[%s17] sm:$0x1]
        %v6883 = vlaneseq
        %v6884 = vshrl.u32 %v6883, 7
        %v6885 = vsub.s32 0, %v6884
        %v6886 = vrot.slane %v6881, %v6885
        %v6888 = vadd.f32 %v6879, %v6886
        %v6889 = vadd.f32 %v6880, %v6886
        %vm6890 = vcmp.gt.f32.partialorder %v6888, 0.0
        %vm6891 = vcmp.gt.f32.partialorder %v6889, 0.0
        %v6892 = vmin.f32 %v6888, 0.0
        %v6893 = vmin.f32 %v6889, 0.0
        %v6894 = vmul.f32 %v6892, 1.442695
        %v6895 = vpow.pop %v6894
        %v6896 = vmul.f32 %v6893, 1.442695
        %v6897 = vpow.pop %v6896
        %v6898 = vsub.f32 %v6895, 1.0
        %v6899 = vsub.f32 %v6897, 1.0
        %v6900 = vsel %vm6890, %v6888, %v6898
        %v6901 = vsel %vm6891, %v6889, %v6899
        %v6902 = vld [vmem:[%s18] sm:$0x1]
        %v6903 = vpack.c.bf16 %v6901, %v6900
        %vm6904 = vcmask 97280
        %v6906 = vsel %vm6904, %v6902, 0
        %vm6908 = vcmask 1045504
        %v6910 = vsel %vm6908, %v6903, 0
        %6912 = vmatprep.subr.bf16.mxu0 0
        %6913 = vmatpush1.bf16.msra.mxu0 0
        %6914 = vmatprep.subr.bf16.mxu0 0
        %6915 = vmatpush1.bf16.msra.mxu0 0
        %6916 = vmatprep.subr.bf16.mxu0 0
        %6917 = vmatpush1.bf16.msra.mxu0 0
        %6918 = vmatprep.subr.bf16.mxu0 0
        %6919 = vmatpush1.bf16.msra.mxu0 0
        %6920 = vmatprep.subr.bf16.mxu0 0
        %6921 = vmatpush1.bf16.msra.mxu0 0
        %6922 = vmatprep.subr.bf16.mxu0 0
        %6923 = vmatpush1.bf16.msra.mxu0 0
        %6924 = vmatprep.subr.bf16.mxu0 0
        %6925 = vmatpush1.bf16.msra.mxu0 0
        %6926 = vmatprep.subr.bf16.mxu0 0
        %6927 = vmatpush1.bf16.msra.mxu0 %v6910
        %6928 = vmatprep.subr.bf16.mxu0 0
        %6929 = vmatpush2.bf16.msra.mxu0 0
        %6930 = vmatprep.subr.bf16.mxu0 0
        %6931 = vmatpush2.bf16.msra.mxu0 0
        %6932 = vmatprep.subr.bf16.mxu0 0
        %6933 = vmatpush2.bf16.msra.mxu0 0
        %6934 = vmatprep.subr.bf16.mxu0 0
        %6935 = vmatpush2.bf16.msra.mxu0 0
        %6936 = vmatprep.subr.bf16.mxu0 0
        %6937 = vmatpush2.bf16.msra.mxu0 0
        %6938 = vmatprep.subr.bf16.mxu0 0
        %6939 = vmatpush2.bf16.msra.mxu0 0
        %6940 = vmatprep.subr.bf16.mxu0 0
        %6941 = vmatpush2.bf16.msra.mxu0 0
        %6942 = vmatprep.subr.bf16.mxu0 0
        %6943 = vmatpush2.bf16.msra.mxu0 0
        %6944 = vmatprep.mubr.bf16.mxu0 0
        %6945 = vmatmul.mubr.bf16.gmra.mxu0 %v6906
        %v6946 = vpop.f32.mrf.mxu0
        %v6947 = vadd.f32 0.0, %v6946
        %v6948 = vpop.f32.mrf.mxu0
        %v6949 = vpop.f32.mrf.mxu0
        %v6950 = vpop.f32.mrf.mxu0
        %6951 = vdwg.mxu0
        %v6952 = vpack.c.bf16 %v6947, %v6947
        %v6953 = vld [vmem:[%s19] sm:$0xf]
        %v6954 = vld [vmem:[%s19 + $0x4] sm:$0xf]
        %v6955 = vld [vmem:[%s19 + $0x8] sm:$0xf]
        %v6956 = vld [vmem:[%s19 + $0xc] sm:$0xf]
        %v6957 = vld [vmem:[%s19 + $0x10] sm:$0xf]
        %v6958 = vld [vmem:[%s19 + $0x14] sm:$0xf]
        %v6959 = vld [vmem:[%s19 + $0x18] sm:$0xf]
        %v6960 = vld [vmem:[%s19 + $0x1c] sm:$0xf]
        %v6961 = vld [vmem:[%s19 + $0x20] sm:$0xf]
        %v6962 = vld [vmem:[%s19 + $0x24] sm:$0xf]
        %v6963 = vld [vmem:[%s19 + $0x28] sm:$0xf]
        %v6964 = vld [vmem:[%s19 + $0x2c] sm:$0xf]
        %v6965 = vld [vmem:[%s19 + $0x30] sm:$0xf]
        %v6966 = vld [vmem:[%s19 + $0x34] sm:$0xf]
        %v6967 = vld [vmem:[%s19 + $0x38] sm:$0xf]
        %v6968 = vld [vmem:[%s19 + $0x3c] sm:$0xf]
        %v6985 = vunpack.c.l.b16 %v6953
        %v6986 = vunpack.c.l.b16 %v6954
        %v6987 = vunpack.c.l.b16 %v6955
        %v6988 = vunpack.c.l.b16 %v6956
        %v6989 = vunpack.c.l.b16 %v6957
        %v6990 = vunpack.c.l.b16 %v6958
        %v6991 = vunpack.c.l.b16 %v6959
        %v6992 = vunpack.c.l.b16 %v6960
        %v6993 = vunpack.c.l.b16 %v6961
        %v6994 = vunpack.c.l.b16 %v6962
        %v6995 = vunpack.c.l.b16 %v6963
        %v6996 = vunpack.c.l.b16 %v6964
        %v6997 = vunpack.c.l.b16 %v6965
        %v6998 = vunpack.c.l.b16 %v6966
        %v6999 = vunpack.c.l.b16 %v6967
        %v7000 = vunpack.c.l.b16 %v6968
        %v7001 = vpack.c.b16 %v6986, %v6985
        %v7002 = vpack.c.b16 %v6988, %v6987
        %v7003 = vpack.c.b16 %v6990, %v6989
        %v7004 = vpack.c.b16 %v6992, %v6991
        %v7005 = vpack.c.b16 %v6994, %v6993
        %v7006 = vpack.c.b16 %v6996, %v6995
        %v7007 = vpack.c.b16 %v6998, %v6997
        %v7008 = vpack.c.b16 %v7000, %v6999
        %7017 = vmatprep.subr.bf16.mxu0 0
        %7018 = vmatpush1.bf16.msra.mxu0 %v7008
        %7019 = vmatprep.subr.bf16.mxu0 0
        %7020 = vmatpush1.bf16.msra.mxu0 %v7007
        %7021 = vmatprep.subr.bf16.mxu0 0
        %7022 = vmatpush1.bf16.msra.mxu0 %v7006
        %7023 = vmatprep.subr.bf16.mxu0 0
        %7024 = vmatpush1.bf16.msra.mxu0 %v7005
        %7025 = vmatprep.subr.bf16.mxu0 0
        %7026 = vmatpush1.bf16.msra.mxu0 %v7004
        %7027 = vmatprep.subr.bf16.mxu0 0
        %7028 = vmatpush1.bf16.msra.mxu0 %v7003
        %7029 = vmatprep.subr.bf16.mxu0 0
        %7030 = vmatpush1.bf16.msra.mxu0 %v7002
        %7031 = vmatprep.subr.bf16.mxu0 0
        %7032 = vmatpush1.bf16.msra.mxu0 %v7001
        %7033 = vmatprep.subr.bf16.mxu0 0
        %7034 = vmatpush2.bf16.msra.mxu0 0
        %7035 = vmatprep.subr.bf16.mxu0 0
        %7036 = vmatpush2.bf16.msra.mxu0 0
        %7037 = vmatprep.subr.bf16.mxu0 0
        %7038 = vmatpush2.bf16.msra.mxu0 0
        %7039 = vmatprep.subr.bf16.mxu0 0
        %7040 = vmatpush2.bf16.msra.mxu0 0
        %7041 = vmatprep.subr.bf16.mxu0 0
        %7042 = vmatpush2.bf16.msra.mxu0 0
        %7043 = vmatprep.subr.bf16.mxu0 0
        %7044 = vmatpush2.bf16.msra.mxu0 0
        %7045 = vmatprep.subr.bf16.mxu0 0
        %7046 = vmatpush2.bf16.msra.mxu0 0
        %7047 = vmatprep.subr.bf16.mxu0 0
        %7048 = vmatpush2.bf16.msra.mxu0 0
        %7049 = vmatprep.mubr.bf16.mxu0 0
        %7050 = vmatmul.mubr.bf16.gmra.mxu0 %v6952
        %v7051 = vpop.f32.mrf.mxu0
        %v7052 = vadd.f32 0.0, %v7051
        %v7053 = vpop.f32.mrf.mxu0
        %v7054 = vpop.f32.mrf.mxu0
        %v7055 = vpop.f32.mrf.mxu0
        %7056 = vdwg.mxu0
        %vm7057 = vcmp.gt.f32.partialorder %v7052, 0.0
        %v7058 = vmin.f32 %v7052, 0.0
        %v7059 = vmul.f32 %v7058, 1.442695
        %v7060 = vpow.pop %v7059
        %v7061 = vsub.f32 %v7060, 1.0
        %v7062 = vsel %vm7057, %v7052, %v7061
        %v7063 = vpack.c.bf16 %v7062, %v7062
        %v7064 = vld [vmem:[%s20] sm:$0xf]
        %v7065 = vld [vmem:[%s20 + $0x4] sm:$0xf]
        %v7066 = vld [vmem:[%s20 + $0x8] sm:$0xf]
        %v7067 = vld [vmem:[%s20 + $0xc] sm:$0xf]
        %v7068 = vld [vmem:[%s21] sm:$0x1]
        %v7070 = vlaneseq
        %v7071 = vshrl.u32 %v7070, 7
        %v7072 = vsub.s32 0, %v7071
        %v7073 = vrot.slane %v7068, %v7072
        %v7079 = vunpack.c.l.b16 %v7064
        %v7080 = vunpack.c.l.b16 %v7065
        %v7081 = vunpack.c.l.b16 %v7066
        %v7082 = vunpack.c.l.b16 %v7067
        %v7083 = vpack.c.b16 %v7080, %v7079
        %v7084 = vpack.c.b16 %v7082, %v7081
        %v7088 = vsel %vm2563, %v7063, 0
        %7090 = vmatprep.subr.bf16.mxu0 0
        %7091 = vmatpush1.bf16.msra.mxu0 0
        %7092 = vmatprep.subr.bf16.mxu0 0
        %7093 = vmatpush1.bf16.msra.mxu0 0
        %7094 = vmatprep.subr.bf16.mxu0 0
        %7095 = vmatpush1.bf16.msra.mxu0 0
        %7096 = vmatprep.subr.bf16.mxu0 0
        %7097 = vmatpush1.bf16.msra.mxu0 0
        %7098 = vmatprep.subr.bf16.mxu0 0
        %7099 = vmatpush1.bf16.msra.mxu0 0
        %7100 = vmatprep.subr.bf16.mxu0 0
        %7101 = vmatpush1.bf16.msra.mxu0 0
        %7102 = vmatprep.subr.bf16.mxu0 0
        %7103 = vmatpush1.bf16.msra.mxu0 %v7084
        %7104 = vmatprep.subr.bf16.mxu0 0
        %7105 = vmatpush1.bf16.msra.mxu0 %v7083
        %7106 = vmatprep.subr.bf16.mxu0 0
        %7107 = vmatpush2.bf16.msra.mxu0 0
        %7108 = vmatprep.subr.bf16.mxu0 0
        %7109 = vmatpush2.bf16.msra.mxu0 0
        %7110 = vmatprep.subr.bf16.mxu0 0
        %7111 = vmatpush2.bf16.msra.mxu0 0
        %7112 = vmatprep.subr.bf16.mxu0 0
        %7113 = vmatpush2.bf16.msra.mxu0 0
        %7114 = vmatprep.subr.bf16.mxu0 0
        %7115 = vmatpush2.bf16.msra.mxu0 0
        %7116 = vmatprep.subr.bf16.mxu0 0
        %7117 = vmatpush2.bf16.msra.mxu0 0
        %7118 = vmatprep.subr.bf16.mxu0 0
        %7119 = vmatpush2.bf16.msra.mxu0 0
        %7120 = vmatprep.subr.bf16.mxu0 0
        %7121 = vmatpush2.bf16.msra.mxu0 0
        %7122 = vmatprep.mubr.bf16.mxu0 0
        %7123 = vmatmul.mubr.bf16.gmra.mxu0 %v7088
        %v7124 = vpop.f32.mrf.mxu0
        %v7125 = vadd.f32 %v7073, %v7124
        %v7126 = vpop.f32.mrf.mxu0
        %v7127 = vpop.f32.mrf.mxu0
        %v7128 = vpop.f32.mrf.mxu0
        %7129 = vdwg.mxu0
        %vm7130 = vcmp.gt.f32.partialorder %v7125, 0.0
        %v7131 = vmin.f32 %v7125, 0.0
        %v7132 = vmul.f32 %v7131, 1.442695
        %v7133 = vpow.pop %v7132
        %v7134 = vsub.f32 %v7133, 1.0
        %v7135 = vsel %vm7130, %v7125, %v7134
        %v7136 = vpack.c.bf16 %v7135, %v7135
        %v7137 = vld [vmem:[%s22] sm:$0xf]
        %v7138 = vld [vmem:[%s22 + $0x4] sm:$0x1]
        %v7139 = vld [vmem:[%s23] sm:$0x1]
        %v7141 = vlaneseq
        %v7142 = vshrl.u32 %v7141, 7
        %v7143 = vsub.s32 0, %v7142
        %v7144 = vrot.slane %v7139, %v7143
        %v7148 = vunpack.c.l.b16 %v7137
        %v7149 = vunpack.c.l.b16 %v7138
        %v7150 = vpack.c.b16 %v7149, %v7148
        %vm7151 = vcmask 80896
        %v7153 = vsel %vm7151, %v7136, 0
        %vm7155 = vcmask 1044480
        %v7157 = vsel %vm7155, %v7150, 0
        %7159 = vmatprep.subr.bf16.mxu0 0
        %7160 = vmatpush1.bf16.msra.mxu0 0
        %7161 = vmatprep.subr.bf16.mxu0 0
        %7162 = vmatpush1.bf16.msra.mxu0 0
        %7163 = vmatprep.subr.bf16.mxu0 0
        %7164 = vmatpush1.bf16.msra.mxu0 0
        %7165 = vmatprep.subr.bf16.mxu0 0
        %7166 = vmatpush1.bf16.msra.mxu0 0
        %7167 = vmatprep.subr.bf16.mxu0 0
        %7168 = vmatpush1.bf16.msra.mxu0 0
        %7169 = vmatprep.subr.bf16.mxu0 0
        %7170 = vmatpush1.bf16.msra.mxu0 0
        %7171 = vmatprep.subr.bf16.mxu0 0
        %7172 = vmatpush1.bf16.msra.mxu0 0
        %7173 = vmatprep.subr.bf16.mxu0 0
        %7174 = vmatpush1.bf16.msra.mxu0 %v7157
        %7175 = vmatprep.subr.bf16.mxu0 0
        %7176 = vmatpush2.bf16.msra.mxu0 0
        %7177 = vmatprep.subr.bf16.mxu0 0
        %7178 = vmatpush2.bf16.msra.mxu0 0
        %7179 = vmatprep.subr.bf16.mxu0 0
        %7180 = vmatpush2.bf16.msra.mxu0 0
        %7181 = vmatprep.subr.bf16.mxu0 0
        %7182 = vmatpush2.bf16.msra.mxu0 0
        %7183 = vmatprep.subr.bf16.mxu0 0
        %7184 = vmatpush2.bf16.msra.mxu0 0
        %7185 = vmatprep.subr.bf16.mxu0 0
        %7186 = vmatpush2.bf16.msra.mxu0 0
        %7187 = vmatprep.subr.bf16.mxu0 0
        %7188 = vmatpush2.bf16.msra.mxu0 0
        %7189 = vmatprep.subr.bf16.mxu0 0
        %7190 = vmatpush2.bf16.msra.mxu0 0
        %7191 = vmatprep.mubr.bf16.mxu0 0
        %7192 = vmatmul.mubr.bf16.gmra.mxu0 %v7153
        %v7193 = vpop.f32.mrf.mxu0
        %v7194 = vadd.f32 %v7144, %v7193
        %v7195 = vpop.f32.mrf.mxu0
        %v7196 = vpop.f32.mrf.mxu0
        %v7197 = vpop.f32.mrf.mxu0
        %7198 = vdwg.mxu0
        %vm7199 = vcmask 9216
        %7200 = vst.msk [vmem:[%s808] sm:$0x3] %vm7199, %v7194
        %p7201 = scmp.lt.s32.totalorder %s38, 1
        %s7202 = scalar_select %p7201, %s38, 1
        %s7203 = smul.addr %s7202, 2
        %s7204 = scalar_lea.vmem %s24, %s7203
        // Predicated region
        $region137: #{net_forward.1} parent=115 // pred_check
          %p7205 = pneg %p565
        $region138: #{net_forward.1} parent=115 // pred_check_branch
          %7207 = sbr.rel (%p7205) target = $region140
        $region139: #{net_forward.1} parent=115 // pred_region
          _
        $region140: #{net_forward.1} parent=115 // pred_fallthru
          _
      $region116: #{net_forward.1} parent=5 // pred_fallthru
        _
      %p7208 = scmp.le.s32.totalorder 2, %s33
      // Predicated region
      $region141: #{net_forward.1} parent=5 // pred_check
        %p7209 = pneg %p7208
      $region142: #{net_forward.1} parent=5 // pred_check_branch
        %7211 = sbr.rel (%p7209) target = $region144
      $region143: #{net_forward.1} parent=5 // pred_region
        %s7212 = ssub.s32 %s33, 2
        // Predicated region
        $region145: #{net_forward.1} parent=143 // pred_check
          %p7213 = pneg %p571
        $region146: #{net_forward.1} parent=143 // pred_check_branch
          %7215 = sbr.rel (%p7213) target = $region148
        $region147: #{net_forward.1} parent=143 // pred_region
          %p7216 = scmp.lt.s32.totalorder %s39, 1
          %s7217 = scalar_select %p7216, %s39, 1
          %s7218 = smul.addr %s7217, 2
          %s7219 = scalar_lea.vmem %s24, %s7218
        $region148: #{net_forward.1} parent=143 // pred_fallthru
          _
      $region144: #{net_forward.1} parent=5 // pred_fallthru
        _
    $region6: #{net_forward.1} parent=1 // loop_footer
      %s37 = sadd.s32 1, %s33
    $region7: #{net_forward.1} parent=1 // loop_footer_branch
      %32 = sbr.rel target = $region3
    $region8: #{net_forward.1} parent=1 // loop_exit
      _
    %7220 = vsyncpa [#allocation8], 1
    %s7221 = scalar_lea.sflag [#allocation8], 1
    %7222 = vsyncpa %s7221, 1
    %7223 = vsyncpa [#allocation10], 1
    %7224 = vsyncpa [#allocation13], 1

</llo_original>
